<compile_context>
chip_gen: v7x
topology: tpu7x:2x2x1
jax: 0.10.0
libtpu: 0.0.40
codegen_flags: <defaults>
</compile_context>

<pallas_src>
import functools

import jax
import jax.numpy as jnp
import numpy as np
from jax.experimental import pallas as pl
from jax.experimental.pallas import tpu as pltpu

LN_EPS = 1e-5  # torch.nn.LayerNorm default


def _layernorm(x, g, b):
    # One-pass LayerNorm: E[x] and E[x^2] in a single sweep,
    # var = E[x^2] - E[x]^2 (identical to torch's biased variance).
    mu = jnp.mean(x, axis=-1, keepdims=True)
    mu2 = jnp.mean(x * x, axis=-1, keepdims=True)
    rstd = jax.lax.rsqrt(mu2 - mu * mu + LN_EPS)
    return (x - mu) * rstd * g + b


def _gelu_exact(x):
    # torch.nn.GELU() default (exact, erf-based).
    # TODO(synk): only switch to tanh-approx GELU (EUP) if a measured
    # VALU-bound regime justifies the numerics change vs torch's exact GELU.
    return 0.5 * x * (1.0 + jax.lax.erf(x * np.float32(1.0 / np.sqrt(2.0))))


def _transformer_kernel(bt, n, dim, heads, dim_head, mid_layer,
                        x_ref, ln1g_ref, ln1b_ref, wqkv_ref, wo_ref, bo_ref,
                        ln2g_ref, ln2b_ref, w1_ref, b1_ref, w2_ref, b2_ref,
                        x_out_ref, x_mid_ref):
    inner = heads * dim_head
    dh = dim_head
    m = bt * n
    cdt = jnp.bfloat16  # MXU input dtype
    layer = pl.program_id(1)

    # Seed the VMEM-resident residual stream from the (aliased) input once per
    # batch tile; it is carried across the "layer" grid axis afterwards.
    @pl.when(layer == 0)
    def _():
        x_out_ref[...] = x_ref[...]

    x = x_out_ref[...].reshape(m, dim)  # (M, D) token-major residual, f32

    # ---- PreNorm + Attention + residual ------------------------------------
    xn = _layernorm(x, ln1g_ref[0], ln1b_ref[0])
    # dim_head^-0.5 is pre-folded into the q columns of wqkv at init.
    qkv = jnp.dot(xn.astype(cdt), wqkv_ref[0],
                  preferred_element_type=jnp.float32)          # (M, 3*inner)
    qkv = qkv.astype(cdt)                                      # bf16 MXU inputs
    wo = wo_ref[0]                                             # (inner, dim) bf16

    # Static loop over heads (small, fixed hyperparameter -- unlike the batch
    # tile).  Each iteration is batched over the BT sequences; the head-concat
    # is folded into the output projection (sum_h o_h @ wo_h), so there are no
    # activation transposes or concatenates.
    attn_out = jnp.zeros((m, dim), jnp.float32)
    for h in range(heads):
        q = qkv[:, 0 * inner + h * dh: 0 * inner + (h + 1) * dh].reshape(bt, n, dh)
        k = qkv[:, 1 * inner + h * dh: 1 * inner + (h + 1) * dh].reshape(bt, n, dh)
        v = qkv[:, 2 * inner + h * dh: 2 * inner + (h + 1) * dh].reshape(bt, n, dh)
        s = jnp.einsum("bqd,bkd->bqk", q, k,
                       preferred_element_type=jnp.float32)     # (BT, N, N) f32
        s = s - jnp.max(s, axis=-1, keepdims=True)
        p = jnp.exp(s)                                         # unnormalized
        l = jnp.sum(p, axis=-1, keepdims=True)                 # (BT, N, 1)
        # Deferred softmax normalization: PV on unnormalized bf16 probs, then
        # one O(N*dh) scale by the EUP approximate reciprocal.
        o = jnp.einsum("bqk,bkd->bqd", p.astype(cdt), v,
                       preferred_element_type=jnp.float32)     # (BT, N, dh)
        o = o * pl.reciprocal(l, approx=True)
        attn_out = attn_out + jnp.dot(
            o.reshape(m, dh).astype(cdt), wo[h * dh:(h + 1) * dh, :],
            preferred_element_type=jnp.float32)
    # TODO(synk): nn.Dropout omitted (dropout=0.0 -> identity in forward).
    # TODO(synk): project_out=False (heads==1 and dim_head==dim -> Identity)
    # is not specialized; the output projection Linear is always applied.
    x = x + attn_out + bo_ref[0]

    # ---- PreNorm + FeedForward + residual ----------------------------------
    xn = _layernorm(x, ln2g_ref[0], ln2b_ref[0])
    h1 = jnp.dot(xn.astype(cdt), w1_ref[0],
                 preferred_element_type=jnp.float32) + b1_ref[0]
    h1 = _gelu_exact(h1)
    h2 = jnp.dot(h1.astype(cdt), w2_ref[0],
                 preferred_element_type=jnp.float32) + b2_ref[0]
    x = x + h2

    x_out_ref[...] = x.reshape(bt, n, dim)

    @pl.when(layer == mid_layer)
    def _():
        x_mid_ref[...] = x.reshape(bt, n, dim)


def transformer_forward(x, params, heads, dim_head, mid_layer=2,
                        batch_tile=None):
    b, n, dim = x.shape
    depth = params["wqkv"].shape[0]
    assert 0 <= mid_layer < depth, "x_mid requires depth > mid_layer"

    if batch_tile is None:
        # Default to >= 2 batch tiles so the "parallel" axis can be sharded
        # across v7x's 2 TensorCores.  Single-TC v5e/v6e callers wanting max
        # weight-DMA amortization can pass batch_tile=b explicitly; keep
        # M = batch_tile*n >= 128 (v5e) / 256 (v6e) where the batch allows.
        batch_tile = b // 2 if (b >= 2 and b % 2 == 0) else b
    assert b % batch_tile == 0
    num_bt = b // batch_tile

    weight_order = ["ln1g", "ln1b", "wqkv", "wo", "bo",
                    "ln2g", "ln2b", "w1", "b1", "w2", "b2"]
    weights = [params[k] for k in weight_order]

    def wspec(arr):
        blk = (1,) + arr.shape[1:]
        # TODO(synk): for real ViT sizes on v7x (64 MiB VMEM), tile the weight
        # N dimension (extra grid axis / pltpu.emit_pipeline) instead of
        # loading whole per-layer weights; unnecessary at demo sizes.
        return pl.BlockSpec(blk, lambda i, l: (l, 0, 0))

    x_spec = pl.BlockSpec((batch_tile, n, dim), lambda i, l: (i, 0, 0))
    out_spec = pl.BlockSpec((batch_tile, n, dim), lambda i, l: (i, 0, 0))

    kernel = functools.partial(_transformer_kernel, batch_tile, n, dim, heads,
                               dim_head, mid_layer)

    # VMEM budget: double-buffered per-layer weight set + resident residual /
    # x_mid blocks + largest intermediates.  Only raise the scoped limit above
    # the 32 MiB default when needed; clamp to ~85% of this generation's
    # physical VMEM.
    w_bytes = sum(int(np.prod(w.shape[1:])) * w.dtype.itemsize for w in weights)
    act_bytes = batch_tile * n * dim * 4
    inter_bytes = 4 * batch_tile * n * max(3 * heads * dim_head,
                                           params["w1"].shape[-1]) * 4
    need = 2 * w_bytes + 4 * act_bytes + inter_bytes
    vmem_limit = None
    if need > 32 * 1024 * 1024:
        try:
            vmem_cap = int(pltpu.get_tpu_info().vmem_capacity_bytes)
        except Exception:
            vmem_cap = 64 * 1024 * 1024
        vmem_limit = min(int(need * 1.25), int(vmem_cap * 0.85))

    return pl.pallas_call(
        kernel,
        out_shape=(jax.ShapeDtypeStruct((b, n, dim), jnp.float32),
                   jax.ShapeDtypeStruct((b, n, dim), jnp.float32)),
        grid_spec=pltpu.PrefetchScalarGridSpec(
            num_scalar_prefetch=0,
            grid=(num_bt, depth),
            in_specs=[x_spec] + [wspec(w) for w in weights],
            out_specs=(out_spec, out_spec),
        ),
        input_output_aliases={0: 0},   # x aliases x_out (seeds the residual)
        compiler_params=pltpu.CompilerParams(
            dimension_semantics=("parallel", "arbitrary"),
            vmem_limit_bytes=vmem_limit),
    )(x, *weights)


def transformer_reference(x, params, heads, dim_head, mid_layer=2):
    """Pure-JAX reference mirroring the PyTorch forward (dropout=0) with the
    kernel's mixed-precision policy (bf16 MXU inputs, f32 accumulation, f32
    LayerNorm/softmax/GELU).  The dim_head^-0.5 scale is pre-folded into the
    q columns of params["wqkv"]."""
    depth = params["wqkv"].shape[0]
    inner = heads * dim_head
    cdt = jnp.bfloat16
    b, n, dim = x.shape
    mlp_dim = params["w1"].shape[-1]
    x_mid = None
    for l in range(depth):
        xn = _layernorm(x, params["ln1g"][l], params["ln1b"][l])
        qkv = jnp.dot(xn.astype(cdt).reshape(b * n, dim), params["wqkv"][l],
                      preferred_element_type=jnp.float32).reshape(b, n, 3 * inner)
        qkv = qkv.astype(cdt)
        q = qkv[..., :inner].reshape(b, n, heads, dim_head)
        k = qkv[..., inner:2 * inner].reshape(b, n, heads, dim_head)
        v = qkv[..., 2 * inner:].reshape(b, n, heads, dim_head)
        s = jnp.einsum("bqhd,bkhd->bhqk", q, k,
                       preferred_element_type=jnp.float32)
        s = s - jnp.max(s, axis=-1, keepdims=True)
        p = jnp.exp(s)
        lsum = jnp.sum(p, axis=-1, keepdims=True)
        o = jnp.einsum("bhqk,bkhd->bhqd", p.astype(cdt), v,
                       preferred_element_type=jnp.float32) / lsum
        o = o.transpose(0, 2, 1, 3).reshape(b, n, inner)
        o = jnp.dot(o.astype(cdt).reshape(b * n, inner), params["wo"][l],
                    preferred_element_type=jnp.float32).reshape(b, n, dim)
        x = x + o + params["bo"][l]
        xn = _layernorm(x, params["ln2g"][l], params["ln2b"][l])
        h = jnp.dot(xn.astype(cdt).reshape(b * n, dim), params["w1"][l],
                    preferred_element_type=jnp.float32).reshape(b, n, mlp_dim)
        h = _gelu_exact(h + params["b1"][l])
        h = jnp.dot(h.astype(cdt).reshape(b * n, mlp_dim), params["w2"][l],
                    preferred_element_type=jnp.float32).reshape(b, n, dim)
        x = x + h + params["b2"][l]
        if l == mid_layer:
            x_mid = x
    return x, x_mid


def init_params(key, depth, dim, heads, dim_head, mlp_dim):
    inner = heads * dim_head
    s = 0.02
    scale = np.float32(dim_head ** -0.5)
    ks = jax.random.split(key, 7)
    f32, bf16 = jnp.float32, jnp.bfloat16
    wqkv = jax.random.normal(ks[0], (depth, dim, 3 * inner), f32) * s
    # Pre-fold the dim_head^-0.5 attention scale into the q columns (saves an
    # O(M*inner) VPU multiply per layer at runtime).
    wqkv = wqkv.at[:, :, :inner].multiply(scale)
    return {
        # LayerNorm: torch default init (gamma=1, beta=0); stored (depth,1,dim)
        "ln1g": jnp.ones((depth, 1, dim), f32),
        "ln1b": jnp.zeros((depth, 1, dim), f32),
        # Linear weights pre-transposed to (in, out), stored bf16 for the MXU.
        "wqkv": wqkv.astype(bf16),
        "wo":   (jax.random.normal(ks[1], (depth, inner, dim), f32) * s).astype(bf16),
        "bo":   jax.random.normal(ks[2], (depth, 1, dim), f32) * s,
        "ln2g": jnp.ones((depth, 1, dim), f32),
        "ln2b": jnp.zeros((depth, 1, dim), f32),
        "w1":   (jax.random.normal(ks[3], (depth, dim, mlp_dim), f32) * s).astype(bf16),
        "b1":   jax.random.normal(ks[4], (depth, 1, mlp_dim), f32) * s,
        "w2":   (jax.random.normal(ks[5], (depth, mlp_dim, dim), f32) * s).astype(bf16),
        "b2":   jax.random.normal(ks[6], (depth, 1, dim), f32) * s,
    }


if __name__ == "__main__":
    # Lane/sublane-friendly demo config: dim=128, inner=128, mlp=256, N=16,
    # depth=4 (>=3 so x_mid at layer index 2 exists).  B=16 so the default
    # two batch tiles give M = 8*16 = 128 rows per weight matmul (fills a v5e
    # MXU wave; the full-batch path below doubles that).
    B, N, DIM = 16, 16, 128
    DEPTH, HEADS, DIM_HEAD, MLP_DIM = 4, 4, 32, 256

    key = jax.random.PRNGKey(0)
    k_x, k_p = jax.random.split(key)
    x = jax.random.normal(k_x, (B, N, DIM), jnp.float32)
    params = init_params(k_p, DEPTH, DIM, HEADS, DIM_HEAD, MLP_DIM)

    # Default: two batch tiles ("parallel" axis >= 2 for v7x's two TCs).
    fwd = jax.jit(functools.partial(transformer_forward,
                                    heads=HEADS, dim_head=DIM_HEAD))
    out, out_mid = fwd(x, params)
    jax.block_until_ready((out, out_mid))

    # Full-batch tile: maximum weight-DMA amortization (single-TC v5e/v6e).
    fwd_full = jax.jit(functools.partial(transformer_forward, heads=HEADS,
                                         dim_head=DIM_HEAD, batch_tile=B))
    out_f, out_mid_f = fwd_full(x, params)
    jax.block_until_ready((out_f, out_mid_f))

    ref_out, ref_mid = transformer_reference(x, params, HEADS, DIM_HEAD)
    for got, ref in ((out, ref_out), (out_mid, ref_mid),
                     (out_f, ref_out), (out_mid_f, ref_mid)):
        assert np.allclose(np.asarray(got), np.asarray(ref),
                           atol=2e-2, rtol=2e-2)
    print("KERNEL_OK")
</pallas_src>

<mosaic_0001>
module attributes {stable_mosaic.version = 11 : i64} {
  func.func @_transformer_kernel(%arg0: i32, %arg1: i32, %arg2: memref<8x16x128xf32, #tpu.memory_space<vmem>>, %arg3: memref<1x1x128xf32, #tpu.memory_space<vmem>>, %arg4: memref<1x1x128xf32, #tpu.memory_space<vmem>>, %arg5: memref<1x128x384xbf16, #tpu.memory_space<vmem>>, %arg6: memref<1x128x128xbf16, #tpu.memory_space<vmem>>, %arg7: memref<1x1x128xf32, #tpu.memory_space<vmem>>, %arg8: memref<1x1x128xf32, #tpu.memory_space<vmem>>, %arg9: memref<1x1x128xf32, #tpu.memory_space<vmem>>, %arg10: memref<1x128x256xbf16, #tpu.memory_space<vmem>>, %arg11: memref<1x1x256xf32, #tpu.memory_space<vmem>>, %arg12: memref<1x256x128xbf16, #tpu.memory_space<vmem>>, %arg13: memref<1x1x128xf32, #tpu.memory_space<vmem>>, %arg14: memref<8x16x128xf32, #tpu.memory_space<vmem>>, %arg15: memref<8x16x128xf32, #tpu.memory_space<vmem>>) attributes {dimension_semantics = [#tpu.dimension_semantics<parallel>, #tpu.dimension_semantics<arbitrary>], iteration_bounds = array<i64: 2, 4>, scalar_prefetch = 0 : i64, scratch_operands = 0 : i64, tpu.core_type = #tpu.core_type<tc>, window_params = [{transform_indices = @transform_0, window_bounds = array<i64: 8, 16, 128>}, {transform_indices = @transform_1, window_bounds = array<i64: 1, 1, 128>}, {transform_indices = @transform_2, window_bounds = array<i64: 1, 1, 128>}, {transform_indices = @transform_3, window_bounds = array<i64: 1, 128, 384>}, {transform_indices = @transform_4, window_bounds = array<i64: 1, 128, 128>}, {transform_indices = @transform_5, window_bounds = array<i64: 1, 1, 128>}, {transform_indices = @transform_6, window_bounds = array<i64: 1, 1, 128>}, {transform_indices = @transform_7, window_bounds = array<i64: 1, 1, 128>}, {transform_indices = @transform_8, window_bounds = array<i64: 1, 128, 256>}, {transform_indices = @transform_9, window_bounds = array<i64: 1, 1, 256>}, {transform_indices = @transform_10, window_bounds = array<i64: 1, 256, 128>}, {transform_indices = @transform_11, window_bounds = array<i64: 1, 1, 128>}, {transform_indices = @transform_12, window_bounds = array<i64: 8, 16, 128>}, {transform_indices = @transform_13, window_bounds = array<i64: 8, 16, 128>}]} {
    %c0_i32 = arith.constant 0 : i32
    %0 = arith.cmpi eq, %arg1, %c0_i32 : i32
    %1 = arith.extui %0 : i1 to i32
    %c0_i32_0 = arith.constant 0 : i32
    %2 = arith.cmpi ne, %1, %c0_i32_0 : i32
    scf.if %2 {
      %c0_76 = arith.constant 0 : index
      %c0_77 = arith.constant 0 : index
      %c0_78 = arith.constant 0 : index
      %196 = vector.load %arg2[%c0_76, %c0_77, %c0_78] : memref<8x16x128xf32, #tpu.memory_space<vmem>>, vector<8x16x128xf32>
      %c0_79 = arith.constant 0 : index
      %c0_80 = arith.constant 0 : index
      %c0_81 = arith.constant 0 : index
      %197 = vector.load %arg14[%c0_79, %c0_80, %c0_81] : memref<8x16x128xf32, #tpu.memory_space<vmem>>, vector<8x16x128xf32>
      tpu.vector_store %arg14[%c0_79, %c0_80, %c0_81], %196 {strides = array<i32>} : memref<8x16x128xf32, #tpu.memory_space<vmem>>, vector<8x16x128xf32>,
    } else {
    }
    %c0 = arith.constant 0 : index
    %c0_1 = arith.constant 0 : index
    %c0_2 = arith.constant 0 : index
    %3 = vector.load %arg14[%c0, %c0_1, %c0_2] : memref<8x16x128xf32, #tpu.memory_space<vmem>>, vector<8x16x128xf32>
    %4 = vector.shape_cast %3 : vector<8x16x128xf32> to vector<128x128xf32>
    %c0_3 = arith.constant 0 : index
    %c0_4 = arith.constant 0 : index
    %c0_5 = arith.constant 0 : index
    %5 = vector.load %arg3[%c0_3, %c0_4, %c0_5] : memref<1x1x128xf32, #tpu.memory_space<vmem>>, vector<1x1x128xf32>
    %6 = vector.shape_cast %5 : vector<1x1x128xf32> to vector<1x128xf32>
    %c0_6 = arith.constant 0 : index
    %c0_7 = arith.constant 0 : index
    %c0_8 = arith.constant 0 : index
    %7 = vector.load %arg4[%c0_6, %c0_7, %c0_8] : memref<1x1x128xf32, #tpu.memory_space<vmem>>, vector<1x1x128xf32>
    %8 = vector.shape_cast %7 : vector<1x1x128xf32> to vector<1x128xf32>
    %cst = arith.constant dense<0.000000e+00> : vector<128xf32>
    %9 = vector.multi_reduction <add>, %4, %cst [1] : vector<128x128xf32> to vector<128xf32>
    %10 = vector.shape_cast %9 : vector<128xf32> to vector<128x1xf32>
    %cst_9 = arith.constant 1.280000e+02 : f32
    %11 = vector.broadcast %cst_9 : f32 to vector<128x1xf32>
    %12 = arith.divf %10, %11 : vector<128x1xf32>
    %13 = arith.mulf %4, %4 : vector<128x128xf32>
    %cst_10 = arith.constant dense<0.000000e+00> : vector<128xf32>
    %14 = vector.multi_reduction <add>, %13, %cst_10 [1] : vector<128x128xf32> to vector<128xf32>
    %15 = vector.shape_cast %14 : vector<128xf32> to vector<128x1xf32>
    %cst_11 = arith.constant 1.280000e+02 : f32
    %16 = vector.broadcast %cst_11 : f32 to vector<128x1xf32>
    %17 = arith.divf %15, %16 : vector<128x1xf32>
    %18 = arith.mulf %12, %12 : vector<128x1xf32>
    %19 = arith.subf %17, %18 : vector<128x1xf32>
    %cst_12 = arith.constant 9.99999974E-6 : f32
    %20 = vector.broadcast %cst_12 : f32 to vector<128x1xf32>
    %21 = arith.addf %19, %20 : vector<128x1xf32>
    %22 = math.rsqrt %21 : vector<128x1xf32>
    %23 = vector.broadcast %12 : vector<128x1xf32> to vector<128x128xf32>
    %24 = arith.subf %4, %23 : vector<128x128xf32>
    %25 = vector.broadcast %22 : vector<128x1xf32> to vector<128x128xf32>
    %26 = arith.mulf %24, %25 : vector<128x128xf32>
    %27 = vector.broadcast %6 : vector<1x128xf32> to vector<128x128xf32>
    %28 = arith.mulf %26, %27 : vector<128x128xf32>
    %29 = vector.broadcast %8 : vector<1x128xf32> to vector<128x128xf32>
    %30 = arith.addf %28, %29 : vector<128x128xf32>
    %31 = arith.truncf %30 : vector<128x128xf32> to vector<128x128xbf16>
    %c0_13 = arith.constant 0 : index
    %c0_14 = arith.constant 0 : index
    %c0_15 = arith.constant 0 : index
    %32 = vector.load %arg5[%c0_13, %c0_14, %c0_15] : memref<1x128x384xbf16, #tpu.memory_space<vmem>>, vector<1x128x384xbf16>
    %33 = vector.shape_cast %32 : vector<1x128x384xbf16> to vector<128x384xbf16>
    %cst_16 = arith.constant dense<0.000000e+00> : vector<128x384xf32>
    %34 = tpu.matmul %31, %33, %cst_16 {dimension_numbers = #tpu.dot_dimension_numbers<[1], [0], [0], [1], [0, 0, 1, 1], [], []>} : vector<128x128xbf16>, vector<128x384xbf16>, vector<128x384xf32> -> vector<128x384xf32>
    %35 = arith.truncf %34 : vector<128x384xf32> to vector<128x384xbf16>
    %c0_17 = arith.constant 0 : index
    %c0_18 = arith.constant 0 : index
    %c0_19 = arith.constant 0 : index
    %36 = vector.load %arg6[%c0_17, %c0_18, %c0_19] : memref<1x128x128xbf16, #tpu.memory_space<vmem>>, vector<1x128x128xbf16>
    %37 = vector.shape_cast %36 : vector<1x128x128xbf16> to vector<128x128xbf16>
    %cst_20 = arith.constant 0.000000e+00 : f32
    %38 = vector.broadcast %cst_20 : f32 to vector<128x128xf32>
    %39 = vector.extract_strided_slice %35 {offsets = [0, 0], sizes = [128, 32], strides = [1, 1]} : vector<128x384xbf16> to vector<128x32xbf16>
    %40 = vector.shape_cast %39 : vector<128x32xbf16> to vector<8x16x32xbf16>
    %41 = vector.extract_strided_slice %35 {offsets = [0, 128], sizes = [128, 32], strides = [1, 1]} : vector<128x384xbf16> to vector<128x32xbf16>
    %42 = vector.shape_cast %41 : vector<128x32xbf16> to vector<8x16x32xbf16>
    %43 = vector.extract_strided_slice %35 {offsets = [0, 256], sizes = [128, 32], strides = [1, 1]} : vector<128x384xbf16> to vector<128x32xbf16>
    %44 = vector.shape_cast %43 : vector<128x32xbf16> to vector<8x16x32xbf16>
    "tpu.trace_start"() <{level = 10 : i32, message = "bqd,bkd->bqk"}> : () -> ()
    %cst_21 = arith.constant dense<0.000000e+00> : vector<8x16x16xf32>
    %45 = tpu.matmul %40, %42, %cst_21 {dimension_numbers = #tpu.dot_dimension_numbers<[2], [2], [1], [1], [0, 0, 0, 1, 1, 1], [0], [0]>} : vector<8x16x32xbf16>, vector<8x16x32xbf16>, vector<8x16x16xf32> -> vector<8x16x16xf32>
    "tpu.trace_stop"() : () -> ()
    %cst_22 = arith.constant dense<0xFF800000> : vector<8x16xf32>
    %46 = vector.multi_reduction <maximumf>, %45, %cst_22 [2] : vector<8x16x16xf32> to vector<8x16xf32>
    %47 = vector.shape_cast %46 : vector<8x16xf32> to vector<8x16x1xf32>
    %48 = vector.broadcast %47 : vector<8x16x1xf32> to vector<8x16x16xf32>
    %49 = arith.subf %45, %48 : vector<8x16x16xf32>
    %50 = math.exp %49 : vector<8x16x16xf32>
    %cst_23 = arith.constant dense<0.000000e+00> : vector<8x16xf32>
    %51 = vector.multi_reduction <add>, %50, %cst_23 [2] : vector<8x16x16xf32> to vector<8x16xf32>
    %52 = vector.shape_cast %51 : vector<8x16xf32> to vector<8x16x1xf32>
    %53 = arith.truncf %50 : vector<8x16x16xf32> to vector<8x16x16xbf16>
    "tpu.trace_start"() <{level = 10 : i32, message = "bqk,bkd->bqd"}> : () -> ()
    %cst_24 = arith.constant dense<0.000000e+00> : vector<8x16x32xf32>
    %54 = tpu.matmul %53, %44, %cst_24 {dimension_numbers = #tpu.dot_dimension_numbers<[2], [1], [1], [2], [0, 0, 0, 1, 1, 2], [0], [0]>} : vector<8x16x16xbf16>, vector<8x16x32xbf16>, vector<8x16x32xf32> -> vector<8x16x32xf32>
    "tpu.trace_stop"() : () -> ()
    %55 = tpu.reciprocal %52 {approx = true} : vector<8x16x1xf32> -> vector<8x16x1xf32>
    %56 = vector.broadcast %55 : vector<8x16x1xf32> to vector<8x16x32xf32>
    %57 = arith.mulf %54, %56 : vector<8x16x32xf32>
    %58 = vector.shape_cast %57 : vector<8x16x32xf32> to vector<128x32xf32>
    %59 = arith.truncf %58 : vector<128x32xf32> to vector<128x32xbf16>
    %60 = vector.extract_strided_slice %37 {offsets = [0, 0], sizes = [32, 128], strides = [1, 1]} : vector<128x128xbf16> to vector<32x128xbf16>
    %cst_25 = arith.constant dense<0.000000e+00> : vector<128x128xf32>
    %61 = tpu.matmul %59, %60, %cst_25 {dimension_numbers = #tpu.dot_dimension_numbers<[1], [0], [0], [1], [0, 0, 1, 1], [], []>} : vector<128x32xbf16>, vector<32x128xbf16>, vector<128x128xf32> -> vector<128x128xf32>
    %62 = arith.addf %38, %61 : vector<128x128xf32>
    %63 = vector.extract_strided_slice %35 {offsets = [0, 32], sizes = [128, 32], strides = [1, 1]} : vector<128x384xbf16> to vector<128x32xbf16>
    %64 = vector.shape_cast %63 : vector<128x32xbf16> to vector<8x16x32xbf16>
    %65 = vector.extract_strided_slice %35 {offsets = [0, 160], sizes = [128, 32], strides = [1, 1]} : vector<128x384xbf16> to vector<128x32xbf16>
    %66 = vector.shape_cast %65 : vector<128x32xbf16> to vector<8x16x32xbf16>
    %67 = vector.extract_strided_slice %35 {offsets = [0, 288], sizes = [128, 32], strides = [1, 1]} : vector<128x384xbf16> to vector<128x32xbf16>
    %68 = vector.shape_cast %67 : vector<128x32xbf16> to vector<8x16x32xbf16>
    "tpu.trace_start"() <{level = 10 : i32, message = "bqd,bkd->bqk"}> : () -> ()
    %cst_26 = arith.constant dense<0.000000e+00> : vector<8x16x16xf32>
    %69 = tpu.matmul %64, %66, %cst_26 {dimension_numbers = #tpu.dot_dimension_numbers<[2], [2], [1], [1], [0, 0, 0, 1, 1, 1], [0], [0]>} : vector<8x16x32xbf16>, vector<8x16x32xbf16>, vector<8x16x16xf32> -> vector<8x16x16xf32>
    "tpu.trace_stop"() : () -> ()
    %cst_27 = arith.constant dense<0xFF800000> : vector<8x16xf32>
    %70 = vector.multi_reduction <maximumf>, %69, %cst_27 [2] : vector<8x16x16xf32> to vector<8x16xf32>
    %71 = vector.shape_cast %70 : vector<8x16xf32> to vector<8x16x1xf32>
    %72 = vector.broadcast %71 : vector<8x16x1xf32> to vector<8x16x16xf32>
    %73 = arith.subf %69, %72 : vector<8x16x16xf32>
    %74 = math.exp %73 : vector<8x16x16xf32>
    %cst_28 = arith.constant dense<0.000000e+00> : vector<8x16xf32>
    %75 = vector.multi_reduction <add>, %74, %cst_28 [2] : vector<8x16x16xf32> to vector<8x16xf32>
    %76 = vector.shape_cast %75 : vector<8x16xf32> to vector<8x16x1xf32>
    %77 = arith.truncf %74 : vector<8x16x16xf32> to vector<8x16x16xbf16>
    "tpu.trace_start"() <{level = 10 : i32, message = "bqk,bkd->bqd"}> : () -> ()
    %cst_29 = arith.constant dense<0.000000e+00> : vector<8x16x32xf32>
    %78 = tpu.matmul %77, %68, %cst_29 {dimension_numbers = #tpu.dot_dimension_numbers<[2], [1], [1], [2], [0, 0, 0, 1, 1, 2], [0], [0]>} : vector<8x16x16xbf16>, vector<8x16x32xbf16>, vector<8x16x32xf32> -> vector<8x16x32xf32>
    "tpu.trace_stop"() : () -> ()
    %79 = tpu.reciprocal %76 {approx = true} : vector<8x16x1xf32> -> vector<8x16x1xf32>
    %80 = vector.broadcast %79 : vector<8x16x1xf32> to vector<8x16x32xf32>
    %81 = arith.mulf %78, %80 : vector<8x16x32xf32>
    %82 = vector.shape_cast %81 : vector<8x16x32xf32> to vector<128x32xf32>
    %83 = arith.truncf %82 : vector<128x32xf32> to vector<128x32xbf16>
    %84 = vector.extract_strided_slice %37 {offsets = [32, 0], sizes = [32, 128], strides = [1, 1]} : vector<128x128xbf16> to vector<32x128xbf16>
    %cst_30 = arith.constant dense<0.000000e+00> : vector<128x128xf32>
    %85 = tpu.matmul %83, %84, %cst_30 {dimension_numbers = #tpu.dot_dimension_numbers<[1], [0], [0], [1], [0, 0, 1, 1], [], []>} : vector<128x32xbf16>, vector<32x128xbf16>, vector<128x128xf32> -> vector<128x128xf32>
    %86 = arith.addf %62, %85 : vector<128x128xf32>
    %87 = vector.extract_strided_slice %35 {offsets = [0, 64], sizes = [128, 32], strides = [1, 1]} : vector<128x384xbf16> to vector<128x32xbf16>
    %88 = vector.shape_cast %87 : vector<128x32xbf16> to vector<8x16x32xbf16>
    %89 = vector.extract_strided_slice %35 {offsets = [0, 192], sizes = [128, 32], strides = [1, 1]} : vector<128x384xbf16> to vector<128x32xbf16>
    %90 = vector.shape_cast %89 : vector<128x32xbf16> to vector<8x16x32xbf16>
    %91 = vector.extract_strided_slice %35 {offsets = [0, 320], sizes = [128, 32], strides = [1, 1]} : vector<128x384xbf16> to vector<128x32xbf16>
    %92 = vector.shape_cast %91 : vector<128x32xbf16> to vector<8x16x32xbf16>
    "tpu.trace_start"() <{level = 10 : i32, message = "bqd,bkd->bqk"}> : () -> ()
    %cst_31 = arith.constant dense<0.000000e+00> : vector<8x16x16xf32>
    %93 = tpu.matmul %88, %90, %cst_31 {dimension_numbers = #tpu.dot_dimension_numbers<[2], [2], [1], [1], [0, 0, 0, 1, 1, 1], [0], [0]>} : vector<8x16x32xbf16>, vector<8x16x32xbf16>, vector<8x16x16xf32> -> vector<8x16x16xf32>
    "tpu.trace_stop"() : () -> ()
    %cst_32 = arith.constant dense<0xFF800000> : vector<8x16xf32>
    %94 = vector.multi_reduction <maximumf>, %93, %cst_32 [2] : vector<8x16x16xf32> to vector<8x16xf32>
    %95 = vector.shape_cast %94 : vector<8x16xf32> to vector<8x16x1xf32>
    %96 = vector.broadcast %95 : vector<8x16x1xf32> to vector<8x16x16xf32>
    %97 = arith.subf %93, %96 : vector<8x16x16xf32>
    %98 = math.exp %97 : vector<8x16x16xf32>
    %cst_33 = arith.constant dense<0.000000e+00> : vector<8x16xf32>
    %99 = vector.multi_reduction <add>, %98, %cst_33 [2] : vector<8x16x16xf32> to vector<8x16xf32>
    %100 = vector.shape_cast %99 : vector<8x16xf32> to vector<8x16x1xf32>
    %101 = arith.truncf %98 : vector<8x16x16xf32> to vector<8x16x16xbf16>
    "tpu.trace_start"() <{level = 10 : i32, message = "bqk,bkd->bqd"}> : () -> ()
    %cst_34 = arith.constant dense<0.000000e+00> : vector<8x16x32xf32>
    %102 = tpu.matmul %101, %92, %cst_34 {dimension_numbers = #tpu.dot_dimension_numbers<[2], [1], [1], [2], [0, 0, 0, 1, 1, 2], [0], [0]>} : vector<8x16x16xbf16>, vector<8x16x32xbf16>, vector<8x16x32xf32> -> vector<8x16x32xf32>
    "tpu.trace_stop"() : () -> ()
    %103 = tpu.reciprocal %100 {approx = true} : vector<8x16x1xf32> -> vector<8x16x1xf32>
    %104 = vector.broadcast %103 : vector<8x16x1xf32> to vector<8x16x32xf32>
    %105 = arith.mulf %102, %104 : vector<8x16x32xf32>
    %106 = vector.shape_cast %105 : vector<8x16x32xf32> to vector<128x32xf32>
    %107 = arith.truncf %106 : vector<128x32xf32> to vector<128x32xbf16>
    %108 = vector.extract_strided_slice %37 {offsets = [64, 0], sizes = [32, 128], strides = [1, 1]} : vector<128x128xbf16> to vector<32x128xbf16>
    %cst_35 = arith.constant dense<0.000000e+00> : vector<128x128xf32>
    %109 = tpu.matmul %107, %108, %cst_35 {dimension_numbers = #tpu.dot_dimension_numbers<[1], [0], [0], [1], [0, 0, 1, 1], [], []>} : vector<128x32xbf16>, vector<32x128xbf16>, vector<128x128xf32> -> vector<128x128xf32>
    %110 = arith.addf %86, %109 : vector<128x128xf32>
    %111 = vector.extract_strided_slice %35 {offsets = [0, 96], sizes = [128, 32], strides = [1, 1]} : vector<128x384xbf16> to vector<128x32xbf16>
    %112 = vector.shape_cast %111 : vector<128x32xbf16> to vector<8x16x32xbf16>
    %113 = vector.extract_strided_slice %35 {offsets = [0, 224], sizes = [128, 32], strides = [1, 1]} : vector<128x384xbf16> to vector<128x32xbf16>
    %114 = vector.shape_cast %113 : vector<128x32xbf16> to vector<8x16x32xbf16>
    %115 = vector.extract_strided_slice %35 {offsets = [0, 352], sizes = [128, 32], strides = [1, 1]} : vector<128x384xbf16> to vector<128x32xbf16>
    %116 = vector.shape_cast %115 : vector<128x32xbf16> to vector<8x16x32xbf16>
    "tpu.trace_start"() <{level = 10 : i32, message = "bqd,bkd->bqk"}> : () -> ()
    %cst_36 = arith.constant dense<0.000000e+00> : vector<8x16x16xf32>
    %117 = tpu.matmul %112, %114, %cst_36 {dimension_numbers = #tpu.dot_dimension_numbers<[2], [2], [1], [1], [0, 0, 0, 1, 1, 1], [0], [0]>} : vector<8x16x32xbf16>, vector<8x16x32xbf16>, vector<8x16x16xf32> -> vector<8x16x16xf32>
    "tpu.trace_stop"() : () -> ()
    %cst_37 = arith.constant dense<0xFF800000> : vector<8x16xf32>
    %118 = vector.multi_reduction <maximumf>, %117, %cst_37 [2] : vector<8x16x16xf32> to vector<8x16xf32>
    %119 = vector.shape_cast %118 : vector<8x16xf32> to vector<8x16x1xf32>
    %120 = vector.broadcast %119 : vector<8x16x1xf32> to vector<8x16x16xf32>
    %121 = arith.subf %117, %120 : vector<8x16x16xf32>
    %122 = math.exp %121 : vector<8x16x16xf32>
    %cst_38 = arith.constant dense<0.000000e+00> : vector<8x16xf32>
    %123 = vector.multi_reduction <add>, %122, %cst_38 [2] : vector<8x16x16xf32> to vector<8x16xf32>
    %124 = vector.shape_cast %123 : vector<8x16xf32> to vector<8x16x1xf32>
    %125 = arith.truncf %122 : vector<8x16x16xf32> to vector<8x16x16xbf16>
    "tpu.trace_start"() <{level = 10 : i32, message = "bqk,bkd->bqd"}> : () -> ()
    %cst_39 = arith.constant dense<0.000000e+00> : vector<8x16x32xf32>
    %126 = tpu.matmul %125, %116, %cst_39 {dimension_numbers = #tpu.dot_dimension_numbers<[2], [1], [1], [2], [0, 0, 0, 1, 1, 2], [0], [0]>} : vector<8x16x16xbf16>, vector<8x16x32xbf16>, vector<8x16x32xf32> -> vector<8x16x32xf32>
    "tpu.trace_stop"() : () -> ()
    %127 = tpu.reciprocal %124 {approx = true} : vector<8x16x1xf32> -> vector<8x16x1xf32>
    %128 = vector.broadcast %127 : vector<8x16x1xf32> to vector<8x16x32xf32>
    %129 = arith.mulf %126, %128 : vector<8x16x32xf32>
    %130 = vector.shape_cast %129 : vector<8x16x32xf32> to vector<128x32xf32>
    %131 = arith.truncf %130 : vector<128x32xf32> to vector<128x32xbf16>
    %132 = vector.extract_strided_slice %37 {offsets = [96, 0], sizes = [32, 128], strides = [1, 1]} : vector<128x128xbf16> to vector<32x128xbf16>
    %cst_40 = arith.constant dense<0.000000e+00> : vector<128x128xf32>
    %133 = tpu.matmul %131, %132, %cst_40 {dimension_numbers = #tpu.dot_dimension_numbers<[1], [0], [0], [1], [0, 0, 1, 1], [], []>} : vector<128x32xbf16>, vector<32x128xbf16>, vector<128x128xf32> -> vector<128x128xf32>
    %134 = arith.addf %110, %133 : vector<128x128xf32>
    %135 = arith.addf %4, %134 : vector<128x128xf32>
    %c0_41 = arith.constant 0 : index
    %c0_42 = arith.constant 0 : index
    %c0_43 = arith.constant 0 : index
    %136 = vector.load %arg7[%c0_41, %c0_42, %c0_43] : memref<1x1x128xf32, #tpu.memory_space<vmem>>, vector<1x1x128xf32>
    %137 = vector.shape_cast %136 : vector<1x1x128xf32> to vector<1x128xf32>
    %138 = vector.broadcast %137 : vector<1x128xf32> to vector<128x128xf32>
    %139 = arith.addf %135, %138 : vector<128x128xf32>
    %c0_44 = arith.constant 0 : index
    %c0_45 = arith.constant 0 : index
    %c0_46 = arith.constant 0 : index
    %140 = vector.load %arg8[%c0_44, %c0_45, %c0_46] : memref<1x1x128xf32, #tpu.memory_space<vmem>>, vector<1x1x128xf32>
    %141 = vector.shape_cast %140 : vector<1x1x128xf32> to vector<1x128xf32>
    %c0_47 = arith.constant 0 : index
    %c0_48 = arith.constant 0 : index
    %c0_49 = arith.constant 0 : index
    %142 = vector.load %arg9[%c0_47, %c0_48, %c0_49] : memref<1x1x128xf32, #tpu.memory_space<vmem>>, vector<1x1x128xf32>
    %143 = vector.shape_cast %142 : vector<1x1x128xf32> to vector<1x128xf32>
    %cst_50 = arith.constant dense<0.000000e+00> : vector<128xf32>
    %144 = vector.multi_reduction <add>, %139, %cst_50 [1] : vector<128x128xf32> to vector<128xf32>
    %145 = vector.shape_cast %144 : vector<128xf32> to vector<128x1xf32>
    %cst_51 = arith.constant 1.280000e+02 : f32
    %146 = vector.broadcast %cst_51 : f32 to vector<128x1xf32>
    %147 = arith.divf %145, %146 : vector<128x1xf32>
    %148 = arith.mulf %139, %139 : vector<128x128xf32>
    %cst_52 = arith.constant dense<0.000000e+00> : vector<128xf32>
    %149 = vector.multi_reduction <add>, %148, %cst_52 [1] : vector<128x128xf32> to vector<128xf32>
    %150 = vector.shape_cast %149 : vector<128xf32> to vector<128x1xf32>
    %cst_53 = arith.constant 1.280000e+02 : f32
    %151 = vector.broadcast %cst_53 : f32 to vector<128x1xf32>
    %152 = arith.divf %150, %151 : vector<128x1xf32>
    %153 = arith.mulf %147, %147 : vector<128x1xf32>
    %154 = arith.subf %152, %153 : vector<128x1xf32>
    %cst_54 = arith.constant 9.99999974E-6 : f32
    %155 = vector.broadcast %cst_54 : f32 to vector<128x1xf32>
    %156 = arith.addf %154, %155 : vector<128x1xf32>
    %157 = math.rsqrt %156 : vector<128x1xf32>
    %158 = vector.broadcast %147 : vector<128x1xf32> to vector<128x128xf32>
    %159 = arith.subf %139, %158 : vector<128x128xf32>
    %160 = vector.broadcast %157 : vector<128x1xf32> to vector<128x128xf32>
    %161 = arith.mulf %159, %160 : vector<128x128xf32>
    %162 = vector.broadcast %141 : vector<1x128xf32> to vector<128x128xf32>
    %163 = arith.mulf %161, %162 : vector<128x128xf32>
    %164 = vector.broadcast %143 : vector<1x128xf32> to vector<128x128xf32>
    %165 = arith.addf %163, %164 : vector<128x128xf32>
    %166 = arith.truncf %165 : vector<128x128xf32> to vector<128x128xbf16>
    %c0_55 = arith.constant 0 : index
    %c0_56 = arith.constant 0 : index
    %c0_57 = arith.constant 0 : index
    %167 = vector.load %arg10[%c0_55, %c0_56, %c0_57] : memref<1x128x256xbf16, #tpu.memory_space<vmem>>, vector<1x128x256xbf16>
    %168 = vector.shape_cast %167 : vector<1x128x256xbf16> to vector<128x256xbf16>
    %cst_58 = arith.constant dense<0.000000e+00> : vector<128x256xf32>
    %169 = tpu.matmul %166, %168, %cst_58 {dimension_numbers = #tpu.dot_dimension_numbers<[1], [0], [0], [1], [0, 0, 1, 1], [], []>} : vector<128x128xbf16>, vector<128x256xbf16>, vector<128x256xf32> -> vector<128x256xf32>
    %c0_59 = arith.constant 0 : index
    %c0_60 = arith.constant 0 : index
    %c0_61 = arith.constant 0 : index
    %170 = vector.load %arg11[%c0_59, %c0_60, %c0_61] : memref<1x1x256xf32, #tpu.memory_space<vmem>>, vector<1x1x256xf32>
    %171 = vector.shape_cast %170 : vector<1x1x256xf32> to vector<1x256xf32>
    %172 = vector.broadcast %171 : vector<1x256xf32> to vector<128x256xf32>
    %173 = arith.addf %169, %172 : vector<128x256xf32>
    %cst_62 = arith.constant 5.000000e-01 : f32
    %174 = vector.broadcast %cst_62 : f32 to vector<128x256xf32>
    %175 = arith.mulf %174, %173 : vector<128x256xf32>
    %cst_63 = arith.constant 0.707106769 : f32
    %176 = vector.broadcast %cst_63 : f32 to vector<128x256xf32>
    %177 = arith.mulf %173, %176 : vector<128x256xf32>
    %178 = math.erf %177 : vector<128x256xf32>
    %cst_64 = arith.constant 1.000000e+00 : f32
    %179 = vector.broadcast %cst_64 : f32 to vector<128x256xf32>
    %180 = arith.addf %179, %178 : vector<128x256xf32>
    %181 = arith.mulf %175, %180 : vector<128x256xf32>
    %182 = arith.truncf %181 : vector<128x256xf32> to vector<128x256xbf16>
    %c0_65 = arith.constant 0 : index
    %c0_66 = arith.constant 0 : index
    %c0_67 = arith.constant 0 : index
    %183 = vector.load %arg12[%c0_65, %c0_66, %c0_67] : memref<1x256x128xbf16, #tpu.memory_space<vmem>>, vector<1x256x128xbf16>
    %184 = vector.shape_cast %183 : vector<1x256x128xbf16> to vector<256x128xbf16>
    %cst_68 = arith.constant dense<0.000000e+00> : vector<128x128xf32>
    %185 = tpu.matmul %182, %184, %cst_68 {dimension_numbers = #tpu.dot_dimension_numbers<[1], [0], [0], [1], [0, 0, 1, 1], [], []>} : vector<128x256xbf16>, vector<256x128xbf16>, vector<128x128xf32> -> vector<128x128xf32>
    %c0_69 = arith.constant 0 : index
    %c0_70 = arith.constant 0 : index
    %c0_71 = arith.constant 0 : index
    %186 = vector.load %arg13[%c0_69, %c0_70, %c0_71] : memref<1x1x128xf32, #tpu.memory_space<vmem>>, vector<1x1x128xf32>
    %187 = vector.shape_cast %186 : vector<1x1x128xf32> to vector<1x128xf32>
    %188 = vector.broadcast %187 : vector<1x128xf32> to vector<128x128xf32>
    %189 = arith.addf %185, %188 : vector<128x128xf32>
    %190 = arith.addf %139, %189 : vector<128x128xf32>
    %191 = vector.shape_cast %190 : vector<128x128xf32> to vector<8x16x128xf32>
    %c0_72 = arith.constant 0 : index
    %c0_73 = arith.constant 0 : index
    %c0_74 = arith.constant 0 : index
    %192 = vector.load %arg14[%c0_72, %c0_73, %c0_74] : memref<8x16x128xf32, #tpu.memory_space<vmem>>, vector<8x16x128xf32>
    tpu.vector_store %arg14[%c0_72, %c0_73, %c0_74], %191 {strides = array<i32>} : memref<8x16x128xf32, #tpu.memory_space<vmem>>, vector<8x16x128xf32>,
    %c2_i32 = arith.constant 2 : i32
    %193 = arith.cmpi eq, %arg1, %c2_i32 : i32
    %194 = arith.extui %193 : i1 to i32
    %c0_i32_75 = arith.constant 0 : i32
    %195 = arith.cmpi ne, %194, %c0_i32_75 : i32
    scf.if %195 {
      %196 = vector.shape_cast %190 : vector<128x128xf32> to vector<8x16x128xf32>
      %c0_76 = arith.constant 0 : index
      %c0_77 = arith.constant 0 : index
      %c0_78 = arith.constant 0 : index
      %197 = vector.load %arg15[%c0_76, %c0_77, %c0_78] : memref<8x16x128xf32, #tpu.memory_space<vmem>>, vector<8x16x128xf32>
      tpu.vector_store %arg15[%c0_76, %c0_77, %c0_78], %196 {strides = array<i32>} : memref<8x16x128xf32, #tpu.memory_space<vmem>>, vector<8x16x128xf32>,
    } else {
    }
    return
  }
  func.func @transform_0(%arg0: i32, %arg1: i32) -> (i32, i32, i32) {
    %c0_i32 = arith.constant 0 : i32
    %c0_i32_0 = arith.constant 0 : i32
    %c0_i32_1 = arith.constant 0 : i32
    return %arg0, %c0_i32, %c0_i32_0 : i32, i32, i32
  }
  func.func @transform_1(%arg0: i32, %arg1: i32) -> (i32, i32, i32) {
    %c0_i32 = arith.constant 0 : i32
    %c0_i32_0 = arith.constant 0 : i32
    %c0_i32_1 = arith.constant 0 : i32
    return %arg1, %c0_i32, %c0_i32_0 : i32, i32, i32
  }
  func.func @transform_2(%arg0: i32, %arg1: i32) -> (i32, i32, i32) {
    %c0_i32 = arith.constant 0 : i32
    %c0_i32_0 = arith.constant 0 : i32
    %c0_i32_1 = arith.constant 0 : i32
    return %arg1, %c0_i32, %c0_i32_0 : i32, i32, i32
  }
  func.func @transform_3(%arg0: i32, %arg1: i32) -> (i32, i32, i32) {
    %c0_i32 = arith.constant 0 : i32
    %c0_i32_0 = arith.constant 0 : i32
    %c0_i32_1 = arith.constant 0 : i32
    return %arg1, %c0_i32, %c0_i32_0 : i32, i32, i32
  }
  func.func @transform_4(%arg0: i32, %arg1: i32) -> (i32, i32, i32) {
    %c0_i32 = arith.constant 0 : i32
    %c0_i32_0 = arith.constant 0 : i32
    %c0_i32_1 = arith.constant 0 : i32
    return %arg1, %c0_i32, %c0_i32_0 : i32, i32, i32
  }
  func.func @transform_5(%arg0: i32, %arg1: i32) -> (i32, i32, i32) {
    %c0_i32 = arith.constant 0 : i32
    %c0_i32_0 = arith.constant 0 : i32
    %c0_i32_1 = arith.constant 0 : i32
    return %arg1, %c0_i32, %c0_i32_0 : i32, i32, i32
  }
  func.func @transform_6(%arg0: i32, %arg1: i32) -> (i32, i32, i32) {
    %c0_i32 = arith.constant 0 : i32
    %c0_i32_0 = arith.constant 0 : i32
    %c0_i32_1 = arith.constant 0 : i32
    return %arg1, %c0_i32, %c0_i32_0 : i32, i32, i32
  }
  func.func @transform_7(%arg0: i32, %arg1: i32) -> (i32, i32, i32) {
    %c0_i32 = arith.constant 0 : i32
    %c0_i32_0 = arith.constant 0 : i32
    %c0_i32_1 = arith.constant 0 : i32
    return %arg1, %c0_i32, %c0_i32_0 : i32, i32, i32
  }
  func.func @transform_8(%arg0: i32, %arg1: i32) -> (i32, i32, i32) {
    %c0_i32 = arith.constant 0 : i32
    %c0_i32_0 = arith.constant 0 : i32
    %c0_i32_1 = arith.constant 0 : i32
    return %arg1, %c0_i32, %c0_i32_0 : i32, i32, i32
  }
  func.func @transform_9(%arg0: i32, %arg1: i32) -> (i32, i32, i32) {
    %c0_i32 = arith.constant 0 : i32
    %c0_i32_0 = arith.constant 0 : i32
    %c0_i32_1 = arith.constant 0 : i32
    return %arg1, %c0_i32, %c0_i32_0 : i32, i32, i32
  }
  func.func @transform_10(%arg0: i32, %arg1: i32) -> (i32, i32, i32) {
    %c0_i32 = arith.constant 0 : i32
    %c0_i32_0 = arith.constant 0 : i32
    %c0_i32_1 = arith.constant 0 : i32
    return %arg1, %c0_i32, %c0_i32_0 : i32, i32, i32
  }
  func.func @transform_11(%arg0: i32, %arg1: i32) -> (i32, i32, i32) {
    %c0_i32 = arith.constant 0 : i32
    %c0_i32_0 = arith.constant 0 : i32
    %c0_i32_1 = arith.constant 0 : i32
    return %arg1, %c0_i32, %c0_i32_0 : i32, i32, i32
  }
  func.func @transform_12(%arg0: i32, %arg1: i32) -> (i32, i32, i32) {
    %c0_i32 = arith.constant 0 : i32
    %c0_i32_0 = arith.constant 0 : i32
    %c0_i32_1 = arith.constant 0 : i32
    return %arg0, %c0_i32, %c0_i32_0 : i32, i32, i32
  }
  func.func @transform_13(%arg0: i32, %arg1: i32) -> (i32, i32, i32) {
    %c0_i32 = arith.constant 0 : i32
    %c0_i32_0 = arith.constant 0 : i32
    %c0_i32_1 = arith.constant 0 : i32
    return %arg0, %c0_i32, %c0_i32_0 : i32, i32, i32
  }
}

</mosaic_0001>

<llo_original>
// kernel: transformer_forward.1
$region0: #{transformer_forward.1}
  #allocation0 [shape = 'u32[]', space=smem, size = 0x4, offset = 0x4, fixed_abs, tag = 'smem constant byte address 0x4 - core index']
  #allocation1 [shape = 'u32[144,128]{1,0:T(1,128)}', space=vmem, size = 0x12000, scoped, tag = 'internal scratch']
  %s0 = inlined_call_operand.hbm [shape: f32[16,16,128], index: 0, kind: input, shape index: {}, may-alias: {0,12}]
  %s1 = inlined_call_operand.vmem [shape: f32[4,1,128], index: 1, kind: input, shape index: {}]
  %s2 = inlined_call_operand.vmem [shape: f32[4,1,128], index: 2, kind: input, shape index: {}]
  %s3 = inlined_call_operand.hbm [shape: bf16[4,128,384], index: 3, kind: input, shape index: {}]
  %s4 = inlined_call_operand.hbm [shape: bf16[4,128,128], index: 4, kind: input, shape index: {}]
  %s5 = inlined_call_operand.vmem [shape: f32[4,1,128], index: 5, kind: input, shape index: {}]
  %s6 = inlined_call_operand.vmem [shape: f32[4,1,128], index: 6, kind: input, shape index: {}]
  %s7 = inlined_call_operand.vmem [shape: f32[4,1,128], index: 7, kind: input, shape index: {}]
  %s8 = inlined_call_operand.vmem [shape: bf16[4,128,256], index: 8, kind: input, shape index: {}]
  %s9 = inlined_call_operand.vmem [shape: f32[4,1,256], index: 9, kind: input, shape index: {}]
  %s10 = inlined_call_operand.hbm [shape: bf16[4,256,128], index: 10, kind: input, shape index: {}]
  %s11 = inlined_call_operand.hbm [shape: f32[4,1,128], index: 11, kind: input, shape index: {}]
  %s12 = inlined_call_operand.hbm [shape: f32[16,16,128], index: 12, kind: output, shape index: {0}, may-alias: {0,12}]
  %s13 = inlined_call_operand.hbm [shape: f32[16,16,128], index: 13, kind: output, shape index: {1}]
  %14 = xla_tuple %s12, %s13
  %s15 = sld [smem:[#allocation0]]
  $region117: #{transformer_forward.1} parent=0
    _
  %s17 = ssub.s32 1, %s15
  %s18 = scalar_select 0, %s17, %s15
  $region1: #{transformer_forward.1} parent=0
    #allocation2 [shape = 'u8[131072]{0}', space=vmem, size = 0x20000, scoped, tag = 'input window, operand 0']
    #allocation3 [shape = 's32[2]{0}', space=sflag, size = 0x8, scoped, tag = 'scoped memory for transformer_forward.1']
    #allocation4 [shape = 's32[2]{0}', space=sflag, size = 0x8, scoped, tag = 'scoped memory for transformer_forward.1']
    #allocation5 [shape = 'u8[196608]{0}', space=vmem, size = 0x30000, scoped, tag = 'input window, operand 3']
    #allocation6 [shape = 's32[2]{0}', space=sflag, size = 0x8, scoped, tag = 'scoped memory for transformer_forward.1']
    #allocation7 [shape = 'u8[65536]{0}', space=vmem, size = 0x10000, scoped, tag = 'input window, operand 4']
    #allocation8 [shape = 'u8[131072]{0}', space=vmem, size = 0x20000, scoped, tag = 'input window, operand 10']
    #allocation9 [shape = 's32[2]{0}', space=sflag, size = 0x8, scoped, tag = 'scoped memory for transformer_forward.1']
    #allocation10 [shape = 'u8[1024]{0}', space=vmem, size = 0x400, scoped, tag = 'input window, operand 11']
    #allocation11 [shape = 'u8[131072]{0}', space=vmem, size = 0x20000, scoped, tag = 'output window, operand 0']
    #allocation12 [shape = 'u8[131072]{0}', space=vmem, size = 0x20000, scoped, tag = 'output window, operand 1']
    #allocation13 [shape = 's32[2]{0}', space=sflag, size = 0x8, scoped, tag = 'scoped memory for transformer_forward.1']
    %19 = vsyncpa [#allocation3], 0
    %s20 = scalar_lea.sflag [#allocation3], 1
    %21 = vsyncpa %s20, 0
    %22 = vsyncpa [#allocation6], 0
    %s23 = scalar_lea.sflag [#allocation6], 1
    %24 = vsyncpa %s23, 0
    %25 = vsyncpa [#allocation9], 0
    %s26 = scalar_lea.sflag [#allocation9], 1
    %27 = vsyncpa %s26, 0
    %28 = vsyncpa [#allocation4], 0
    %s29 = scalar_lea.sflag [#allocation4], 1
    %30 = vsyncpa %s29, 0
    %31 = vsyncpa [#allocation13], 0
    %s32 = scalar_lea.sflag [#allocation13], 1
    %33 = vsyncpa %s32, 0
    loop: start=0, step=1, limit=10
    $region2: #{transformer_forward.1} parent=1 // loop_pre_header
      _
    $region3: #{transformer_forward.1} parent=1 // loop_header
      %s35 = sphi 0, %s39
      %p36 = scmp.ge.s32.totalorder %s35, 10
      %s42 = sphi 0, %s54
      %s43 = sphi 0, %s50
      %s44 = sphi 0, %s42
      %s45 = sphi 0, %s43
      %s46 = sphi 0, %s44
      %s47 = sphi 0, %s45
      %s57 = sphi 0, %s59
      %s60 = sphi 0, %s57
      %s61 = sphi 0, %s60
      %s77 = sphi 0, %s61
      %s83 = sphi 0, %s85
      %s86 = sphi 0, %s83
      %s87 = sphi 0, %s86
      %s103 = sphi 0, %s87
      %s109 = sphi 0, %s111
      %s112 = sphi 0, %s109
      %s113 = sphi 0, %s112
      %s129 = sphi 0, %s113
      %s135 = sphi 0, %s137
      %s138 = sphi 0, %s135
      %s139 = sphi 0, %s138
      %s155 = sphi 0, %s139
      %s161 = sphi 0, %s163
      %s164 = sphi 0, %s161
      %s165 = sphi 0, %s164
      %s181 = sphi 0, %s165
      %s187 = sphi 0, %s189
      %s190 = sphi 0, %s187
      %s191 = sphi 0, %s190
      %s207 = sphi 0, %s191
      %s213 = sphi 0, %s215
      %s216 = sphi 0, %s213
      %s217 = sphi 0, %s216
      %s233 = sphi 0, %s217
      %s239 = sphi 0, %s241
      %s242 = sphi 0, %s239
      %s243 = sphi 0, %s242
      %s259 = sphi 0, %s243
      %s265 = sphi 0, %s267
      %s268 = sphi 0, %s265
      %s269 = sphi 0, %s268
      %s285 = sphi 0, %s269
      %s291 = sphi 0, %s293
      %s294 = sphi 0, %s291
      %s295 = sphi 0, %s294
      %s311 = sphi 0, %s295
      %s317 = sphi 0, %s319
      %s320 = sphi 0, %s317
      %s321 = sphi 0, %s320
      %s337 = sphi 0, %s321
      %s343 = sphi 0, %s345
      %s346 = sphi 0, %s343
      %s347 = sphi 0, %s346
      %s363 = sphi 0, %s347
      %s369 = sphi 0, %s371
      %s372 = sphi 0, %s369
      %s373 = sphi 0, %s372
      %s389 = sphi 0, %s373
      %s395 = sphi 0, %s397
      %s398 = sphi 0, %s395
      %s399 = sphi 0, %s398
      %s415 = sphi 0, %s399
    $region4: #{transformer_forward.1} parent=1 // loop_header_branch
      %38 = sbr.rel (%p36) target = $region8
    $region5: #{transformer_forward.1} parent=1 // loop_body
      %s40 = ssub.s32 %s35, 1
      %s41 = ssub.s32 %s35, 2
      %s48 = sadd.s32 1, %s43
      %p49 = scmp.ge.s32.totalorder %s48, 4
      %s50 = scalar_select %p49, 0, %s48
      %s51 = sadd.s32 1, %s42
      %s52 = scalar_select %p49, %s51, %s42
      %p53 = scmp.ge.s32.totalorder %s52, 2
      %s54 = scalar_select %p53, 0, %s52
      %s55 = ssub.s32 %s42, %s54
      %p56 = scmp.eq.s32.totalorder %s55, 0
      %s58 = sadd.s32 %s57, 1
      %s59 = scalar_select %p56, %s57, %s58
      %p62 = pneg %p56
      %p63 = scmp.eq.s32.totalorder %s35, 7
      %p64 = por %p62, %p63
      %p65 = scmp.ne.s32.totalorder %s57, %s60
      %p66 = scmp.eq.s32.totalorder %s35, 0
      %p67 = por %p65, %p66
      %p68 = scmp.ne.s32.totalorder %s57, %s60
      %p69 = scmp.eq.s32.totalorder %s40, 7
      %p70 = por %p68, %p69
      %p71 = scmp.ne.s32.totalorder %s60, %s61
      %p72 = scmp.eq.s32.totalorder %s40, 0
      %p73 = por %p71, %p72
      %p74 = scmp.ne.s32.totalorder %s60, %s61
      %p75 = scmp.eq.s32.totalorder %s41, 7
      %p76 = por %p74, %p75
      %p78 = scmp.ne.s32.totalorder %s61, %s77
      %p79 = scmp.eq.s32.totalorder %s41, 0
      %p80 = por %p78, %p79
      %s81 = ssub.s32 %s43, %s50
      %p82 = scmp.eq.s32.totalorder %s81, 0
      %s84 = sadd.s32 %s83, 1
      %s85 = scalar_select %p82, %s83, %s84
      %p88 = pneg %p82
      %p89 = scmp.eq.s32.totalorder %s35, 7
      %p90 = por %p88, %p89
      %p91 = scmp.ne.s32.totalorder %s83, %s86
      %p92 = scmp.eq.s32.totalorder %s35, 0
      %p93 = por %p91, %p92
      %p94 = scmp.ne.s32.totalorder %s83, %s86
      %p95 = scmp.eq.s32.totalorder %s40, 7
      %p96 = por %p94, %p95
      %p97 = scmp.ne.s32.totalorder %s86, %s87
      %p98 = scmp.eq.s32.totalorder %s40, 0
      %p99 = por %p97, %p98
      %p100 = scmp.ne.s32.totalorder %s86, %s87
      %p101 = scmp.eq.s32.totalorder %s41, 7
      %p102 = por %p100, %p101
      %p104 = scmp.ne.s32.totalorder %s87, %s103
      %p105 = scmp.eq.s32.totalorder %s41, 0
      %p106 = por %p104, %p105
      %s107 = ssub.s32 %s43, %s50
      %p108 = scmp.eq.s32.totalorder %s107, 0
      %s110 = sadd.s32 %s109, 1
      %s111 = scalar_select %p108, %s109, %s110
      %p114 = pneg %p108
      %p115 = scmp.eq.s32.totalorder %s35, 7
      %p116 = por %p114, %p115
      %p117 = scmp.ne.s32.totalorder %s109, %s112
      %p118 = scmp.eq.s32.totalorder %s35, 0
      %p119 = por %p117, %p118
      %p120 = scmp.ne.s32.totalorder %s109, %s112
      %p121 = scmp.eq.s32.totalorder %s40, 7
      %p122 = por %p120, %p121
      %p123 = scmp.ne.s32.totalorder %s112, %s113
      %p124 = scmp.eq.s32.totalorder %s40, 0
      %p125 = por %p123, %p124
      %p126 = scmp.ne.s32.totalorder %s112, %s113
      %p127 = scmp.eq.s32.totalorder %s41, 7
      %p128 = por %p126, %p127
      %p130 = scmp.ne.s32.totalorder %s113, %s129
      %p131 = scmp.eq.s32.totalorder %s41, 0
      %p132 = por %p130, %p131
      %s133 = ssub.s32 %s43, %s50
      %p134 = scmp.eq.s32.totalorder %s133, 0
      %s136 = sadd.s32 %s135, 1
      %s137 = scalar_select %p134, %s135, %s136
      %p140 = pneg %p134
      %p141 = scmp.eq.s32.totalorder %s35, 7
      %p142 = por %p140, %p141
      %p143 = scmp.ne.s32.totalorder %s135, %s138
      %p144 = scmp.eq.s32.totalorder %s35, 0
      %p145 = por %p143, %p144
      %p146 = scmp.ne.s32.totalorder %s135, %s138
      %p147 = scmp.eq.s32.totalorder %s40, 7
      %p148 = por %p146, %p147
      %p149 = scmp.ne.s32.totalorder %s138, %s139
      %p150 = scmp.eq.s32.totalorder %s40, 0
      %p151 = por %p149, %p150
      %p152 = scmp.ne.s32.totalorder %s138, %s139
      %p153 = scmp.eq.s32.totalorder %s41, 7
      %p154 = por %p152, %p153
      %p156 = scmp.ne.s32.totalorder %s139, %s155
      %p157 = scmp.eq.s32.totalorder %s41, 0
      %p158 = por %p156, %p157
      %s159 = ssub.s32 %s43, %s50
      %p160 = scmp.eq.s32.totalorder %s159, 0
      %s162 = sadd.s32 %s161, 1
      %s163 = scalar_select %p160, %s161, %s162
      %p166 = pneg %p160
      %p167 = scmp.eq.s32.totalorder %s35, 7
      %p168 = por %p166, %p167
      %p169 = scmp.ne.s32.totalorder %s161, %s164
      %p170 = scmp.eq.s32.totalorder %s35, 0
      %p171 = por %p169, %p170
      %p172 = scmp.ne.s32.totalorder %s161, %s164
      %p173 = scmp.eq.s32.totalorder %s40, 7
      %p174 = por %p172, %p173
      %p175 = scmp.ne.s32.totalorder %s164, %s165
      %p176 = scmp.eq.s32.totalorder %s40, 0
      %p177 = por %p175, %p176
      %p178 = scmp.ne.s32.totalorder %s164, %s165
      %p179 = scmp.eq.s32.totalorder %s41, 7
      %p180 = por %p178, %p179
      %p182 = scmp.ne.s32.totalorder %s165, %s181
      %p183 = scmp.eq.s32.totalorder %s41, 0
      %p184 = por %p182, %p183
      %s185 = ssub.s32 %s43, %s50
      %p186 = scmp.eq.s32.totalorder %s185, 0
      %s188 = sadd.s32 %s187, 1
      %s189 = scalar_select %p186, %s187, %s188
      %p192 = pneg %p186
      %p193 = scmp.eq.s32.totalorder %s35, 7
      %p194 = por %p192, %p193
      %p195 = scmp.ne.s32.totalorder %s187, %s190
      %p196 = scmp.eq.s32.totalorder %s35, 0
      %p197 = por %p195, %p196
      %p198 = scmp.ne.s32.totalorder %s187, %s190
      %p199 = scmp.eq.s32.totalorder %s40, 7
      %p200 = por %p198, %p199
      %p201 = scmp.ne.s32.totalorder %s190, %s191
      %p202 = scmp.eq.s32.totalorder %s40, 0
      %p203 = por %p201, %p202
      %p204 = scmp.ne.s32.totalorder %s190, %s191
      %p205 = scmp.eq.s32.totalorder %s41, 7
      %p206 = por %p204, %p205
      %p208 = scmp.ne.s32.totalorder %s191, %s207
      %p209 = scmp.eq.s32.totalorder %s41, 0
      %p210 = por %p208, %p209
      %s211 = ssub.s32 %s43, %s50
      %p212 = scmp.eq.s32.totalorder %s211, 0
      %s214 = sadd.s32 %s213, 1
      %s215 = scalar_select %p212, %s213, %s214
      %p218 = pneg %p212
      %p219 = scmp.eq.s32.totalorder %s35, 7
      %p220 = por %p218, %p219
      %p221 = scmp.ne.s32.totalorder %s213, %s216
      %p222 = scmp.eq.s32.totalorder %s35, 0
      %p223 = por %p221, %p222
      %p224 = scmp.ne.s32.totalorder %s213, %s216
      %p225 = scmp.eq.s32.totalorder %s40, 7
      %p226 = por %p224, %p225
      %p227 = scmp.ne.s32.totalorder %s216, %s217
      %p228 = scmp.eq.s32.totalorder %s40, 0
      %p229 = por %p227, %p228
      %p230 = scmp.ne.s32.totalorder %s216, %s217
      %p231 = scmp.eq.s32.totalorder %s41, 7
      %p232 = por %p230, %p231
      %p234 = scmp.ne.s32.totalorder %s217, %s233
      %p235 = scmp.eq.s32.totalorder %s41, 0
      %p236 = por %p234, %p235
      %s237 = ssub.s32 %s43, %s50
      %p238 = scmp.eq.s32.totalorder %s237, 0
      %s240 = sadd.s32 %s239, 1
      %s241 = scalar_select %p238, %s239, %s240
      %p244 = pneg %p238
      %p245 = scmp.eq.s32.totalorder %s35, 7
      %p246 = por %p244, %p245
      %p247 = scmp.ne.s32.totalorder %s239, %s242
      %p248 = scmp.eq.s32.totalorder %s35, 0
      %p249 = por %p247, %p248
      %p250 = scmp.ne.s32.totalorder %s239, %s242
      %p251 = scmp.eq.s32.totalorder %s40, 7
      %p252 = por %p250, %p251
      %p253 = scmp.ne.s32.totalorder %s242, %s243
      %p254 = scmp.eq.s32.totalorder %s40, 0
      %p255 = por %p253, %p254
      %p256 = scmp.ne.s32.totalorder %s242, %s243
      %p257 = scmp.eq.s32.totalorder %s41, 7
      %p258 = por %p256, %p257
      %p260 = scmp.ne.s32.totalorder %s243, %s259
      %p261 = scmp.eq.s32.totalorder %s41, 0
      %p262 = por %p260, %p261
      %s263 = ssub.s32 %s43, %s50
      %p264 = scmp.eq.s32.totalorder %s263, 0
      %s266 = sadd.s32 %s265, 1
      %s267 = scalar_select %p264, %s265, %s266
      %p270 = pneg %p264
      %p271 = scmp.eq.s32.totalorder %s35, 7
      %p272 = por %p270, %p271
      %p273 = scmp.ne.s32.totalorder %s265, %s268
      %p274 = scmp.eq.s32.totalorder %s35, 0
      %p275 = por %p273, %p274
      %p276 = scmp.ne.s32.totalorder %s265, %s268
      %p277 = scmp.eq.s32.totalorder %s40, 7
      %p278 = por %p276, %p277
      %p279 = scmp.ne.s32.totalorder %s268, %s269
      %p280 = scmp.eq.s32.totalorder %s40, 0
      %p281 = por %p279, %p280
      %p282 = scmp.ne.s32.totalorder %s268, %s269
      %p283 = scmp.eq.s32.totalorder %s41, 7
      %p284 = por %p282, %p283
      %p286 = scmp.ne.s32.totalorder %s269, %s285
      %p287 = scmp.eq.s32.totalorder %s41, 0
      %p288 = por %p286, %p287
      %s289 = ssub.s32 %s43, %s50
      %p290 = scmp.eq.s32.totalorder %s289, 0
      %s292 = sadd.s32 %s291, 1
      %s293 = scalar_select %p290, %s291, %s292
      %p296 = pneg %p290
      %p297 = scmp.eq.s32.totalorder %s35, 7
      %p298 = por %p296, %p297
      %p299 = scmp.ne.s32.totalorder %s291, %s294
      %p300 = scmp.eq.s32.totalorder %s35, 0
      %p301 = por %p299, %p300
      %p302 = scmp.ne.s32.totalorder %s291, %s294
      %p303 = scmp.eq.s32.totalorder %s40, 7
      %p304 = por %p302, %p303
      %p305 = scmp.ne.s32.totalorder %s294, %s295
      %p306 = scmp.eq.s32.totalorder %s40, 0
      %p307 = por %p305, %p306
      %p308 = scmp.ne.s32.totalorder %s294, %s295
      %p309 = scmp.eq.s32.totalorder %s41, 7
      %p310 = por %p308, %p309
      %p312 = scmp.ne.s32.totalorder %s295, %s311
      %p313 = scmp.eq.s32.totalorder %s41, 0
      %p314 = por %p312, %p313
      %s315 = ssub.s32 %s43, %s50
      %p316 = scmp.eq.s32.totalorder %s315, 0
      %s318 = sadd.s32 %s317, 1
      %s319 = scalar_select %p316, %s317, %s318
      %p322 = pneg %p316
      %p323 = scmp.eq.s32.totalorder %s35, 7
      %p324 = por %p322, %p323
      %p325 = scmp.ne.s32.totalorder %s317, %s320
      %p326 = scmp.eq.s32.totalorder %s35, 0
      %p327 = por %p325, %p326
      %p328 = scmp.ne.s32.totalorder %s317, %s320
      %p329 = scmp.eq.s32.totalorder %s40, 7
      %p330 = por %p328, %p329
      %p331 = scmp.ne.s32.totalorder %s320, %s321
      %p332 = scmp.eq.s32.totalorder %s40, 0
      %p333 = por %p331, %p332
      %p334 = scmp.ne.s32.totalorder %s320, %s321
      %p335 = scmp.eq.s32.totalorder %s41, 7
      %p336 = por %p334, %p335
      %p338 = scmp.ne.s32.totalorder %s321, %s337
      %p339 = scmp.eq.s32.totalorder %s41, 0
      %p340 = por %p338, %p339
      %s341 = ssub.s32 %s43, %s50
      %p342 = scmp.eq.s32.totalorder %s341, 0
      %s344 = sadd.s32 %s343, 1
      %s345 = scalar_select %p342, %s343, %s344
      %p348 = pneg %p342
      %p349 = scmp.eq.s32.totalorder %s35, 7
      %p350 = por %p348, %p349
      %p351 = scmp.ne.s32.totalorder %s343, %s346
      %p352 = scmp.eq.s32.totalorder %s35, 0
      %p353 = por %p351, %p352
      %p354 = scmp.ne.s32.totalorder %s343, %s346
      %p355 = scmp.eq.s32.totalorder %s40, 7
      %p356 = por %p354, %p355
      %p357 = scmp.ne.s32.totalorder %s346, %s347
      %p358 = scmp.eq.s32.totalorder %s40, 0
      %p359 = por %p357, %p358
      %p360 = scmp.ne.s32.totalorder %s346, %s347
      %p361 = scmp.eq.s32.totalorder %s41, 7
      %p362 = por %p360, %p361
      %p364 = scmp.ne.s32.totalorder %s347, %s363
      %p365 = scmp.eq.s32.totalorder %s41, 0
      %p366 = por %p364, %p365
      %s367 = ssub.s32 %s42, %s54
      %p368 = scmp.eq.s32.totalorder %s367, 0
      %s370 = sadd.s32 %s369, 1
      %s371 = scalar_select %p368, %s369, %s370
      %p374 = pneg %p368
      %p375 = scmp.eq.s32.totalorder %s35, 7
      %p376 = por %p374, %p375
      %p377 = scmp.ne.s32.totalorder %s369, %s372
      %p378 = scmp.eq.s32.totalorder %s35, 0
      %p379 = por %p377, %p378
      %p380 = scmp.ne.s32.totalorder %s369, %s372
      %p381 = scmp.eq.s32.totalorder %s40, 7
      %p382 = por %p380, %p381
      %p383 = scmp.ne.s32.totalorder %s372, %s373
      %p384 = scmp.eq.s32.totalorder %s40, 0
      %p385 = por %p383, %p384
      %p386 = scmp.ne.s32.totalorder %s372, %s373
      %p387 = scmp.eq.s32.totalorder %s41, 7
      %p388 = por %p386, %p387
      %p390 = scmp.ne.s32.totalorder %s373, %s389
      %p391 = scmp.eq.s32.totalorder %s41, 0
      %p392 = por %p390, %p391
      %s393 = ssub.s32 %s42, %s54
      %p394 = scmp.eq.s32.totalorder %s393, 0
      %s396 = sadd.s32 %s395, 1
      %s397 = scalar_select %p394, %s395, %s396
      %p400 = pneg %p394
      %p401 = scmp.eq.s32.totalorder %s35, 7
      %p402 = por %p400, %p401
      %p403 = scmp.ne.s32.totalorder %s395, %s398
      %p404 = scmp.eq.s32.totalorder %s35, 0
      %p405 = por %p403, %p404
      %p406 = scmp.ne.s32.totalorder %s395, %s398
      %p407 = scmp.eq.s32.totalorder %s40, 7
      %p408 = por %p406, %p407
      %p409 = scmp.ne.s32.totalorder %s398, %s399
      %p410 = scmp.eq.s32.totalorder %s40, 0
      %p411 = por %p409, %p410
      %p412 = scmp.ne.s32.totalorder %s398, %s399
      %p413 = scmp.eq.s32.totalorder %s41, 7
      %p414 = por %p412, %p413
      %p416 = scmp.ne.s32.totalorder %s399, %s415
      %p417 = scmp.eq.s32.totalorder %s41, 0
      %p418 = por %p416, %p417
      %p419 = scmp.le.s32.totalorder 1, %s35
      %p420 = scmp.lt.s32.totalorder %s35, 9
      %p421 = pnand %p419, %p420
      %p422 = pneg %p421
      // Predicated region
      $region9: #{transformer_forward.1} parent=5 // pred_check
        _
      $region10: #{transformer_forward.1} parent=5 // pred_check_branch
        %424 = sbr.rel (%p421) target = $region12
      $region11: #{transformer_forward.1} parent=5 // pred_region
        %s425 = ssub.s32 %s35, 1
      $region12: #{transformer_forward.1} parent=5 // pred_fallthru
        _
      %p426 = scmp.lt.s32.totalorder %s35, 8
      // Predicated region
      $region13: #{transformer_forward.1} parent=5 // pred_check
        %p427 = pneg %p426
      $region14: #{transformer_forward.1} parent=5 // pred_check_branch
        %429 = sbr.rel (%p427) target = $region16
      $region15: #{transformer_forward.1} parent=5 // pred_region
        // Predicated region
        $region17: #{transformer_forward.1} parent=15 // pred_check
          %p430 = pneg %p67
        $region18: #{transformer_forward.1} parent=15 // pred_check_branch
          %432 = sbr.rel (%p430) target = $region20
        $region19: #{transformer_forward.1} parent=15 // pred_region
          %s433 = sand.u32 %s57, 1
          %s434 = scalar_lea.sflag [#allocation3], %s433
          %s435 = sand.u32 %s57, 1
          %s436 = smul.addr %s435, 128
          %s437 = scalar_lea.vmem [#allocation2], %s436
          %s438 = smul.u32 8, %s42
          %s440 = ssub.s32 2048, 2048
          %441 = vsyncadd %s434, %s440
          %s442 = smul.addr %s438, 2
          %s443 = smul.addr %s442, 128
          %s444 = scalar_lea.hbm %s0, %s443
          %s445 = sshll.u32 %s437, 4
          %s446 = int_to_ptr.vmem [resolvable:$true] %s445
          %451 = dma.hbm_to_vmem [thread:$0]  %s444, 2048, %s446, %s434, 128, 128, 8
        $region20: #{transformer_forward.1} parent=15 // pred_fallthru
          _
        // Predicated region
        $region21: #{transformer_forward.1} parent=15 // pred_check
          %p452 = pneg %p93
        $region22: #{transformer_forward.1} parent=15 // pred_check_branch
          %454 = sbr.rel (%p452) target = $region24
        $region23: #{transformer_forward.1} parent=15 // pred_region
          %p455 = scmp.lt.s32.totalorder %s43, 3
          %s456 = scalar_select %p455, %s43, 3
          %s457 = scalar_lea.vmem %s1, %s456
        $region24: #{transformer_forward.1} parent=15 // pred_fallthru
          _
        // Predicated region
        $region25: #{transformer_forward.1} parent=15 // pred_check
          %p458 = pneg %p119
        $region26: #{transformer_forward.1} parent=15 // pred_check_branch
          %460 = sbr.rel (%p458) target = $region28
        $region27: #{transformer_forward.1} parent=15 // pred_region
          %p461 = scmp.lt.s32.totalorder %s43, 3
          %s462 = scalar_select %p461, %s43, 3
          %s463 = scalar_lea.vmem %s2, %s462
        $region28: #{transformer_forward.1} parent=15 // pred_fallthru
          _
        // Predicated region
        $region29: #{transformer_forward.1} parent=15 // pred_check
          %p464 = pneg %p145
        $region30: #{transformer_forward.1} parent=15 // pred_check_branch
          %466 = sbr.rel (%p464) target = $region32
        $region31: #{transformer_forward.1} parent=15 // pred_region
          %s467 = sand.u32 %s35, 1
          %s468 = scalar_lea.sflag [#allocation6], %s467
          %s469 = sand.u32 %s135, 1
          %s470 = smul.addr %s469, 192
          %s471 = scalar_lea.vmem [#allocation5], %s470
          %s473 = ssub.s32 3072, 3072
          %474 = vsyncadd %s468, %s473
          %s475 = smul.addr %s43, 48
          %s476 = smul.addr %s475, 64
          %s477 = scalar_lea.hbm %s3, %s476
          %s478 = sshll.u32 %s471, 4
          %s479 = int_to_ptr.vmem [resolvable:$true] %s478
          %484 = dma.hbm_to_vmem [thread:$0]  %s477, 3072, %s479, %s468, 192, 192, 12
        $region32: #{transformer_forward.1} parent=15 // pred_fallthru
          _
        // Predicated region
        $region33: #{transformer_forward.1} parent=15 // pred_check
          %p485 = pneg %p171
        $region34: #{transformer_forward.1} parent=15 // pred_check_branch
          %487 = sbr.rel (%p485) target = $region36
        $region35: #{transformer_forward.1} parent=15 // pred_region
          %s488 = sand.u32 %s35, 1
          %s489 = scalar_lea.sflag [#allocation6], %s488
          %s490 = sand.u32 %s161, 1
          %s491 = smul.addr %s490, 64
          %s492 = scalar_lea.vmem [#allocation7], %s491
          %s494 = ssub.s32 1024, 1024
          %495 = vsyncadd %s489, %s494
          %s496 = smul.addr %s43, 16
          %s497 = smul.addr %s496, 64
          %s498 = scalar_lea.hbm %s4, %s497
          %s499 = sshll.u32 %s492, 4
          %s500 = int_to_ptr.vmem [resolvable:$true] %s499
          %505 = dma.hbm_to_vmem [thread:$0]  %s498, 1024, %s500, %s489, 64, 64, 4
        $region36: #{transformer_forward.1} parent=15 // pred_fallthru
          _
        // Predicated region
        $region37: #{transformer_forward.1} parent=15 // pred_check
          %p506 = pneg %p197
        $region38: #{transformer_forward.1} parent=15 // pred_check_branch
          %508 = sbr.rel (%p506) target = $region40
        $region39: #{transformer_forward.1} parent=15 // pred_region
          %p509 = scmp.lt.s32.totalorder %s43, 3
          %s510 = scalar_select %p509, %s43, 3
          %s511 = scalar_lea.vmem %s5, %s510
        $region40: #{transformer_forward.1} parent=15 // pred_fallthru
          _
        // Predicated region
        $region41: #{transformer_forward.1} parent=15 // pred_check
          %p512 = pneg %p223
        $region42: #{transformer_forward.1} parent=15 // pred_check_branch
          %514 = sbr.rel (%p512) target = $region44
        $region43: #{transformer_forward.1} parent=15 // pred_region
          %p515 = scmp.lt.s32.totalorder %s43, 3
          %s516 = scalar_select %p515, %s43, 3
          %s517 = scalar_lea.vmem %s6, %s516
        $region44: #{transformer_forward.1} parent=15 // pred_fallthru
          _
        // Predicated region
        $region45: #{transformer_forward.1} parent=15 // pred_check
          %p518 = pneg %p249
        $region46: #{transformer_forward.1} parent=15 // pred_check_branch
          %520 = sbr.rel (%p518) target = $region48
        $region47: #{transformer_forward.1} parent=15 // pred_region
          %p521 = scmp.lt.s32.totalorder %s43, 3
          %s522 = scalar_select %p521, %s43, 3
          %s523 = scalar_lea.vmem %s7, %s522
        $region48: #{transformer_forward.1} parent=15 // pred_fallthru
          _
        // Predicated region
        $region49: #{transformer_forward.1} parent=15 // pred_check
          %p524 = pneg %p275
        $region50: #{transformer_forward.1} parent=15 // pred_check_branch
          %526 = sbr.rel (%p524) target = $region52
        $region51: #{transformer_forward.1} parent=15 // pred_region
          %p527 = scmp.lt.s32.totalorder %s43, 3
          %s528 = scalar_select %p527, %s43, 3
          %s529 = smul.addr %s528, 32
          %s530 = smul.addr %s529, 4
          %s531 = scalar_lea.vmem %s8, %s530
        $region52: #{transformer_forward.1} parent=15 // pred_fallthru
          _
        // Predicated region
        $region53: #{transformer_forward.1} parent=15 // pred_check
          %p532 = pneg %p301
        $region54: #{transformer_forward.1} parent=15 // pred_check_branch
          %534 = sbr.rel (%p532) target = $region56
        $region55: #{transformer_forward.1} parent=15 // pred_region
          %p535 = scmp.lt.s32.totalorder %s43, 3
          %s536 = scalar_select %p535, %s43, 3
          %s537 = smul.addr %s536, 2
          %s538 = scalar_lea.vmem %s9, %s537
        $region56: #{transformer_forward.1} parent=15 // pred_fallthru
          _
        // Predicated region
        $region57: #{transformer_forward.1} parent=15 // pred_check
          %p539 = pneg %p327
        $region58: #{transformer_forward.1} parent=15 // pred_check_branch
          %541 = sbr.rel (%p539) target = $region60
        $region59: #{transformer_forward.1} parent=15 // pred_region
          %s542 = sand.u32 %s35, 1
          %s543 = scalar_lea.sflag [#allocation9], %s542
          %s544 = sand.u32 %s317, 1
          %s545 = smul.addr %s544, 128
          %s546 = scalar_lea.vmem [#allocation8], %s545
          %s548 = ssub.s32 2048, 2048
          %549 = vsyncadd %s543, %s548
          %s550 = smul.addr %s43, 32
          %s551 = smul.addr %s550, 64
          %s552 = scalar_lea.hbm %s10, %s551
          %s553 = sshll.u32 %s546, 4
          %s554 = int_to_ptr.vmem [resolvable:$true] %s553
          %559 = dma.hbm_to_vmem [thread:$0]  %s552, 2048, %s554, %s543, 64, 64, 4
        $region60: #{transformer_forward.1} parent=15 // pred_fallthru
          _
        // Predicated region
        $region61: #{transformer_forward.1} parent=15 // pred_check
          %p560 = pneg %p353
        $region62: #{transformer_forward.1} parent=15 // pred_check_branch
          %562 = sbr.rel (%p560) target = $region64
        $region63: #{transformer_forward.1} parent=15 // pred_region
          %s563 = sand.u32 %s35, 1
          %s564 = scalar_lea.sflag [#allocation9], %s563
          %s565 = sand.u32 %s343, 1
          %s566 = scalar_lea.vmem [#allocation10], %s565
          %s568 = ssub.s32 16, 16
          %569 = vsyncadd %s564, %s568
          %s570 = smul.addr %s43, 16
          %s571 = scalar_lea.hbm %s11, %s570
          %s573 = sshll.u32 %s566, 4
          %s574 = int_to_ptr.vmem [resolvable:$true] %s573
          %576 = dma.hbm_to_vmem [thread:$0]  %s571, 16, %s574, %s564
        $region64: #{transformer_forward.1} parent=15 // pred_fallthru
          _
      $region16: #{transformer_forward.1} parent=5 // pred_fallthru
        _
      %p577 = scmp.le.s32.totalorder 1, %s35
      %p578 = scmp.lt.s32.totalorder %s35, 9
      %p579 = pnand %p577, %p578
      %p580 = pneg %p579
      // Predicated region
      $region65: #{transformer_forward.1} parent=5 // pred_check
        _
      $region66: #{transformer_forward.1} parent=5 // pred_check_branch
        %582 = sbr.rel (%p579) target = $region68
      $region67: #{transformer_forward.1} parent=5 // pred_region
        %s583 = ssub.s32 %s35, 1
        %s584 = sand.u32 %s60, 1
        %s585 = scalar_lea.sflag [#allocation3], %s584
        %s586 = sand.u32 %s60, 1
        %s587 = smul.addr %s586, 128
        %s588 = scalar_lea.vmem [#allocation2], %s587
        // Predicated region
        $region69: #{transformer_forward.1} parent=67 // pred_check
          %p589 = pneg %p73
        $region70: #{transformer_forward.1} parent=67 // pred_check_branch
          %591 = sbr.rel (%p589) target = $region72
        $region71: #{transformer_forward.1} parent=67 // pred_region
          %592 = dma.done %s585, 2048
        $region72: #{transformer_forward.1} parent=67 // pred_fallthru
          _
        %s593 = sand.u32 %s40, 1
        %s594 = scalar_lea.sflag [#allocation6], %s593
        %s595 = sand.u32 %s138, 1
        %s596 = smul.addr %s595, 192
        %s597 = scalar_lea.vmem [#allocation5], %s596
        // Predicated region
        $region73: #{transformer_forward.1} parent=67 // pred_check
          %p598 = pneg %p151
        $region74: #{transformer_forward.1} parent=67 // pred_check_branch
          %600 = sbr.rel (%p598) target = $region76
        $region75: #{transformer_forward.1} parent=67 // pred_region
          %601 = dma.done %s594, 3072
        $region76: #{transformer_forward.1} parent=67 // pred_fallthru
          _
        %s602 = sand.u32 %s40, 1
        %s603 = scalar_lea.sflag [#allocation6], %s602
        %s604 = sand.u32 %s164, 1
        %s605 = smul.addr %s604, 64
        %s606 = scalar_lea.vmem [#allocation7], %s605
        // Predicated region
        $region77: #{transformer_forward.1} parent=67 // pred_check
          %p607 = pneg %p177
        $region78: #{transformer_forward.1} parent=67 // pred_check_branch
          %609 = sbr.rel (%p607) target = $region80
        $region79: #{transformer_forward.1} parent=67 // pred_region
          %610 = dma.done %s603, 1024
        $region80: #{transformer_forward.1} parent=67 // pred_fallthru
          _
        %s611 = sand.u32 %s40, 1
        %s612 = scalar_lea.sflag [#allocation9], %s611
        %s613 = sand.u32 %s320, 1
        %s614 = smul.addr %s613, 128
        %s615 = scalar_lea.vmem [#allocation8], %s614
        // Predicated region
        $region81: #{transformer_forward.1} parent=67 // pred_check
          %p616 = pneg %p333
        $region82: #{transformer_forward.1} parent=67 // pred_check_branch
          %618 = sbr.rel (%p616) target = $region84
        $region83: #{transformer_forward.1} parent=67 // pred_region
          %619 = dma.done %s612, 2048
        $region84: #{transformer_forward.1} parent=67 // pred_fallthru
          _
        %s620 = sand.u32 %s40, 1
        %s621 = scalar_lea.sflag [#allocation9], %s620
        %s622 = sand.u32 %s346, 1
        %s623 = scalar_lea.vmem [#allocation10], %s622
        // Predicated region
        $region85: #{transformer_forward.1} parent=67 // pred_check
          %p624 = pneg %p359
        $region86: #{transformer_forward.1} parent=67 // pred_check_branch
          %626 = sbr.rel (%p624) target = $region88
        $region87: #{transformer_forward.1} parent=67 // pred_region
          %627 = dma.done %s621, 16
        $region88: #{transformer_forward.1} parent=67 // pred_fallthru
          _
        %s628 = sand.u32 %s60, 1
        %s629 = scalar_lea.sflag [#allocation3], %s628
        %s630 = sand.u32 %s60, 1
        %s631 = smul.addr %s630, 128
        %s632 = scalar_lea.vmem [#allocation2], %s631
        %p633 = pneg %p73
        %p634 = pneg %p70
        %p635 = scmp.lt.s32.totalorder %s45, 3
        %s636 = scalar_select %p635, %s45, 3
        %s637 = scalar_lea.vmem %s1, %s636
        %p638 = pneg %p99
        %p639 = pneg %p96
        %p640 = scmp.lt.s32.totalorder %s45, 3
        %s641 = scalar_select %p640, %s45, 3
        %s642 = scalar_lea.vmem %s2, %s641
        %p643 = pneg %p125
        %p644 = pneg %p122
        %s645 = sand.u32 %s40, 1
        %s646 = scalar_lea.sflag [#allocation6], %s645
        %s647 = sand.u32 %s138, 1
        %s648 = smul.addr %s647, 192
        %s649 = scalar_lea.vmem [#allocation5], %s648
        %p650 = pneg %p151
        %p651 = pneg %p148
        %s652 = sand.u32 %s40, 1
        %s653 = scalar_lea.sflag [#allocation6], %s652
        %s654 = sand.u32 %s164, 1
        %s655 = smul.addr %s654, 64
        %s656 = scalar_lea.vmem [#allocation7], %s655
        %p657 = pneg %p177
        %p658 = pneg %p174
        %p659 = scmp.lt.s32.totalorder %s45, 3
        %s660 = scalar_select %p659, %s45, 3
        %s661 = scalar_lea.vmem %s5, %s660
        %p662 = pneg %p203
        %p663 = pneg %p200
        %p664 = scmp.lt.s32.totalorder %s45, 3
        %s665 = scalar_select %p664, %s45, 3
        %s666 = scalar_lea.vmem %s6, %s665
        %p667 = pneg %p229
        %p668 = pneg %p226
        %p669 = scmp.lt.s32.totalorder %s45, 3
        %s670 = scalar_select %p669, %s45, 3
        %s671 = scalar_lea.vmem %s7, %s670
        %p672 = pneg %p255
        %p673 = pneg %p252
        %p674 = scmp.lt.s32.totalorder %s45, 3
        %s675 = scalar_select %p674, %s45, 3
        %s676 = smul.addr %s675, 32
        %s677 = smul.addr %s676, 4
        %s678 = scalar_lea.vmem %s8, %s677
        %p679 = pneg %p281
        %p680 = pneg %p278
        %p681 = scmp.lt.s32.totalorder %s45, 3
        %s682 = scalar_select %p681, %s45, 3
        %s683 = smul.addr %s682, 2
        %s684 = scalar_lea.vmem %s9, %s683
        %p685 = pneg %p307
        %p686 = pneg %p304
        %s687 = sand.u32 %s40, 1
        %s688 = scalar_lea.sflag [#allocation9], %s687
        %s689 = sand.u32 %s320, 1
        %s690 = smul.addr %s689, 128
        %s691 = scalar_lea.vmem [#allocation8], %s690
        %p692 = pneg %p333
        %p693 = pneg %p330
        %s694 = sand.u32 %s40, 1
        %s695 = scalar_lea.sflag [#allocation9], %s694
        %s696 = sand.u32 %s346, 1
        %s697 = scalar_lea.vmem [#allocation10], %s696
        %p698 = pneg %p359
        %p699 = pneg %p356
        %p700 = pneg %p385
        %p701 = pneg %p382
        %s702 = sand.u32 %s372, 1
        %s703 = scalar_lea.sflag [#allocation4], %s702
        %s704 = sand.u32 %s372, 1
        %s705 = smul.addr %s704, 128
        %s706 = scalar_lea.vmem [#allocation11], %s705
        %p707 = pneg %p411
        %p708 = pneg %p408
        %s709 = sand.u32 %s398, 1
        %s710 = scalar_lea.sflag [#allocation13], %s709
        %s711 = sand.u32 %s398, 1
        %s712 = smul.addr %s711, 128
        %s713 = scalar_lea.vmem [#allocation12], %s712
        %s714 = smul.u32 8, %s44
        %p715 = scmp.lt.s32.totalorder %s45, 3
        %s716 = scalar_select %p715, %s45, 3
        %s717 = scalar_lea.vmem %s1, %s716
        %p718 = scmp.lt.s32.totalorder %s45, 3
        %s719 = scalar_select %p718, %s45, 3
        %s720 = scalar_lea.vmem %s2, %s719
        %p721 = scmp.lt.s32.totalorder %s45, 3
        %s722 = scalar_select %p721, %s45, 3
        %s723 = scalar_lea.vmem %s5, %s722
        %p724 = scmp.lt.s32.totalorder %s45, 3
        %s725 = scalar_select %p724, %s45, 3
        %s726 = scalar_lea.vmem %s6, %s725
        %p727 = scmp.lt.s32.totalorder %s45, 3
        %s728 = scalar_select %p727, %s45, 3
        %s729 = scalar_lea.vmem %s7, %s728
        %p730 = scmp.lt.s32.totalorder %s45, 3
        %s731 = scalar_select %p730, %s45, 3
        %s732 = smul.addr %s731, 32
        %s733 = smul.addr %s732, 4
        %s734 = scalar_lea.vmem %s8, %s733
        %p735 = scmp.lt.s32.totalorder %s45, 3
        %s736 = scalar_select %p735, %s45, 3
        %s737 = smul.addr %s736, 2
        %s738 = scalar_lea.vmem %s9, %s737
        %s739 = smul.u32 8, %s44
        %s740 = smul.u32 8, %s44
        %p742 = scmp.eq.s32.totalorder %s45, 0
        // Predicated region
        $region89: #{transformer_forward.1} parent=67 // pred_check
          %p743 = pneg %p742
        $region90: #{transformer_forward.1} parent=67 // pred_check_branch
          %745 = sbr.rel (%p743) target = $region92
        $region91: #{transformer_forward.1} parent=67 // pred_region
          %v746 = vld [vmem:[%s588] sm:$0xff]
          %v747 = vld [vmem:[%s588 + $0x8] sm:$0xff]
          %v748 = vld [vmem:[%s588 + $0x10] sm:$0xff]
          %v749 = vld [vmem:[%s588 + $0x18] sm:$0xff]
          %v750 = vld [vmem:[%s588 + $0x20] sm:$0xff]
          %v751 = vld [vmem:[%s588 + $0x28] sm:$0xff]
          %v752 = vld [vmem:[%s588 + $0x30] sm:$0xff]
          %v753 = vld [vmem:[%s588 + $0x38] sm:$0xff]
          %v754 = vld [vmem:[%s588 + $0x40] sm:$0xff]
          %v755 = vld [vmem:[%s588 + $0x48] sm:$0xff]
          %v756 = vld [vmem:[%s588 + $0x50] sm:$0xff]
          %v757 = vld [vmem:[%s588 + $0x58] sm:$0xff]
          %v758 = vld [vmem:[%s588 + $0x60] sm:$0xff]
          %v759 = vld [vmem:[%s588 + $0x68] sm:$0xff]
          %v760 = vld [vmem:[%s588 + $0x70] sm:$0xff]
          %v761 = vld [vmem:[%s588 + $0x78] sm:$0xff]
          %762 = vst [vmem:[%s706] sm:$0xff] %v746
          %763 = vst [vmem:[%s706 + $0x8] sm:$0xff] %v747
          %764 = vst [vmem:[%s706 + $0x10] sm:$0xff] %v748
          %765 = vst [vmem:[%s706 + $0x18] sm:$0xff] %v749
          %766 = vst [vmem:[%s706 + $0x20] sm:$0xff] %v750
          %767 = vst [vmem:[%s706 + $0x28] sm:$0xff] %v751
          %768 = vst [vmem:[%s706 + $0x30] sm:$0xff] %v752
          %769 = vst [vmem:[%s706 + $0x38] sm:$0xff] %v753
          %770 = vst [vmem:[%s706 + $0x40] sm:$0xff] %v754
          %771 = vst [vmem:[%s706 + $0x48] sm:$0xff] %v755
          %772 = vst [vmem:[%s706 + $0x50] sm:$0xff] %v756
          %773 = vst [vmem:[%s706 + $0x58] sm:$0xff] %v757
          %774 = vst [vmem:[%s706 + $0x60] sm:$0xff] %v758
          %775 = vst [vmem:[%s706 + $0x68] sm:$0xff] %v759
          %776 = vst [vmem:[%s706 + $0x70] sm:$0xff] %v760
          %777 = vst [vmem:[%s706 + $0x78] sm:$0xff] %v761
        $region92: #{transformer_forward.1} parent=67 // pred_fallthru
          _
        %v778 = vld [vmem:[%s706] sm:$0xff]
        %v779 = vld [vmem:[%s706 + $0x8] sm:$0xff]
        %v780 = vld [vmem:[%s706 + $0x10] sm:$0xff]
        %v781 = vld [vmem:[%s706 + $0x18] sm:$0xff]
        %v782 = vld [vmem:[%s706 + $0x20] sm:$0xff]
        %v783 = vld [vmem:[%s706 + $0x28] sm:$0xff]
        %v784 = vld [vmem:[%s706 + $0x30] sm:$0xff]
        %v785 = vld [vmem:[%s706 + $0x38] sm:$0xff]
        %v786 = vld [vmem:[%s706 + $0x40] sm:$0xff]
        %v787 = vld [vmem:[%s706 + $0x48] sm:$0xff]
        %v788 = vld [vmem:[%s706 + $0x50] sm:$0xff]
        %v789 = vld [vmem:[%s706 + $0x58] sm:$0xff]
        %v790 = vld [vmem:[%s706 + $0x60] sm:$0xff]
        %v791 = vld [vmem:[%s706 + $0x68] sm:$0xff]
        %v792 = vld [vmem:[%s706 + $0x70] sm:$0xff]
        %v793 = vld [vmem:[%s706 + $0x78] sm:$0xff]
        %v794 = vld [vmem:[%s717] sm:$0x1]
        %v795 = vld [vmem:[%s720] sm:$0x1]
        %796 = vadd.xlane.f32.xlu0 %v778
        %v797 = vpop.xlane.xlu0 %796
        %798 = vadd.xlane.f32.xlu0 %v779
        %v799 = vpop.xlane.xlu0 %798
        %800 = vadd.xlane.f32.xlu0 %v780
        %v801 = vpop.xlane.xlu0 %800
        %802 = vadd.xlane.f32.xlu0 %v781
        %v803 = vpop.xlane.xlu0 %802
        %804 = vadd.xlane.f32.xlu0 %v782
        %v805 = vpop.xlane.xlu0 %804
        %806 = vadd.xlane.f32.xlu0 %v783
        %v807 = vpop.xlane.xlu0 %806
        %808 = vadd.xlane.f32.xlu0 %v784
        %v809 = vpop.xlane.xlu0 %808
        %810 = vadd.xlane.f32.xlu0 %v785
        %v811 = vpop.xlane.xlu0 %810
        %812 = vadd.xlane.f32.xlu0 %v786
        %v813 = vpop.xlane.xlu0 %812
        %814 = vadd.xlane.f32.xlu0 %v787
        %v815 = vpop.xlane.xlu0 %814
        %816 = vadd.xlane.f32.xlu0 %v788
        %v817 = vpop.xlane.xlu0 %816
        %818 = vadd.xlane.f32.xlu0 %v789
        %v819 = vpop.xlane.xlu0 %818
        %820 = vadd.xlane.f32.xlu0 %v790
        %v821 = vpop.xlane.xlu0 %820
        %822 = vadd.xlane.f32.xlu0 %v791
        %v823 = vpop.xlane.xlu0 %822
        %824 = vadd.xlane.f32.xlu0 %v792
        %v825 = vpop.xlane.xlu0 %824
        %826 = vadd.xlane.f32.xlu0 %v793
        %v827 = vpop.xlane.xlu0 %826
        %v828 = vrcp.pop 128.0
        %v829 = vmul.f32 %v797, %v828
        %v830 = vmul.f32 %v799, %v828
        %v831 = vmul.f32 %v801, %v828
        %v832 = vmul.f32 %v803, %v828
        %v833 = vmul.f32 %v805, %v828
        %v834 = vmul.f32 %v807, %v828
        %v835 = vmul.f32 %v809, %v828
        %v836 = vmul.f32 %v811, %v828
        %v837 = vmul.f32 %v813, %v828
        %v838 = vmul.f32 %v815, %v828
        %v839 = vmul.f32 %v817, %v828
        %v840 = vmul.f32 %v819, %v828
        %v841 = vmul.f32 %v821, %v828
        %v842 = vmul.f32 %v823, %v828
        %v843 = vmul.f32 %v825, %v828
        %v844 = vmul.f32 %v827, %v828
        %v845 = vmul.f32 %v778, %v778
        %v846 = vmul.f32 %v779, %v779
        %v847 = vmul.f32 %v780, %v780
        %v848 = vmul.f32 %v781, %v781
        %v849 = vmul.f32 %v782, %v782
        %v850 = vmul.f32 %v783, %v783
        %v851 = vmul.f32 %v784, %v784
        %v852 = vmul.f32 %v785, %v785
        %v853 = vmul.f32 %v786, %v786
        %v854 = vmul.f32 %v787, %v787
        %v855 = vmul.f32 %v788, %v788
        %v856 = vmul.f32 %v789, %v789
        %v857 = vmul.f32 %v790, %v790
        %v858 = vmul.f32 %v791, %v791
        %v859 = vmul.f32 %v792, %v792
        %v860 = vmul.f32 %v793, %v793
        %861 = vadd.xlane.f32.xlu0 %v845
        %v862 = vpop.xlane.xlu0 %861
        %863 = vadd.xlane.f32.xlu0 %v846
        %v864 = vpop.xlane.xlu0 %863
        %865 = vadd.xlane.f32.xlu0 %v847
        %v866 = vpop.xlane.xlu0 %865
        %867 = vadd.xlane.f32.xlu0 %v848
        %v868 = vpop.xlane.xlu0 %867
        %869 = vadd.xlane.f32.xlu0 %v849
        %v870 = vpop.xlane.xlu0 %869
        %871 = vadd.xlane.f32.xlu0 %v850
        %v872 = vpop.xlane.xlu0 %871
        %873 = vadd.xlane.f32.xlu0 %v851
        %v874 = vpop.xlane.xlu0 %873
        %875 = vadd.xlane.f32.xlu0 %v852
        %v876 = vpop.xlane.xlu0 %875
        %877 = vadd.xlane.f32.xlu0 %v853
        %v878 = vpop.xlane.xlu0 %877
        %879 = vadd.xlane.f32.xlu0 %v854
        %v880 = vpop.xlane.xlu0 %879
        %881 = vadd.xlane.f32.xlu0 %v855
        %v882 = vpop.xlane.xlu0 %881
        %883 = vadd.xlane.f32.xlu0 %v856
        %v884 = vpop.xlane.xlu0 %883
        %885 = vadd.xlane.f32.xlu0 %v857
        %v886 = vpop.xlane.xlu0 %885
        %887 = vadd.xlane.f32.xlu0 %v858
        %v888 = vpop.xlane.xlu0 %887
        %889 = vadd.xlane.f32.xlu0 %v859
        %v890 = vpop.xlane.xlu0 %889
        %891 = vadd.xlane.f32.xlu0 %v860
        %v892 = vpop.xlane.xlu0 %891
        %v893 = vmul.f32 %v862, %v828
        %v894 = vmul.f32 %v864, %v828
        %v895 = vmul.f32 %v866, %v828
        %v896 = vmul.f32 %v868, %v828
        %v897 = vmul.f32 %v870, %v828
        %v898 = vmul.f32 %v872, %v828
        %v899 = vmul.f32 %v874, %v828
        %v900 = vmul.f32 %v876, %v828
        %v901 = vmul.f32 %v878, %v828
        %v902 = vmul.f32 %v880, %v828
        %v903 = vmul.f32 %v882, %v828
        %v904 = vmul.f32 %v884, %v828
        %v905 = vmul.f32 %v886, %v828
        %v906 = vmul.f32 %v888, %v828
        %v907 = vmul.f32 %v890, %v828
        %v908 = vmul.f32 %v892, %v828
        %v909 = vmul.f32 %v829, %v829
        %v910 = vmul.f32 %v830, %v830
        %v911 = vmul.f32 %v831, %v831
        %v912 = vmul.f32 %v832, %v832
        %v913 = vmul.f32 %v833, %v833
        %v914 = vmul.f32 %v834, %v834
        %v915 = vmul.f32 %v835, %v835
        %v916 = vmul.f32 %v836, %v836
        %v917 = vmul.f32 %v837, %v837
        %v918 = vmul.f32 %v838, %v838
        %v919 = vmul.f32 %v839, %v839
        %v920 = vmul.f32 %v840, %v840
        %v921 = vmul.f32 %v841, %v841
        %v922 = vmul.f32 %v842, %v842
        %v923 = vmul.f32 %v843, %v843
        %v924 = vmul.f32 %v844, %v844
        %v925 = vsub.f32 %v893, %v909
        %v926 = vsub.f32 %v894, %v910
        %v927 = vsub.f32 %v895, %v911
        %v928 = vsub.f32 %v896, %v912
        %v929 = vsub.f32 %v897, %v913
        %v930 = vsub.f32 %v898, %v914
        %v931 = vsub.f32 %v899, %v915
        %v932 = vsub.f32 %v900, %v916
        %v933 = vsub.f32 %v901, %v917
        %v934 = vsub.f32 %v902, %v918
        %v935 = vsub.f32 %v903, %v919
        %v936 = vsub.f32 %v904, %v920
        %v937 = vsub.f32 %v905, %v921
        %v938 = vsub.f32 %v906, %v922
        %v939 = vsub.f32 %v907, %v923
        %v940 = vsub.f32 %v908, %v924
        %v941 = vadd.f32 %v925, 1e-05
        %v942 = vadd.f32 %v926, 1e-05
        %v943 = vadd.f32 %v927, 1e-05
        %v944 = vadd.f32 %v928, 1e-05
        %v945 = vadd.f32 %v929, 1e-05
        %v946 = vadd.f32 %v930, 1e-05
        %v947 = vadd.f32 %v931, 1e-05
        %v948 = vadd.f32 %v932, 1e-05
        %v949 = vadd.f32 %v933, 1e-05
        %v950 = vadd.f32 %v934, 1e-05
        %v951 = vadd.f32 %v935, 1e-05
        %v952 = vadd.f32 %v936, 1e-05
        %v953 = vadd.f32 %v937, 1e-05
        %v954 = vadd.f32 %v938, 1e-05
        %v955 = vadd.f32 %v939, 1e-05
        %v956 = vadd.f32 %v940, 1e-05
        %v957 = vrsqrt.pop %v941
        %v958 = vrsqrt.pop %v942
        %v959 = vrsqrt.pop %v943
        %v960 = vrsqrt.pop %v944
        %v961 = vrsqrt.pop %v945
        %v962 = vrsqrt.pop %v946
        %v963 = vrsqrt.pop %v947
        %v964 = vrsqrt.pop %v948
        %v965 = vrsqrt.pop %v949
        %v966 = vrsqrt.pop %v950
        %v967 = vrsqrt.pop %v951
        %v968 = vrsqrt.pop %v952
        %v969 = vrsqrt.pop %v953
        %v970 = vrsqrt.pop %v954
        %v971 = vrsqrt.pop %v955
        %v972 = vrsqrt.pop %v956
        %v973 = vsub.f32 %v778, %v829
        %v974 = vsub.f32 %v779, %v830
        %v975 = vsub.f32 %v780, %v831
        %v976 = vsub.f32 %v781, %v832
        %v977 = vsub.f32 %v782, %v833
        %v978 = vsub.f32 %v783, %v834
        %v979 = vsub.f32 %v784, %v835
        %v980 = vsub.f32 %v785, %v836
        %v981 = vsub.f32 %v786, %v837
        %v982 = vsub.f32 %v787, %v838
        %v983 = vsub.f32 %v788, %v839
        %v984 = vsub.f32 %v789, %v840
        %v985 = vsub.f32 %v790, %v841
        %v986 = vsub.f32 %v791, %v842
        %v987 = vsub.f32 %v792, %v843
        %v988 = vsub.f32 %v793, %v844
        %v989 = vmul.f32 %v973, %v957
        %v990 = vmul.f32 %v974, %v958
        %v991 = vmul.f32 %v975, %v959
        %v992 = vmul.f32 %v976, %v960
        %v993 = vmul.f32 %v977, %v961
        %v994 = vmul.f32 %v978, %v962
        %v995 = vmul.f32 %v979, %v963
        %v996 = vmul.f32 %v980, %v964
        %v997 = vmul.f32 %v981, %v965
        %v998 = vmul.f32 %v982, %v966
        %v999 = vmul.f32 %v983, %v967
        %v1000 = vmul.f32 %v984, %v968
        %v1001 = vmul.f32 %v985, %v969
        %v1002 = vmul.f32 %v986, %v970
        %v1003 = vmul.f32 %v987, %v971
        %v1004 = vmul.f32 %v988, %v972
        %v1006 = vlaneseq
        %v1007 = vshrl.u32 %v1006, 7
        %v1008 = vsub.s32 0, %v1007
        %v1009 = vrot.slane %v794, %v1008
        %v1011 = vmul.f32 %v989, %v1009
        %v1012 = vmul.f32 %v990, %v1009
        %v1013 = vmul.f32 %v991, %v1009
        %v1014 = vmul.f32 %v992, %v1009
        %v1015 = vmul.f32 %v993, %v1009
        %v1016 = vmul.f32 %v994, %v1009
        %v1017 = vmul.f32 %v995, %v1009
        %v1018 = vmul.f32 %v996, %v1009
        %v1019 = vmul.f32 %v997, %v1009
        %v1020 = vmul.f32 %v998, %v1009
        %v1021 = vmul.f32 %v999, %v1009
        %v1022 = vmul.f32 %v1000, %v1009
        %v1023 = vmul.f32 %v1001, %v1009
        %v1024 = vmul.f32 %v1002, %v1009
        %v1025 = vmul.f32 %v1003, %v1009
        %v1026 = vmul.f32 %v1004, %v1009
        %v1028 = vlaneseq
        %v1029 = vshrl.u32 %v1028, 7
        %v1030 = vsub.s32 0, %v1029
        %v1031 = vrot.slane %v795, %v1030
        %v1033 = vadd.f32 %v1011, %v1031
        %v1034 = vadd.f32 %v1012, %v1031
        %v1035 = vadd.f32 %v1013, %v1031
        %v1036 = vadd.f32 %v1014, %v1031
        %v1037 = vadd.f32 %v1015, %v1031
        %v1038 = vadd.f32 %v1016, %v1031
        %v1039 = vadd.f32 %v1017, %v1031
        %v1040 = vadd.f32 %v1018, %v1031
        %v1041 = vadd.f32 %v1019, %v1031
        %v1042 = vadd.f32 %v1020, %v1031
        %v1043 = vadd.f32 %v1021, %v1031
        %v1044 = vadd.f32 %v1022, %v1031
        %v1045 = vadd.f32 %v1023, %v1031
        %v1046 = vadd.f32 %v1024, %v1031
        %v1047 = vadd.f32 %v1025, %v1031
        %v1048 = vadd.f32 %v1026, %v1031
        %v1049 = vpack.c.bf16 %v1034, %v1033
        %v1050 = vpack.c.bf16 %v1036, %v1035
        %v1051 = vpack.c.bf16 %v1038, %v1037
        %v1052 = vpack.c.bf16 %v1040, %v1039
        %v1053 = vpack.c.bf16 %v1042, %v1041
        %v1054 = vpack.c.bf16 %v1044, %v1043
        %v1055 = vpack.c.bf16 %v1046, %v1045
        %v1056 = vpack.c.bf16 %v1048, %v1047
        %v1057 = vld [vmem:[%s597] sm:$0xff]
        %v1058 = vld [vmem:[%s597 + $0x8] sm:$0xf]
        %v1059 = vld [vmem:[%s597 + $0xc] sm:$0xff]
        %v1060 = vld [vmem:[%s597 + $0x14] sm:$0xf]
        %v1061 = vld [vmem:[%s597 + $0x18] sm:$0xff]
        %v1062 = vld [vmem:[%s597 + $0x20] sm:$0xf]
        %v1063 = vld [vmem:[%s597 + $0x24] sm:$0xff]
        %v1064 = vld [vmem:[%s597 + $0x2c] sm:$0xf]
        %v1065 = vld [vmem:[%s597 + $0x30] sm:$0xff]
        %v1066 = vld [vmem:[%s597 + $0x38] sm:$0xf]
        %v1067 = vld [vmem:[%s597 + $0x3c] sm:$0xff]
        %v1068 = vld [vmem:[%s597 + $0x44] sm:$0xf]
        %v1069 = vld [vmem:[%s597 + $0x48] sm:$0xff]
        %v1070 = vld [vmem:[%s597 + $0x50] sm:$0xf]
        %v1071 = vld [vmem:[%s597 + $0x54] sm:$0xff]
        %v1072 = vld [vmem:[%s597 + $0x5c] sm:$0xf]
        %v1073 = vld [vmem:[%s597 + $0x60] sm:$0xff]
        %v1074 = vld [vmem:[%s597 + $0x68] sm:$0xf]
        %v1075 = vld [vmem:[%s597 + $0x6c] sm:$0xff]
        %v1076 = vld [vmem:[%s597 + $0x74] sm:$0xf]
        %v1077 = vld [vmem:[%s597 + $0x78] sm:$0xff]
        %v1078 = vld [vmem:[%s597 + $0x80] sm:$0xf]
        %v1079 = vld [vmem:[%s597 + $0x84] sm:$0xff]
        %v1080 = vld [vmem:[%s597 + $0x8c] sm:$0xf]
        %v1081 = vld [vmem:[%s597 + $0x90] sm:$0xff]
        %v1082 = vld [vmem:[%s597 + $0x98] sm:$0xf]
        %v1083 = vld [vmem:[%s597 + $0x9c] sm:$0xff]
        %v1084 = vld [vmem:[%s597 + $0xa4] sm:$0xf]
        %v1085 = vld [vmem:[%s597 + $0xa8] sm:$0xff]
        %v1086 = vld [vmem:[%s597 + $0xb0] sm:$0xf]
        %v1087 = vld [vmem:[%s597 + $0xb4] sm:$0xff]
        %v1088 = vld [vmem:[%s597 + $0xbc] sm:$0xf]
        %v1121 = vunpack.c.l.b16 %v1057
        %v1122 = vunpack.c.h.b16 %v1057
        %v1123 = vunpack.c.l.b16 %v1058
        %v1124 = vunpack.c.l.b16 %v1059
        %v1125 = vunpack.c.h.b16 %v1059
        %v1126 = vunpack.c.l.b16 %v1060
        %v1127 = vunpack.c.l.b16 %v1061
        %v1128 = vunpack.c.h.b16 %v1061
        %v1129 = vunpack.c.l.b16 %v1062
        %v1130 = vunpack.c.l.b16 %v1063
        %v1131 = vunpack.c.h.b16 %v1063
        %v1132 = vunpack.c.l.b16 %v1064
        %v1133 = vunpack.c.l.b16 %v1065
        %v1134 = vunpack.c.h.b16 %v1065
        %v1135 = vunpack.c.l.b16 %v1066
        %v1136 = vunpack.c.l.b16 %v1067
        %v1137 = vunpack.c.h.b16 %v1067
        %v1138 = vunpack.c.l.b16 %v1068
        %v1139 = vunpack.c.l.b16 %v1069
        %v1140 = vunpack.c.h.b16 %v1069
        %v1141 = vunpack.c.l.b16 %v1070
        %v1142 = vunpack.c.l.b16 %v1071
        %v1143 = vunpack.c.h.b16 %v1071
        %v1144 = vunpack.c.l.b16 %v1072
        %v1145 = vunpack.c.l.b16 %v1073
        %v1146 = vunpack.c.h.b16 %v1073
        %v1147 = vunpack.c.l.b16 %v1074
        %v1148 = vunpack.c.l.b16 %v1075
        %v1149 = vunpack.c.h.b16 %v1075
        %v1150 = vunpack.c.l.b16 %v1076
        %v1151 = vunpack.c.l.b16 %v1077
        %v1152 = vunpack.c.h.b16 %v1077
        %v1153 = vunpack.c.l.b16 %v1078
        %v1154 = vunpack.c.l.b16 %v1079
        %v1155 = vunpack.c.h.b16 %v1079
        %v1156 = vunpack.c.l.b16 %v1080
        %v1157 = vunpack.c.l.b16 %v1081
        %v1158 = vunpack.c.h.b16 %v1081
        %v1159 = vunpack.c.l.b16 %v1082
        %v1160 = vunpack.c.l.b16 %v1083
        %v1161 = vunpack.c.h.b16 %v1083
        %v1162 = vunpack.c.l.b16 %v1084
        %v1163 = vunpack.c.l.b16 %v1085
        %v1164 = vunpack.c.h.b16 %v1085
        %v1165 = vunpack.c.l.b16 %v1086
        %v1166 = vunpack.c.l.b16 %v1087
        %v1167 = vunpack.c.h.b16 %v1087
        %v1168 = vunpack.c.l.b16 %v1088
        %v1169 = vpack.c.b16 %v1124, %v1121
        %v1170 = vpack.c.b16 %v1125, %v1122
        %v1171 = vpack.c.b16 %v1126, %v1123
        %v1172 = vpack.c.b16 %v1130, %v1127
        %v1173 = vpack.c.b16 %v1131, %v1128
        %v1174 = vpack.c.b16 %v1132, %v1129
        %v1175 = vpack.c.b16 %v1136, %v1133
        %v1176 = vpack.c.b16 %v1137, %v1134
        %v1177 = vpack.c.b16 %v1138, %v1135
        %v1178 = vpack.c.b16 %v1142, %v1139
        %v1179 = vpack.c.b16 %v1143, %v1140
        %v1180 = vpack.c.b16 %v1144, %v1141
        %v1181 = vpack.c.b16 %v1148, %v1145
        %v1182 = vpack.c.b16 %v1149, %v1146
        %v1183 = vpack.c.b16 %v1150, %v1147
        %v1184 = vpack.c.b16 %v1154, %v1151
        %v1185 = vpack.c.b16 %v1155, %v1152
        %v1186 = vpack.c.b16 %v1156, %v1153
        %v1187 = vpack.c.b16 %v1160, %v1157
        %v1188 = vpack.c.b16 %v1161, %v1158
        %v1189 = vpack.c.b16 %v1162, %v1159
        %v1190 = vpack.c.b16 %v1166, %v1163
        %v1191 = vpack.c.b16 %v1167, %v1164
        %v1192 = vpack.c.b16 %v1168, %v1165
        %1217 = vmatprep.subr.bf16.mxu0 %v1170
        %1218 = vmatpush1.bf16.msra.mxu0 %v1169
        %1219 = vmatprep.subr.bf16.mxu0 %v1173
        %1220 = vmatpush1.bf16.msra.mxu0 %v1172
        %1221 = vmatprep.subr.bf16.mxu0 %v1176
        %1222 = vmatpush1.bf16.msra.mxu0 %v1175
        %1223 = vmatprep.subr.bf16.mxu0 %v1179
        %1224 = vmatpush1.bf16.msra.mxu0 %v1178
        %1225 = vmatprep.subr.bf16.mxu0 %v1182
        %1226 = vmatpush1.bf16.msra.mxu0 %v1181
        %1227 = vmatprep.subr.bf16.mxu0 %v1185
        %1228 = vmatpush1.bf16.msra.mxu0 %v1184
        %1229 = vmatprep.subr.bf16.mxu0 %v1188
        %1230 = vmatpush1.bf16.msra.mxu0 %v1187
        %1231 = vmatprep.subr.bf16.mxu0 %v1191
        %1232 = vmatpush1.bf16.msra.mxu0 %v1190
        %1233 = vmatprep.subr.bf16.mxu0 0
        %1234 = vmatpush1.bf16.msra.mxu0 0
        %1235 = vmatprep.subr.bf16.mxu0 0
        %1236 = vmatpush1.bf16.msra.mxu0 0
        %1237 = vmatprep.subr.bf16.mxu0 0
        %1238 = vmatpush1.bf16.msra.mxu0 0
        %1239 = vmatprep.subr.bf16.mxu0 0
        %1240 = vmatpush1.bf16.msra.mxu0 0
        %1241 = vmatprep.subr.bf16.mxu0 0
        %1242 = vmatpush1.bf16.msra.mxu0 0
        %1243 = vmatprep.subr.bf16.mxu0 0
        %1244 = vmatpush1.bf16.msra.mxu0 0
        %1245 = vmatprep.subr.bf16.mxu0 0
        %1246 = vmatpush1.bf16.msra.mxu0 0
        %1247 = vmatprep.subr.bf16.mxu0 0
        %1248 = vmatpush1.bf16.msra.mxu0 0
        %1249 = vmatprep.mubr.bf16.mxu0 0
        %1250 = vmatmul.mubr.bf16.gmra.mrb[0].mxu0 %v1049
        %v1251 = vpop.f32.mrb[0].mxu0
        %v1252 = vadd.f32 0.0, %v1251
        %v1253 = vpop.f32.mrb[0].mxu0
        %v1254 = vadd.f32 0.0, %v1253
        %v1255 = vpop.f32.mrb[0].mxu0
        %v1256 = vadd.f32 0.0, %v1255
        %v1257 = vpop.f32.mrb[0].mxu0
        %v1258 = vadd.f32 0.0, %v1257
        %1259 = vmatprep.mubr.bf16.mxu0 0
        %1260 = vmatmul.mubr.bf16.gmra.mrb[0].mxu0 %v1050
        %v1261 = vpop.f32.mrb[0].mxu0
        %v1262 = vadd.f32 0.0, %v1261
        %v1263 = vpop.f32.mrb[0].mxu0
        %v1264 = vadd.f32 0.0, %v1263
        %v1265 = vpop.f32.mrb[0].mxu0
        %v1266 = vadd.f32 0.0, %v1265
        %v1267 = vpop.f32.mrb[0].mxu0
        %v1268 = vadd.f32 0.0, %v1267
        %1269 = vmatprep.mubr.bf16.mxu0 0
        %1270 = vmatmul.mubr.bf16.gmra.mrb[0].mxu0 %v1051
        %v1271 = vpop.f32.mrb[0].mxu0
        %v1272 = vadd.f32 0.0, %v1271
        %v1273 = vpop.f32.mrb[0].mxu0
        %v1274 = vadd.f32 0.0, %v1273
        %v1275 = vpop.f32.mrb[0].mxu0
        %v1276 = vadd.f32 0.0, %v1275
        %v1277 = vpop.f32.mrb[0].mxu0
        %v1278 = vadd.f32 0.0, %v1277
        %1279 = vmatprep.mubr.bf16.mxu0 0
        %1280 = vmatmul.mubr.bf16.gmra.mrb[0].mxu0 %v1052
        %v1281 = vpop.f32.mrb[0].mxu0
        %v1282 = vadd.f32 0.0, %v1281
        %v1283 = vpop.f32.mrb[0].mxu0
        %v1284 = vadd.f32 0.0, %v1283
        %v1285 = vpop.f32.mrb[0].mxu0
        %v1286 = vadd.f32 0.0, %v1285
        %v1287 = vpop.f32.mrb[0].mxu0
        %v1288 = vadd.f32 0.0, %v1287
        %1289 = vmatprep.mubr.bf16.mxu0 0
        %1290 = vmatmul.mubr.bf16.gmra.mrb[0].mxu0 %v1053
        %v1291 = vpop.f32.mrb[0].mxu0
        %v1292 = vadd.f32 0.0, %v1291
        %v1293 = vpop.f32.mrb[0].mxu0
        %v1294 = vadd.f32 0.0, %v1293
        %v1295 = vpop.f32.mrb[0].mxu0
        %v1296 = vadd.f32 0.0, %v1295
        %v1297 = vpop.f32.mrb[0].mxu0
        %v1298 = vadd.f32 0.0, %v1297
        %1299 = vmatprep.mubr.bf16.mxu0 0
        %1300 = vmatmul.mubr.bf16.gmra.mrb[0].mxu0 %v1054
        %v1301 = vpop.f32.mrb[0].mxu0
        %v1302 = vadd.f32 0.0, %v1301
        %v1303 = vpop.f32.mrb[0].mxu0
        %v1304 = vadd.f32 0.0, %v1303
        %v1305 = vpop.f32.mrb[0].mxu0
        %v1306 = vadd.f32 0.0, %v1305
        %v1307 = vpop.f32.mrb[0].mxu0
        %v1308 = vadd.f32 0.0, %v1307
        %1309 = vmatprep.mubr.bf16.mxu0 0
        %1310 = vmatmul.mubr.bf16.gmra.mrb[0].mxu0 %v1055
        %v1311 = vpop.f32.mrb[0].mxu0
        %v1312 = vadd.f32 0.0, %v1311
        %v1313 = vpop.f32.mrb[0].mxu0
        %v1314 = vadd.f32 0.0, %v1313
        %v1315 = vpop.f32.mrb[0].mxu0
        %v1316 = vadd.f32 0.0, %v1315
        %v1317 = vpop.f32.mrb[0].mxu0
        %v1318 = vadd.f32 0.0, %v1317
        %1319 = vmatprep.mubr.bf16.mxu0 0
        %1320 = vmatmul.mubr.bf16.gmra.mrb[0].mxu0 %v1056
        %v1321 = vpop.f32.mrb[0].mxu0
        %v1322 = vadd.f32 0.0, %v1321
        %v1323 = vpop.f32.mrb[0].mxu0
        %v1324 = vadd.f32 0.0, %v1323
        %v1325 = vpop.f32.mrb[0].mxu0
        %v1326 = vadd.f32 0.0, %v1325
        %v1327 = vpop.f32.mrb[0].mxu0
        %v1328 = vadd.f32 0.0, %v1327
        %1329 = vdwg.mxu0
        %1330 = vmatprep.subr.bf16.mxu0 0
        %1331 = vmatpush1.bf16.msra.mxu0 %v1171
        %1332 = vmatprep.subr.bf16.mxu0 0
        %1333 = vmatpush1.bf16.msra.mxu0 %v1174
        %1334 = vmatprep.subr.bf16.mxu0 0
        %1335 = vmatpush1.bf16.msra.mxu0 %v1177
        %1336 = vmatprep.subr.bf16.mxu0 0
        %1337 = vmatpush1.bf16.msra.mxu0 %v1180
        %1338 = vmatprep.subr.bf16.mxu0 0
        %1339 = vmatpush1.bf16.msra.mxu0 %v1183
        %1340 = vmatprep.subr.bf16.mxu0 0
        %1341 = vmatpush1.bf16.msra.mxu0 %v1186
        %1342 = vmatprep.subr.bf16.mxu0 0
        %1343 = vmatpush1.bf16.msra.mxu0 %v1189
        %1344 = vmatprep.subr.bf16.mxu0 0
        %1345 = vmatpush1.bf16.msra.mxu0 %v1192
        %1346 = vmatprep.subr.bf16.mxu0 0
        %1347 = vmatpush1.bf16.msra.mxu0 0
        %1348 = vmatprep.subr.bf16.mxu0 0
        %1349 = vmatpush1.bf16.msra.mxu0 0
        %1350 = vmatprep.subr.bf16.mxu0 0
        %1351 = vmatpush1.bf16.msra.mxu0 0
        %1352 = vmatprep.subr.bf16.mxu0 0
        %1353 = vmatpush1.bf16.msra.mxu0 0
        %1354 = vmatprep.subr.bf16.mxu0 0
        %1355 = vmatpush1.bf16.msra.mxu0 0
        %1356 = vmatprep.subr.bf16.mxu0 0
        %1357 = vmatpush1.bf16.msra.mxu0 0
        %1358 = vmatprep.subr.bf16.mxu0 0
        %1359 = vmatpush1.bf16.msra.mxu0 0
        %1360 = vmatprep.subr.bf16.mxu0 0
        %1361 = vmatpush1.bf16.msra.mxu0 0
        %1362 = vmatprep.mubr.bf16.mxu0 0
        %1363 = vmatmul.mubr.bf16.gmra.mrb[0].mxu0 %v1049
        %v1364 = vpop.f32.mrb[0].mxu0
        %v1365 = vadd.f32 0.0, %v1364
        %v1366 = vpop.f32.mrb[0].mxu0
        %v1367 = vpop.f32.mrb[0].mxu0
        %v1368 = vadd.f32 0.0, %v1367
        %v1369 = vpop.f32.mrb[0].mxu0
        %1370 = vmatprep.mubr.bf16.mxu0 0
        %1371 = vmatmul.mubr.bf16.gmra.mrb[0].mxu0 %v1050
        %v1372 = vpop.f32.mrb[0].mxu0
        %v1373 = vadd.f32 0.0, %v1372
        %v1374 = vpop.f32.mrb[0].mxu0
        %v1375 = vpop.f32.mrb[0].mxu0
        %v1376 = vadd.f32 0.0, %v1375
        %v1377 = vpop.f32.mrb[0].mxu0
        %1378 = vmatprep.mubr.bf16.mxu0 0
        %1379 = vmatmul.mubr.bf16.gmra.mrb[0].mxu0 %v1051
        %v1380 = vpop.f32.mrb[0].mxu0
        %v1381 = vadd.f32 0.0, %v1380
        %v1382 = vpop.f32.mrb[0].mxu0
        %v1383 = vpop.f32.mrb[0].mxu0
        %v1384 = vadd.f32 0.0, %v1383
        %v1385 = vpop.f32.mrb[0].mxu0
        %1386 = vmatprep.mubr.bf16.mxu0 0
        %1387 = vmatmul.mubr.bf16.gmra.mrb[0].mxu0 %v1052
        %v1388 = vpop.f32.mrb[0].mxu0
        %v1389 = vadd.f32 0.0, %v1388
        %v1390 = vpop.f32.mrb[0].mxu0
        %v1391 = vpop.f32.mrb[0].mxu0
        %v1392 = vadd.f32 0.0, %v1391
        %v1393 = vpop.f32.mrb[0].mxu0
        %1394 = vmatprep.mubr.bf16.mxu0 0
        %1395 = vmatmul.mubr.bf16.gmra.mrb[0].mxu0 %v1053
        %v1396 = vpop.f32.mrb[0].mxu0
        %v1397 = vadd.f32 0.0, %v1396
        %v1398 = vpop.f32.mrb[0].mxu0
        %v1399 = vpop.f32.mrb[0].mxu0
        %v1400 = vadd.f32 0.0, %v1399
        %v1401 = vpop.f32.mrb[0].mxu0
        %1402 = vmatprep.mubr.bf16.mxu0 0
        %1403 = vmatmul.mubr.bf16.gmra.mrb[0].mxu0 %v1054
        %v1404 = vpop.f32.mrb[0].mxu0
        %v1405 = vadd.f32 0.0, %v1404
        %v1406 = vpop.f32.mrb[0].mxu0
        %v1407 = vpop.f32.mrb[0].mxu0
        %v1408 = vadd.f32 0.0, %v1407
        %v1409 = vpop.f32.mrb[0].mxu0
        %1410 = vmatprep.mubr.bf16.mxu0 0
        %1411 = vmatmul.mubr.bf16.gmra.mrb[0].mxu0 %v1055
        %v1412 = vpop.f32.mrb[0].mxu0
        %v1413 = vadd.f32 0.0, %v1412
        %v1414 = vpop.f32.mrb[0].mxu0
        %v1415 = vpop.f32.mrb[0].mxu0
        %v1416 = vadd.f32 0.0, %v1415
        %v1417 = vpop.f32.mrb[0].mxu0
        %1418 = vmatprep.mubr.bf16.mxu0 0
        %1419 = vmatmul.mubr.bf16.gmra.mrb[0].mxu0 %v1056
        %v1420 = vpop.f32.mrb[0].mxu0
        %v1421 = vadd.f32 0.0, %v1420
        %v1422 = vpop.f32.mrb[0].mxu0
        %v1423 = vpop.f32.mrb[0].mxu0
        %v1424 = vadd.f32 0.0, %v1423
        %v1425 = vpop.f32.mrb[0].mxu0
        %1426 = vdwg.mxu0
        %v1427 = vpack.c.bf16 %v1256, %v1252
        %v1428 = vpack.c.bf16 %v1258, %v1254
        %v1429 = vpack.c.bf16 %v1368, %v1365
        %v1430 = vpack.c.bf16 %v1266, %v1262
        %v1431 = vpack.c.bf16 %v1268, %v1264
        %v1432 = vpack.c.bf16 %v1376, %v1373
        %v1433 = vpack.c.bf16 %v1276, %v1272
        %v1434 = vpack.c.bf16 %v1278, %v1274
        %v1435 = vpack.c.bf16 %v1384, %v1381
        %v1436 = vpack.c.bf16 %v1286, %v1282
        %v1437 = vpack.c.bf16 %v1288, %v1284
        %v1438 = vpack.c.bf16 %v1392, %v1389
        %v1439 = vpack.c.bf16 %v1296, %v1292
        %v1440 = vpack.c.bf16 %v1298, %v1294
        %v1441 = vpack.c.bf16 %v1400, %v1397
        %v1442 = vpack.c.bf16 %v1306, %v1302
        %v1443 = vpack.c.bf16 %v1308, %v1304
        %v1444 = vpack.c.bf16 %v1408, %v1405
        %v1445 = vpack.c.bf16 %v1316, %v1312
        %v1446 = vpack.c.bf16 %v1318, %v1314
        %v1447 = vpack.c.bf16 %v1416, %v1413
        %v1448 = vpack.c.bf16 %v1326, %v1322
        %v1449 = vpack.c.bf16 %v1328, %v1324
        %v1450 = vpack.c.bf16 %v1424, %v1421
        %v1451 = vld [vmem:[%s606] sm:$0xf]
        %v1452 = vld [vmem:[%s606 + $0x4] sm:$0xf]
        %v1453 = vld [vmem:[%s606 + $0x8] sm:$0xf]
        %v1454 = vld [vmem:[%s606 + $0xc] sm:$0xf]
        %v1455 = vld [vmem:[%s606 + $0x10] sm:$0xf]
        %v1456 = vld [vmem:[%s606 + $0x14] sm:$0xf]
        %v1457 = vld [vmem:[%s606 + $0x18] sm:$0xf]
        %v1458 = vld [vmem:[%s606 + $0x1c] sm:$0xf]
        %v1459 = vld [vmem:[%s606 + $0x20] sm:$0xf]
        %v1460 = vld [vmem:[%s606 + $0x24] sm:$0xf]
        %v1461 = vld [vmem:[%s606 + $0x28] sm:$0xf]
        %v1462 = vld [vmem:[%s606 + $0x2c] sm:$0xf]
        %v1463 = vld [vmem:[%s606 + $0x30] sm:$0xf]
        %v1464 = vld [vmem:[%s606 + $0x34] sm:$0xf]
        %v1465 = vld [vmem:[%s606 + $0x38] sm:$0xf]
        %v1466 = vld [vmem:[%s606 + $0x3c] sm:$0xf]
        %vm1467 = vcmask 261120
        %v1469 = vsel %vm1467, %v1427, 0
        %v1472 = vsel %vm1467, %v1428, 0
        %1474 = vmatprep.subr.bf16.mxu0 0
        %1475 = vmatpush1.bf16.xpose.msra.mxu0 %v1472
        %1476 = vmatprep.subr.bf16.mxu0 0
        %1477 = vmatpush1.bf16.xpose.msra.mxu0 0
        %1478 = vmatprep.subr.bf16.mxu0 0
        %1479 = vmatpush1.bf16.xpose.msra.mxu0 0
        %1480 = vmatprep.subr.bf16.mxu0 0
        %1481 = vmatpush1.bf16.xpose.msra.mxu0 0
        %1482 = vmatprep.subr.bf16.mxu0 0
        %1483 = vmatpush1.bf16.xpose.msra.mxu0 0
        %1484 = vmatprep.subr.bf16.mxu0 0
        %1485 = vmatpush1.bf16.xpose.msra.mxu0 0
        %1486 = vmatprep.subr.bf16.mxu0 0
        %1487 = vmatpush1.bf16.xpose.msra.mxu0 0
        %1488 = vmatprep.subr.bf16.mxu0 0
        %1489 = vmatpush1.bf16.xpose.msra.mxu0 0
        %1490 = vmatprep.subr.bf16.mxu0 0
        %1491 = vmatpush1.bf16.xpose.msra.mxu0 0
        %1492 = vmatprep.subr.bf16.mxu0 0
        %1493 = vmatpush1.bf16.xpose.msra.mxu0 0
        %1494 = vmatprep.subr.bf16.mxu0 0
        %1495 = vmatpush1.bf16.xpose.msra.mxu0 0
        %1496 = vmatprep.subr.bf16.mxu0 0
        %1497 = vmatpush1.bf16.xpose.msra.mxu0 0
        %1498 = vmatprep.subr.bf16.mxu0 0
        %1499 = vmatpush1.bf16.xpose.msra.mxu0 0
        %1500 = vmatprep.subr.bf16.mxu0 0
        %1501 = vmatpush1.bf16.xpose.msra.mxu0 0
        %1502 = vmatprep.subr.bf16.mxu0 0
        %1503 = vmatpush1.bf16.xpose.msra.mxu0 0
        %1504 = vmatprep.subr.bf16.mxu0 0
        %1505 = vmatpush1.bf16.xpose.msra.mxu0 0
        %1506 = vmatprep.mubr.bf16.mxu0 0
        %1507 = vmatmul.mubr.bf16.gmra.mrb[0].mxu0 %v1469
        %v1508 = vpop.f32.mrb[0].mxu0
        %v1509 = vadd.f32 0.0, %v1508
        %v1510 = vpop.f32.mrb[0].mxu0
        %v1511 = vpop.f32.mrb[0].mxu0
        %v1512 = vadd.f32 0.0, %v1511
        %v1513 = vpop.f32.mrb[0].mxu0
        %1514 = vdwg.mxu0
        %v1516 = vsel %vm1467, %v1430, 0
        %v1519 = vsel %vm1467, %v1431, 0
        %1521 = vmatprep.subr.bf16.mxu0 0
        %1522 = vmatpush1.bf16.xpose.msra.mxu0 %v1519
        %1523 = vmatprep.subr.bf16.mxu0 0
        %1524 = vmatpush1.bf16.xpose.msra.mxu0 0
        %1525 = vmatprep.subr.bf16.mxu0 0
        %1526 = vmatpush1.bf16.xpose.msra.mxu0 0
        %1527 = vmatprep.subr.bf16.mxu0 0
        %1528 = vmatpush1.bf16.xpose.msra.mxu0 0
        %1529 = vmatprep.subr.bf16.mxu0 0
        %1530 = vmatpush1.bf16.xpose.msra.mxu0 0
        %1531 = vmatprep.subr.bf16.mxu0 0
        %1532 = vmatpush1.bf16.xpose.msra.mxu0 0
        %1533 = vmatprep.subr.bf16.mxu0 0
        %1534 = vmatpush1.bf16.xpose.msra.mxu0 0
        %1535 = vmatprep.subr.bf16.mxu0 0
        %1536 = vmatpush1.bf16.xpose.msra.mxu0 0
        %1537 = vmatprep.subr.bf16.mxu0 0
        %1538 = vmatpush1.bf16.xpose.msra.mxu0 0
        %1539 = vmatprep.subr.bf16.mxu0 0
        %1540 = vmatpush1.bf16.xpose.msra.mxu0 0
        %1541 = vmatprep.subr.bf16.mxu0 0
        %1542 = vmatpush1.bf16.xpose.msra.mxu0 0
        %1543 = vmatprep.subr.bf16.mxu0 0
        %1544 = vmatpush1.bf16.xpose.msra.mxu0 0
        %1545 = vmatprep.subr.bf16.mxu0 0
        %1546 = vmatpush1.bf16.xpose.msra.mxu0 0
        %1547 = vmatprep.subr.bf16.mxu0 0
        %1548 = vmatpush1.bf16.xpose.msra.mxu0 0
        %1549 = vmatprep.subr.bf16.mxu0 0
        %1550 = vmatpush1.bf16.xpose.msra.mxu0 0
        %1551 = vmatprep.subr.bf16.mxu0 0
        %1552 = vmatpush1.bf16.xpose.msra.mxu0 0
        %1553 = vmatprep.mubr.bf16.mxu0 0
        %1554 = vmatmul.mubr.bf16.gmra.mrb[0].mxu0 %v1516
        %v1555 = vpop.f32.mrb[0].mxu0
        %v1556 = vadd.f32 0.0, %v1555
        %v1557 = vpop.f32.mrb[0].mxu0
        %v1558 = vpop.f32.mrb[0].mxu0
        %v1559 = vadd.f32 0.0, %v1558
        %v1560 = vpop.f32.mrb[0].mxu0
        %1561 = vdwg.mxu0
        %v1563 = vsel %vm1467, %v1433, 0
        %v1566 = vsel %vm1467, %v1434, 0
        %1568 = vmatprep.subr.bf16.mxu0 0
        %1569 = vmatpush1.bf16.xpose.msra.mxu0 %v1566
        %1570 = vmatprep.subr.bf16.mxu0 0
        %1571 = vmatpush1.bf16.xpose.msra.mxu0 0
        %1572 = vmatprep.subr.bf16.mxu0 0
        %1573 = vmatpush1.bf16.xpose.msra.mxu0 0
        %1574 = vmatprep.subr.bf16.mxu0 0
        %1575 = vmatpush1.bf16.xpose.msra.mxu0 0
        %1576 = vmatprep.subr.bf16.mxu0 0
        %1577 = vmatpush1.bf16.xpose.msra.mxu0 0
        %1578 = vmatprep.subr.bf16.mxu0 0
        %1579 = vmatpush1.bf16.xpose.msra.mxu0 0
        %1580 = vmatprep.subr.bf16.mxu0 0
        %1581 = vmatpush1.bf16.xpose.msra.mxu0 0
        %1582 = vmatprep.subr.bf16.mxu0 0
        %1583 = vmatpush1.bf16.xpose.msra.mxu0 0
        %1584 = vmatprep.subr.bf16.mxu0 0
        %1585 = vmatpush1.bf16.xpose.msra.mxu0 0
        %1586 = vmatprep.subr.bf16.mxu0 0
        %1587 = vmatpush1.bf16.xpose.msra.mxu0 0
        %1588 = vmatprep.subr.bf16.mxu0 0
        %1589 = vmatpush1.bf16.xpose.msra.mxu0 0
        %1590 = vmatprep.subr.bf16.mxu0 0
        %1591 = vmatpush1.bf16.xpose.msra.mxu0 0
        %1592 = vmatprep.subr.bf16.mxu0 0
        %1593 = vmatpush1.bf16.xpose.msra.mxu0 0
        %1594 = vmatprep.subr.bf16.mxu0 0
        %1595 = vmatpush1.bf16.xpose.msra.mxu0 0
        %1596 = vmatprep.subr.bf16.mxu0 0
        %1597 = vmatpush1.bf16.xpose.msra.mxu0 0
        %1598 = vmatprep.subr.bf16.mxu0 0
        %1599 = vmatpush1.bf16.xpose.msra.mxu0 0
        %1600 = vmatprep.mubr.bf16.mxu0 0
        %1601 = vmatmul.mubr.bf16.gmra.mrb[0].mxu0 %v1563
        %v1602 = vpop.f32.mrb[0].mxu0
        %v1603 = vadd.f32 0.0, %v1602
        %v1604 = vpop.f32.mrb[0].mxu0
        %v1605 = vpop.f32.mrb[0].mxu0
        %v1606 = vadd.f32 0.0, %v1605
        %v1607 = vpop.f32.mrb[0].mxu0
        %1608 = vdwg.mxu0
        %v1610 = vsel %vm1467, %v1436, 0
        %v1613 = vsel %vm1467, %v1437, 0
        %1615 = vmatprep.subr.bf16.mxu0 0
        %1616 = vmatpush1.bf16.xpose.msra.mxu0 %v1613
        %1617 = vmatprep.subr.bf16.mxu0 0
        %1618 = vmatpush1.bf16.xpose.msra.mxu0 0
        %1619 = vmatprep.subr.bf16.mxu0 0
        %1620 = vmatpush1.bf16.xpose.msra.mxu0 0
        %1621 = vmatprep.subr.bf16.mxu0 0
        %1622 = vmatpush1.bf16.xpose.msra.mxu0 0
        %1623 = vmatprep.subr.bf16.mxu0 0
        %1624 = vmatpush1.bf16.xpose.msra.mxu0 0
        %1625 = vmatprep.subr.bf16.mxu0 0
        %1626 = vmatpush1.bf16.xpose.msra.mxu0 0
        %1627 = vmatprep.subr.bf16.mxu0 0
        %1628 = vmatpush1.bf16.xpose.msra.mxu0 0
        %1629 = vmatprep.subr.bf16.mxu0 0
        %1630 = vmatpush1.bf16.xpose.msra.mxu0 0
        %1631 = vmatprep.subr.bf16.mxu0 0
        %1632 = vmatpush1.bf16.xpose.msra.mxu0 0
        %1633 = vmatprep.subr.bf16.mxu0 0
        %1634 = vmatpush1.bf16.xpose.msra.mxu0 0
        %1635 = vmatprep.subr.bf16.mxu0 0
        %1636 = vmatpush1.bf16.xpose.msra.mxu0 0
        %1637 = vmatprep.subr.bf16.mxu0 0
        %1638 = vmatpush1.bf16.xpose.msra.mxu0 0
        %1639 = vmatprep.subr.bf16.mxu0 0
        %1640 = vmatpush1.bf16.xpose.msra.mxu0 0
        %1641 = vmatprep.subr.bf16.mxu0 0
        %1642 = vmatpush1.bf16.xpose.msra.mxu0 0
        %1643 = vmatprep.subr.bf16.mxu0 0
        %1644 = vmatpush1.bf16.xpose.msra.mxu0 0
        %1645 = vmatprep.subr.bf16.mxu0 0
        %1646 = vmatpush1.bf16.xpose.msra.mxu0 0
        %1647 = vmatprep.mubr.bf16.mxu0 0
        %1648 = vmatmul.mubr.bf16.gmra.mrb[0].mxu0 %v1610
        %v1649 = vpop.f32.mrb[0].mxu0
        %v1650 = vadd.f32 0.0, %v1649
        %v1651 = vpop.f32.mrb[0].mxu0
        %v1652 = vpop.f32.mrb[0].mxu0
        %v1653 = vadd.f32 0.0, %v1652
        %v1654 = vpop.f32.mrb[0].mxu0
        %1655 = vdwg.mxu0
        %v1657 = vsel %vm1467, %v1439, 0
        %v1660 = vsel %vm1467, %v1440, 0
        %1662 = vmatprep.subr.bf16.mxu0 0
        %1663 = vmatpush1.bf16.xpose.msra.mxu0 %v1660
        %1664 = vmatprep.subr.bf16.mxu0 0
        %1665 = vmatpush1.bf16.xpose.msra.mxu0 0
        %1666 = vmatprep.subr.bf16.mxu0 0
        %1667 = vmatpush1.bf16.xpose.msra.mxu0 0
        %1668 = vmatprep.subr.bf16.mxu0 0
        %1669 = vmatpush1.bf16.xpose.msra.mxu0 0
        %1670 = vmatprep.subr.bf16.mxu0 0
        %1671 = vmatpush1.bf16.xpose.msra.mxu0 0
        %1672 = vmatprep.subr.bf16.mxu0 0
        %1673 = vmatpush1.bf16.xpose.msra.mxu0 0
        %1674 = vmatprep.subr.bf16.mxu0 0
        %1675 = vmatpush1.bf16.xpose.msra.mxu0 0
        %1676 = vmatprep.subr.bf16.mxu0 0
        %1677 = vmatpush1.bf16.xpose.msra.mxu0 0
        %1678 = vmatprep.subr.bf16.mxu0 0
        %1679 = vmatpush1.bf16.xpose.msra.mxu0 0
        %1680 = vmatprep.subr.bf16.mxu0 0
        %1681 = vmatpush1.bf16.xpose.msra.mxu0 0
        %1682 = vmatprep.subr.bf16.mxu0 0
        %1683 = vmatpush1.bf16.xpose.msra.mxu0 0
        %1684 = vmatprep.subr.bf16.mxu0 0
        %1685 = vmatpush1.bf16.xpose.msra.mxu0 0
        %1686 = vmatprep.subr.bf16.mxu0 0
        %1687 = vmatpush1.bf16.xpose.msra.mxu0 0
        %1688 = vmatprep.subr.bf16.mxu0 0
        %1689 = vmatpush1.bf16.xpose.msra.mxu0 0
        %1690 = vmatprep.subr.bf16.mxu0 0
        %1691 = vmatpush1.bf16.xpose.msra.mxu0 0
        %1692 = vmatprep.subr.bf16.mxu0 0
        %1693 = vmatpush1.bf16.xpose.msra.mxu0 0
        %1694 = vmatprep.mubr.bf16.mxu0 0
        %1695 = vmatmul.mubr.bf16.gmra.mrb[0].mxu0 %v1657
        %v1696 = vpop.f32.mrb[0].mxu0
        %v1697 = vadd.f32 0.0, %v1696
        %v1698 = vpop.f32.mrb[0].mxu0
        %v1699 = vpop.f32.mrb[0].mxu0
        %v1700 = vadd.f32 0.0, %v1699
        %v1701 = vpop.f32.mrb[0].mxu0
        %1702 = vdwg.mxu0
        %v1704 = vsel %vm1467, %v1442, 0
        %v1707 = vsel %vm1467, %v1443, 0
        %1709 = vmatprep.subr.bf16.mxu0 0
        %1710 = vmatpush1.bf16.xpose.msra.mxu0 %v1707
        %1711 = vmatprep.subr.bf16.mxu0 0
        %1712 = vmatpush1.bf16.xpose.msra.mxu0 0
        %1713 = vmatprep.subr.bf16.mxu0 0
        %1714 = vmatpush1.bf16.xpose.msra.mxu0 0
        %1715 = vmatprep.subr.bf16.mxu0 0
        %1716 = vmatpush1.bf16.xpose.msra.mxu0 0
        %1717 = vmatprep.subr.bf16.mxu0 0
        %1718 = vmatpush1.bf16.xpose.msra.mxu0 0
        %1719 = vmatprep.subr.bf16.mxu0 0
        %1720 = vmatpush1.bf16.xpose.msra.mxu0 0
        %1721 = vmatprep.subr.bf16.mxu0 0
        %1722 = vmatpush1.bf16.xpose.msra.mxu0 0
        %1723 = vmatprep.subr.bf16.mxu0 0
        %1724 = vmatpush1.bf16.xpose.msra.mxu0 0
        %1725 = vmatprep.subr.bf16.mxu0 0
        %1726 = vmatpush1.bf16.xpose.msra.mxu0 0
        %1727 = vmatprep.subr.bf16.mxu0 0
        %1728 = vmatpush1.bf16.xpose.msra.mxu0 0
        %1729 = vmatprep.subr.bf16.mxu0 0
        %1730 = vmatpush1.bf16.xpose.msra.mxu0 0
        %1731 = vmatprep.subr.bf16.mxu0 0
        %1732 = vmatpush1.bf16.xpose.msra.mxu0 0
        %1733 = vmatprep.subr.bf16.mxu0 0
        %1734 = vmatpush1.bf16.xpose.msra.mxu0 0
        %1735 = vmatprep.subr.bf16.mxu0 0
        %1736 = vmatpush1.bf16.xpose.msra.mxu0 0
        %1737 = vmatprep.subr.bf16.mxu0 0
        %1738 = vmatpush1.bf16.xpose.msra.mxu0 0
        %1739 = vmatprep.subr.bf16.mxu0 0
        %1740 = vmatpush1.bf16.xpose.msra.mxu0 0
        %1741 = vmatprep.mubr.bf16.mxu0 0
        %1742 = vmatmul.mubr.bf16.gmra.mrb[0].mxu0 %v1704
        %v1743 = vpop.f32.mrb[0].mxu0
        %v1744 = vadd.f32 0.0, %v1743
        %v1745 = vpop.f32.mrb[0].mxu0
        %v1746 = vpop.f32.mrb[0].mxu0
        %v1747 = vadd.f32 0.0, %v1746
        %v1748 = vpop.f32.mrb[0].mxu0
        %1749 = vdwg.mxu0
        %v1751 = vsel %vm1467, %v1445, 0
        %v1754 = vsel %vm1467, %v1446, 0
        %1756 = vmatprep.subr.bf16.mxu0 0
        %1757 = vmatpush1.bf16.xpose.msra.mxu0 %v1754
        %1758 = vmatprep.subr.bf16.mxu0 0
        %1759 = vmatpush1.bf16.xpose.msra.mxu0 0
        %1760 = vmatprep.subr.bf16.mxu0 0
        %1761 = vmatpush1.bf16.xpose.msra.mxu0 0
        %1762 = vmatprep.subr.bf16.mxu0 0
        %1763 = vmatpush1.bf16.xpose.msra.mxu0 0
        %1764 = vmatprep.subr.bf16.mxu0 0
        %1765 = vmatpush1.bf16.xpose.msra.mxu0 0
        %1766 = vmatprep.subr.bf16.mxu0 0
        %1767 = vmatpush1.bf16.xpose.msra.mxu0 0
        %1768 = vmatprep.subr.bf16.mxu0 0
        %1769 = vmatpush1.bf16.xpose.msra.mxu0 0
        %1770 = vmatprep.subr.bf16.mxu0 0
        %1771 = vmatpush1.bf16.xpose.msra.mxu0 0
        %1772 = vmatprep.subr.bf16.mxu0 0
        %1773 = vmatpush1.bf16.xpose.msra.mxu0 0
        %1774 = vmatprep.subr.bf16.mxu0 0
        %1775 = vmatpush1.bf16.xpose.msra.mxu0 0
        %1776 = vmatprep.subr.bf16.mxu0 0
        %1777 = vmatpush1.bf16.xpose.msra.mxu0 0
        %1778 = vmatprep.subr.bf16.mxu0 0
        %1779 = vmatpush1.bf16.xpose.msra.mxu0 0
        %1780 = vmatprep.subr.bf16.mxu0 0
        %1781 = vmatpush1.bf16.xpose.msra.mxu0 0
        %1782 = vmatprep.subr.bf16.mxu0 0
        %1783 = vmatpush1.bf16.xpose.msra.mxu0 0
        %1784 = vmatprep.subr.bf16.mxu0 0
        %1785 = vmatpush1.bf16.xpose.msra.mxu0 0
        %1786 = vmatprep.subr.bf16.mxu0 0
        %1787 = vmatpush1.bf16.xpose.msra.mxu0 0
        %1788 = vmatprep.mubr.bf16.mxu0 0
        %1789 = vmatmul.mubr.bf16.gmra.mrb[0].mxu0 %v1751
        %v1790 = vpop.f32.mrb[0].mxu0
        %v1791 = vadd.f32 0.0, %v1790
        %v1792 = vpop.f32.mrb[0].mxu0
        %v1793 = vpop.f32.mrb[0].mxu0
        %v1794 = vadd.f32 0.0, %v1793
        %v1795 = vpop.f32.mrb[0].mxu0
        %1796 = vdwg.mxu0
        %v1798 = vsel %vm1467, %v1448, 0
        %v1801 = vsel %vm1467, %v1449, 0
        %1803 = vmatprep.subr.bf16.mxu0 0
        %1804 = vmatpush1.bf16.xpose.msra.mxu0 %v1801
        %1805 = vmatprep.subr.bf16.mxu0 0
        %1806 = vmatpush1.bf16.xpose.msra.mxu0 0
        %1807 = vmatprep.subr.bf16.mxu0 0
        %1808 = vmatpush1.bf16.xpose.msra.mxu0 0
        %1809 = vmatprep.subr.bf16.mxu0 0
        %1810 = vmatpush1.bf16.xpose.msra.mxu0 0
        %1811 = vmatprep.subr.bf16.mxu0 0
        %1812 = vmatpush1.bf16.xpose.msra.mxu0 0
        %1813 = vmatprep.subr.bf16.mxu0 0
        %1814 = vmatpush1.bf16.xpose.msra.mxu0 0
        %1815 = vmatprep.subr.bf16.mxu0 0
        %1816 = vmatpush1.bf16.xpose.msra.mxu0 0
        %1817 = vmatprep.subr.bf16.mxu0 0
        %1818 = vmatpush1.bf16.xpose.msra.mxu0 0
        %1819 = vmatprep.subr.bf16.mxu0 0
        %1820 = vmatpush1.bf16.xpose.msra.mxu0 0
        %1821 = vmatprep.subr.bf16.mxu0 0
        %1822 = vmatpush1.bf16.xpose.msra.mxu0 0
        %1823 = vmatprep.subr.bf16.mxu0 0
        %1824 = vmatpush1.bf16.xpose.msra.mxu0 0
        %1825 = vmatprep.subr.bf16.mxu0 0
        %1826 = vmatpush1.bf16.xpose.msra.mxu0 0
        %1827 = vmatprep.subr.bf16.mxu0 0
        %1828 = vmatpush1.bf16.xpose.msra.mxu0 0
        %1829 = vmatprep.subr.bf16.mxu0 0
        %1830 = vmatpush1.bf16.xpose.msra.mxu0 0
        %1831 = vmatprep.subr.bf16.mxu0 0
        %1832 = vmatpush1.bf16.xpose.msra.mxu0 0
        %1833 = vmatprep.subr.bf16.mxu0 0
        %1834 = vmatpush1.bf16.xpose.msra.mxu0 0
        %1835 = vmatprep.mubr.bf16.mxu0 0
        %1836 = vmatmul.mubr.bf16.gmra.mrb[0].mxu0 %v1798
        %v1837 = vpop.f32.mrb[0].mxu0
        %v1838 = vadd.f32 0.0, %v1837
        %v1839 = vpop.f32.mrb[0].mxu0
        %v1840 = vpop.f32.mrb[0].mxu0
        %v1841 = vadd.f32 0.0, %v1840
        %v1842 = vpop.f32.mrb[0].mxu0
        %1843 = vdwg.mxu0
        %vm1844 = vcmask 130048
        %v1845 = vsel %vm1844, %v1509, -inf
        %1846 = vmax.xlane.f32.xlu0 %v1845
        %v1847 = vpop.xlane.xlu0 %1846
        %v1848 = vsel %vm1844, %v1512, -inf
        %1849 = vmax.xlane.f32.xlu0 %v1848
        %v1850 = vpop.xlane.xlu0 %1849
        %v1851 = vsel %vm1844, %v1556, -inf
        %1852 = vmax.xlane.f32.xlu0 %v1851
        %v1853 = vpop.xlane.xlu0 %1852
        %v1854 = vsel %vm1844, %v1559, -inf
        %1855 = vmax.xlane.f32.xlu0 %v1854
        %v1856 = vpop.xlane.xlu0 %1855
        %v1857 = vsel %vm1844, %v1603, -inf
        %1858 = vmax.xlane.f32.xlu0 %v1857
        %v1859 = vpop.xlane.xlu0 %1858
        %v1860 = vsel %vm1844, %v1606, -inf
        %1861 = vmax.xlane.f32.xlu0 %v1860
        %v1862 = vpop.xlane.xlu0 %1861
        %v1863 = vsel %vm1844, %v1650, -inf
        %1864 = vmax.xlane.f32.xlu0 %v1863
        %v1865 = vpop.xlane.xlu0 %1864
        %v1866 = vsel %vm1844, %v1653, -inf
        %1867 = vmax.xlane.f32.xlu0 %v1866
        %v1868 = vpop.xlane.xlu0 %1867
        %v1869 = vsel %vm1844, %v1697, -inf
        %1870 = vmax.xlane.f32.xlu0 %v1869
        %v1871 = vpop.xlane.xlu0 %1870
        %v1872 = vsel %vm1844, %v1700, -inf
        %1873 = vmax.xlane.f32.xlu0 %v1872
        %v1874 = vpop.xlane.xlu0 %1873
        %v1875 = vsel %vm1844, %v1744, -inf
        %1876 = vmax.xlane.f32.xlu0 %v1875
        %v1877 = vpop.xlane.xlu0 %1876
        %v1878 = vsel %vm1844, %v1747, -inf
        %1879 = vmax.xlane.f32.xlu0 %v1878
        %v1880 = vpop.xlane.xlu0 %1879
        %v1881 = vsel %vm1844, %v1791, -inf
        %1882 = vmax.xlane.f32.xlu0 %v1881
        %v1883 = vpop.xlane.xlu0 %1882
        %v1884 = vsel %vm1844, %v1794, -inf
        %1885 = vmax.xlane.f32.xlu0 %v1884
        %v1886 = vpop.xlane.xlu0 %1885
        %v1887 = vsel %vm1844, %v1838, -inf
        %1888 = vmax.xlane.f32.xlu0 %v1887
        %v1889 = vpop.xlane.xlu0 %1888
        %v1890 = vsel %vm1844, %v1841, -inf
        %1891 = vmax.xlane.f32.xlu0 %v1890
        %v1892 = vpop.xlane.xlu0 %1891
        %v1893 = vsub.f32 %v1509, %v1847
        %v1894 = vsub.f32 %v1512, %v1850
        %v1895 = vsub.f32 %v1556, %v1853
        %v1896 = vsub.f32 %v1559, %v1856
        %v1897 = vsub.f32 %v1603, %v1859
        %v1898 = vsub.f32 %v1606, %v1862
        %v1899 = vsub.f32 %v1650, %v1865
        %v1900 = vsub.f32 %v1653, %v1868
        %v1901 = vsub.f32 %v1697, %v1871
        %v1902 = vsub.f32 %v1700, %v1874
        %v1903 = vsub.f32 %v1744, %v1877
        %v1904 = vsub.f32 %v1747, %v1880
        %v1905 = vsub.f32 %v1791, %v1883
        %v1906 = vsub.f32 %v1794, %v1886
        %v1907 = vsub.f32 %v1838, %v1889
        %v1908 = vsub.f32 %v1841, %v1892
        %v1909 = vmul.f32 %v1893, 1.442695
        %v1910 = vpow.pop %v1909
        %v1911 = vmul.f32 %v1894, 1.442695
        %v1912 = vpow.pop %v1911
        %v1913 = vmul.f32 %v1895, 1.442695
        %v1914 = vpow.pop %v1913
        %v1915 = vmul.f32 %v1896, 1.442695
        %v1916 = vpow.pop %v1915
        %v1917 = vmul.f32 %v1897, 1.442695
        %v1918 = vpow.pop %v1917
        %v1919 = vmul.f32 %v1898, 1.442695
        %v1920 = vpow.pop %v1919
        %v1921 = vmul.f32 %v1899, 1.442695
        %v1922 = vpow.pop %v1921
        %v1923 = vmul.f32 %v1900, 1.442695
        %v1924 = vpow.pop %v1923
        %v1925 = vmul.f32 %v1901, 1.442695
        %v1926 = vpow.pop %v1925
        %v1927 = vmul.f32 %v1902, 1.442695
        %v1928 = vpow.pop %v1927
        %v1929 = vmul.f32 %v1903, 1.442695
        %v1930 = vpow.pop %v1929
        %v1931 = vmul.f32 %v1904, 1.442695
        %v1932 = vpow.pop %v1931
        %v1933 = vmul.f32 %v1905, 1.442695
        %v1934 = vpow.pop %v1933
        %v1935 = vmul.f32 %v1906, 1.442695
        %v1936 = vpow.pop %v1935
        %v1937 = vmul.f32 %v1907, 1.442695
        %v1938 = vpow.pop %v1937
        %v1939 = vmul.f32 %v1908, 1.442695
        %v1940 = vpow.pop %v1939
        %v1941 = vsel %vm1844, %v1910, 0.0
        %1942 = vadd.xlane.f32.xlu0 %v1941
        %v1943 = vpop.xlane.xlu0 %1942
        %v1944 = vsel %vm1844, %v1912, 0.0
        %1945 = vadd.xlane.f32.xlu0 %v1944
        %v1946 = vpop.xlane.xlu0 %1945
        %v1947 = vsel %vm1844, %v1914, 0.0
        %1948 = vadd.xlane.f32.xlu0 %v1947
        %v1949 = vpop.xlane.xlu0 %1948
        %v1950 = vsel %vm1844, %v1916, 0.0
        %1951 = vadd.xlane.f32.xlu0 %v1950
        %v1952 = vpop.xlane.xlu0 %1951
        %v1953 = vsel %vm1844, %v1918, 0.0
        %1954 = vadd.xlane.f32.xlu0 %v1953
        %v1955 = vpop.xlane.xlu0 %1954
        %v1956 = vsel %vm1844, %v1920, 0.0
        %1957 = vadd.xlane.f32.xlu0 %v1956
        %v1958 = vpop.xlane.xlu0 %1957
        %v1959 = vsel %vm1844, %v1922, 0.0
        %1960 = vadd.xlane.f32.xlu0 %v1959
        %v1961 = vpop.xlane.xlu0 %1960
        %v1962 = vsel %vm1844, %v1924, 0.0
        %1963 = vadd.xlane.f32.xlu0 %v1962
        %v1964 = vpop.xlane.xlu0 %1963
        %v1965 = vsel %vm1844, %v1926, 0.0
        %1966 = vadd.xlane.f32.xlu0 %v1965
        %v1967 = vpop.xlane.xlu0 %1966
        %v1968 = vsel %vm1844, %v1928, 0.0
        %1969 = vadd.xlane.f32.xlu0 %v1968
        %v1970 = vpop.xlane.xlu0 %1969
        %v1971 = vsel %vm1844, %v1930, 0.0
        %1972 = vadd.xlane.f32.xlu0 %v1971
        %v1973 = vpop.xlane.xlu0 %1972
        %v1974 = vsel %vm1844, %v1932, 0.0
        %1975 = vadd.xlane.f32.xlu0 %v1974
        %v1976 = vpop.xlane.xlu0 %1975
        %v1977 = vsel %vm1844, %v1934, 0.0
        %1978 = vadd.xlane.f32.xlu0 %v1977
        %v1979 = vpop.xlane.xlu0 %1978
        %v1980 = vsel %vm1844, %v1936, 0.0
        %1981 = vadd.xlane.f32.xlu0 %v1980
        %v1982 = vpop.xlane.xlu0 %1981
        %v1983 = vsel %vm1844, %v1938, 0.0
        %1984 = vadd.xlane.f32.xlu0 %v1983
        %v1985 = vpop.xlane.xlu0 %1984
        %v1986 = vsel %vm1844, %v1940, 0.0
        %1987 = vadd.xlane.f32.xlu0 %v1986
        %v1988 = vpop.xlane.xlu0 %1987
        %v1989 = vpack.c.bf16 %v1912, %v1910
        %v1990 = vpack.c.bf16 %v1916, %v1914
        %v1991 = vpack.c.bf16 %v1920, %v1918
        %v1992 = vpack.c.bf16 %v1924, %v1922
        %v1993 = vpack.c.bf16 %v1928, %v1926
        %v1994 = vpack.c.bf16 %v1932, %v1930
        %v1995 = vpack.c.bf16 %v1936, %v1934
        %v1996 = vpack.c.bf16 %v1940, %v1938
        %v1998 = vsel %vm1844, %v1989, 0
        %2000 = vmatprep.subr.bf16.mxu0 0
        %2001 = vmatpush1.bf16.msra.mxu0 %v1429
        %2002 = vmatprep.subr.bf16.mxu0 0
        %2003 = vmatpush1.bf16.msra.mxu0 0
        %2004 = vmatprep.subr.bf16.mxu0 0
        %2005 = vmatpush1.bf16.msra.mxu0 0
        %2006 = vmatprep.subr.bf16.mxu0 0
        %2007 = vmatpush1.bf16.msra.mxu0 0
        %2008 = vmatprep.subr.bf16.mxu0 0
        %2009 = vmatpush1.bf16.msra.mxu0 0
        %2010 = vmatprep.subr.bf16.mxu0 0
        %2011 = vmatpush1.bf16.msra.mxu0 0
        %2012 = vmatprep.subr.bf16.mxu0 0
        %2013 = vmatpush1.bf16.msra.mxu0 0
        %2014 = vmatprep.subr.bf16.mxu0 0
        %2015 = vmatpush1.bf16.msra.mxu0 0
        %2016 = vmatprep.subr.bf16.mxu0 0
        %2017 = vmatpush1.bf16.msra.mxu0 0
        %2018 = vmatprep.subr.bf16.mxu0 0
        %2019 = vmatpush1.bf16.msra.mxu0 0
        %2020 = vmatprep.subr.bf16.mxu0 0
        %2021 = vmatpush1.bf16.msra.mxu0 0
        %2022 = vmatprep.subr.bf16.mxu0 0
        %2023 = vmatpush1.bf16.msra.mxu0 0
        %2024 = vmatprep.subr.bf16.mxu0 0
        %2025 = vmatpush1.bf16.msra.mxu0 0
        %2026 = vmatprep.subr.bf16.mxu0 0
        %2027 = vmatpush1.bf16.msra.mxu0 0
        %2028 = vmatprep.subr.bf16.mxu0 0
        %2029 = vmatpush1.bf16.msra.mxu0 0
        %2030 = vmatprep.subr.bf16.mxu0 0
        %2031 = vmatpush1.bf16.msra.mxu0 0
        %2032 = vmatprep.mubr.bf16.mxu0 0
        %2033 = vmatmul.mubr.bf16.gmra.mrb[0].mxu0 %v1998
        %v2034 = vpop.f32.mrb[0].mxu0
        %v2035 = vadd.f32 0.0, %v2034
        %v2036 = vpop.f32.mrb[0].mxu0
        %v2037 = vpop.f32.mrb[0].mxu0
        %v2038 = vadd.f32 0.0, %v2037
        %v2039 = vpop.f32.mrb[0].mxu0
        %2040 = vdwg.mxu0
        %v2042 = vsel %vm1844, %v1990, 0
        %2044 = vmatprep.subr.bf16.mxu0 0
        %2045 = vmatpush1.bf16.msra.mxu0 %v1432
        %2046 = vmatprep.subr.bf16.mxu0 0
        %2047 = vmatpush1.bf16.msra.mxu0 0
        %2048 = vmatprep.subr.bf16.mxu0 0
        %2049 = vmatpush1.bf16.msra.mxu0 0
        %2050 = vmatprep.subr.bf16.mxu0 0
        %2051 = vmatpush1.bf16.msra.mxu0 0
        %2052 = vmatprep.subr.bf16.mxu0 0
        %2053 = vmatpush1.bf16.msra.mxu0 0
        %2054 = vmatprep.subr.bf16.mxu0 0
        %2055 = vmatpush1.bf16.msra.mxu0 0
        %2056 = vmatprep.subr.bf16.mxu0 0
        %2057 = vmatpush1.bf16.msra.mxu0 0
        %2058 = vmatprep.subr.bf16.mxu0 0
        %2059 = vmatpush1.bf16.msra.mxu0 0
        %2060 = vmatprep.subr.bf16.mxu0 0
        %2061 = vmatpush1.bf16.msra.mxu0 0
        %2062 = vmatprep.subr.bf16.mxu0 0
        %2063 = vmatpush1.bf16.msra.mxu0 0
        %2064 = vmatprep.subr.bf16.mxu0 0
        %2065 = vmatpush1.bf16.msra.mxu0 0
        %2066 = vmatprep.subr.bf16.mxu0 0
        %2067 = vmatpush1.bf16.msra.mxu0 0
        %2068 = vmatprep.subr.bf16.mxu0 0
        %2069 = vmatpush1.bf16.msra.mxu0 0
        %2070 = vmatprep.subr.bf16.mxu0 0
        %2071 = vmatpush1.bf16.msra.mxu0 0
        %2072 = vmatprep.subr.bf16.mxu0 0
        %2073 = vmatpush1.bf16.msra.mxu0 0
        %2074 = vmatprep.subr.bf16.mxu0 0
        %2075 = vmatpush1.bf16.msra.mxu0 0
        %2076 = vmatprep.mubr.bf16.mxu0 0
        %2077 = vmatmul.mubr.bf16.gmra.mrb[0].mxu0 %v2042
        %v2078 = vpop.f32.mrb[0].mxu0
        %v2079 = vadd.f32 0.0, %v2078
        %v2080 = vpop.f32.mrb[0].mxu0
        %v2081 = vpop.f32.mrb[0].mxu0
        %v2082 = vadd.f32 0.0, %v2081
        %v2083 = vpop.f32.mrb[0].mxu0
        %2084 = vdwg.mxu0
        %v2086 = vsel %vm1844, %v1991, 0
        %2088 = vmatprep.subr.bf16.mxu0 0
        %2089 = vmatpush1.bf16.msra.mxu0 %v1435
        %2090 = vmatprep.subr.bf16.mxu0 0
        %2091 = vmatpush1.bf16.msra.mxu0 0
        %2092 = vmatprep.subr.bf16.mxu0 0
        %2093 = vmatpush1.bf16.msra.mxu0 0
        %2094 = vmatprep.subr.bf16.mxu0 0
        %2095 = vmatpush1.bf16.msra.mxu0 0
        %2096 = vmatprep.subr.bf16.mxu0 0
        %2097 = vmatpush1.bf16.msra.mxu0 0
        %2098 = vmatprep.subr.bf16.mxu0 0
        %2099 = vmatpush1.bf16.msra.mxu0 0
        %2100 = vmatprep.subr.bf16.mxu0 0
        %2101 = vmatpush1.bf16.msra.mxu0 0
        %2102 = vmatprep.subr.bf16.mxu0 0
        %2103 = vmatpush1.bf16.msra.mxu0 0
        %2104 = vmatprep.subr.bf16.mxu0 0
        %2105 = vmatpush1.bf16.msra.mxu0 0
        %2106 = vmatprep.subr.bf16.mxu0 0
        %2107 = vmatpush1.bf16.msra.mxu0 0
        %2108 = vmatprep.subr.bf16.mxu0 0
        %2109 = vmatpush1.bf16.msra.mxu0 0
        %2110 = vmatprep.subr.bf16.mxu0 0
        %2111 = vmatpush1.bf16.msra.mxu0 0
        %2112 = vmatprep.subr.bf16.mxu0 0
        %2113 = vmatpush1.bf16.msra.mxu0 0
        %2114 = vmatprep.subr.bf16.mxu0 0
        %2115 = vmatpush1.bf16.msra.mxu0 0
        %2116 = vmatprep.subr.bf16.mxu0 0
        %2117 = vmatpush1.bf16.msra.mxu0 0
        %2118 = vmatprep.subr.bf16.mxu0 0
        %2119 = vmatpush1.bf16.msra.mxu0 0
        %2120 = vmatprep.mubr.bf16.mxu0 0
        %2121 = vmatmul.mubr.bf16.gmra.mrb[0].mxu0 %v2086
        %v2122 = vpop.f32.mrb[0].mxu0
        %v2123 = vadd.f32 0.0, %v2122
        %v2124 = vpop.f32.mrb[0].mxu0
        %v2125 = vpop.f32.mrb[0].mxu0
        %v2126 = vadd.f32 0.0, %v2125
        %v2127 = vpop.f32.mrb[0].mxu0
        %2128 = vdwg.mxu0
        %v2130 = vsel %vm1844, %v1992, 0
        %2132 = vmatprep.subr.bf16.mxu0 0
        %2133 = vmatpush1.bf16.msra.mxu0 %v1438
        %2134 = vmatprep.subr.bf16.mxu0 0
        %2135 = vmatpush1.bf16.msra.mxu0 0
        %2136 = vmatprep.subr.bf16.mxu0 0
        %2137 = vmatpush1.bf16.msra.mxu0 0
        %2138 = vmatprep.subr.bf16.mxu0 0
        %2139 = vmatpush1.bf16.msra.mxu0 0
        %2140 = vmatprep.subr.bf16.mxu0 0
        %2141 = vmatpush1.bf16.msra.mxu0 0
        %2142 = vmatprep.subr.bf16.mxu0 0
        %2143 = vmatpush1.bf16.msra.mxu0 0
        %2144 = vmatprep.subr.bf16.mxu0 0
        %2145 = vmatpush1.bf16.msra.mxu0 0
        %2146 = vmatprep.subr.bf16.mxu0 0
        %2147 = vmatpush1.bf16.msra.mxu0 0
        %2148 = vmatprep.subr.bf16.mxu0 0
        %2149 = vmatpush1.bf16.msra.mxu0 0
        %2150 = vmatprep.subr.bf16.mxu0 0
        %2151 = vmatpush1.bf16.msra.mxu0 0
        %2152 = vmatprep.subr.bf16.mxu0 0
        %2153 = vmatpush1.bf16.msra.mxu0 0
        %2154 = vmatprep.subr.bf16.mxu0 0
        %2155 = vmatpush1.bf16.msra.mxu0 0
        %2156 = vmatprep.subr.bf16.mxu0 0
        %2157 = vmatpush1.bf16.msra.mxu0 0
        %2158 = vmatprep.subr.bf16.mxu0 0
        %2159 = vmatpush1.bf16.msra.mxu0 0
        %2160 = vmatprep.subr.bf16.mxu0 0
        %2161 = vmatpush1.bf16.msra.mxu0 0
        %2162 = vmatprep.subr.bf16.mxu0 0
        %2163 = vmatpush1.bf16.msra.mxu0 0
        %2164 = vmatprep.mubr.bf16.mxu0 0
        %2165 = vmatmul.mubr.bf16.gmra.mrb[0].mxu0 %v2130
        %v2166 = vpop.f32.mrb[0].mxu0
        %v2167 = vadd.f32 0.0, %v2166
        %v2168 = vpop.f32.mrb[0].mxu0
        %v2169 = vpop.f32.mrb[0].mxu0
        %v2170 = vadd.f32 0.0, %v2169
        %v2171 = vpop.f32.mrb[0].mxu0
        %2172 = vdwg.mxu0
        %v2174 = vsel %vm1844, %v1993, 0
        %2176 = vmatprep.subr.bf16.mxu0 0
        %2177 = vmatpush1.bf16.msra.mxu0 %v1441
        %2178 = vmatprep.subr.bf16.mxu0 0
        %2179 = vmatpush1.bf16.msra.mxu0 0
        %2180 = vmatprep.subr.bf16.mxu0 0
        %2181 = vmatpush1.bf16.msra.mxu0 0
        %2182 = vmatprep.subr.bf16.mxu0 0
        %2183 = vmatpush1.bf16.msra.mxu0 0
        %2184 = vmatprep.subr.bf16.mxu0 0
        %2185 = vmatpush1.bf16.msra.mxu0 0
        %2186 = vmatprep.subr.bf16.mxu0 0
        %2187 = vmatpush1.bf16.msra.mxu0 0
        %2188 = vmatprep.subr.bf16.mxu0 0
        %2189 = vmatpush1.bf16.msra.mxu0 0
        %2190 = vmatprep.subr.bf16.mxu0 0
        %2191 = vmatpush1.bf16.msra.mxu0 0
        %2192 = vmatprep.subr.bf16.mxu0 0
        %2193 = vmatpush1.bf16.msra.mxu0 0
        %2194 = vmatprep.subr.bf16.mxu0 0
        %2195 = vmatpush1.bf16.msra.mxu0 0
        %2196 = vmatprep.subr.bf16.mxu0 0
        %2197 = vmatpush1.bf16.msra.mxu0 0
        %2198 = vmatprep.subr.bf16.mxu0 0
        %2199 = vmatpush1.bf16.msra.mxu0 0
        %2200 = vmatprep.subr.bf16.mxu0 0
        %2201 = vmatpush1.bf16.msra.mxu0 0
        %2202 = vmatprep.subr.bf16.mxu0 0
        %2203 = vmatpush1.bf16.msra.mxu0 0
        %2204 = vmatprep.subr.bf16.mxu0 0
        %2205 = vmatpush1.bf16.msra.mxu0 0
        %2206 = vmatprep.subr.bf16.mxu0 0
        %2207 = vmatpush1.bf16.msra.mxu0 0
        %2208 = vmatprep.mubr.bf16.mxu0 0
        %2209 = vmatmul.mubr.bf16.gmra.mrb[0].mxu0 %v2174
        %v2210 = vpop.f32.mrb[0].mxu0
        %v2211 = vadd.f32 0.0, %v2210
        %v2212 = vpop.f32.mrb[0].mxu0
        %v2213 = vpop.f32.mrb[0].mxu0
        %v2214 = vadd.f32 0.0, %v2213
        %v2215 = vpop.f32.mrb[0].mxu0
        %2216 = vdwg.mxu0
        %v2218 = vsel %vm1844, %v1994, 0
        %2220 = vmatprep.subr.bf16.mxu0 0
        %2221 = vmatpush1.bf16.msra.mxu0 %v1444
        %2222 = vmatprep.subr.bf16.mxu0 0
        %2223 = vmatpush1.bf16.msra.mxu0 0
        %2224 = vmatprep.subr.bf16.mxu0 0
        %2225 = vmatpush1.bf16.msra.mxu0 0
        %2226 = vmatprep.subr.bf16.mxu0 0
        %2227 = vmatpush1.bf16.msra.mxu0 0
        %2228 = vmatprep.subr.bf16.mxu0 0
        %2229 = vmatpush1.bf16.msra.mxu0 0
        %2230 = vmatprep.subr.bf16.mxu0 0
        %2231 = vmatpush1.bf16.msra.mxu0 0
        %2232 = vmatprep.subr.bf16.mxu0 0
        %2233 = vmatpush1.bf16.msra.mxu0 0
        %2234 = vmatprep.subr.bf16.mxu0 0
        %2235 = vmatpush1.bf16.msra.mxu0 0
        %2236 = vmatprep.subr.bf16.mxu0 0
        %2237 = vmatpush1.bf16.msra.mxu0 0
        %2238 = vmatprep.subr.bf16.mxu0 0
        %2239 = vmatpush1.bf16.msra.mxu0 0
        %2240 = vmatprep.subr.bf16.mxu0 0
        %2241 = vmatpush1.bf16.msra.mxu0 0
        %2242 = vmatprep.subr.bf16.mxu0 0
        %2243 = vmatpush1.bf16.msra.mxu0 0
        %2244 = vmatprep.subr.bf16.mxu0 0
        %2245 = vmatpush1.bf16.msra.mxu0 0
        %2246 = vmatprep.subr.bf16.mxu0 0
        %2247 = vmatpush1.bf16.msra.mxu0 0
        %2248 = vmatprep.subr.bf16.mxu0 0
        %2249 = vmatpush1.bf16.msra.mxu0 0
        %2250 = vmatprep.subr.bf16.mxu0 0
        %2251 = vmatpush1.bf16.msra.mxu0 0
        %2252 = vmatprep.mubr.bf16.mxu0 0
        %2253 = vmatmul.mubr.bf16.gmra.mrb[0].mxu0 %v2218
        %v2254 = vpop.f32.mrb[0].mxu0
        %v2255 = vadd.f32 0.0, %v2254
        %v2256 = vpop.f32.mrb[0].mxu0
        %v2257 = vpop.f32.mrb[0].mxu0
        %v2258 = vadd.f32 0.0, %v2257
        %v2259 = vpop.f32.mrb[0].mxu0
        %2260 = vdwg.mxu0
        %v2262 = vsel %vm1844, %v1995, 0
        %2264 = vmatprep.subr.bf16.mxu0 0
        %2265 = vmatpush1.bf16.msra.mxu0 %v1447
        %2266 = vmatprep.subr.bf16.mxu0 0
        %2267 = vmatpush1.bf16.msra.mxu0 0
        %2268 = vmatprep.subr.bf16.mxu0 0
        %2269 = vmatpush1.bf16.msra.mxu0 0
        %2270 = vmatprep.subr.bf16.mxu0 0
        %2271 = vmatpush1.bf16.msra.mxu0 0
        %2272 = vmatprep.subr.bf16.mxu0 0
        %2273 = vmatpush1.bf16.msra.mxu0 0
        %2274 = vmatprep.subr.bf16.mxu0 0
        %2275 = vmatpush1.bf16.msra.mxu0 0
        %2276 = vmatprep.subr.bf16.mxu0 0
        %2277 = vmatpush1.bf16.msra.mxu0 0
        %2278 = vmatprep.subr.bf16.mxu0 0
        %2279 = vmatpush1.bf16.msra.mxu0 0
        %2280 = vmatprep.subr.bf16.mxu0 0
        %2281 = vmatpush1.bf16.msra.mxu0 0
        %2282 = vmatprep.subr.bf16.mxu0 0
        %2283 = vmatpush1.bf16.msra.mxu0 0
        %2284 = vmatprep.subr.bf16.mxu0 0
        %2285 = vmatpush1.bf16.msra.mxu0 0
        %2286 = vmatprep.subr.bf16.mxu0 0
        %2287 = vmatpush1.bf16.msra.mxu0 0
        %2288 = vmatprep.subr.bf16.mxu0 0
        %2289 = vmatpush1.bf16.msra.mxu0 0
        %2290 = vmatprep.subr.bf16.mxu0 0
        %2291 = vmatpush1.bf16.msra.mxu0 0
        %2292 = vmatprep.subr.bf16.mxu0 0
        %2293 = vmatpush1.bf16.msra.mxu0 0
        %2294 = vmatprep.subr.bf16.mxu0 0
        %2295 = vmatpush1.bf16.msra.mxu0 0
        %2296 = vmatprep.mubr.bf16.mxu0 0
        %2297 = vmatmul.mubr.bf16.gmra.mrb[0].mxu0 %v2262
        %v2298 = vpop.f32.mrb[0].mxu0
        %v2299 = vadd.f32 0.0, %v2298
        %v2300 = vpop.f32.mrb[0].mxu0
        %v2301 = vpop.f32.mrb[0].mxu0
        %v2302 = vadd.f32 0.0, %v2301
        %v2303 = vpop.f32.mrb[0].mxu0
        %2304 = vdwg.mxu0
        %v2306 = vsel %vm1844, %v1996, 0
        %2308 = vmatprep.subr.bf16.mxu0 0
        %2309 = vmatpush1.bf16.msra.mxu0 %v1450
        %2310 = vmatprep.subr.bf16.mxu0 0
        %2311 = vmatpush1.bf16.msra.mxu0 0
        %2312 = vmatprep.subr.bf16.mxu0 0
        %2313 = vmatpush1.bf16.msra.mxu0 0
        %2314 = vmatprep.subr.bf16.mxu0 0
        %2315 = vmatpush1.bf16.msra.mxu0 0
        %2316 = vmatprep.subr.bf16.mxu0 0
        %2317 = vmatpush1.bf16.msra.mxu0 0
        %2318 = vmatprep.subr.bf16.mxu0 0
        %2319 = vmatpush1.bf16.msra.mxu0 0
        %2320 = vmatprep.subr.bf16.mxu0 0
        %2321 = vmatpush1.bf16.msra.mxu0 0
        %2322 = vmatprep.subr.bf16.mxu0 0
        %2323 = vmatpush1.bf16.msra.mxu0 0
        %2324 = vmatprep.subr.bf16.mxu0 0
        %2325 = vmatpush1.bf16.msra.mxu0 0
        %2326 = vmatprep.subr.bf16.mxu0 0
        %2327 = vmatpush1.bf16.msra.mxu0 0
        %2328 = vmatprep.subr.bf16.mxu0 0
        %2329 = vmatpush1.bf16.msra.mxu0 0
        %2330 = vmatprep.subr.bf16.mxu0 0
        %2331 = vmatpush1.bf16.msra.mxu0 0
        %2332 = vmatprep.subr.bf16.mxu0 0
        %2333 = vmatpush1.bf16.msra.mxu0 0
        %2334 = vmatprep.subr.bf16.mxu0 0
        %2335 = vmatpush1.bf16.msra.mxu0 0
        %2336 = vmatprep.subr.bf16.mxu0 0
        %2337 = vmatpush1.bf16.msra.mxu0 0
        %2338 = vmatprep.subr.bf16.mxu0 0
        %2339 = vmatpush1.bf16.msra.mxu0 0
        %2340 = vmatprep.mubr.bf16.mxu0 0
        %2341 = vmatmul.mubr.bf16.gmra.mrb[0].mxu0 %v2306
        %v2342 = vpop.f32.mrb[0].mxu0
        %v2343 = vadd.f32 0.0, %v2342
        %v2344 = vpop.f32.mrb[0].mxu0
        %v2345 = vpop.f32.mrb[0].mxu0
        %v2346 = vadd.f32 0.0, %v2345
        %v2347 = vpop.f32.mrb[0].mxu0
        %2348 = vdwg.mxu0
        %v2349 = vrcp.pop %v1943
        %v2350 = vrcp.pop %v1946
        %v2351 = vrcp.pop %v1949
        %v2352 = vrcp.pop %v1952
        %v2353 = vrcp.pop %v1955
        %v2354 = vrcp.pop %v1958
        %v2355 = vrcp.pop %v1961
        %v2356 = vrcp.pop %v1964
        %v2357 = vrcp.pop %v1967
        %v2358 = vrcp.pop %v1970
        %v2359 = vrcp.pop %v1973
        %v2360 = vrcp.pop %v1976
        %v2361 = vrcp.pop %v1979
        %v2362 = vrcp.pop %v1982
        %v2363 = vrcp.pop %v1985
        %v2364 = vrcp.pop %v1988
        %v2365 = vmul.f32 %v2035, %v2349
        %v2366 = vmul.f32 %v2038, %v2350
        %v2367 = vmul.f32 %v2079, %v2351
        %v2368 = vmul.f32 %v2082, %v2352
        %v2369 = vmul.f32 %v2123, %v2353
        %v2370 = vmul.f32 %v2126, %v2354
        %v2371 = vmul.f32 %v2167, %v2355
        %v2372 = vmul.f32 %v2170, %v2356
        %v2373 = vmul.f32 %v2211, %v2357
        %v2374 = vmul.f32 %v2214, %v2358
        %v2375 = vmul.f32 %v2255, %v2359
        %v2376 = vmul.f32 %v2258, %v2360
        %v2377 = vmul.f32 %v2299, %v2361
        %v2378 = vmul.f32 %v2302, %v2362
        %v2379 = vmul.f32 %v2343, %v2363
        %v2380 = vmul.f32 %v2346, %v2364
        %v2381 = vpack.c.bf16 %v2366, %v2365
        %v2382 = vpack.c.bf16 %v2368, %v2367
        %v2383 = vpack.c.bf16 %v2370, %v2369
        %v2384 = vpack.c.bf16 %v2372, %v2371
        %v2385 = vpack.c.bf16 %v2374, %v2373
        %v2386 = vpack.c.bf16 %v2376, %v2375
        %v2387 = vpack.c.bf16 %v2378, %v2377
        %v2388 = vpack.c.bf16 %v2380, %v2379
        %2390 = vrot.lane.b32.xlu0 %v1427, 96
        %v2391 = vpop.permute.xlu0 %2390
        %2393 = vrot.lane.b32.xlu0 %v1428, 96
        %v2394 = vpop.permute.xlu0 %2393
        %v2396 = vsel %vm1467, %v2391, 0
        %v2399 = vsel %vm1467, %v2394, 0
        %2401 = vmatprep.subr.bf16.mxu0 0
        %2402 = vmatpush1.bf16.xpose.msra.mxu0 %v2399
        %2403 = vmatprep.subr.bf16.mxu0 0
        %2404 = vmatpush1.bf16.xpose.msra.mxu0 0
        %2405 = vmatprep.subr.bf16.mxu0 0
        %2406 = vmatpush1.bf16.xpose.msra.mxu0 0
        %2407 = vmatprep.subr.bf16.mxu0 0
        %2408 = vmatpush1.bf16.xpose.msra.mxu0 0
        %2409 = vmatprep.subr.bf16.mxu0 0
        %2410 = vmatpush1.bf16.xpose.msra.mxu0 0
        %2411 = vmatprep.subr.bf16.mxu0 0
        %2412 = vmatpush1.bf16.xpose.msra.mxu0 0
        %2413 = vmatprep.subr.bf16.mxu0 0
        %2414 = vmatpush1.bf16.xpose.msra.mxu0 0
        %2415 = vmatprep.subr.bf16.mxu0 0
        %2416 = vmatpush1.bf16.xpose.msra.mxu0 0
        %2417 = vmatprep.subr.bf16.mxu0 0
        %2418 = vmatpush1.bf16.xpose.msra.mxu0 0
        %2419 = vmatprep.subr.bf16.mxu0 0
        %2420 = vmatpush1.bf16.xpose.msra.mxu0 0
        %2421 = vmatprep.subr.bf16.mxu0 0
        %2422 = vmatpush1.bf16.xpose.msra.mxu0 0
        %2423 = vmatprep.subr.bf16.mxu0 0
        %2424 = vmatpush1.bf16.xpose.msra.mxu0 0
        %2425 = vmatprep.subr.bf16.mxu0 0
        %2426 = vmatpush1.bf16.xpose.msra.mxu0 0
        %2427 = vmatprep.subr.bf16.mxu0 0
        %2428 = vmatpush1.bf16.xpose.msra.mxu0 0
        %2429 = vmatprep.subr.bf16.mxu0 0
        %2430 = vmatpush1.bf16.xpose.msra.mxu0 0
        %2431 = vmatprep.subr.bf16.mxu0 0
        %2432 = vmatpush1.bf16.xpose.msra.mxu0 0
        %2433 = vmatprep.mubr.bf16.mxu0 0
        %2434 = vmatmul.mubr.bf16.gmra.mrb[0].mxu0 %v2396
        %v2435 = vpop.f32.mrb[0].mxu0
        %v2436 = vadd.f32 0.0, %v2435
        %v2437 = vpop.f32.mrb[0].mxu0
        %v2438 = vpop.f32.mrb[0].mxu0
        %v2439 = vadd.f32 0.0, %v2438
        %v2440 = vpop.f32.mrb[0].mxu0
        %2441 = vdwg.mxu0
        %2443 = vrot.lane.b32.xlu0 %v1430, 96
        %v2444 = vpop.permute.xlu0 %2443
        %2446 = vrot.lane.b32.xlu0 %v1431, 96
        %v2447 = vpop.permute.xlu0 %2446
        %v2449 = vsel %vm1467, %v2444, 0
        %v2452 = vsel %vm1467, %v2447, 0
        %2454 = vmatprep.subr.bf16.mxu0 0
        %2455 = vmatpush1.bf16.xpose.msra.mxu0 %v2452
        %2456 = vmatprep.subr.bf16.mxu0 0
        %2457 = vmatpush1.bf16.xpose.msra.mxu0 0
        %2458 = vmatprep.subr.bf16.mxu0 0
        %2459 = vmatpush1.bf16.xpose.msra.mxu0 0
        %2460 = vmatprep.subr.bf16.mxu0 0
        %2461 = vmatpush1.bf16.xpose.msra.mxu0 0
        %2462 = vmatprep.subr.bf16.mxu0 0
        %2463 = vmatpush1.bf16.xpose.msra.mxu0 0
        %2464 = vmatprep.subr.bf16.mxu0 0
        %2465 = vmatpush1.bf16.xpose.msra.mxu0 0
        %2466 = vmatprep.subr.bf16.mxu0 0
        %2467 = vmatpush1.bf16.xpose.msra.mxu0 0
        %2468 = vmatprep.subr.bf16.mxu0 0
        %2469 = vmatpush1.bf16.xpose.msra.mxu0 0
        %2470 = vmatprep.subr.bf16.mxu0 0
        %2471 = vmatpush1.bf16.xpose.msra.mxu0 0
        %2472 = vmatprep.subr.bf16.mxu0 0
        %2473 = vmatpush1.bf16.xpose.msra.mxu0 0
        %2474 = vmatprep.subr.bf16.mxu0 0
        %2475 = vmatpush1.bf16.xpose.msra.mxu0 0
        %2476 = vmatprep.subr.bf16.mxu0 0
        %2477 = vmatpush1.bf16.xpose.msra.mxu0 0
        %2478 = vmatprep.subr.bf16.mxu0 0
        %2479 = vmatpush1.bf16.xpose.msra.mxu0 0
        %2480 = vmatprep.subr.bf16.mxu0 0
        %2481 = vmatpush1.bf16.xpose.msra.mxu0 0
        %2482 = vmatprep.subr.bf16.mxu0 0
        %2483 = vmatpush1.bf16.xpose.msra.mxu0 0
        %2484 = vmatprep.subr.bf16.mxu0 0
        %2485 = vmatpush1.bf16.xpose.msra.mxu0 0
        %2486 = vmatprep.mubr.bf16.mxu0 0
        %2487 = vmatmul.mubr.bf16.gmra.mrb[0].mxu0 %v2449
        %v2488 = vpop.f32.mrb[0].mxu0
        %v2489 = vadd.f32 0.0, %v2488
        %v2490 = vpop.f32.mrb[0].mxu0
        %v2491 = vpop.f32.mrb[0].mxu0
        %v2492 = vadd.f32 0.0, %v2491
        %v2493 = vpop.f32.mrb[0].mxu0
        %2494 = vdwg.mxu0
        %2496 = vrot.lane.b32.xlu0 %v1433, 96
        %v2497 = vpop.permute.xlu0 %2496
        %2499 = vrot.lane.b32.xlu0 %v1434, 96
        %v2500 = vpop.permute.xlu0 %2499
        %v2502 = vsel %vm1467, %v2497, 0
        %v2505 = vsel %vm1467, %v2500, 0
        %2507 = vmatprep.subr.bf16.mxu0 0
        %2508 = vmatpush1.bf16.xpose.msra.mxu0 %v2505
        %2509 = vmatprep.subr.bf16.mxu0 0
        %2510 = vmatpush1.bf16.xpose.msra.mxu0 0
        %2511 = vmatprep.subr.bf16.mxu0 0
        %2512 = vmatpush1.bf16.xpose.msra.mxu0 0
        %2513 = vmatprep.subr.bf16.mxu0 0
        %2514 = vmatpush1.bf16.xpose.msra.mxu0 0
        %2515 = vmatprep.subr.bf16.mxu0 0
        %2516 = vmatpush1.bf16.xpose.msra.mxu0 0
        %2517 = vmatprep.subr.bf16.mxu0 0
        %2518 = vmatpush1.bf16.xpose.msra.mxu0 0
        %2519 = vmatprep.subr.bf16.mxu0 0
        %2520 = vmatpush1.bf16.xpose.msra.mxu0 0
        %2521 = vmatprep.subr.bf16.mxu0 0
        %2522 = vmatpush1.bf16.xpose.msra.mxu0 0
        %2523 = vmatprep.subr.bf16.mxu0 0
        %2524 = vmatpush1.bf16.xpose.msra.mxu0 0
        %2525 = vmatprep.subr.bf16.mxu0 0
        %2526 = vmatpush1.bf16.xpose.msra.mxu0 0
        %2527 = vmatprep.subr.bf16.mxu0 0
        %2528 = vmatpush1.bf16.xpose.msra.mxu0 0
        %2529 = vmatprep.subr.bf16.mxu0 0
        %2530 = vmatpush1.bf16.xpose.msra.mxu0 0
        %2531 = vmatprep.subr.bf16.mxu0 0
        %2532 = vmatpush1.bf16.xpose.msra.mxu0 0
        %2533 = vmatprep.subr.bf16.mxu0 0
        %2534 = vmatpush1.bf16.xpose.msra.mxu0 0
        %2535 = vmatprep.subr.bf16.mxu0 0
        %2536 = vmatpush1.bf16.xpose.msra.mxu0 0
        %2537 = vmatprep.subr.bf16.mxu0 0
        %2538 = vmatpush1.bf16.xpose.msra.mxu0 0
        %2539 = vmatprep.mubr.bf16.mxu0 0
        %2540 = vmatmul.mubr.bf16.gmra.mrb[0].mxu0 %v2502
        %v2541 = vpop.f32.mrb[0].mxu0
        %v2542 = vadd.f32 0.0, %v2541
        %v2543 = vpop.f32.mrb[0].mxu0
        %v2544 = vpop.f32.mrb[0].mxu0
        %v2545 = vadd.f32 0.0, %v2544
        %v2546 = vpop.f32.mrb[0].mxu0
        %2547 = vdwg.mxu0
        %2549 = vrot.lane.b32.xlu0 %v1436, 96
        %v2550 = vpop.permute.xlu0 %2549
        %2552 = vrot.lane.b32.xlu0 %v1437, 96
        %v2553 = vpop.permute.xlu0 %2552
        %v2555 = vsel %vm1467, %v2550, 0
        %v2558 = vsel %vm1467, %v2553, 0
        %2560 = vmatprep.subr.bf16.mxu0 0
        %2561 = vmatpush1.bf16.xpose.msra.mxu0 %v2558
        %2562 = vmatprep.subr.bf16.mxu0 0
        %2563 = vmatpush1.bf16.xpose.msra.mxu0 0
        %2564 = vmatprep.subr.bf16.mxu0 0
        %2565 = vmatpush1.bf16.xpose.msra.mxu0 0
        %2566 = vmatprep.subr.bf16.mxu0 0
        %2567 = vmatpush1.bf16.xpose.msra.mxu0 0
        %2568 = vmatprep.subr.bf16.mxu0 0
        %2569 = vmatpush1.bf16.xpose.msra.mxu0 0
        %2570 = vmatprep.subr.bf16.mxu0 0
        %2571 = vmatpush1.bf16.xpose.msra.mxu0 0
        %2572 = vmatprep.subr.bf16.mxu0 0
        %2573 = vmatpush1.bf16.xpose.msra.mxu0 0
        %2574 = vmatprep.subr.bf16.mxu0 0
        %2575 = vmatpush1.bf16.xpose.msra.mxu0 0
        %2576 = vmatprep.subr.bf16.mxu0 0
        %2577 = vmatpush1.bf16.xpose.msra.mxu0 0
        %2578 = vmatprep.subr.bf16.mxu0 0
        %2579 = vmatpush1.bf16.xpose.msra.mxu0 0
        %2580 = vmatprep.subr.bf16.mxu0 0
        %2581 = vmatpush1.bf16.xpose.msra.mxu0 0
        %2582 = vmatprep.subr.bf16.mxu0 0
        %2583 = vmatpush1.bf16.xpose.msra.mxu0 0
        %2584 = vmatprep.subr.bf16.mxu0 0
        %2585 = vmatpush1.bf16.xpose.msra.mxu0 0
        %2586 = vmatprep.subr.bf16.mxu0 0
        %2587 = vmatpush1.bf16.xpose.msra.mxu0 0
        %2588 = vmatprep.subr.bf16.mxu0 0
        %2589 = vmatpush1.bf16.xpose.msra.mxu0 0
        %2590 = vmatprep.subr.bf16.mxu0 0
        %2591 = vmatpush1.bf16.xpose.msra.mxu0 0
        %2592 = vmatprep.mubr.bf16.mxu0 0
        %2593 = vmatmul.mubr.bf16.gmra.mrb[0].mxu0 %v2555
        %v2594 = vpop.f32.mrb[0].mxu0
        %v2595 = vadd.f32 0.0, %v2594
        %v2596 = vpop.f32.mrb[0].mxu0
        %v2597 = vpop.f32.mrb[0].mxu0
        %v2598 = vadd.f32 0.0, %v2597
        %v2599 = vpop.f32.mrb[0].mxu0
        %2600 = vdwg.mxu0
        %2602 = vrot.lane.b32.xlu0 %v1439, 96
        %v2603 = vpop.permute.xlu0 %2602
        %2605 = vrot.lane.b32.xlu0 %v1440, 96
        %v2606 = vpop.permute.xlu0 %2605
        %v2608 = vsel %vm1467, %v2603, 0
        %v2611 = vsel %vm1467, %v2606, 0
        %2613 = vmatprep.subr.bf16.mxu0 0
        %2614 = vmatpush1.bf16.xpose.msra.mxu0 %v2611
        %2615 = vmatprep.subr.bf16.mxu0 0
        %2616 = vmatpush1.bf16.xpose.msra.mxu0 0
        %2617 = vmatprep.subr.bf16.mxu0 0
        %2618 = vmatpush1.bf16.xpose.msra.mxu0 0
        %2619 = vmatprep.subr.bf16.mxu0 0
        %2620 = vmatpush1.bf16.xpose.msra.mxu0 0
        %2621 = vmatprep.subr.bf16.mxu0 0
        %2622 = vmatpush1.bf16.xpose.msra.mxu0 0
        %2623 = vmatprep.subr.bf16.mxu0 0
        %2624 = vmatpush1.bf16.xpose.msra.mxu0 0
        %2625 = vmatprep.subr.bf16.mxu0 0
        %2626 = vmatpush1.bf16.xpose.msra.mxu0 0
        %2627 = vmatprep.subr.bf16.mxu0 0
        %2628 = vmatpush1.bf16.xpose.msra.mxu0 0
        %2629 = vmatprep.subr.bf16.mxu0 0
        %2630 = vmatpush1.bf16.xpose.msra.mxu0 0
        %2631 = vmatprep.subr.bf16.mxu0 0
        %2632 = vmatpush1.bf16.xpose.msra.mxu0 0
        %2633 = vmatprep.subr.bf16.mxu0 0
        %2634 = vmatpush1.bf16.xpose.msra.mxu0 0
        %2635 = vmatprep.subr.bf16.mxu0 0
        %2636 = vmatpush1.bf16.xpose.msra.mxu0 0
        %2637 = vmatprep.subr.bf16.mxu0 0
        %2638 = vmatpush1.bf16.xpose.msra.mxu0 0
        %2639 = vmatprep.subr.bf16.mxu0 0
        %2640 = vmatpush1.bf16.xpose.msra.mxu0 0
        %2641 = vmatprep.subr.bf16.mxu0 0
        %2642 = vmatpush1.bf16.xpose.msra.mxu0 0
        %2643 = vmatprep.subr.bf16.mxu0 0
        %2644 = vmatpush1.bf16.xpose.msra.mxu0 0
        %2645 = vmatprep.mubr.bf16.mxu0 0
        %2646 = vmatmul.mubr.bf16.gmra.mrb[0].mxu0 %v2608
        %v2647 = vpop.f32.mrb[0].mxu0
        %v2648 = vadd.f32 0.0, %v2647
        %v2649 = vpop.f32.mrb[0].mxu0
        %v2650 = vpop.f32.mrb[0].mxu0
        %v2651 = vadd.f32 0.0, %v2650
        %v2652 = vpop.f32.mrb[0].mxu0
        %2653 = vdwg.mxu0
        %2655 = vrot.lane.b32.xlu0 %v1442, 96
        %v2656 = vpop.permute.xlu0 %2655
        %2658 = vrot.lane.b32.xlu0 %v1443, 96
        %v2659 = vpop.permute.xlu0 %2658
        %v2661 = vsel %vm1467, %v2656, 0
        %v2664 = vsel %vm1467, %v2659, 0
        %2666 = vmatprep.subr.bf16.mxu0 0
        %2667 = vmatpush1.bf16.xpose.msra.mxu0 %v2664
        %2668 = vmatprep.subr.bf16.mxu0 0
        %2669 = vmatpush1.bf16.xpose.msra.mxu0 0
        %2670 = vmatprep.subr.bf16.mxu0 0
        %2671 = vmatpush1.bf16.xpose.msra.mxu0 0
        %2672 = vmatprep.subr.bf16.mxu0 0
        %2673 = vmatpush1.bf16.xpose.msra.mxu0 0
        %2674 = vmatprep.subr.bf16.mxu0 0
        %2675 = vmatpush1.bf16.xpose.msra.mxu0 0
        %2676 = vmatprep.subr.bf16.mxu0 0
        %2677 = vmatpush1.bf16.xpose.msra.mxu0 0
        %2678 = vmatprep.subr.bf16.mxu0 0
        %2679 = vmatpush1.bf16.xpose.msra.mxu0 0
        %2680 = vmatprep.subr.bf16.mxu0 0
        %2681 = vmatpush1.bf16.xpose.msra.mxu0 0
        %2682 = vmatprep.subr.bf16.mxu0 0
        %2683 = vmatpush1.bf16.xpose.msra.mxu0 0
        %2684 = vmatprep.subr.bf16.mxu0 0
        %2685 = vmatpush1.bf16.xpose.msra.mxu0 0
        %2686 = vmatprep.subr.bf16.mxu0 0
        %2687 = vmatpush1.bf16.xpose.msra.mxu0 0
        %2688 = vmatprep.subr.bf16.mxu0 0
        %2689 = vmatpush1.bf16.xpose.msra.mxu0 0
        %2690 = vmatprep.subr.bf16.mxu0 0
        %2691 = vmatpush1.bf16.xpose.msra.mxu0 0
        %2692 = vmatprep.subr.bf16.mxu0 0
        %2693 = vmatpush1.bf16.xpose.msra.mxu0 0
        %2694 = vmatprep.subr.bf16.mxu0 0
        %2695 = vmatpush1.bf16.xpose.msra.mxu0 0
        %2696 = vmatprep.subr.bf16.mxu0 0
        %2697 = vmatpush1.bf16.xpose.msra.mxu0 0
        %2698 = vmatprep.mubr.bf16.mxu0 0
        %2699 = vmatmul.mubr.bf16.gmra.mrb[0].mxu0 %v2661
        %v2700 = vpop.f32.mrb[0].mxu0
        %v2701 = vadd.f32 0.0, %v2700
        %v2702 = vpop.f32.mrb[0].mxu0
        %v2703 = vpop.f32.mrb[0].mxu0
        %v2704 = vadd.f32 0.0, %v2703
        %v2705 = vpop.f32.mrb[0].mxu0
        %2706 = vdwg.mxu0
        %2708 = vrot.lane.b32.xlu0 %v1445, 96
        %v2709 = vpop.permute.xlu0 %2708
        %2711 = vrot.lane.b32.xlu0 %v1446, 96
        %v2712 = vpop.permute.xlu0 %2711
        %v2714 = vsel %vm1467, %v2709, 0
        %v2717 = vsel %vm1467, %v2712, 0
        %2719 = vmatprep.subr.bf16.mxu0 0
        %2720 = vmatpush1.bf16.xpose.msra.mxu0 %v2717
        %2721 = vmatprep.subr.bf16.mxu0 0
        %2722 = vmatpush1.bf16.xpose.msra.mxu0 0
        %2723 = vmatprep.subr.bf16.mxu0 0
        %2724 = vmatpush1.bf16.xpose.msra.mxu0 0
        %2725 = vmatprep.subr.bf16.mxu0 0
        %2726 = vmatpush1.bf16.xpose.msra.mxu0 0
        %2727 = vmatprep.subr.bf16.mxu0 0
        %2728 = vmatpush1.bf16.xpose.msra.mxu0 0
        %2729 = vmatprep.subr.bf16.mxu0 0
        %2730 = vmatpush1.bf16.xpose.msra.mxu0 0
        %2731 = vmatprep.subr.bf16.mxu0 0
        %2732 = vmatpush1.bf16.xpose.msra.mxu0 0
        %2733 = vmatprep.subr.bf16.mxu0 0
        %2734 = vmatpush1.bf16.xpose.msra.mxu0 0
        %2735 = vmatprep.subr.bf16.mxu0 0
        %2736 = vmatpush1.bf16.xpose.msra.mxu0 0
        %2737 = vmatprep.subr.bf16.mxu0 0
        %2738 = vmatpush1.bf16.xpose.msra.mxu0 0
        %2739 = vmatprep.subr.bf16.mxu0 0
        %2740 = vmatpush1.bf16.xpose.msra.mxu0 0
        %2741 = vmatprep.subr.bf16.mxu0 0
        %2742 = vmatpush1.bf16.xpose.msra.mxu0 0
        %2743 = vmatprep.subr.bf16.mxu0 0
        %2744 = vmatpush1.bf16.xpose.msra.mxu0 0
        %2745 = vmatprep.subr.bf16.mxu0 0
        %2746 = vmatpush1.bf16.xpose.msra.mxu0 0
        %2747 = vmatprep.subr.bf16.mxu0 0
        %2748 = vmatpush1.bf16.xpose.msra.mxu0 0
        %2749 = vmatprep.subr.bf16.mxu0 0
        %2750 = vmatpush1.bf16.xpose.msra.mxu0 0
        %2751 = vmatprep.mubr.bf16.mxu0 0
        %2752 = vmatmul.mubr.bf16.gmra.mrb[0].mxu0 %v2714
        %v2753 = vpop.f32.mrb[0].mxu0
        %v2754 = vadd.f32 0.0, %v2753
        %v2755 = vpop.f32.mrb[0].mxu0
        %v2756 = vpop.f32.mrb[0].mxu0
        %v2757 = vadd.f32 0.0, %v2756
        %v2758 = vpop.f32.mrb[0].mxu0
        %2759 = vdwg.mxu0
        %2761 = vrot.lane.b32.xlu0 %v1448, 96
        %v2762 = vpop.permute.xlu0 %2761
        %2764 = vrot.lane.b32.xlu0 %v1449, 96
        %v2765 = vpop.permute.xlu0 %2764
        %v2767 = vsel %vm1467, %v2762, 0
        %v2770 = vsel %vm1467, %v2765, 0
        %2772 = vmatprep.subr.bf16.mxu0 0
        %2773 = vmatpush1.bf16.xpose.msra.mxu0 %v2770
        %2774 = vmatprep.subr.bf16.mxu0 0
        %2775 = vmatpush1.bf16.xpose.msra.mxu0 0
        %2776 = vmatprep.subr.bf16.mxu0 0
        %2777 = vmatpush1.bf16.xpose.msra.mxu0 0
        %2778 = vmatprep.subr.bf16.mxu0 0
        %2779 = vmatpush1.bf16.xpose.msra.mxu0 0
        %2780 = vmatprep.subr.bf16.mxu0 0
        %2781 = vmatpush1.bf16.xpose.msra.mxu0 0
        %2782 = vmatprep.subr.bf16.mxu0 0
        %2783 = vmatpush1.bf16.xpose.msra.mxu0 0
        %2784 = vmatprep.subr.bf16.mxu0 0
        %2785 = vmatpush1.bf16.xpose.msra.mxu0 0
        %2786 = vmatprep.subr.bf16.mxu0 0
        %2787 = vmatpush1.bf16.xpose.msra.mxu0 0
        %2788 = vmatprep.subr.bf16.mxu0 0
        %2789 = vmatpush1.bf16.xpose.msra.mxu0 0
        %2790 = vmatprep.subr.bf16.mxu0 0
        %2791 = vmatpush1.bf16.xpose.msra.mxu0 0
        %2792 = vmatprep.subr.bf16.mxu0 0
        %2793 = vmatpush1.bf16.xpose.msra.mxu0 0
        %2794 = vmatprep.subr.bf16.mxu0 0
        %2795 = vmatpush1.bf16.xpose.msra.mxu0 0
        %2796 = vmatprep.subr.bf16.mxu0 0
        %2797 = vmatpush1.bf16.xpose.msra.mxu0 0
        %2798 = vmatprep.subr.bf16.mxu0 0
        %2799 = vmatpush1.bf16.xpose.msra.mxu0 0
        %2800 = vmatprep.subr.bf16.mxu0 0
        %2801 = vmatpush1.bf16.xpose.msra.mxu0 0
        %2802 = vmatprep.subr.bf16.mxu0 0
        %2803 = vmatpush1.bf16.xpose.msra.mxu0 0
        %2804 = vmatprep.mubr.bf16.mxu0 0
        %2805 = vmatmul.mubr.bf16.gmra.mrb[0].mxu0 %v2767
        %v2806 = vpop.f32.mrb[0].mxu0
        %v2807 = vadd.f32 0.0, %v2806
        %v2808 = vpop.f32.mrb[0].mxu0
        %v2809 = vpop.f32.mrb[0].mxu0
        %v2810 = vadd.f32 0.0, %v2809
        %v2811 = vpop.f32.mrb[0].mxu0
        %2812 = vdwg.mxu0
        %v2813 = vsel %vm1844, %v2436, -inf
        %2814 = vmax.xlane.f32.xlu0 %v2813
        %v2815 = vpop.xlane.xlu0 %2814
        %v2816 = vsel %vm1844, %v2439, -inf
        %2817 = vmax.xlane.f32.xlu0 %v2816
        %v2818 = vpop.xlane.xlu0 %2817
        %v2819 = vsel %vm1844, %v2489, -inf
        %2820 = vmax.xlane.f32.xlu0 %v2819
        %v2821 = vpop.xlane.xlu0 %2820
        %v2822 = vsel %vm1844, %v2492, -inf
        %2823 = vmax.xlane.f32.xlu0 %v2822
        %v2824 = vpop.xlane.xlu0 %2823
        %v2825 = vsel %vm1844, %v2542, -inf
        %2826 = vmax.xlane.f32.xlu0 %v2825
        %v2827 = vpop.xlane.xlu0 %2826
        %v2828 = vsel %vm1844, %v2545, -inf
        %2829 = vmax.xlane.f32.xlu0 %v2828
        %v2830 = vpop.xlane.xlu0 %2829
        %v2831 = vsel %vm1844, %v2595, -inf
        %2832 = vmax.xlane.f32.xlu0 %v2831
        %v2833 = vpop.xlane.xlu0 %2832
        %v2834 = vsel %vm1844, %v2598, -inf
        %2835 = vmax.xlane.f32.xlu0 %v2834
        %v2836 = vpop.xlane.xlu0 %2835
        %v2837 = vsel %vm1844, %v2648, -inf
        %2838 = vmax.xlane.f32.xlu0 %v2837
        %v2839 = vpop.xlane.xlu0 %2838
        %v2840 = vsel %vm1844, %v2651, -inf
        %2841 = vmax.xlane.f32.xlu0 %v2840
        %v2842 = vpop.xlane.xlu0 %2841
        %v2843 = vsel %vm1844, %v2701, -inf
        %2844 = vmax.xlane.f32.xlu0 %v2843
        %v2845 = vpop.xlane.xlu0 %2844
        %v2846 = vsel %vm1844, %v2704, -inf
        %2847 = vmax.xlane.f32.xlu0 %v2846
        %v2848 = vpop.xlane.xlu0 %2847
        %v2849 = vsel %vm1844, %v2754, -inf
        %2850 = vmax.xlane.f32.xlu0 %v2849
        %v2851 = vpop.xlane.xlu0 %2850
        %v2852 = vsel %vm1844, %v2757, -inf
        %2853 = vmax.xlane.f32.xlu0 %v2852
        %v2854 = vpop.xlane.xlu0 %2853
        %v2855 = vsel %vm1844, %v2807, -inf
        %2856 = vmax.xlane.f32.xlu0 %v2855
        %v2857 = vpop.xlane.xlu0 %2856
        %v2858 = vsel %vm1844, %v2810, -inf
        %2859 = vmax.xlane.f32.xlu0 %v2858
        %v2860 = vpop.xlane.xlu0 %2859
        %v2861 = vsub.f32 %v2436, %v2815
        %v2862 = vsub.f32 %v2439, %v2818
        %v2863 = vsub.f32 %v2489, %v2821
        %v2864 = vsub.f32 %v2492, %v2824
        %v2865 = vsub.f32 %v2542, %v2827
        %v2866 = vsub.f32 %v2545, %v2830
        %v2867 = vsub.f32 %v2595, %v2833
        %v2868 = vsub.f32 %v2598, %v2836
        %v2869 = vsub.f32 %v2648, %v2839
        %v2870 = vsub.f32 %v2651, %v2842
        %v2871 = vsub.f32 %v2701, %v2845
        %v2872 = vsub.f32 %v2704, %v2848
        %v2873 = vsub.f32 %v2754, %v2851
        %v2874 = vsub.f32 %v2757, %v2854
        %v2875 = vsub.f32 %v2807, %v2857
        %v2876 = vsub.f32 %v2810, %v2860
        %v2877 = vmul.f32 %v2861, 1.442695
        %v2878 = vpow.pop %v2877
        %v2879 = vmul.f32 %v2862, 1.442695
        %v2880 = vpow.pop %v2879
        %v2881 = vmul.f32 %v2863, 1.442695
        %v2882 = vpow.pop %v2881
        %v2883 = vmul.f32 %v2864, 1.442695
        %v2884 = vpow.pop %v2883
        %v2885 = vmul.f32 %v2865, 1.442695
        %v2886 = vpow.pop %v2885
        %v2887 = vmul.f32 %v2866, 1.442695
        %v2888 = vpow.pop %v2887
        %v2889 = vmul.f32 %v2867, 1.442695
        %v2890 = vpow.pop %v2889
        %v2891 = vmul.f32 %v2868, 1.442695
        %v2892 = vpow.pop %v2891
        %v2893 = vmul.f32 %v2869, 1.442695
        %v2894 = vpow.pop %v2893
        %v2895 = vmul.f32 %v2870, 1.442695
        %v2896 = vpow.pop %v2895
        %v2897 = vmul.f32 %v2871, 1.442695
        %v2898 = vpow.pop %v2897
        %v2899 = vmul.f32 %v2872, 1.442695
        %v2900 = vpow.pop %v2899
        %v2901 = vmul.f32 %v2873, 1.442695
        %v2902 = vpow.pop %v2901
        %v2903 = vmul.f32 %v2874, 1.442695
        %v2904 = vpow.pop %v2903
        %v2905 = vmul.f32 %v2875, 1.442695
        %v2906 = vpow.pop %v2905
        %v2907 = vmul.f32 %v2876, 1.442695
        %v2908 = vpow.pop %v2907
        %v2909 = vsel %vm1844, %v2878, 0.0
        %2910 = vadd.xlane.f32.xlu0 %v2909
        %v2911 = vpop.xlane.xlu0 %2910
        %v2912 = vsel %vm1844, %v2880, 0.0
        %2913 = vadd.xlane.f32.xlu0 %v2912
        %v2914 = vpop.xlane.xlu0 %2913
        %v2915 = vsel %vm1844, %v2882, 0.0
        %2916 = vadd.xlane.f32.xlu0 %v2915
        %v2917 = vpop.xlane.xlu0 %2916
        %v2918 = vsel %vm1844, %v2884, 0.0
        %2919 = vadd.xlane.f32.xlu0 %v2918
        %v2920 = vpop.xlane.xlu0 %2919
        %v2921 = vsel %vm1844, %v2886, 0.0
        %2922 = vadd.xlane.f32.xlu0 %v2921
        %v2923 = vpop.xlane.xlu0 %2922
        %v2924 = vsel %vm1844, %v2888, 0.0
        %2925 = vadd.xlane.f32.xlu0 %v2924
        %v2926 = vpop.xlane.xlu0 %2925
        %v2927 = vsel %vm1844, %v2890, 0.0
        %2928 = vadd.xlane.f32.xlu0 %v2927
        %v2929 = vpop.xlane.xlu0 %2928
        %v2930 = vsel %vm1844, %v2892, 0.0
        %2931 = vadd.xlane.f32.xlu0 %v2930
        %v2932 = vpop.xlane.xlu0 %2931
        %v2933 = vsel %vm1844, %v2894, 0.0
        %2934 = vadd.xlane.f32.xlu0 %v2933
        %v2935 = vpop.xlane.xlu0 %2934
        %v2936 = vsel %vm1844, %v2896, 0.0
        %2937 = vadd.xlane.f32.xlu0 %v2936
        %v2938 = vpop.xlane.xlu0 %2937
        %v2939 = vsel %vm1844, %v2898, 0.0
        %2940 = vadd.xlane.f32.xlu0 %v2939
        %v2941 = vpop.xlane.xlu0 %2940
        %v2942 = vsel %vm1844, %v2900, 0.0
        %2943 = vadd.xlane.f32.xlu0 %v2942
        %v2944 = vpop.xlane.xlu0 %2943
        %v2945 = vsel %vm1844, %v2902, 0.0
        %2946 = vadd.xlane.f32.xlu0 %v2945
        %v2947 = vpop.xlane.xlu0 %2946
        %v2948 = vsel %vm1844, %v2904, 0.0
        %2949 = vadd.xlane.f32.xlu0 %v2948
        %v2950 = vpop.xlane.xlu0 %2949
        %v2951 = vsel %vm1844, %v2906, 0.0
        %2952 = vadd.xlane.f32.xlu0 %v2951
        %v2953 = vpop.xlane.xlu0 %2952
        %v2954 = vsel %vm1844, %v2908, 0.0
        %2955 = vadd.xlane.f32.xlu0 %v2954
        %v2956 = vpop.xlane.xlu0 %2955
        %v2957 = vpack.c.bf16 %v2880, %v2878
        %v2958 = vpack.c.bf16 %v2884, %v2882
        %v2959 = vpack.c.bf16 %v2888, %v2886
        %v2960 = vpack.c.bf16 %v2892, %v2890
        %v2961 = vpack.c.bf16 %v2896, %v2894
        %v2962 = vpack.c.bf16 %v2900, %v2898
        %v2963 = vpack.c.bf16 %v2904, %v2902
        %v2964 = vpack.c.bf16 %v2908, %v2906
        %2966 = vrot.lane.b32.xlu0 %v1429, 96
        %v2967 = vpop.permute.xlu0 %2966
        %v2970 = vsel %vm1844, %v2957, 0
        %2972 = vmatprep.subr.bf16.mxu0 0
        %2973 = vmatpush1.bf16.msra.mxu0 %v2967
        %2974 = vmatprep.subr.bf16.mxu0 0
        %2975 = vmatpush1.bf16.msra.mxu0 0
        %2976 = vmatprep.subr.bf16.mxu0 0
        %2977 = vmatpush1.bf16.msra.mxu0 0
        %2978 = vmatprep.subr.bf16.mxu0 0
        %2979 = vmatpush1.bf16.msra.mxu0 0
        %2980 = vmatprep.subr.bf16.mxu0 0
        %2981 = vmatpush1.bf16.msra.mxu0 0
        %2982 = vmatprep.subr.bf16.mxu0 0
        %2983 = vmatpush1.bf16.msra.mxu0 0
        %2984 = vmatprep.subr.bf16.mxu0 0
        %2985 = vmatpush1.bf16.msra.mxu0 0
        %2986 = vmatprep.subr.bf16.mxu0 0
        %2987 = vmatpush1.bf16.msra.mxu0 0
        %2988 = vmatprep.subr.bf16.mxu0 0
        %2989 = vmatpush1.bf16.msra.mxu0 0
        %2990 = vmatprep.subr.bf16.mxu0 0
        %2991 = vmatpush1.bf16.msra.mxu0 0
        %2992 = vmatprep.subr.bf16.mxu0 0
        %2993 = vmatpush1.bf16.msra.mxu0 0
        %2994 = vmatprep.subr.bf16.mxu0 0
        %2995 = vmatpush1.bf16.msra.mxu0 0
        %2996 = vmatprep.subr.bf16.mxu0 0
        %2997 = vmatpush1.bf16.msra.mxu0 0
        %2998 = vmatprep.subr.bf16.mxu0 0
        %2999 = vmatpush1.bf16.msra.mxu0 0
        %3000 = vmatprep.subr.bf16.mxu0 0
        %3001 = vmatpush1.bf16.msra.mxu0 0
        %3002 = vmatprep.subr.bf16.mxu0 0
        %3003 = vmatpush1.bf16.msra.mxu0 0
        %3004 = vmatprep.mubr.bf16.mxu0 0
        %3005 = vmatmul.mubr.bf16.gmra.mrb[0].mxu0 %v2970
        %v3006 = vpop.f32.mrb[0].mxu0
        %v3007 = vadd.f32 0.0, %v3006
        %v3008 = vpop.f32.mrb[0].mxu0
        %v3009 = vpop.f32.mrb[0].mxu0
        %v3010 = vadd.f32 0.0, %v3009
        %v3011 = vpop.f32.mrb[0].mxu0
        %3012 = vdwg.mxu0
        %3014 = vrot.lane.b32.xlu0 %v1432, 96
        %v3015 = vpop.permute.xlu0 %3014
        %v3018 = vsel %vm1844, %v2958, 0
        %3020 = vmatprep.subr.bf16.mxu0 0
        %3021 = vmatpush1.bf16.msra.mxu0 %v3015
        %3022 = vmatprep.subr.bf16.mxu0 0
        %3023 = vmatpush1.bf16.msra.mxu0 0
        %3024 = vmatprep.subr.bf16.mxu0 0
        %3025 = vmatpush1.bf16.msra.mxu0 0
        %3026 = vmatprep.subr.bf16.mxu0 0
        %3027 = vmatpush1.bf16.msra.mxu0 0
        %3028 = vmatprep.subr.bf16.mxu0 0
        %3029 = vmatpush1.bf16.msra.mxu0 0
        %3030 = vmatprep.subr.bf16.mxu0 0
        %3031 = vmatpush1.bf16.msra.mxu0 0
        %3032 = vmatprep.subr.bf16.mxu0 0
        %3033 = vmatpush1.bf16.msra.mxu0 0
        %3034 = vmatprep.subr.bf16.mxu0 0
        %3035 = vmatpush1.bf16.msra.mxu0 0
        %3036 = vmatprep.subr.bf16.mxu0 0
        %3037 = vmatpush1.bf16.msra.mxu0 0
        %3038 = vmatprep.subr.bf16.mxu0 0
        %3039 = vmatpush1.bf16.msra.mxu0 0
        %3040 = vmatprep.subr.bf16.mxu0 0
        %3041 = vmatpush1.bf16.msra.mxu0 0
        %3042 = vmatprep.subr.bf16.mxu0 0
        %3043 = vmatpush1.bf16.msra.mxu0 0
        %3044 = vmatprep.subr.bf16.mxu0 0
        %3045 = vmatpush1.bf16.msra.mxu0 0
        %3046 = vmatprep.subr.bf16.mxu0 0
        %3047 = vmatpush1.bf16.msra.mxu0 0
        %3048 = vmatprep.subr.bf16.mxu0 0
        %3049 = vmatpush1.bf16.msra.mxu0 0
        %3050 = vmatprep.subr.bf16.mxu0 0
        %3051 = vmatpush1.bf16.msra.mxu0 0
        %3052 = vmatprep.mubr.bf16.mxu0 0
        %3053 = vmatmul.mubr.bf16.gmra.mrb[0].mxu0 %v3018
        %v3054 = vpop.f32.mrb[0].mxu0
        %v3055 = vadd.f32 0.0, %v3054
        %v3056 = vpop.f32.mrb[0].mxu0
        %v3057 = vpop.f32.mrb[0].mxu0
        %v3058 = vadd.f32 0.0, %v3057
        %v3059 = vpop.f32.mrb[0].mxu0
        %3060 = vdwg.mxu0
        %3062 = vrot.lane.b32.xlu0 %v1435, 96
        %v3063 = vpop.permute.xlu0 %3062
        %v3066 = vsel %vm1844, %v2959, 0
        %3068 = vmatprep.subr.bf16.mxu0 0
        %3069 = vmatpush1.bf16.msra.mxu0 %v3063
        %3070 = vmatprep.subr.bf16.mxu0 0
        %3071 = vmatpush1.bf16.msra.mxu0 0
        %3072 = vmatprep.subr.bf16.mxu0 0
        %3073 = vmatpush1.bf16.msra.mxu0 0
        %3074 = vmatprep.subr.bf16.mxu0 0
        %3075 = vmatpush1.bf16.msra.mxu0 0
        %3076 = vmatprep.subr.bf16.mxu0 0
        %3077 = vmatpush1.bf16.msra.mxu0 0
        %3078 = vmatprep.subr.bf16.mxu0 0
        %3079 = vmatpush1.bf16.msra.mxu0 0
        %3080 = vmatprep.subr.bf16.mxu0 0
        %3081 = vmatpush1.bf16.msra.mxu0 0
        %3082 = vmatprep.subr.bf16.mxu0 0
        %3083 = vmatpush1.bf16.msra.mxu0 0
        %3084 = vmatprep.subr.bf16.mxu0 0
        %3085 = vmatpush1.bf16.msra.mxu0 0
        %3086 = vmatprep.subr.bf16.mxu0 0
        %3087 = vmatpush1.bf16.msra.mxu0 0
        %3088 = vmatprep.subr.bf16.mxu0 0
        %3089 = vmatpush1.bf16.msra.mxu0 0
        %3090 = vmatprep.subr.bf16.mxu0 0
        %3091 = vmatpush1.bf16.msra.mxu0 0
        %3092 = vmatprep.subr.bf16.mxu0 0
        %3093 = vmatpush1.bf16.msra.mxu0 0
        %3094 = vmatprep.subr.bf16.mxu0 0
        %3095 = vmatpush1.bf16.msra.mxu0 0
        %3096 = vmatprep.subr.bf16.mxu0 0
        %3097 = vmatpush1.bf16.msra.mxu0 0
        %3098 = vmatprep.subr.bf16.mxu0 0
        %3099 = vmatpush1.bf16.msra.mxu0 0
        %3100 = vmatprep.mubr.bf16.mxu0 0
        %3101 = vmatmul.mubr.bf16.gmra.mrb[0].mxu0 %v3066
        %v3102 = vpop.f32.mrb[0].mxu0
        %v3103 = vadd.f32 0.0, %v3102
        %v3104 = vpop.f32.mrb[0].mxu0
        %v3105 = vpop.f32.mrb[0].mxu0
        %v3106 = vadd.f32 0.0, %v3105
        %v3107 = vpop.f32.mrb[0].mxu0
        %3108 = vdwg.mxu0
        %3110 = vrot.lane.b32.xlu0 %v1438, 96
        %v3111 = vpop.permute.xlu0 %3110
        %v3114 = vsel %vm1844, %v2960, 0
        %3116 = vmatprep.subr.bf16.mxu0 0
        %3117 = vmatpush1.bf16.msra.mxu0 %v3111
        %3118 = vmatprep.subr.bf16.mxu0 0
        %3119 = vmatpush1.bf16.msra.mxu0 0
        %3120 = vmatprep.subr.bf16.mxu0 0
        %3121 = vmatpush1.bf16.msra.mxu0 0
        %3122 = vmatprep.subr.bf16.mxu0 0
        %3123 = vmatpush1.bf16.msra.mxu0 0
        %3124 = vmatprep.subr.bf16.mxu0 0
        %3125 = vmatpush1.bf16.msra.mxu0 0
        %3126 = vmatprep.subr.bf16.mxu0 0
        %3127 = vmatpush1.bf16.msra.mxu0 0
        %3128 = vmatprep.subr.bf16.mxu0 0
        %3129 = vmatpush1.bf16.msra.mxu0 0
        %3130 = vmatprep.subr.bf16.mxu0 0
        %3131 = vmatpush1.bf16.msra.mxu0 0
        %3132 = vmatprep.subr.bf16.mxu0 0
        %3133 = vmatpush1.bf16.msra.mxu0 0
        %3134 = vmatprep.subr.bf16.mxu0 0
        %3135 = vmatpush1.bf16.msra.mxu0 0
        %3136 = vmatprep.subr.bf16.mxu0 0
        %3137 = vmatpush1.bf16.msra.mxu0 0
        %3138 = vmatprep.subr.bf16.mxu0 0
        %3139 = vmatpush1.bf16.msra.mxu0 0
        %3140 = vmatprep.subr.bf16.mxu0 0
        %3141 = vmatpush1.bf16.msra.mxu0 0
        %3142 = vmatprep.subr.bf16.mxu0 0
        %3143 = vmatpush1.bf16.msra.mxu0 0
        %3144 = vmatprep.subr.bf16.mxu0 0
        %3145 = vmatpush1.bf16.msra.mxu0 0
        %3146 = vmatprep.subr.bf16.mxu0 0
        %3147 = vmatpush1.bf16.msra.mxu0 0
        %3148 = vmatprep.mubr.bf16.mxu0 0
        %3149 = vmatmul.mubr.bf16.gmra.mrb[0].mxu0 %v3114
        %v3150 = vpop.f32.mrb[0].mxu0
        %v3151 = vadd.f32 0.0, %v3150
        %v3152 = vpop.f32.mrb[0].mxu0
        %v3153 = vpop.f32.mrb[0].mxu0
        %v3154 = vadd.f32 0.0, %v3153
        %v3155 = vpop.f32.mrb[0].mxu0
        %3156 = vdwg.mxu0
        %3158 = vrot.lane.b32.xlu0 %v1441, 96
        %v3159 = vpop.permute.xlu0 %3158
        %v3162 = vsel %vm1844, %v2961, 0
        %3164 = vmatprep.subr.bf16.mxu0 0
        %3165 = vmatpush1.bf16.msra.mxu0 %v3159
        %3166 = vmatprep.subr.bf16.mxu0 0
        %3167 = vmatpush1.bf16.msra.mxu0 0
        %3168 = vmatprep.subr.bf16.mxu0 0
        %3169 = vmatpush1.bf16.msra.mxu0 0
        %3170 = vmatprep.subr.bf16.mxu0 0
        %3171 = vmatpush1.bf16.msra.mxu0 0
        %3172 = vmatprep.subr.bf16.mxu0 0
        %3173 = vmatpush1.bf16.msra.mxu0 0
        %3174 = vmatprep.subr.bf16.mxu0 0
        %3175 = vmatpush1.bf16.msra.mxu0 0
        %3176 = vmatprep.subr.bf16.mxu0 0
        %3177 = vmatpush1.bf16.msra.mxu0 0
        %3178 = vmatprep.subr.bf16.mxu0 0
        %3179 = vmatpush1.bf16.msra.mxu0 0
        %3180 = vmatprep.subr.bf16.mxu0 0
        %3181 = vmatpush1.bf16.msra.mxu0 0
        %3182 = vmatprep.subr.bf16.mxu0 0
        %3183 = vmatpush1.bf16.msra.mxu0 0
        %3184 = vmatprep.subr.bf16.mxu0 0
        %3185 = vmatpush1.bf16.msra.mxu0 0
        %3186 = vmatprep.subr.bf16.mxu0 0
        %3187 = vmatpush1.bf16.msra.mxu0 0
        %3188 = vmatprep.subr.bf16.mxu0 0
        %3189 = vmatpush1.bf16.msra.mxu0 0
        %3190 = vmatprep.subr.bf16.mxu0 0
        %3191 = vmatpush1.bf16.msra.mxu0 0
        %3192 = vmatprep.subr.bf16.mxu0 0
        %3193 = vmatpush1.bf16.msra.mxu0 0
        %3194 = vmatprep.subr.bf16.mxu0 0
        %3195 = vmatpush1.bf16.msra.mxu0 0
        %3196 = vmatprep.mubr.bf16.mxu0 0
        %3197 = vmatmul.mubr.bf16.gmra.mrb[0].mxu0 %v3162
        %v3198 = vpop.f32.mrb[0].mxu0
        %v3199 = vadd.f32 0.0, %v3198
        %v3200 = vpop.f32.mrb[0].mxu0
        %v3201 = vpop.f32.mrb[0].mxu0
        %v3202 = vadd.f32 0.0, %v3201
        %v3203 = vpop.f32.mrb[0].mxu0
        %3204 = vdwg.mxu0
        %3206 = vrot.lane.b32.xlu0 %v1444, 96
        %v3207 = vpop.permute.xlu0 %3206
        %v3210 = vsel %vm1844, %v2962, 0
        %3212 = vmatprep.subr.bf16.mxu0 0
        %3213 = vmatpush1.bf16.msra.mxu0 %v3207
        %3214 = vmatprep.subr.bf16.mxu0 0
        %3215 = vmatpush1.bf16.msra.mxu0 0
        %3216 = vmatprep.subr.bf16.mxu0 0
        %3217 = vmatpush1.bf16.msra.mxu0 0
        %3218 = vmatprep.subr.bf16.mxu0 0
        %3219 = vmatpush1.bf16.msra.mxu0 0
        %3220 = vmatprep.subr.bf16.mxu0 0
        %3221 = vmatpush1.bf16.msra.mxu0 0
        %3222 = vmatprep.subr.bf16.mxu0 0
        %3223 = vmatpush1.bf16.msra.mxu0 0
        %3224 = vmatprep.subr.bf16.mxu0 0
        %3225 = vmatpush1.bf16.msra.mxu0 0
        %3226 = vmatprep.subr.bf16.mxu0 0
        %3227 = vmatpush1.bf16.msra.mxu0 0
        %3228 = vmatprep.subr.bf16.mxu0 0
        %3229 = vmatpush1.bf16.msra.mxu0 0
        %3230 = vmatprep.subr.bf16.mxu0 0
        %3231 = vmatpush1.bf16.msra.mxu0 0
        %3232 = vmatprep.subr.bf16.mxu0 0
        %3233 = vmatpush1.bf16.msra.mxu0 0
        %3234 = vmatprep.subr.bf16.mxu0 0
        %3235 = vmatpush1.bf16.msra.mxu0 0
        %3236 = vmatprep.subr.bf16.mxu0 0
        %3237 = vmatpush1.bf16.msra.mxu0 0
        %3238 = vmatprep.subr.bf16.mxu0 0
        %3239 = vmatpush1.bf16.msra.mxu0 0
        %3240 = vmatprep.subr.bf16.mxu0 0
        %3241 = vmatpush1.bf16.msra.mxu0 0
        %3242 = vmatprep.subr.bf16.mxu0 0
        %3243 = vmatpush1.bf16.msra.mxu0 0
        %3244 = vmatprep.mubr.bf16.mxu0 0
        %3245 = vmatmul.mubr.bf16.gmra.mrb[0].mxu0 %v3210
        %v3246 = vpop.f32.mrb[0].mxu0
        %v3247 = vadd.f32 0.0, %v3246
        %v3248 = vpop.f32.mrb[0].mxu0
        %v3249 = vpop.f32.mrb[0].mxu0
        %v3250 = vadd.f32 0.0, %v3249
        %v3251 = vpop.f32.mrb[0].mxu0
        %3252 = vdwg.mxu0
        %3254 = vrot.lane.b32.xlu0 %v1447, 96
        %v3255 = vpop.permute.xlu0 %3254
        %v3258 = vsel %vm1844, %v2963, 0
        %3260 = vmatprep.subr.bf16.mxu0 0
        %3261 = vmatpush1.bf16.msra.mxu0 %v3255
        %3262 = vmatprep.subr.bf16.mxu0 0
        %3263 = vmatpush1.bf16.msra.mxu0 0
        %3264 = vmatprep.subr.bf16.mxu0 0
        %3265 = vmatpush1.bf16.msra.mxu0 0
        %3266 = vmatprep.subr.bf16.mxu0 0
        %3267 = vmatpush1.bf16.msra.mxu0 0
        %3268 = vmatprep.subr.bf16.mxu0 0
        %3269 = vmatpush1.bf16.msra.mxu0 0
        %3270 = vmatprep.subr.bf16.mxu0 0
        %3271 = vmatpush1.bf16.msra.mxu0 0
        %3272 = vmatprep.subr.bf16.mxu0 0
        %3273 = vmatpush1.bf16.msra.mxu0 0
        %3274 = vmatprep.subr.bf16.mxu0 0
        %3275 = vmatpush1.bf16.msra.mxu0 0
        %3276 = vmatprep.subr.bf16.mxu0 0
        %3277 = vmatpush1.bf16.msra.mxu0 0
        %3278 = vmatprep.subr.bf16.mxu0 0
        %3279 = vmatpush1.bf16.msra.mxu0 0
        %3280 = vmatprep.subr.bf16.mxu0 0
        %3281 = vmatpush1.bf16.msra.mxu0 0
        %3282 = vmatprep.subr.bf16.mxu0 0
        %3283 = vmatpush1.bf16.msra.mxu0 0
        %3284 = vmatprep.subr.bf16.mxu0 0
        %3285 = vmatpush1.bf16.msra.mxu0 0
        %3286 = vmatprep.subr.bf16.mxu0 0
        %3287 = vmatpush1.bf16.msra.mxu0 0
        %3288 = vmatprep.subr.bf16.mxu0 0
        %3289 = vmatpush1.bf16.msra.mxu0 0
        %3290 = vmatprep.subr.bf16.mxu0 0
        %3291 = vmatpush1.bf16.msra.mxu0 0
        %3292 = vmatprep.mubr.bf16.mxu0 0
        %3293 = vmatmul.mubr.bf16.gmra.mrb[0].mxu0 %v3258
        %v3294 = vpop.f32.mrb[0].mxu0
        %v3295 = vadd.f32 0.0, %v3294
        %v3296 = vpop.f32.mrb[0].mxu0
        %v3297 = vpop.f32.mrb[0].mxu0
        %v3298 = vadd.f32 0.0, %v3297
        %v3299 = vpop.f32.mrb[0].mxu0
        %3300 = vdwg.mxu0
        %3302 = vrot.lane.b32.xlu0 %v1450, 96
        %v3303 = vpop.permute.xlu0 %3302
        %v3306 = vsel %vm1844, %v2964, 0
        %3308 = vmatprep.subr.bf16.mxu0 0
        %3309 = vmatpush1.bf16.msra.mxu0 %v3303
        %3310 = vmatprep.subr.bf16.mxu0 0
        %3311 = vmatpush1.bf16.msra.mxu0 0
        %3312 = vmatprep.subr.bf16.mxu0 0
        %3313 = vmatpush1.bf16.msra.mxu0 0
        %3314 = vmatprep.subr.bf16.mxu0 0
        %3315 = vmatpush1.bf16.msra.mxu0 0
        %3316 = vmatprep.subr.bf16.mxu0 0
        %3317 = vmatpush1.bf16.msra.mxu0 0
        %3318 = vmatprep.subr.bf16.mxu0 0
        %3319 = vmatpush1.bf16.msra.mxu0 0
        %3320 = vmatprep.subr.bf16.mxu0 0
        %3321 = vmatpush1.bf16.msra.mxu0 0
        %3322 = vmatprep.subr.bf16.mxu0 0
        %3323 = vmatpush1.bf16.msra.mxu0 0
        %3324 = vmatprep.subr.bf16.mxu0 0
        %3325 = vmatpush1.bf16.msra.mxu0 0
        %3326 = vmatprep.subr.bf16.mxu0 0
        %3327 = vmatpush1.bf16.msra.mxu0 0
        %3328 = vmatprep.subr.bf16.mxu0 0
        %3329 = vmatpush1.bf16.msra.mxu0 0
        %3330 = vmatprep.subr.bf16.mxu0 0
        %3331 = vmatpush1.bf16.msra.mxu0 0
        %3332 = vmatprep.subr.bf16.mxu0 0
        %3333 = vmatpush1.bf16.msra.mxu0 0
        %3334 = vmatprep.subr.bf16.mxu0 0
        %3335 = vmatpush1.bf16.msra.mxu0 0
        %3336 = vmatprep.subr.bf16.mxu0 0
        %3337 = vmatpush1.bf16.msra.mxu0 0
        %3338 = vmatprep.subr.bf16.mxu0 0
        %3339 = vmatpush1.bf16.msra.mxu0 0
        %3340 = vmatprep.mubr.bf16.mxu0 0
        %3341 = vmatmul.mubr.bf16.gmra.mrb[0].mxu0 %v3306
        %v3342 = vpop.f32.mrb[0].mxu0
        %v3343 = vadd.f32 0.0, %v3342
        %v3344 = vpop.f32.mrb[0].mxu0
        %v3345 = vpop.f32.mrb[0].mxu0
        %v3346 = vadd.f32 0.0, %v3345
        %v3347 = vpop.f32.mrb[0].mxu0
        %3348 = vdwg.mxu0
        %v3349 = vrcp.pop %v2911
        %v3350 = vrcp.pop %v2914
        %v3351 = vrcp.pop %v2917
        %v3352 = vrcp.pop %v2920
        %v3353 = vrcp.pop %v2923
        %v3354 = vrcp.pop %v2926
        %v3355 = vrcp.pop %v2929
        %v3356 = vrcp.pop %v2932
        %v3357 = vrcp.pop %v2935
        %v3358 = vrcp.pop %v2938
        %v3359 = vrcp.pop %v2941
        %v3360 = vrcp.pop %v2944
        %v3361 = vrcp.pop %v2947
        %v3362 = vrcp.pop %v2950
        %v3363 = vrcp.pop %v2953
        %v3364 = vrcp.pop %v2956
        %v3365 = vmul.f32 %v3007, %v3349
        %v3366 = vmul.f32 %v3010, %v3350
        %v3367 = vmul.f32 %v3055, %v3351
        %v3368 = vmul.f32 %v3058, %v3352
        %v3369 = vmul.f32 %v3103, %v3353
        %v3370 = vmul.f32 %v3106, %v3354
        %v3371 = vmul.f32 %v3151, %v3355
        %v3372 = vmul.f32 %v3154, %v3356
        %v3373 = vmul.f32 %v3199, %v3357
        %v3374 = vmul.f32 %v3202, %v3358
        %v3375 = vmul.f32 %v3247, %v3359
        %v3376 = vmul.f32 %v3250, %v3360
        %v3377 = vmul.f32 %v3295, %v3361
        %v3378 = vmul.f32 %v3298, %v3362
        %v3379 = vmul.f32 %v3343, %v3363
        %v3380 = vmul.f32 %v3346, %v3364
        %v3381 = vpack.c.bf16 %v3366, %v3365
        %v3382 = vpack.c.bf16 %v3368, %v3367
        %v3383 = vpack.c.bf16 %v3370, %v3369
        %v3384 = vpack.c.bf16 %v3372, %v3371
        %v3385 = vpack.c.bf16 %v3374, %v3373
        %v3386 = vpack.c.bf16 %v3376, %v3375
        %v3387 = vpack.c.bf16 %v3378, %v3377
        %v3388 = vpack.c.bf16 %v3380, %v3379
        %v3393 = vunpack.c.l.b16 %v1455
        %v3394 = vunpack.c.l.b16 %v1456
        %v3395 = vunpack.c.l.b16 %v1457
        %v3396 = vunpack.c.l.b16 %v1458
        %v3397 = vpack.c.b16 %v3394, %v3393
        %v3398 = vpack.c.b16 %v3396, %v3395
        %v3402 = vsel %vm1467, %v3381, 0
        %v3405 = vsel %vm1467, %v3382, 0
        %v3408 = vsel %vm1467, %v3383, 0
        %v3411 = vsel %vm1467, %v3384, 0
        %v3414 = vsel %vm1467, %v3385, 0
        %v3417 = vsel %vm1467, %v3386, 0
        %v3420 = vsel %vm1467, %v3387, 0
        %v3423 = vsel %vm1467, %v3388, 0
        %3425 = vmatprep.subr.bf16.mxu0 0
        %3426 = vmatpush1.bf16.msra.mxu0 %v3397
        %3427 = vmatprep.subr.bf16.mxu0 0
        %3428 = vmatpush1.bf16.msra.mxu0 %v3398
        %3429 = vmatprep.subr.bf16.mxu0 0
        %3430 = vmatpush1.bf16.msra.mxu0 0
        %3431 = vmatprep.subr.bf16.mxu0 0
        %3432 = vmatpush1.bf16.msra.mxu0 0
        %3433 = vmatprep.subr.bf16.mxu0 0
        %3434 = vmatpush1.bf16.msra.mxu0 0
        %3435 = vmatprep.subr.bf16.mxu0 0
        %3436 = vmatpush1.bf16.msra.mxu0 0
        %3437 = vmatprep.subr.bf16.mxu0 0
        %3438 = vmatpush1.bf16.msra.mxu0 0
        %3439 = vmatprep.subr.bf16.mxu0 0
        %3440 = vmatpush1.bf16.msra.mxu0 0
        %3441 = vmatprep.subr.bf16.mxu0 0
        %3442 = vmatpush1.bf16.msra.mxu0 0
        %3443 = vmatprep.subr.bf16.mxu0 0
        %3444 = vmatpush1.bf16.msra.mxu0 0
        %3445 = vmatprep.subr.bf16.mxu0 0
        %3446 = vmatpush1.bf16.msra.mxu0 0
        %3447 = vmatprep.subr.bf16.mxu0 0
        %3448 = vmatpush1.bf16.msra.mxu0 0
        %3449 = vmatprep.subr.bf16.mxu0 0
        %3450 = vmatpush1.bf16.msra.mxu0 0
        %3451 = vmatprep.subr.bf16.mxu0 0
        %3452 = vmatpush1.bf16.msra.mxu0 0
        %3453 = vmatprep.subr.bf16.mxu0 0
        %3454 = vmatpush1.bf16.msra.mxu0 0
        %3455 = vmatprep.subr.bf16.mxu0 0
        %3456 = vmatpush1.bf16.msra.mxu0 0
        %3457 = vmatprep.mubr.bf16.mxu0 0
        %3458 = vmatmul.mubr.bf16.gmra.mrb[0].mxu0 %v3402
        %v3459 = vpop.f32.mrb[0].mxu0
        %v3460 = vadd.f32 0.0, %v3459
        %v3461 = vpop.f32.mrb[0].mxu0
        %v3462 = vpop.f32.mrb[0].mxu0
        %v3463 = vadd.f32 0.0, %v3462
        %v3464 = vpop.f32.mrb[0].mxu0
        %3465 = vmatprep.mubr.bf16.mxu0 0
        %3466 = vmatmul.mubr.bf16.gmra.mrb[0].mxu0 %v3405
        %v3467 = vpop.f32.mrb[0].mxu0
        %v3468 = vadd.f32 0.0, %v3467
        %v3469 = vpop.f32.mrb[0].mxu0
        %v3470 = vpop.f32.mrb[0].mxu0
        %v3471 = vadd.f32 0.0, %v3470
        %v3472 = vpop.f32.mrb[0].mxu0
        %3473 = vmatprep.mubr.bf16.mxu0 0
        %3474 = vmatmul.mubr.bf16.gmra.mrb[0].mxu0 %v3408
        %v3475 = vpop.f32.mrb[0].mxu0
        %v3476 = vadd.f32 0.0, %v3475
        %v3477 = vpop.f32.mrb[0].mxu0
        %v3478 = vpop.f32.mrb[0].mxu0
        %v3479 = vadd.f32 0.0, %v3478
        %v3480 = vpop.f32.mrb[0].mxu0
        %3481 = vmatprep.mubr.bf16.mxu0 0
        %3482 = vmatmul.mubr.bf16.gmra.mrb[0].mxu0 %v3411
        %v3483 = vpop.f32.mrb[0].mxu0
        %v3484 = vadd.f32 0.0, %v3483
        %v3485 = vpop.f32.mrb[0].mxu0
        %v3486 = vpop.f32.mrb[0].mxu0
        %v3487 = vadd.f32 0.0, %v3486
        %v3488 = vpop.f32.mrb[0].mxu0
        %3489 = vmatprep.mubr.bf16.mxu0 0
        %3490 = vmatmul.mubr.bf16.gmra.mrb[0].mxu0 %v3414
        %v3491 = vpop.f32.mrb[0].mxu0
        %v3492 = vadd.f32 0.0, %v3491
        %v3493 = vpop.f32.mrb[0].mxu0
        %v3494 = vpop.f32.mrb[0].mxu0
        %v3495 = vadd.f32 0.0, %v3494
        %v3496 = vpop.f32.mrb[0].mxu0
        %3497 = vmatprep.mubr.bf16.mxu0 0
        %3498 = vmatmul.mubr.bf16.gmra.mrb[0].mxu0 %v3417
        %v3499 = vpop.f32.mrb[0].mxu0
        %v3500 = vadd.f32 0.0, %v3499
        %v3501 = vpop.f32.mrb[0].mxu0
        %v3502 = vpop.f32.mrb[0].mxu0
        %v3503 = vadd.f32 0.0, %v3502
        %v3504 = vpop.f32.mrb[0].mxu0
        %3505 = vmatprep.mubr.bf16.mxu0 0
        %3506 = vmatmul.mubr.bf16.gmra.mrb[0].mxu0 %v3420
        %v3507 = vpop.f32.mrb[0].mxu0
        %v3508 = vadd.f32 0.0, %v3507
        %v3509 = vpop.f32.mrb[0].mxu0
        %v3510 = vpop.f32.mrb[0].mxu0
        %v3511 = vadd.f32 0.0, %v3510
        %v3512 = vpop.f32.mrb[0].mxu0
        %3513 = vmatprep.mubr.bf16.mxu0 0
        %3514 = vmatmul.mubr.bf16.gmra.mrb[0].mxu0 %v3423
        %v3515 = vpop.f32.mrb[0].mxu0
        %v3516 = vadd.f32 0.0, %v3515
        %v3517 = vpop.f32.mrb[0].mxu0
        %v3518 = vpop.f32.mrb[0].mxu0
        %v3519 = vadd.f32 0.0, %v3518
        %v3520 = vpop.f32.mrb[0].mxu0
        %3521 = vdwg.mxu0
        %v3526 = vunpack.c.l.b16 %v1451
        %v3527 = vunpack.c.l.b16 %v1452
        %v3528 = vunpack.c.l.b16 %v1453
        %v3529 = vunpack.c.l.b16 %v1454
        %v3530 = vpack.c.b16 %v3527, %v3526
        %v3531 = vpack.c.b16 %v3529, %v3528
        %v3535 = vsel %vm1467, %v2381, 0
        %v3538 = vsel %vm1467, %v2382, 0
        %v3541 = vsel %vm1467, %v2383, 0
        %v3544 = vsel %vm1467, %v2384, 0
        %v3547 = vsel %vm1467, %v2385, 0
        %v3550 = vsel %vm1467, %v2386, 0
        %v3553 = vsel %vm1467, %v2387, 0
        %v3556 = vsel %vm1467, %v2388, 0
        %3558 = vmatprep.subr.bf16.mxu0 0
        %3559 = vmatpush1.bf16.msra.mxu0 %v3530
        %3560 = vmatprep.subr.bf16.mxu0 0
        %3561 = vmatpush1.bf16.msra.mxu0 %v3531
        %3562 = vmatprep.subr.bf16.mxu0 0
        %3563 = vmatpush1.bf16.msra.mxu0 0
        %3564 = vmatprep.subr.bf16.mxu0 0
        %3565 = vmatpush1.bf16.msra.mxu0 0
        %3566 = vmatprep.subr.bf16.mxu0 0
        %3567 = vmatpush1.bf16.msra.mxu0 0
        %3568 = vmatprep.subr.bf16.mxu0 0
        %3569 = vmatpush1.bf16.msra.mxu0 0
        %3570 = vmatprep.subr.bf16.mxu0 0
        %3571 = vmatpush1.bf16.msra.mxu0 0
        %3572 = vmatprep.subr.bf16.mxu0 0
        %3573 = vmatpush1.bf16.msra.mxu0 0
        %3574 = vmatprep.subr.bf16.mxu0 0
        %3575 = vmatpush1.bf16.msra.mxu0 0
        %3576 = vmatprep.subr.bf16.mxu0 0
        %3577 = vmatpush1.bf16.msra.mxu0 0
        %3578 = vmatprep.subr.bf16.mxu0 0
        %3579 = vmatpush1.bf16.msra.mxu0 0
        %3580 = vmatprep.subr.bf16.mxu0 0
        %3581 = vmatpush1.bf16.msra.mxu0 0
        %3582 = vmatprep.subr.bf16.mxu0 0
        %3583 = vmatpush1.bf16.msra.mxu0 0
        %3584 = vmatprep.subr.bf16.mxu0 0
        %3585 = vmatpush1.bf16.msra.mxu0 0
        %3586 = vmatprep.subr.bf16.mxu0 0
        %3587 = vmatpush1.bf16.msra.mxu0 0
        %3588 = vmatprep.subr.bf16.mxu0 0
        %3589 = vmatpush1.bf16.msra.mxu0 0
        %3590 = vmatprep.mubr.bf16.mxu0 0
        %3591 = vmatmul.mubr.bf16.gmra.mrb[0].mxu0 %v3535
        %v3592 = vpop.f32.mrb[0].mxu0
        %v3593 = vadd.f32 %v3460, %v3592
        %v3594 = vpop.f32.mrb[0].mxu0
        %v3595 = vpop.f32.mrb[0].mxu0
        %v3596 = vadd.f32 %v3463, %v3595
        %v3597 = vpop.f32.mrb[0].mxu0
        %3598 = vmatprep.mubr.bf16.mxu0 0
        %3599 = vmatmul.mubr.bf16.gmra.mrb[0].mxu0 %v3538
        %v3600 = vpop.f32.mrb[0].mxu0
        %v3601 = vadd.f32 %v3468, %v3600
        %v3602 = vpop.f32.mrb[0].mxu0
        %v3603 = vpop.f32.mrb[0].mxu0
        %v3604 = vadd.f32 %v3471, %v3603
        %v3605 = vpop.f32.mrb[0].mxu0
        %3606 = vmatprep.mubr.bf16.mxu0 0
        %3607 = vmatmul.mubr.bf16.gmra.mrb[0].mxu0 %v3541
        %v3608 = vpop.f32.mrb[0].mxu0
        %v3609 = vadd.f32 %v3476, %v3608
        %v3610 = vpop.f32.mrb[0].mxu0
        %v3611 = vpop.f32.mrb[0].mxu0
        %v3612 = vadd.f32 %v3479, %v3611
        %v3613 = vpop.f32.mrb[0].mxu0
        %3614 = vmatprep.mubr.bf16.mxu0 0
        %3615 = vmatmul.mubr.bf16.gmra.mrb[0].mxu0 %v3544
        %v3616 = vpop.f32.mrb[0].mxu0
        %v3617 = vadd.f32 %v3484, %v3616
        %v3618 = vpop.f32.mrb[0].mxu0
        %v3619 = vpop.f32.mrb[0].mxu0
        %v3620 = vadd.f32 %v3487, %v3619
        %v3621 = vpop.f32.mrb[0].mxu0
        %3622 = vmatprep.mubr.bf16.mxu0 0
        %3623 = vmatmul.mubr.bf16.gmra.mrb[0].mxu0 %v3547
        %v3624 = vpop.f32.mrb[0].mxu0
        %v3625 = vadd.f32 %v3492, %v3624
        %v3626 = vpop.f32.mrb[0].mxu0
        %v3627 = vpop.f32.mrb[0].mxu0
        %v3628 = vadd.f32 %v3495, %v3627
        %v3629 = vpop.f32.mrb[0].mxu0
        %3630 = vmatprep.mubr.bf16.mxu0 0
        %3631 = vmatmul.mubr.bf16.gmra.mrb[0].mxu0 %v3550
        %v3632 = vpop.f32.mrb[0].mxu0
        %v3633 = vadd.f32 %v3500, %v3632
        %v3634 = vpop.f32.mrb[0].mxu0
        %v3635 = vpop.f32.mrb[0].mxu0
        %v3636 = vadd.f32 %v3503, %v3635
        %v3637 = vpop.f32.mrb[0].mxu0
        %3638 = vmatprep.mubr.bf16.mxu0 0
        %3639 = vmatmul.mubr.bf16.gmra.mrb[0].mxu0 %v3553
        %v3640 = vpop.f32.mrb[0].mxu0
        %v3641 = vadd.f32 %v3508, %v3640
        %v3642 = vpop.f32.mrb[0].mxu0
        %v3643 = vpop.f32.mrb[0].mxu0
        %v3644 = vadd.f32 %v3511, %v3643
        %v3645 = vpop.f32.mrb[0].mxu0
        %3646 = vmatprep.mubr.bf16.mxu0 0
        %3647 = vmatmul.mubr.bf16.gmra.mrb[0].mxu0 %v3556
        %v3648 = vpop.f32.mrb[0].mxu0
        %v3649 = vadd.f32 %v3516, %v3648
        %v3650 = vpop.f32.mrb[0].mxu0
        %v3651 = vpop.f32.mrb[0].mxu0
        %v3652 = vadd.f32 %v3519, %v3651
        %v3653 = vpop.f32.mrb[0].mxu0
        %3654 = vdwg.mxu0
        %3655 = vrot.lane.b32.xlu0 %v1427, 64
        %v3656 = vpop.permute.xlu0 %3655
        %3657 = vrot.lane.b32.xlu0 %v1428, 64
        %v3658 = vpop.permute.xlu0 %3657
        %v3660 = vsel %vm1467, %v3656, 0
        %v3663 = vsel %vm1467, %v3658, 0
        %3665 = vmatprep.subr.bf16.mxu0 0
        %3666 = vmatpush1.bf16.xpose.msra.mxu0 %v3663
        %3667 = vmatprep.subr.bf16.mxu0 0
        %3668 = vmatpush1.bf16.xpose.msra.mxu0 0
        %3669 = vmatprep.subr.bf16.mxu0 0
        %3670 = vmatpush1.bf16.xpose.msra.mxu0 0
        %3671 = vmatprep.subr.bf16.mxu0 0
        %3672 = vmatpush1.bf16.xpose.msra.mxu0 0
        %3673 = vmatprep.subr.bf16.mxu0 0
        %3674 = vmatpush1.bf16.xpose.msra.mxu0 0
        %3675 = vmatprep.subr.bf16.mxu0 0
        %3676 = vmatpush1.bf16.xpose.msra.mxu0 0
        %3677 = vmatprep.subr.bf16.mxu0 0
        %3678 = vmatpush1.bf16.xpose.msra.mxu0 0
        %3679 = vmatprep.subr.bf16.mxu0 0
        %3680 = vmatpush1.bf16.xpose.msra.mxu0 0
        %3681 = vmatprep.subr.bf16.mxu0 0
        %3682 = vmatpush1.bf16.xpose.msra.mxu0 0
        %3683 = vmatprep.subr.bf16.mxu0 0
        %3684 = vmatpush1.bf16.xpose.msra.mxu0 0
        %3685 = vmatprep.subr.bf16.mxu0 0
        %3686 = vmatpush1.bf16.xpose.msra.mxu0 0
        %3687 = vmatprep.subr.bf16.mxu0 0
        %3688 = vmatpush1.bf16.xpose.msra.mxu0 0
        %3689 = vmatprep.subr.bf16.mxu0 0
        %3690 = vmatpush1.bf16.xpose.msra.mxu0 0
        %3691 = vmatprep.subr.bf16.mxu0 0
        %3692 = vmatpush1.bf16.xpose.msra.mxu0 0
        %3693 = vmatprep.subr.bf16.mxu0 0
        %3694 = vmatpush1.bf16.xpose.msra.mxu0 0
        %3695 = vmatprep.subr.bf16.mxu0 0
        %3696 = vmatpush1.bf16.xpose.msra.mxu0 0
        %3697 = vmatprep.mubr.bf16.mxu0 0
        %3698 = vmatmul.mubr.bf16.gmra.mrb[0].mxu0 %v3660
        %v3699 = vpop.f32.mrb[0].mxu0
        %v3700 = vadd.f32 0.0, %v3699
        %v3701 = vpop.f32.mrb[0].mxu0
        %v3702 = vpop.f32.mrb[0].mxu0
        %v3703 = vadd.f32 0.0, %v3702
        %v3704 = vpop.f32.mrb[0].mxu0
        %3705 = vdwg.mxu0
        %3706 = vrot.lane.b32.xlu0 %v1430, 64
        %v3707 = vpop.permute.xlu0 %3706
        %3708 = vrot.lane.b32.xlu0 %v1431, 64
        %v3709 = vpop.permute.xlu0 %3708
        %v3711 = vsel %vm1467, %v3707, 0
        %v3714 = vsel %vm1467, %v3709, 0
        %3716 = vmatprep.subr.bf16.mxu0 0
        %3717 = vmatpush1.bf16.xpose.msra.mxu0 %v3714
        %3718 = vmatprep.subr.bf16.mxu0 0
        %3719 = vmatpush1.bf16.xpose.msra.mxu0 0
        %3720 = vmatprep.subr.bf16.mxu0 0
        %3721 = vmatpush1.bf16.xpose.msra.mxu0 0
        %3722 = vmatprep.subr.bf16.mxu0 0
        %3723 = vmatpush1.bf16.xpose.msra.mxu0 0
        %3724 = vmatprep.subr.bf16.mxu0 0
        %3725 = vmatpush1.bf16.xpose.msra.mxu0 0
        %3726 = vmatprep.subr.bf16.mxu0 0
        %3727 = vmatpush1.bf16.xpose.msra.mxu0 0
        %3728 = vmatprep.subr.bf16.mxu0 0
        %3729 = vmatpush1.bf16.xpose.msra.mxu0 0
        %3730 = vmatprep.subr.bf16.mxu0 0
        %3731 = vmatpush1.bf16.xpose.msra.mxu0 0
        %3732 = vmatprep.subr.bf16.mxu0 0
        %3733 = vmatpush1.bf16.xpose.msra.mxu0 0
        %3734 = vmatprep.subr.bf16.mxu0 0
        %3735 = vmatpush1.bf16.xpose.msra.mxu0 0
        %3736 = vmatprep.subr.bf16.mxu0 0
        %3737 = vmatpush1.bf16.xpose.msra.mxu0 0
        %3738 = vmatprep.subr.bf16.mxu0 0
        %3739 = vmatpush1.bf16.xpose.msra.mxu0 0
        %3740 = vmatprep.subr.bf16.mxu0 0
        %3741 = vmatpush1.bf16.xpose.msra.mxu0 0
        %3742 = vmatprep.subr.bf16.mxu0 0
        %3743 = vmatpush1.bf16.xpose.msra.mxu0 0
        %3744 = vmatprep.subr.bf16.mxu0 0
        %3745 = vmatpush1.bf16.xpose.msra.mxu0 0
        %3746 = vmatprep.subr.bf16.mxu0 0
        %3747 = vmatpush1.bf16.xpose.msra.mxu0 0
        %3748 = vmatprep.mubr.bf16.mxu0 0
        %3749 = vmatmul.mubr.bf16.gmra.mrb[0].mxu0 %v3711
        %v3750 = vpop.f32.mrb[0].mxu0
        %v3751 = vadd.f32 0.0, %v3750
        %v3752 = vpop.f32.mrb[0].mxu0
        %v3753 = vpop.f32.mrb[0].mxu0
        %v3754 = vadd.f32 0.0, %v3753
        %v3755 = vpop.f32.mrb[0].mxu0
        %3756 = vdwg.mxu0
        %3757 = vrot.lane.b32.xlu0 %v1433, 64
        %v3758 = vpop.permute.xlu0 %3757
        %3759 = vrot.lane.b32.xlu0 %v1434, 64
        %v3760 = vpop.permute.xlu0 %3759
        %v3762 = vsel %vm1467, %v3758, 0
        %v3765 = vsel %vm1467, %v3760, 0
        %3767 = vmatprep.subr.bf16.mxu0 0
        %3768 = vmatpush1.bf16.xpose.msra.mxu0 %v3765
        %3769 = vmatprep.subr.bf16.mxu0 0
        %3770 = vmatpush1.bf16.xpose.msra.mxu0 0
        %3771 = vmatprep.subr.bf16.mxu0 0
        %3772 = vmatpush1.bf16.xpose.msra.mxu0 0
        %3773 = vmatprep.subr.bf16.mxu0 0
        %3774 = vmatpush1.bf16.xpose.msra.mxu0 0
        %3775 = vmatprep.subr.bf16.mxu0 0
        %3776 = vmatpush1.bf16.xpose.msra.mxu0 0
        %3777 = vmatprep.subr.bf16.mxu0 0
        %3778 = vmatpush1.bf16.xpose.msra.mxu0 0
        %3779 = vmatprep.subr.bf16.mxu0 0
        %3780 = vmatpush1.bf16.xpose.msra.mxu0 0
        %3781 = vmatprep.subr.bf16.mxu0 0
        %3782 = vmatpush1.bf16.xpose.msra.mxu0 0
        %3783 = vmatprep.subr.bf16.mxu0 0
        %3784 = vmatpush1.bf16.xpose.msra.mxu0 0
        %3785 = vmatprep.subr.bf16.mxu0 0
        %3786 = vmatpush1.bf16.xpose.msra.mxu0 0
        %3787 = vmatprep.subr.bf16.mxu0 0
        %3788 = vmatpush1.bf16.xpose.msra.mxu0 0
        %3789 = vmatprep.subr.bf16.mxu0 0
        %3790 = vmatpush1.bf16.xpose.msra.mxu0 0
        %3791 = vmatprep.subr.bf16.mxu0 0
        %3792 = vmatpush1.bf16.xpose.msra.mxu0 0
        %3793 = vmatprep.subr.bf16.mxu0 0
        %3794 = vmatpush1.bf16.xpose.msra.mxu0 0
        %3795 = vmatprep.subr.bf16.mxu0 0
        %3796 = vmatpush1.bf16.xpose.msra.mxu0 0
        %3797 = vmatprep.subr.bf16.mxu0 0
        %3798 = vmatpush1.bf16.xpose.msra.mxu0 0
        %3799 = vmatprep.mubr.bf16.mxu0 0
        %3800 = vmatmul.mubr.bf16.gmra.mrb[0].mxu0 %v3762
        %v3801 = vpop.f32.mrb[0].mxu0
        %v3802 = vadd.f32 0.0, %v3801
        %v3803 = vpop.f32.mrb[0].mxu0
        %v3804 = vpop.f32.mrb[0].mxu0
        %v3805 = vadd.f32 0.0, %v3804
        %v3806 = vpop.f32.mrb[0].mxu0
        %3807 = vdwg.mxu0
        %3808 = vrot.lane.b32.xlu0 %v1436, 64
        %v3809 = vpop.permute.xlu0 %3808
        %3810 = vrot.lane.b32.xlu0 %v1437, 64
        %v3811 = vpop.permute.xlu0 %3810
        %v3813 = vsel %vm1467, %v3809, 0
        %v3816 = vsel %vm1467, %v3811, 0
        %3818 = vmatprep.subr.bf16.mxu0 0
        %3819 = vmatpush1.bf16.xpose.msra.mxu0 %v3816
        %3820 = vmatprep.subr.bf16.mxu0 0
        %3821 = vmatpush1.bf16.xpose.msra.mxu0 0
        %3822 = vmatprep.subr.bf16.mxu0 0
        %3823 = vmatpush1.bf16.xpose.msra.mxu0 0
        %3824 = vmatprep.subr.bf16.mxu0 0
        %3825 = vmatpush1.bf16.xpose.msra.mxu0 0
        %3826 = vmatprep.subr.bf16.mxu0 0
        %3827 = vmatpush1.bf16.xpose.msra.mxu0 0
        %3828 = vmatprep.subr.bf16.mxu0 0
        %3829 = vmatpush1.bf16.xpose.msra.mxu0 0
        %3830 = vmatprep.subr.bf16.mxu0 0
        %3831 = vmatpush1.bf16.xpose.msra.mxu0 0
        %3832 = vmatprep.subr.bf16.mxu0 0
        %3833 = vmatpush1.bf16.xpose.msra.mxu0 0
        %3834 = vmatprep.subr.bf16.mxu0 0
        %3835 = vmatpush1.bf16.xpose.msra.mxu0 0
        %3836 = vmatprep.subr.bf16.mxu0 0
        %3837 = vmatpush1.bf16.xpose.msra.mxu0 0
        %3838 = vmatprep.subr.bf16.mxu0 0
        %3839 = vmatpush1.bf16.xpose.msra.mxu0 0
        %3840 = vmatprep.subr.bf16.mxu0 0
        %3841 = vmatpush1.bf16.xpose.msra.mxu0 0
        %3842 = vmatprep.subr.bf16.mxu0 0
        %3843 = vmatpush1.bf16.xpose.msra.mxu0 0
        %3844 = vmatprep.subr.bf16.mxu0 0
        %3845 = vmatpush1.bf16.xpose.msra.mxu0 0
        %3846 = vmatprep.subr.bf16.mxu0 0
        %3847 = vmatpush1.bf16.xpose.msra.mxu0 0
        %3848 = vmatprep.subr.bf16.mxu0 0
        %3849 = vmatpush1.bf16.xpose.msra.mxu0 0
        %3850 = vmatprep.mubr.bf16.mxu0 0
        %3851 = vmatmul.mubr.bf16.gmra.mrb[0].mxu0 %v3813
        %v3852 = vpop.f32.mrb[0].mxu0
        %v3853 = vadd.f32 0.0, %v3852
        %v3854 = vpop.f32.mrb[0].mxu0
        %v3855 = vpop.f32.mrb[0].mxu0
        %v3856 = vadd.f32 0.0, %v3855
        %v3857 = vpop.f32.mrb[0].mxu0
        %3858 = vdwg.mxu0
        %3859 = vrot.lane.b32.xlu0 %v1439, 64
        %v3860 = vpop.permute.xlu0 %3859
        %3861 = vrot.lane.b32.xlu0 %v1440, 64
        %v3862 = vpop.permute.xlu0 %3861
        %v3864 = vsel %vm1467, %v3860, 0
        %v3867 = vsel %vm1467, %v3862, 0
        %3869 = vmatprep.subr.bf16.mxu0 0
        %3870 = vmatpush1.bf16.xpose.msra.mxu0 %v3867
        %3871 = vmatprep.subr.bf16.mxu0 0
        %3872 = vmatpush1.bf16.xpose.msra.mxu0 0
        %3873 = vmatprep.subr.bf16.mxu0 0
        %3874 = vmatpush1.bf16.xpose.msra.mxu0 0
        %3875 = vmatprep.subr.bf16.mxu0 0
        %3876 = vmatpush1.bf16.xpose.msra.mxu0 0
        %3877 = vmatprep.subr.bf16.mxu0 0
        %3878 = vmatpush1.bf16.xpose.msra.mxu0 0
        %3879 = vmatprep.subr.bf16.mxu0 0
        %3880 = vmatpush1.bf16.xpose.msra.mxu0 0
        %3881 = vmatprep.subr.bf16.mxu0 0
        %3882 = vmatpush1.bf16.xpose.msra.mxu0 0
        %3883 = vmatprep.subr.bf16.mxu0 0
        %3884 = vmatpush1.bf16.xpose.msra.mxu0 0
        %3885 = vmatprep.subr.bf16.mxu0 0
        %3886 = vmatpush1.bf16.xpose.msra.mxu0 0
        %3887 = vmatprep.subr.bf16.mxu0 0
        %3888 = vmatpush1.bf16.xpose.msra.mxu0 0
        %3889 = vmatprep.subr.bf16.mxu0 0
        %3890 = vmatpush1.bf16.xpose.msra.mxu0 0
        %3891 = vmatprep.subr.bf16.mxu0 0
        %3892 = vmatpush1.bf16.xpose.msra.mxu0 0
        %3893 = vmatprep.subr.bf16.mxu0 0
        %3894 = vmatpush1.bf16.xpose.msra.mxu0 0
        %3895 = vmatprep.subr.bf16.mxu0 0
        %3896 = vmatpush1.bf16.xpose.msra.mxu0 0
        %3897 = vmatprep.subr.bf16.mxu0 0
        %3898 = vmatpush1.bf16.xpose.msra.mxu0 0
        %3899 = vmatprep.subr.bf16.mxu0 0
        %3900 = vmatpush1.bf16.xpose.msra.mxu0 0
        %3901 = vmatprep.mubr.bf16.mxu0 0
        %3902 = vmatmul.mubr.bf16.gmra.mrb[0].mxu0 %v3864
        %v3903 = vpop.f32.mrb[0].mxu0
        %v3904 = vadd.f32 0.0, %v3903
        %v3905 = vpop.f32.mrb[0].mxu0
        %v3906 = vpop.f32.mrb[0].mxu0
        %v3907 = vadd.f32 0.0, %v3906
        %v3908 = vpop.f32.mrb[0].mxu0
        %3909 = vdwg.mxu0
        %3910 = vrot.lane.b32.xlu0 %v1442, 64
        %v3911 = vpop.permute.xlu0 %3910
        %3912 = vrot.lane.b32.xlu0 %v1443, 64
        %v3913 = vpop.permute.xlu0 %3912
        %v3915 = vsel %vm1467, %v3911, 0
        %v3918 = vsel %vm1467, %v3913, 0
        %3920 = vmatprep.subr.bf16.mxu0 0
        %3921 = vmatpush1.bf16.xpose.msra.mxu0 %v3918
        %3922 = vmatprep.subr.bf16.mxu0 0
        %3923 = vmatpush1.bf16.xpose.msra.mxu0 0
        %3924 = vmatprep.subr.bf16.mxu0 0
        %3925 = vmatpush1.bf16.xpose.msra.mxu0 0
        %3926 = vmatprep.subr.bf16.mxu0 0
        %3927 = vmatpush1.bf16.xpose.msra.mxu0 0
        %3928 = vmatprep.subr.bf16.mxu0 0
        %3929 = vmatpush1.bf16.xpose.msra.mxu0 0
        %3930 = vmatprep.subr.bf16.mxu0 0
        %3931 = vmatpush1.bf16.xpose.msra.mxu0 0
        %3932 = vmatprep.subr.bf16.mxu0 0
        %3933 = vmatpush1.bf16.xpose.msra.mxu0 0
        %3934 = vmatprep.subr.bf16.mxu0 0
        %3935 = vmatpush1.bf16.xpose.msra.mxu0 0
        %3936 = vmatprep.subr.bf16.mxu0 0
        %3937 = vmatpush1.bf16.xpose.msra.mxu0 0
        %3938 = vmatprep.subr.bf16.mxu0 0
        %3939 = vmatpush1.bf16.xpose.msra.mxu0 0
        %3940 = vmatprep.subr.bf16.mxu0 0
        %3941 = vmatpush1.bf16.xpose.msra.mxu0 0
        %3942 = vmatprep.subr.bf16.mxu0 0
        %3943 = vmatpush1.bf16.xpose.msra.mxu0 0
        %3944 = vmatprep.subr.bf16.mxu0 0
        %3945 = vmatpush1.bf16.xpose.msra.mxu0 0
        %3946 = vmatprep.subr.bf16.mxu0 0
        %3947 = vmatpush1.bf16.xpose.msra.mxu0 0
        %3948 = vmatprep.subr.bf16.mxu0 0
        %3949 = vmatpush1.bf16.xpose.msra.mxu0 0
        %3950 = vmatprep.subr.bf16.mxu0 0
        %3951 = vmatpush1.bf16.xpose.msra.mxu0 0
        %3952 = vmatprep.mubr.bf16.mxu0 0
        %3953 = vmatmul.mubr.bf16.gmra.mrb[0].mxu0 %v3915
        %v3954 = vpop.f32.mrb[0].mxu0
        %v3955 = vadd.f32 0.0, %v3954
        %v3956 = vpop.f32.mrb[0].mxu0
        %v3957 = vpop.f32.mrb[0].mxu0
        %v3958 = vadd.f32 0.0, %v3957
        %v3959 = vpop.f32.mrb[0].mxu0
        %3960 = vdwg.mxu0
        %3961 = vrot.lane.b32.xlu0 %v1445, 64
        %v3962 = vpop.permute.xlu0 %3961
        %3963 = vrot.lane.b32.xlu0 %v1446, 64
        %v3964 = vpop.permute.xlu0 %3963
        %v3966 = vsel %vm1467, %v3962, 0
        %v3969 = vsel %vm1467, %v3964, 0
        %3971 = vmatprep.subr.bf16.mxu0 0
        %3972 = vmatpush1.bf16.xpose.msra.mxu0 %v3969
        %3973 = vmatprep.subr.bf16.mxu0 0
        %3974 = vmatpush1.bf16.xpose.msra.mxu0 0
        %3975 = vmatprep.subr.bf16.mxu0 0
        %3976 = vmatpush1.bf16.xpose.msra.mxu0 0
        %3977 = vmatprep.subr.bf16.mxu0 0
        %3978 = vmatpush1.bf16.xpose.msra.mxu0 0
        %3979 = vmatprep.subr.bf16.mxu0 0
        %3980 = vmatpush1.bf16.xpose.msra.mxu0 0
        %3981 = vmatprep.subr.bf16.mxu0 0
        %3982 = vmatpush1.bf16.xpose.msra.mxu0 0
        %3983 = vmatprep.subr.bf16.mxu0 0
        %3984 = vmatpush1.bf16.xpose.msra.mxu0 0
        %3985 = vmatprep.subr.bf16.mxu0 0
        %3986 = vmatpush1.bf16.xpose.msra.mxu0 0
        %3987 = vmatprep.subr.bf16.mxu0 0
        %3988 = vmatpush1.bf16.xpose.msra.mxu0 0
        %3989 = vmatprep.subr.bf16.mxu0 0
        %3990 = vmatpush1.bf16.xpose.msra.mxu0 0
        %3991 = vmatprep.subr.bf16.mxu0 0
        %3992 = vmatpush1.bf16.xpose.msra.mxu0 0
        %3993 = vmatprep.subr.bf16.mxu0 0
        %3994 = vmatpush1.bf16.xpose.msra.mxu0 0
        %3995 = vmatprep.subr.bf16.mxu0 0
        %3996 = vmatpush1.bf16.xpose.msra.mxu0 0
        %3997 = vmatprep.subr.bf16.mxu0 0
        %3998 = vmatpush1.bf16.xpose.msra.mxu0 0
        %3999 = vmatprep.subr.bf16.mxu0 0
        %4000 = vmatpush1.bf16.xpose.msra.mxu0 0
        %4001 = vmatprep.subr.bf16.mxu0 0
        %4002 = vmatpush1.bf16.xpose.msra.mxu0 0
        %4003 = vmatprep.mubr.bf16.mxu0 0
        %4004 = vmatmul.mubr.bf16.gmra.mrb[0].mxu0 %v3966
        %v4005 = vpop.f32.mrb[0].mxu0
        %v4006 = vadd.f32 0.0, %v4005
        %v4007 = vpop.f32.mrb[0].mxu0
        %v4008 = vpop.f32.mrb[0].mxu0
        %v4009 = vadd.f32 0.0, %v4008
        %v4010 = vpop.f32.mrb[0].mxu0
        %4011 = vdwg.mxu0
        %4012 = vrot.lane.b32.xlu0 %v1448, 64
        %v4013 = vpop.permute.xlu0 %4012
        %4014 = vrot.lane.b32.xlu0 %v1449, 64
        %v4015 = vpop.permute.xlu0 %4014
        %v4017 = vsel %vm1467, %v4013, 0
        %v4020 = vsel %vm1467, %v4015, 0
        %4022 = vmatprep.subr.bf16.mxu0 0
        %4023 = vmatpush1.bf16.xpose.msra.mxu0 %v4020
        %4024 = vmatprep.subr.bf16.mxu0 0
        %4025 = vmatpush1.bf16.xpose.msra.mxu0 0
        %4026 = vmatprep.subr.bf16.mxu0 0
        %4027 = vmatpush1.bf16.xpose.msra.mxu0 0
        %4028 = vmatprep.subr.bf16.mxu0 0
        %4029 = vmatpush1.bf16.xpose.msra.mxu0 0
        %4030 = vmatprep.subr.bf16.mxu0 0
        %4031 = vmatpush1.bf16.xpose.msra.mxu0 0
        %4032 = vmatprep.subr.bf16.mxu0 0
        %4033 = vmatpush1.bf16.xpose.msra.mxu0 0
        %4034 = vmatprep.subr.bf16.mxu0 0
        %4035 = vmatpush1.bf16.xpose.msra.mxu0 0
        %4036 = vmatprep.subr.bf16.mxu0 0
        %4037 = vmatpush1.bf16.xpose.msra.mxu0 0
        %4038 = vmatprep.subr.bf16.mxu0 0
        %4039 = vmatpush1.bf16.xpose.msra.mxu0 0
        %4040 = vmatprep.subr.bf16.mxu0 0
        %4041 = vmatpush1.bf16.xpose.msra.mxu0 0
        %4042 = vmatprep.subr.bf16.mxu0 0
        %4043 = vmatpush1.bf16.xpose.msra.mxu0 0
        %4044 = vmatprep.subr.bf16.mxu0 0
        %4045 = vmatpush1.bf16.xpose.msra.mxu0 0
        %4046 = vmatprep.subr.bf16.mxu0 0
        %4047 = vmatpush1.bf16.xpose.msra.mxu0 0
        %4048 = vmatprep.subr.bf16.mxu0 0
        %4049 = vmatpush1.bf16.xpose.msra.mxu0 0
        %4050 = vmatprep.subr.bf16.mxu0 0
        %4051 = vmatpush1.bf16.xpose.msra.mxu0 0
        %4052 = vmatprep.subr.bf16.mxu0 0
        %4053 = vmatpush1.bf16.xpose.msra.mxu0 0
        %4054 = vmatprep.mubr.bf16.mxu0 0
        %4055 = vmatmul.mubr.bf16.gmra.mrb[0].mxu0 %v4017
        %v4056 = vpop.f32.mrb[0].mxu0
        %v4057 = vadd.f32 0.0, %v4056
        %v4058 = vpop.f32.mrb[0].mxu0
        %v4059 = vpop.f32.mrb[0].mxu0
        %v4060 = vadd.f32 0.0, %v4059
        %v4061 = vpop.f32.mrb[0].mxu0
        %4062 = vdwg.mxu0
        %v4063 = vsel %vm1844, %v3700, -inf
        %4064 = vmax.xlane.f32.xlu0 %v4063
        %v4065 = vpop.xlane.xlu0 %4064
        %v4066 = vsel %vm1844, %v3703, -inf
        %4067 = vmax.xlane.f32.xlu0 %v4066
        %v4068 = vpop.xlane.xlu0 %4067
        %v4069 = vsel %vm1844, %v3751, -inf
        %4070 = vmax.xlane.f32.xlu0 %v4069
        %v4071 = vpop.xlane.xlu0 %4070
        %v4072 = vsel %vm1844, %v3754, -inf
        %4073 = vmax.xlane.f32.xlu0 %v4072
        %v4074 = vpop.xlane.xlu0 %4073
        %v4075 = vsel %vm1844, %v3802, -inf
        %4076 = vmax.xlane.f32.xlu0 %v4075
        %v4077 = vpop.xlane.xlu0 %4076
        %v4078 = vsel %vm1844, %v3805, -inf
        %4079 = vmax.xlane.f32.xlu0 %v4078
        %v4080 = vpop.xlane.xlu0 %4079
        %v4081 = vsel %vm1844, %v3853, -inf
        %4082 = vmax.xlane.f32.xlu0 %v4081
        %v4083 = vpop.xlane.xlu0 %4082
        %v4084 = vsel %vm1844, %v3856, -inf
        %4085 = vmax.xlane.f32.xlu0 %v4084
        %v4086 = vpop.xlane.xlu0 %4085
        %v4087 = vsel %vm1844, %v3904, -inf
        %4088 = vmax.xlane.f32.xlu0 %v4087
        %v4089 = vpop.xlane.xlu0 %4088
        %v4090 = vsel %vm1844, %v3907, -inf
        %4091 = vmax.xlane.f32.xlu0 %v4090
        %v4092 = vpop.xlane.xlu0 %4091
        %v4093 = vsel %vm1844, %v3955, -inf
        %4094 = vmax.xlane.f32.xlu0 %v4093
        %v4095 = vpop.xlane.xlu0 %4094
        %v4096 = vsel %vm1844, %v3958, -inf
        %4097 = vmax.xlane.f32.xlu0 %v4096
        %v4098 = vpop.xlane.xlu0 %4097
        %v4099 = vsel %vm1844, %v4006, -inf
        %4100 = vmax.xlane.f32.xlu0 %v4099
        %v4101 = vpop.xlane.xlu0 %4100
        %v4102 = vsel %vm1844, %v4009, -inf
        %4103 = vmax.xlane.f32.xlu0 %v4102
        %v4104 = vpop.xlane.xlu0 %4103
        %v4105 = vsel %vm1844, %v4057, -inf
        %4106 = vmax.xlane.f32.xlu0 %v4105
        %v4107 = vpop.xlane.xlu0 %4106
        %v4108 = vsel %vm1844, %v4060, -inf
        %4109 = vmax.xlane.f32.xlu0 %v4108
        %v4110 = vpop.xlane.xlu0 %4109
        %v4111 = vsub.f32 %v3700, %v4065
        %v4112 = vsub.f32 %v3703, %v4068
        %v4113 = vsub.f32 %v3751, %v4071
        %v4114 = vsub.f32 %v3754, %v4074
        %v4115 = vsub.f32 %v3802, %v4077
        %v4116 = vsub.f32 %v3805, %v4080
        %v4117 = vsub.f32 %v3853, %v4083
        %v4118 = vsub.f32 %v3856, %v4086
        %v4119 = vsub.f32 %v3904, %v4089
        %v4120 = vsub.f32 %v3907, %v4092
        %v4121 = vsub.f32 %v3955, %v4095
        %v4122 = vsub.f32 %v3958, %v4098
        %v4123 = vsub.f32 %v4006, %v4101
        %v4124 = vsub.f32 %v4009, %v4104
        %v4125 = vsub.f32 %v4057, %v4107
        %v4126 = vsub.f32 %v4060, %v4110
        %v4127 = vmul.f32 %v4111, 1.442695
        %v4128 = vpow.pop %v4127
        %v4129 = vmul.f32 %v4112, 1.442695
        %v4130 = vpow.pop %v4129
        %v4131 = vmul.f32 %v4113, 1.442695
        %v4132 = vpow.pop %v4131
        %v4133 = vmul.f32 %v4114, 1.442695
        %v4134 = vpow.pop %v4133
        %v4135 = vmul.f32 %v4115, 1.442695
        %v4136 = vpow.pop %v4135
        %v4137 = vmul.f32 %v4116, 1.442695
        %v4138 = vpow.pop %v4137
        %v4139 = vmul.f32 %v4117, 1.442695
        %v4140 = vpow.pop %v4139
        %v4141 = vmul.f32 %v4118, 1.442695
        %v4142 = vpow.pop %v4141
        %v4143 = vmul.f32 %v4119, 1.442695
        %v4144 = vpow.pop %v4143
        %v4145 = vmul.f32 %v4120, 1.442695
        %v4146 = vpow.pop %v4145
        %v4147 = vmul.f32 %v4121, 1.442695
        %v4148 = vpow.pop %v4147
        %v4149 = vmul.f32 %v4122, 1.442695
        %v4150 = vpow.pop %v4149
        %v4151 = vmul.f32 %v4123, 1.442695
        %v4152 = vpow.pop %v4151
        %v4153 = vmul.f32 %v4124, 1.442695
        %v4154 = vpow.pop %v4153
        %v4155 = vmul.f32 %v4125, 1.442695
        %v4156 = vpow.pop %v4155
        %v4157 = vmul.f32 %v4126, 1.442695
        %v4158 = vpow.pop %v4157
        %v4159 = vsel %vm1844, %v4128, 0.0
        %4160 = vadd.xlane.f32.xlu0 %v4159
        %v4161 = vpop.xlane.xlu0 %4160
        %v4162 = vsel %vm1844, %v4130, 0.0
        %4163 = vadd.xlane.f32.xlu0 %v4162
        %v4164 = vpop.xlane.xlu0 %4163
        %v4165 = vsel %vm1844, %v4132, 0.0
        %4166 = vadd.xlane.f32.xlu0 %v4165
        %v4167 = vpop.xlane.xlu0 %4166
        %v4168 = vsel %vm1844, %v4134, 0.0
        %4169 = vadd.xlane.f32.xlu0 %v4168
        %v4170 = vpop.xlane.xlu0 %4169
        %v4171 = vsel %vm1844, %v4136, 0.0
        %4172 = vadd.xlane.f32.xlu0 %v4171
        %v4173 = vpop.xlane.xlu0 %4172
        %v4174 = vsel %vm1844, %v4138, 0.0
        %4175 = vadd.xlane.f32.xlu0 %v4174
        %v4176 = vpop.xlane.xlu0 %4175
        %v4177 = vsel %vm1844, %v4140, 0.0
        %4178 = vadd.xlane.f32.xlu0 %v4177
        %v4179 = vpop.xlane.xlu0 %4178
        %v4180 = vsel %vm1844, %v4142, 0.0
        %4181 = vadd.xlane.f32.xlu0 %v4180
        %v4182 = vpop.xlane.xlu0 %4181
        %v4183 = vsel %vm1844, %v4144, 0.0
        %4184 = vadd.xlane.f32.xlu0 %v4183
        %v4185 = vpop.xlane.xlu0 %4184
        %v4186 = vsel %vm1844, %v4146, 0.0
        %4187 = vadd.xlane.f32.xlu0 %v4186
        %v4188 = vpop.xlane.xlu0 %4187
        %v4189 = vsel %vm1844, %v4148, 0.0
        %4190 = vadd.xlane.f32.xlu0 %v4189
        %v4191 = vpop.xlane.xlu0 %4190
        %v4192 = vsel %vm1844, %v4150, 0.0
        %4193 = vadd.xlane.f32.xlu0 %v4192
        %v4194 = vpop.xlane.xlu0 %4193
        %v4195 = vsel %vm1844, %v4152, 0.0
        %4196 = vadd.xlane.f32.xlu0 %v4195
        %v4197 = vpop.xlane.xlu0 %4196
        %v4198 = vsel %vm1844, %v4154, 0.0
        %4199 = vadd.xlane.f32.xlu0 %v4198
        %v4200 = vpop.xlane.xlu0 %4199
        %v4201 = vsel %vm1844, %v4156, 0.0
        %4202 = vadd.xlane.f32.xlu0 %v4201
        %v4203 = vpop.xlane.xlu0 %4202
        %v4204 = vsel %vm1844, %v4158, 0.0
        %4205 = vadd.xlane.f32.xlu0 %v4204
        %v4206 = vpop.xlane.xlu0 %4205
        %v4207 = vpack.c.bf16 %v4130, %v4128
        %v4208 = vpack.c.bf16 %v4134, %v4132
        %v4209 = vpack.c.bf16 %v4138, %v4136
        %v4210 = vpack.c.bf16 %v4142, %v4140
        %v4211 = vpack.c.bf16 %v4146, %v4144
        %v4212 = vpack.c.bf16 %v4150, %v4148
        %v4213 = vpack.c.bf16 %v4154, %v4152
        %v4214 = vpack.c.bf16 %v4158, %v4156
        %4215 = vrot.lane.b32.xlu0 %v1429, 64
        %v4216 = vpop.permute.xlu0 %4215
        %v4219 = vsel %vm1844, %v4207, 0
        %4221 = vmatprep.subr.bf16.mxu0 0
        %4222 = vmatpush1.bf16.msra.mxu0 %v4216
        %4223 = vmatprep.subr.bf16.mxu0 0
        %4224 = vmatpush1.bf16.msra.mxu0 0
        %4225 = vmatprep.subr.bf16.mxu0 0
        %4226 = vmatpush1.bf16.msra.mxu0 0
        %4227 = vmatprep.subr.bf16.mxu0 0
        %4228 = vmatpush1.bf16.msra.mxu0 0
        %4229 = vmatprep.subr.bf16.mxu0 0
        %4230 = vmatpush1.bf16.msra.mxu0 0
        %4231 = vmatprep.subr.bf16.mxu0 0
        %4232 = vmatpush1.bf16.msra.mxu0 0
        %4233 = vmatprep.subr.bf16.mxu0 0
        %4234 = vmatpush1.bf16.msra.mxu0 0
        %4235 = vmatprep.subr.bf16.mxu0 0
        %4236 = vmatpush1.bf16.msra.mxu0 0
        %4237 = vmatprep.subr.bf16.mxu0 0
        %4238 = vmatpush1.bf16.msra.mxu0 0
        %4239 = vmatprep.subr.bf16.mxu0 0
        %4240 = vmatpush1.bf16.msra.mxu0 0
        %4241 = vmatprep.subr.bf16.mxu0 0
        %4242 = vmatpush1.bf16.msra.mxu0 0
        %4243 = vmatprep.subr.bf16.mxu0 0
        %4244 = vmatpush1.bf16.msra.mxu0 0
        %4245 = vmatprep.subr.bf16.mxu0 0
        %4246 = vmatpush1.bf16.msra.mxu0 0
        %4247 = vmatprep.subr.bf16.mxu0 0
        %4248 = vmatpush1.bf16.msra.mxu0 0
        %4249 = vmatprep.subr.bf16.mxu0 0
        %4250 = vmatpush1.bf16.msra.mxu0 0
        %4251 = vmatprep.subr.bf16.mxu0 0
        %4252 = vmatpush1.bf16.msra.mxu0 0
        %4253 = vmatprep.mubr.bf16.mxu0 0
        %4254 = vmatmul.mubr.bf16.gmra.mrb[0].mxu0 %v4219
        %v4255 = vpop.f32.mrb[0].mxu0
        %v4256 = vadd.f32 0.0, %v4255
        %v4257 = vpop.f32.mrb[0].mxu0
        %v4258 = vpop.f32.mrb[0].mxu0
        %v4259 = vadd.f32 0.0, %v4258
        %v4260 = vpop.f32.mrb[0].mxu0
        %4261 = vdwg.mxu0
        %4262 = vrot.lane.b32.xlu0 %v1432, 64
        %v4263 = vpop.permute.xlu0 %4262
        %v4266 = vsel %vm1844, %v4208, 0
        %4268 = vmatprep.subr.bf16.mxu0 0
        %4269 = vmatpush1.bf16.msra.mxu0 %v4263
        %4270 = vmatprep.subr.bf16.mxu0 0
        %4271 = vmatpush1.bf16.msra.mxu0 0
        %4272 = vmatprep.subr.bf16.mxu0 0
        %4273 = vmatpush1.bf16.msra.mxu0 0
        %4274 = vmatprep.subr.bf16.mxu0 0
        %4275 = vmatpush1.bf16.msra.mxu0 0
        %4276 = vmatprep.subr.bf16.mxu0 0
        %4277 = vmatpush1.bf16.msra.mxu0 0
        %4278 = vmatprep.subr.bf16.mxu0 0
        %4279 = vmatpush1.bf16.msra.mxu0 0
        %4280 = vmatprep.subr.bf16.mxu0 0
        %4281 = vmatpush1.bf16.msra.mxu0 0
        %4282 = vmatprep.subr.bf16.mxu0 0
        %4283 = vmatpush1.bf16.msra.mxu0 0
        %4284 = vmatprep.subr.bf16.mxu0 0
        %4285 = vmatpush1.bf16.msra.mxu0 0
        %4286 = vmatprep.subr.bf16.mxu0 0
        %4287 = vmatpush1.bf16.msra.mxu0 0
        %4288 = vmatprep.subr.bf16.mxu0 0
        %4289 = vmatpush1.bf16.msra.mxu0 0
        %4290 = vmatprep.subr.bf16.mxu0 0
        %4291 = vmatpush1.bf16.msra.mxu0 0
        %4292 = vmatprep.subr.bf16.mxu0 0
        %4293 = vmatpush1.bf16.msra.mxu0 0
        %4294 = vmatprep.subr.bf16.mxu0 0
        %4295 = vmatpush1.bf16.msra.mxu0 0
        %4296 = vmatprep.subr.bf16.mxu0 0
        %4297 = vmatpush1.bf16.msra.mxu0 0
        %4298 = vmatprep.subr.bf16.mxu0 0
        %4299 = vmatpush1.bf16.msra.mxu0 0
        %4300 = vmatprep.mubr.bf16.mxu0 0
        %4301 = vmatmul.mubr.bf16.gmra.mrb[0].mxu0 %v4266
        %v4302 = vpop.f32.mrb[0].mxu0
        %v4303 = vadd.f32 0.0, %v4302
        %v4304 = vpop.f32.mrb[0].mxu0
        %v4305 = vpop.f32.mrb[0].mxu0
        %v4306 = vadd.f32 0.0, %v4305
        %v4307 = vpop.f32.mrb[0].mxu0
        %4308 = vdwg.mxu0
        %4309 = vrot.lane.b32.xlu0 %v1435, 64
        %v4310 = vpop.permute.xlu0 %4309
        %v4313 = vsel %vm1844, %v4209, 0
        %4315 = vmatprep.subr.bf16.mxu0 0
        %4316 = vmatpush1.bf16.msra.mxu0 %v4310
        %4317 = vmatprep.subr.bf16.mxu0 0
        %4318 = vmatpush1.bf16.msra.mxu0 0
        %4319 = vmatprep.subr.bf16.mxu0 0
        %4320 = vmatpush1.bf16.msra.mxu0 0
        %4321 = vmatprep.subr.bf16.mxu0 0
        %4322 = vmatpush1.bf16.msra.mxu0 0
        %4323 = vmatprep.subr.bf16.mxu0 0
        %4324 = vmatpush1.bf16.msra.mxu0 0
        %4325 = vmatprep.subr.bf16.mxu0 0
        %4326 = vmatpush1.bf16.msra.mxu0 0
        %4327 = vmatprep.subr.bf16.mxu0 0
        %4328 = vmatpush1.bf16.msra.mxu0 0
        %4329 = vmatprep.subr.bf16.mxu0 0
        %4330 = vmatpush1.bf16.msra.mxu0 0
        %4331 = vmatprep.subr.bf16.mxu0 0
        %4332 = vmatpush1.bf16.msra.mxu0 0
        %4333 = vmatprep.subr.bf16.mxu0 0
        %4334 = vmatpush1.bf16.msra.mxu0 0
        %4335 = vmatprep.subr.bf16.mxu0 0
        %4336 = vmatpush1.bf16.msra.mxu0 0
        %4337 = vmatprep.subr.bf16.mxu0 0
        %4338 = vmatpush1.bf16.msra.mxu0 0
        %4339 = vmatprep.subr.bf16.mxu0 0
        %4340 = vmatpush1.bf16.msra.mxu0 0
        %4341 = vmatprep.subr.bf16.mxu0 0
        %4342 = vmatpush1.bf16.msra.mxu0 0
        %4343 = vmatprep.subr.bf16.mxu0 0
        %4344 = vmatpush1.bf16.msra.mxu0 0
        %4345 = vmatprep.subr.bf16.mxu0 0
        %4346 = vmatpush1.bf16.msra.mxu0 0
        %4347 = vmatprep.mubr.bf16.mxu0 0
        %4348 = vmatmul.mubr.bf16.gmra.mrb[0].mxu0 %v4313
        %v4349 = vpop.f32.mrb[0].mxu0
        %v4350 = vadd.f32 0.0, %v4349
        %v4351 = vpop.f32.mrb[0].mxu0
        %v4352 = vpop.f32.mrb[0].mxu0
        %v4353 = vadd.f32 0.0, %v4352
        %v4354 = vpop.f32.mrb[0].mxu0
        %4355 = vdwg.mxu0
        %4356 = vrot.lane.b32.xlu0 %v1438, 64
        %v4357 = vpop.permute.xlu0 %4356
        %v4360 = vsel %vm1844, %v4210, 0
        %4362 = vmatprep.subr.bf16.mxu0 0
        %4363 = vmatpush1.bf16.msra.mxu0 %v4357
        %4364 = vmatprep.subr.bf16.mxu0 0
        %4365 = vmatpush1.bf16.msra.mxu0 0
        %4366 = vmatprep.subr.bf16.mxu0 0
        %4367 = vmatpush1.bf16.msra.mxu0 0
        %4368 = vmatprep.subr.bf16.mxu0 0
        %4369 = vmatpush1.bf16.msra.mxu0 0
        %4370 = vmatprep.subr.bf16.mxu0 0
        %4371 = vmatpush1.bf16.msra.mxu0 0
        %4372 = vmatprep.subr.bf16.mxu0 0
        %4373 = vmatpush1.bf16.msra.mxu0 0
        %4374 = vmatprep.subr.bf16.mxu0 0
        %4375 = vmatpush1.bf16.msra.mxu0 0
        %4376 = vmatprep.subr.bf16.mxu0 0
        %4377 = vmatpush1.bf16.msra.mxu0 0
        %4378 = vmatprep.subr.bf16.mxu0 0
        %4379 = vmatpush1.bf16.msra.mxu0 0
        %4380 = vmatprep.subr.bf16.mxu0 0
        %4381 = vmatpush1.bf16.msra.mxu0 0
        %4382 = vmatprep.subr.bf16.mxu0 0
        %4383 = vmatpush1.bf16.msra.mxu0 0
        %4384 = vmatprep.subr.bf16.mxu0 0
        %4385 = vmatpush1.bf16.msra.mxu0 0
        %4386 = vmatprep.subr.bf16.mxu0 0
        %4387 = vmatpush1.bf16.msra.mxu0 0
        %4388 = vmatprep.subr.bf16.mxu0 0
        %4389 = vmatpush1.bf16.msra.mxu0 0
        %4390 = vmatprep.subr.bf16.mxu0 0
        %4391 = vmatpush1.bf16.msra.mxu0 0
        %4392 = vmatprep.subr.bf16.mxu0 0
        %4393 = vmatpush1.bf16.msra.mxu0 0
        %4394 = vmatprep.mubr.bf16.mxu0 0
        %4395 = vmatmul.mubr.bf16.gmra.mrb[0].mxu0 %v4360
        %v4396 = vpop.f32.mrb[0].mxu0
        %v4397 = vadd.f32 0.0, %v4396
        %v4398 = vpop.f32.mrb[0].mxu0
        %v4399 = vpop.f32.mrb[0].mxu0
        %v4400 = vadd.f32 0.0, %v4399
        %v4401 = vpop.f32.mrb[0].mxu0
        %4402 = vdwg.mxu0
        %4403 = vrot.lane.b32.xlu0 %v1441, 64
        %v4404 = vpop.permute.xlu0 %4403
        %v4407 = vsel %vm1844, %v4211, 0
        %4409 = vmatprep.subr.bf16.mxu0 0
        %4410 = vmatpush1.bf16.msra.mxu0 %v4404
        %4411 = vmatprep.subr.bf16.mxu0 0
        %4412 = vmatpush1.bf16.msra.mxu0 0
        %4413 = vmatprep.subr.bf16.mxu0 0
        %4414 = vmatpush1.bf16.msra.mxu0 0
        %4415 = vmatprep.subr.bf16.mxu0 0
        %4416 = vmatpush1.bf16.msra.mxu0 0
        %4417 = vmatprep.subr.bf16.mxu0 0
        %4418 = vmatpush1.bf16.msra.mxu0 0
        %4419 = vmatprep.subr.bf16.mxu0 0
        %4420 = vmatpush1.bf16.msra.mxu0 0
        %4421 = vmatprep.subr.bf16.mxu0 0
        %4422 = vmatpush1.bf16.msra.mxu0 0
        %4423 = vmatprep.subr.bf16.mxu0 0
        %4424 = vmatpush1.bf16.msra.mxu0 0
        %4425 = vmatprep.subr.bf16.mxu0 0
        %4426 = vmatpush1.bf16.msra.mxu0 0
        %4427 = vmatprep.subr.bf16.mxu0 0
        %4428 = vmatpush1.bf16.msra.mxu0 0
        %4429 = vmatprep.subr.bf16.mxu0 0
        %4430 = vmatpush1.bf16.msra.mxu0 0
        %4431 = vmatprep.subr.bf16.mxu0 0
        %4432 = vmatpush1.bf16.msra.mxu0 0
        %4433 = vmatprep.subr.bf16.mxu0 0
        %4434 = vmatpush1.bf16.msra.mxu0 0
        %4435 = vmatprep.subr.bf16.mxu0 0
        %4436 = vmatpush1.bf16.msra.mxu0 0
        %4437 = vmatprep.subr.bf16.mxu0 0
        %4438 = vmatpush1.bf16.msra.mxu0 0
        %4439 = vmatprep.subr.bf16.mxu0 0
        %4440 = vmatpush1.bf16.msra.mxu0 0
        %4441 = vmatprep.mubr.bf16.mxu0 0
        %4442 = vmatmul.mubr.bf16.gmra.mrb[0].mxu0 %v4407
        %v4443 = vpop.f32.mrb[0].mxu0
        %v4444 = vadd.f32 0.0, %v4443
        %v4445 = vpop.f32.mrb[0].mxu0
        %v4446 = vpop.f32.mrb[0].mxu0
        %v4447 = vadd.f32 0.0, %v4446
        %v4448 = vpop.f32.mrb[0].mxu0
        %4449 = vdwg.mxu0
        %4450 = vrot.lane.b32.xlu0 %v1444, 64
        %v4451 = vpop.permute.xlu0 %4450
        %v4454 = vsel %vm1844, %v4212, 0
        %4456 = vmatprep.subr.bf16.mxu0 0
        %4457 = vmatpush1.bf16.msra.mxu0 %v4451
        %4458 = vmatprep.subr.bf16.mxu0 0
        %4459 = vmatpush1.bf16.msra.mxu0 0
        %4460 = vmatprep.subr.bf16.mxu0 0
        %4461 = vmatpush1.bf16.msra.mxu0 0
        %4462 = vmatprep.subr.bf16.mxu0 0
        %4463 = vmatpush1.bf16.msra.mxu0 0
        %4464 = vmatprep.subr.bf16.mxu0 0
        %4465 = vmatpush1.bf16.msra.mxu0 0
        %4466 = vmatprep.subr.bf16.mxu0 0
        %4467 = vmatpush1.bf16.msra.mxu0 0
        %4468 = vmatprep.subr.bf16.mxu0 0
        %4469 = vmatpush1.bf16.msra.mxu0 0
        %4470 = vmatprep.subr.bf16.mxu0 0
        %4471 = vmatpush1.bf16.msra.mxu0 0
        %4472 = vmatprep.subr.bf16.mxu0 0
        %4473 = vmatpush1.bf16.msra.mxu0 0
        %4474 = vmatprep.subr.bf16.mxu0 0
        %4475 = vmatpush1.bf16.msra.mxu0 0
        %4476 = vmatprep.subr.bf16.mxu0 0
        %4477 = vmatpush1.bf16.msra.mxu0 0
        %4478 = vmatprep.subr.bf16.mxu0 0
        %4479 = vmatpush1.bf16.msra.mxu0 0
        %4480 = vmatprep.subr.bf16.mxu0 0
        %4481 = vmatpush1.bf16.msra.mxu0 0
        %4482 = vmatprep.subr.bf16.mxu0 0
        %4483 = vmatpush1.bf16.msra.mxu0 0
        %4484 = vmatprep.subr.bf16.mxu0 0
        %4485 = vmatpush1.bf16.msra.mxu0 0
        %4486 = vmatprep.subr.bf16.mxu0 0
        %4487 = vmatpush1.bf16.msra.mxu0 0
        %4488 = vmatprep.mubr.bf16.mxu0 0
        %4489 = vmatmul.mubr.bf16.gmra.mrb[0].mxu0 %v4454
        %v4490 = vpop.f32.mrb[0].mxu0
        %v4491 = vadd.f32 0.0, %v4490
        %v4492 = vpop.f32.mrb[0].mxu0
        %v4493 = vpop.f32.mrb[0].mxu0
        %v4494 = vadd.f32 0.0, %v4493
        %v4495 = vpop.f32.mrb[0].mxu0
        %4496 = vdwg.mxu0
        %4497 = vrot.lane.b32.xlu0 %v1447, 64
        %v4498 = vpop.permute.xlu0 %4497
        %v4501 = vsel %vm1844, %v4213, 0
        %4503 = vmatprep.subr.bf16.mxu0 0
        %4504 = vmatpush1.bf16.msra.mxu0 %v4498
        %4505 = vmatprep.subr.bf16.mxu0 0
        %4506 = vmatpush1.bf16.msra.mxu0 0
        %4507 = vmatprep.subr.bf16.mxu0 0
        %4508 = vmatpush1.bf16.msra.mxu0 0
        %4509 = vmatprep.subr.bf16.mxu0 0
        %4510 = vmatpush1.bf16.msra.mxu0 0
        %4511 = vmatprep.subr.bf16.mxu0 0
        %4512 = vmatpush1.bf16.msra.mxu0 0
        %4513 = vmatprep.subr.bf16.mxu0 0
        %4514 = vmatpush1.bf16.msra.mxu0 0
        %4515 = vmatprep.subr.bf16.mxu0 0
        %4516 = vmatpush1.bf16.msra.mxu0 0
        %4517 = vmatprep.subr.bf16.mxu0 0
        %4518 = vmatpush1.bf16.msra.mxu0 0
        %4519 = vmatprep.subr.bf16.mxu0 0
        %4520 = vmatpush1.bf16.msra.mxu0 0
        %4521 = vmatprep.subr.bf16.mxu0 0
        %4522 = vmatpush1.bf16.msra.mxu0 0
        %4523 = vmatprep.subr.bf16.mxu0 0
        %4524 = vmatpush1.bf16.msra.mxu0 0
        %4525 = vmatprep.subr.bf16.mxu0 0
        %4526 = vmatpush1.bf16.msra.mxu0 0
        %4527 = vmatprep.subr.bf16.mxu0 0
        %4528 = vmatpush1.bf16.msra.mxu0 0
        %4529 = vmatprep.subr.bf16.mxu0 0
        %4530 = vmatpush1.bf16.msra.mxu0 0
        %4531 = vmatprep.subr.bf16.mxu0 0
        %4532 = vmatpush1.bf16.msra.mxu0 0
        %4533 = vmatprep.subr.bf16.mxu0 0
        %4534 = vmatpush1.bf16.msra.mxu0 0
        %4535 = vmatprep.mubr.bf16.mxu0 0
        %4536 = vmatmul.mubr.bf16.gmra.mrb[0].mxu0 %v4501
        %v4537 = vpop.f32.mrb[0].mxu0
        %v4538 = vadd.f32 0.0, %v4537
        %v4539 = vpop.f32.mrb[0].mxu0
        %v4540 = vpop.f32.mrb[0].mxu0
        %v4541 = vadd.f32 0.0, %v4540
        %v4542 = vpop.f32.mrb[0].mxu0
        %4543 = vdwg.mxu0
        %4544 = vrot.lane.b32.xlu0 %v1450, 64
        %v4545 = vpop.permute.xlu0 %4544
        %v4548 = vsel %vm1844, %v4214, 0
        %4550 = vmatprep.subr.bf16.mxu0 0
        %4551 = vmatpush1.bf16.msra.mxu0 %v4545
        %4552 = vmatprep.subr.bf16.mxu0 0
        %4553 = vmatpush1.bf16.msra.mxu0 0
        %4554 = vmatprep.subr.bf16.mxu0 0
        %4555 = vmatpush1.bf16.msra.mxu0 0
        %4556 = vmatprep.subr.bf16.mxu0 0
        %4557 = vmatpush1.bf16.msra.mxu0 0
        %4558 = vmatprep.subr.bf16.mxu0 0
        %4559 = vmatpush1.bf16.msra.mxu0 0
        %4560 = vmatprep.subr.bf16.mxu0 0
        %4561 = vmatpush1.bf16.msra.mxu0 0
        %4562 = vmatprep.subr.bf16.mxu0 0
        %4563 = vmatpush1.bf16.msra.mxu0 0
        %4564 = vmatprep.subr.bf16.mxu0 0
        %4565 = vmatpush1.bf16.msra.mxu0 0
        %4566 = vmatprep.subr.bf16.mxu0 0
        %4567 = vmatpush1.bf16.msra.mxu0 0
        %4568 = vmatprep.subr.bf16.mxu0 0
        %4569 = vmatpush1.bf16.msra.mxu0 0
        %4570 = vmatprep.subr.bf16.mxu0 0
        %4571 = vmatpush1.bf16.msra.mxu0 0
        %4572 = vmatprep.subr.bf16.mxu0 0
        %4573 = vmatpush1.bf16.msra.mxu0 0
        %4574 = vmatprep.subr.bf16.mxu0 0
        %4575 = vmatpush1.bf16.msra.mxu0 0
        %4576 = vmatprep.subr.bf16.mxu0 0
        %4577 = vmatpush1.bf16.msra.mxu0 0
        %4578 = vmatprep.subr.bf16.mxu0 0
        %4579 = vmatpush1.bf16.msra.mxu0 0
        %4580 = vmatprep.subr.bf16.mxu0 0
        %4581 = vmatpush1.bf16.msra.mxu0 0
        %4582 = vmatprep.mubr.bf16.mxu0 0
        %4583 = vmatmul.mubr.bf16.gmra.mrb[0].mxu0 %v4548
        %v4584 = vpop.f32.mrb[0].mxu0
        %v4585 = vadd.f32 0.0, %v4584
        %v4586 = vpop.f32.mrb[0].mxu0
        %v4587 = vpop.f32.mrb[0].mxu0
        %v4588 = vadd.f32 0.0, %v4587
        %v4589 = vpop.f32.mrb[0].mxu0
        %4590 = vdwg.mxu0
        %v4591 = vrcp.pop %v4161
        %v4592 = vrcp.pop %v4164
        %v4593 = vrcp.pop %v4167
        %v4594 = vrcp.pop %v4170
        %v4595 = vrcp.pop %v4173
        %v4596 = vrcp.pop %v4176
        %v4597 = vrcp.pop %v4179
        %v4598 = vrcp.pop %v4182
        %v4599 = vrcp.pop %v4185
        %v4600 = vrcp.pop %v4188
        %v4601 = vrcp.pop %v4191
        %v4602 = vrcp.pop %v4194
        %v4603 = vrcp.pop %v4197
        %v4604 = vrcp.pop %v4200
        %v4605 = vrcp.pop %v4203
        %v4606 = vrcp.pop %v4206
        %v4607 = vmul.f32 %v4256, %v4591
        %v4608 = vmul.f32 %v4259, %v4592
        %v4609 = vmul.f32 %v4303, %v4593
        %v4610 = vmul.f32 %v4306, %v4594
        %v4611 = vmul.f32 %v4350, %v4595
        %v4612 = vmul.f32 %v4353, %v4596
        %v4613 = vmul.f32 %v4397, %v4597
        %v4614 = vmul.f32 %v4400, %v4598
        %v4615 = vmul.f32 %v4444, %v4599
        %v4616 = vmul.f32 %v4447, %v4600
        %v4617 = vmul.f32 %v4491, %v4601
        %v4618 = vmul.f32 %v4494, %v4602
        %v4619 = vmul.f32 %v4538, %v4603
        %v4620 = vmul.f32 %v4541, %v4604
        %v4621 = vmul.f32 %v4585, %v4605
        %v4622 = vmul.f32 %v4588, %v4606
        %v4623 = vpack.c.bf16 %v4608, %v4607
        %v4624 = vpack.c.bf16 %v4610, %v4609
        %v4625 = vpack.c.bf16 %v4612, %v4611
        %v4626 = vpack.c.bf16 %v4614, %v4613
        %v4627 = vpack.c.bf16 %v4616, %v4615
        %v4628 = vpack.c.bf16 %v4618, %v4617
        %v4629 = vpack.c.bf16 %v4620, %v4619
        %v4630 = vpack.c.bf16 %v4622, %v4621
        %v4635 = vunpack.c.l.b16 %v1459
        %v4636 = vunpack.c.l.b16 %v1460
        %v4637 = vunpack.c.l.b16 %v1461
        %v4638 = vunpack.c.l.b16 %v1462
        %v4639 = vpack.c.b16 %v4636, %v4635
        %v4640 = vpack.c.b16 %v4638, %v4637
        %v4644 = vsel %vm1467, %v4623, 0
        %v4647 = vsel %vm1467, %v4624, 0
        %v4650 = vsel %vm1467, %v4625, 0
        %v4653 = vsel %vm1467, %v4626, 0
        %v4656 = vsel %vm1467, %v4627, 0
        %v4659 = vsel %vm1467, %v4628, 0
        %v4662 = vsel %vm1467, %v4629, 0
        %v4665 = vsel %vm1467, %v4630, 0
        %4667 = vmatprep.subr.bf16.mxu0 0
        %4668 = vmatpush1.bf16.msra.mxu0 %v4639
        %4669 = vmatprep.subr.bf16.mxu0 0
        %4670 = vmatpush1.bf16.msra.mxu0 %v4640
        %4671 = vmatprep.subr.bf16.mxu0 0
        %4672 = vmatpush1.bf16.msra.mxu0 0
        %4673 = vmatprep.subr.bf16.mxu0 0
        %4674 = vmatpush1.bf16.msra.mxu0 0
        %4675 = vmatprep.subr.bf16.mxu0 0
        %4676 = vmatpush1.bf16.msra.mxu0 0
        %4677 = vmatprep.subr.bf16.mxu0 0
        %4678 = vmatpush1.bf16.msra.mxu0 0
        %4679 = vmatprep.subr.bf16.mxu0 0
        %4680 = vmatpush1.bf16.msra.mxu0 0
        %4681 = vmatprep.subr.bf16.mxu0 0
        %4682 = vmatpush1.bf16.msra.mxu0 0
        %4683 = vmatprep.subr.bf16.mxu0 0
        %4684 = vmatpush1.bf16.msra.mxu0 0
        %4685 = vmatprep.subr.bf16.mxu0 0
        %4686 = vmatpush1.bf16.msra.mxu0 0
        %4687 = vmatprep.subr.bf16.mxu0 0
        %4688 = vmatpush1.bf16.msra.mxu0 0
        %4689 = vmatprep.subr.bf16.mxu0 0
        %4690 = vmatpush1.bf16.msra.mxu0 0
        %4691 = vmatprep.subr.bf16.mxu0 0
        %4692 = vmatpush1.bf16.msra.mxu0 0
        %4693 = vmatprep.subr.bf16.mxu0 0
        %4694 = vmatpush1.bf16.msra.mxu0 0
        %4695 = vmatprep.subr.bf16.mxu0 0
        %4696 = vmatpush1.bf16.msra.mxu0 0
        %4697 = vmatprep.subr.bf16.mxu0 0
        %4698 = vmatpush1.bf16.msra.mxu0 0
        %4699 = vmatprep.mubr.bf16.mxu0 0
        %4700 = vmatmul.mubr.bf16.gmra.mrb[0].mxu0 %v4644
        %v4701 = vpop.f32.mrb[0].mxu0
        %v4702 = vadd.f32 0.0, %v4701
        %v4703 = vpop.f32.mrb[0].mxu0
        %v4704 = vpop.f32.mrb[0].mxu0
        %v4705 = vadd.f32 0.0, %v4704
        %v4706 = vpop.f32.mrb[0].mxu0
        %4707 = vmatprep.mubr.bf16.mxu0 0
        %4708 = vmatmul.mubr.bf16.gmra.mrb[0].mxu0 %v4647
        %v4709 = vpop.f32.mrb[0].mxu0
        %v4710 = vadd.f32 0.0, %v4709
        %v4711 = vpop.f32.mrb[0].mxu0
        %v4712 = vpop.f32.mrb[0].mxu0
        %v4713 = vadd.f32 0.0, %v4712
        %v4714 = vpop.f32.mrb[0].mxu0
        %4715 = vmatprep.mubr.bf16.mxu0 0
        %4716 = vmatmul.mubr.bf16.gmra.mrb[0].mxu0 %v4650
        %v4717 = vpop.f32.mrb[0].mxu0
        %v4718 = vadd.f32 0.0, %v4717
        %v4719 = vpop.f32.mrb[0].mxu0
        %v4720 = vpop.f32.mrb[0].mxu0
        %v4721 = vadd.f32 0.0, %v4720
        %v4722 = vpop.f32.mrb[0].mxu0
        %4723 = vmatprep.mubr.bf16.mxu0 0
        %4724 = vmatmul.mubr.bf16.gmra.mrb[0].mxu0 %v4653
        %v4725 = vpop.f32.mrb[0].mxu0
        %v4726 = vadd.f32 0.0, %v4725
        %v4727 = vpop.f32.mrb[0].mxu0
        %v4728 = vpop.f32.mrb[0].mxu0
        %v4729 = vadd.f32 0.0, %v4728
        %v4730 = vpop.f32.mrb[0].mxu0
        %4731 = vmatprep.mubr.bf16.mxu0 0
        %4732 = vmatmul.mubr.bf16.gmra.mrb[0].mxu0 %v4656
        %v4733 = vpop.f32.mrb[0].mxu0
        %v4734 = vadd.f32 0.0, %v4733
        %v4735 = vpop.f32.mrb[0].mxu0
        %v4736 = vpop.f32.mrb[0].mxu0
        %v4737 = vadd.f32 0.0, %v4736
        %v4738 = vpop.f32.mrb[0].mxu0
        %4739 = vmatprep.mubr.bf16.mxu0 0
        %4740 = vmatmul.mubr.bf16.gmra.mrb[0].mxu0 %v4659
        %v4741 = vpop.f32.mrb[0].mxu0
        %v4742 = vadd.f32 0.0, %v4741
        %v4743 = vpop.f32.mrb[0].mxu0
        %v4744 = vpop.f32.mrb[0].mxu0
        %v4745 = vadd.f32 0.0, %v4744
        %v4746 = vpop.f32.mrb[0].mxu0
        %4747 = vmatprep.mubr.bf16.mxu0 0
        %4748 = vmatmul.mubr.bf16.gmra.mrb[0].mxu0 %v4662
        %v4749 = vpop.f32.mrb[0].mxu0
        %v4750 = vadd.f32 0.0, %v4749
        %v4751 = vpop.f32.mrb[0].mxu0
        %v4752 = vpop.f32.mrb[0].mxu0
        %v4753 = vadd.f32 0.0, %v4752
        %v4754 = vpop.f32.mrb[0].mxu0
        %4755 = vmatprep.mubr.bf16.mxu0 0
        %4756 = vmatmul.mubr.bf16.gmra.mrb[0].mxu0 %v4665
        %v4757 = vpop.f32.mrb[0].mxu0
        %v4758 = vadd.f32 0.0, %v4757
        %v4759 = vpop.f32.mrb[0].mxu0
        %v4760 = vpop.f32.mrb[0].mxu0
        %v4761 = vadd.f32 0.0, %v4760
        %v4762 = vpop.f32.mrb[0].mxu0
        %4763 = vdwg.mxu0
        %v4764 = vadd.f32 %v3593, %v4702
        %v4765 = vadd.f32 %v3596, %v4705
        %v4766 = vadd.f32 %v3601, %v4710
        %v4767 = vadd.f32 %v3604, %v4713
        %v4768 = vadd.f32 %v3609, %v4718
        %v4769 = vadd.f32 %v3612, %v4721
        %v4770 = vadd.f32 %v3617, %v4726
        %v4771 = vadd.f32 %v3620, %v4729
        %v4772 = vadd.f32 %v3625, %v4734
        %v4773 = vadd.f32 %v3628, %v4737
        %v4774 = vadd.f32 %v3633, %v4742
        %v4775 = vadd.f32 %v3636, %v4745
        %v4776 = vadd.f32 %v3641, %v4750
        %v4777 = vadd.f32 %v3644, %v4753
        %v4778 = vadd.f32 %v3649, %v4758
        %v4779 = vadd.f32 %v3652, %v4761
        %4780 = vrot.lane.b32.xlu0 %v1427, 32
        %v4781 = vpop.permute.xlu0 %4780
        %4782 = vrot.lane.b32.xlu0 %v1428, 32
        %v4783 = vpop.permute.xlu0 %4782
        %v4785 = vsel %vm1467, %v4781, 0
        %v4788 = vsel %vm1467, %v4783, 0
        %4790 = vmatprep.subr.bf16.mxu0 0
        %4791 = vmatpush1.bf16.xpose.msra.mxu0 %v4788
        %4792 = vmatprep.subr.bf16.mxu0 0
        %4793 = vmatpush1.bf16.xpose.msra.mxu0 0
        %4794 = vmatprep.subr.bf16.mxu0 0
        %4795 = vmatpush1.bf16.xpose.msra.mxu0 0
        %4796 = vmatprep.subr.bf16.mxu0 0
        %4797 = vmatpush1.bf16.xpose.msra.mxu0 0
        %4798 = vmatprep.subr.bf16.mxu0 0
        %4799 = vmatpush1.bf16.xpose.msra.mxu0 0
        %4800 = vmatprep.subr.bf16.mxu0 0
        %4801 = vmatpush1.bf16.xpose.msra.mxu0 0
        %4802 = vmatprep.subr.bf16.mxu0 0
        %4803 = vmatpush1.bf16.xpose.msra.mxu0 0
        %4804 = vmatprep.subr.bf16.mxu0 0
        %4805 = vmatpush1.bf16.xpose.msra.mxu0 0
        %4806 = vmatprep.subr.bf16.mxu0 0
        %4807 = vmatpush1.bf16.xpose.msra.mxu0 0
        %4808 = vmatprep.subr.bf16.mxu0 0
        %4809 = vmatpush1.bf16.xpose.msra.mxu0 0
        %4810 = vmatprep.subr.bf16.mxu0 0
        %4811 = vmatpush1.bf16.xpose.msra.mxu0 0
        %4812 = vmatprep.subr.bf16.mxu0 0
        %4813 = vmatpush1.bf16.xpose.msra.mxu0 0
        %4814 = vmatprep.subr.bf16.mxu0 0
        %4815 = vmatpush1.bf16.xpose.msra.mxu0 0
        %4816 = vmatprep.subr.bf16.mxu0 0
        %4817 = vmatpush1.bf16.xpose.msra.mxu0 0
        %4818 = vmatprep.subr.bf16.mxu0 0
        %4819 = vmatpush1.bf16.xpose.msra.mxu0 0
        %4820 = vmatprep.subr.bf16.mxu0 0
        %4821 = vmatpush1.bf16.xpose.msra.mxu0 0
        %4822 = vmatprep.mubr.bf16.mxu0 0
        %4823 = vmatmul.mubr.bf16.gmra.mrb[0].mxu0 %v4785
        %v4824 = vpop.f32.mrb[0].mxu0
        %v4825 = vadd.f32 0.0, %v4824
        %v4826 = vpop.f32.mrb[0].mxu0
        %v4827 = vpop.f32.mrb[0].mxu0
        %v4828 = vadd.f32 0.0, %v4827
        %v4829 = vpop.f32.mrb[0].mxu0
        %4830 = vdwg.mxu0
        %4831 = vrot.lane.b32.xlu0 %v1430, 32
        %v4832 = vpop.permute.xlu0 %4831
        %4833 = vrot.lane.b32.xlu0 %v1431, 32
        %v4834 = vpop.permute.xlu0 %4833
        %v4836 = vsel %vm1467, %v4832, 0
        %v4839 = vsel %vm1467, %v4834, 0
        %4841 = vmatprep.subr.bf16.mxu0 0
        %4842 = vmatpush1.bf16.xpose.msra.mxu0 %v4839
        %4843 = vmatprep.subr.bf16.mxu0 0
        %4844 = vmatpush1.bf16.xpose.msra.mxu0 0
        %4845 = vmatprep.subr.bf16.mxu0 0
        %4846 = vmatpush1.bf16.xpose.msra.mxu0 0
        %4847 = vmatprep.subr.bf16.mxu0 0
        %4848 = vmatpush1.bf16.xpose.msra.mxu0 0
        %4849 = vmatprep.subr.bf16.mxu0 0
        %4850 = vmatpush1.bf16.xpose.msra.mxu0 0
        %4851 = vmatprep.subr.bf16.mxu0 0
        %4852 = vmatpush1.bf16.xpose.msra.mxu0 0
        %4853 = vmatprep.subr.bf16.mxu0 0
        %4854 = vmatpush1.bf16.xpose.msra.mxu0 0
        %4855 = vmatprep.subr.bf16.mxu0 0
        %4856 = vmatpush1.bf16.xpose.msra.mxu0 0
        %4857 = vmatprep.subr.bf16.mxu0 0
        %4858 = vmatpush1.bf16.xpose.msra.mxu0 0
        %4859 = vmatprep.subr.bf16.mxu0 0
        %4860 = vmatpush1.bf16.xpose.msra.mxu0 0
        %4861 = vmatprep.subr.bf16.mxu0 0
        %4862 = vmatpush1.bf16.xpose.msra.mxu0 0
        %4863 = vmatprep.subr.bf16.mxu0 0
        %4864 = vmatpush1.bf16.xpose.msra.mxu0 0
        %4865 = vmatprep.subr.bf16.mxu0 0
        %4866 = vmatpush1.bf16.xpose.msra.mxu0 0
        %4867 = vmatprep.subr.bf16.mxu0 0
        %4868 = vmatpush1.bf16.xpose.msra.mxu0 0
        %4869 = vmatprep.subr.bf16.mxu0 0
        %4870 = vmatpush1.bf16.xpose.msra.mxu0 0
        %4871 = vmatprep.subr.bf16.mxu0 0
        %4872 = vmatpush1.bf16.xpose.msra.mxu0 0
        %4873 = vmatprep.mubr.bf16.mxu0 0
        %4874 = vmatmul.mubr.bf16.gmra.mrb[0].mxu0 %v4836
        %v4875 = vpop.f32.mrb[0].mxu0
        %v4876 = vadd.f32 0.0, %v4875
        %v4877 = vpop.f32.mrb[0].mxu0
        %v4878 = vpop.f32.mrb[0].mxu0
        %v4879 = vadd.f32 0.0, %v4878
        %v4880 = vpop.f32.mrb[0].mxu0
        %4881 = vdwg.mxu0
        %4882 = vrot.lane.b32.xlu0 %v1433, 32
        %v4883 = vpop.permute.xlu0 %4882
        %4884 = vrot.lane.b32.xlu0 %v1434, 32
        %v4885 = vpop.permute.xlu0 %4884
        %v4887 = vsel %vm1467, %v4883, 0
        %v4890 = vsel %vm1467, %v4885, 0
        %4892 = vmatprep.subr.bf16.mxu0 0
        %4893 = vmatpush1.bf16.xpose.msra.mxu0 %v4890
        %4894 = vmatprep.subr.bf16.mxu0 0
        %4895 = vmatpush1.bf16.xpose.msra.mxu0 0
        %4896 = vmatprep.subr.bf16.mxu0 0
        %4897 = vmatpush1.bf16.xpose.msra.mxu0 0
        %4898 = vmatprep.subr.bf16.mxu0 0
        %4899 = vmatpush1.bf16.xpose.msra.mxu0 0
        %4900 = vmatprep.subr.bf16.mxu0 0
        %4901 = vmatpush1.bf16.xpose.msra.mxu0 0
        %4902 = vmatprep.subr.bf16.mxu0 0
        %4903 = vmatpush1.bf16.xpose.msra.mxu0 0
        %4904 = vmatprep.subr.bf16.mxu0 0
        %4905 = vmatpush1.bf16.xpose.msra.mxu0 0
        %4906 = vmatprep.subr.bf16.mxu0 0
        %4907 = vmatpush1.bf16.xpose.msra.mxu0 0
        %4908 = vmatprep.subr.bf16.mxu0 0
        %4909 = vmatpush1.bf16.xpose.msra.mxu0 0
        %4910 = vmatprep.subr.bf16.mxu0 0
        %4911 = vmatpush1.bf16.xpose.msra.mxu0 0
        %4912 = vmatprep.subr.bf16.mxu0 0
        %4913 = vmatpush1.bf16.xpose.msra.mxu0 0
        %4914 = vmatprep.subr.bf16.mxu0 0
        %4915 = vmatpush1.bf16.xpose.msra.mxu0 0
        %4916 = vmatprep.subr.bf16.mxu0 0
        %4917 = vmatpush1.bf16.xpose.msra.mxu0 0
        %4918 = vmatprep.subr.bf16.mxu0 0
        %4919 = vmatpush1.bf16.xpose.msra.mxu0 0
        %4920 = vmatprep.subr.bf16.mxu0 0
        %4921 = vmatpush1.bf16.xpose.msra.mxu0 0
        %4922 = vmatprep.subr.bf16.mxu0 0
        %4923 = vmatpush1.bf16.xpose.msra.mxu0 0
        %4924 = vmatprep.mubr.bf16.mxu0 0
        %4925 = vmatmul.mubr.bf16.gmra.mrb[0].mxu0 %v4887
        %v4926 = vpop.f32.mrb[0].mxu0
        %v4927 = vadd.f32 0.0, %v4926
        %v4928 = vpop.f32.mrb[0].mxu0
        %v4929 = vpop.f32.mrb[0].mxu0
        %v4930 = vadd.f32 0.0, %v4929
        %v4931 = vpop.f32.mrb[0].mxu0
        %4932 = vdwg.mxu0
        %4933 = vrot.lane.b32.xlu0 %v1436, 32
        %v4934 = vpop.permute.xlu0 %4933
        %4935 = vrot.lane.b32.xlu0 %v1437, 32
        %v4936 = vpop.permute.xlu0 %4935
        %v4938 = vsel %vm1467, %v4934, 0
        %v4941 = vsel %vm1467, %v4936, 0
        %4943 = vmatprep.subr.bf16.mxu0 0
        %4944 = vmatpush1.bf16.xpose.msra.mxu0 %v4941
        %4945 = vmatprep.subr.bf16.mxu0 0
        %4946 = vmatpush1.bf16.xpose.msra.mxu0 0
        %4947 = vmatprep.subr.bf16.mxu0 0
        %4948 = vmatpush1.bf16.xpose.msra.mxu0 0
        %4949 = vmatprep.subr.bf16.mxu0 0
        %4950 = vmatpush1.bf16.xpose.msra.mxu0 0
        %4951 = vmatprep.subr.bf16.mxu0 0
        %4952 = vmatpush1.bf16.xpose.msra.mxu0 0
        %4953 = vmatprep.subr.bf16.mxu0 0
        %4954 = vmatpush1.bf16.xpose.msra.mxu0 0
        %4955 = vmatprep.subr.bf16.mxu0 0
        %4956 = vmatpush1.bf16.xpose.msra.mxu0 0
        %4957 = vmatprep.subr.bf16.mxu0 0
        %4958 = vmatpush1.bf16.xpose.msra.mxu0 0
        %4959 = vmatprep.subr.bf16.mxu0 0
        %4960 = vmatpush1.bf16.xpose.msra.mxu0 0
        %4961 = vmatprep.subr.bf16.mxu0 0
        %4962 = vmatpush1.bf16.xpose.msra.mxu0 0
        %4963 = vmatprep.subr.bf16.mxu0 0
        %4964 = vmatpush1.bf16.xpose.msra.mxu0 0
        %4965 = vmatprep.subr.bf16.mxu0 0
        %4966 = vmatpush1.bf16.xpose.msra.mxu0 0
        %4967 = vmatprep.subr.bf16.mxu0 0
        %4968 = vmatpush1.bf16.xpose.msra.mxu0 0
        %4969 = vmatprep.subr.bf16.mxu0 0
        %4970 = vmatpush1.bf16.xpose.msra.mxu0 0
        %4971 = vmatprep.subr.bf16.mxu0 0
        %4972 = vmatpush1.bf16.xpose.msra.mxu0 0
        %4973 = vmatprep.subr.bf16.mxu0 0
        %4974 = vmatpush1.bf16.xpose.msra.mxu0 0
        %4975 = vmatprep.mubr.bf16.mxu0 0
        %4976 = vmatmul.mubr.bf16.gmra.mrb[0].mxu0 %v4938
        %v4977 = vpop.f32.mrb[0].mxu0
        %v4978 = vadd.f32 0.0, %v4977
        %v4979 = vpop.f32.mrb[0].mxu0
        %v4980 = vpop.f32.mrb[0].mxu0
        %v4981 = vadd.f32 0.0, %v4980
        %v4982 = vpop.f32.mrb[0].mxu0
        %4983 = vdwg.mxu0
        %4984 = vrot.lane.b32.xlu0 %v1439, 32
        %v4985 = vpop.permute.xlu0 %4984
        %4986 = vrot.lane.b32.xlu0 %v1440, 32
        %v4987 = vpop.permute.xlu0 %4986
        %v4989 = vsel %vm1467, %v4985, 0
        %v4992 = vsel %vm1467, %v4987, 0
        %4994 = vmatprep.subr.bf16.mxu0 0
        %4995 = vmatpush1.bf16.xpose.msra.mxu0 %v4992
        %4996 = vmatprep.subr.bf16.mxu0 0
        %4997 = vmatpush1.bf16.xpose.msra.mxu0 0
        %4998 = vmatprep.subr.bf16.mxu0 0
        %4999 = vmatpush1.bf16.xpose.msra.mxu0 0
        %5000 = vmatprep.subr.bf16.mxu0 0
        %5001 = vmatpush1.bf16.xpose.msra.mxu0 0
        %5002 = vmatprep.subr.bf16.mxu0 0
        %5003 = vmatpush1.bf16.xpose.msra.mxu0 0
        %5004 = vmatprep.subr.bf16.mxu0 0
        %5005 = vmatpush1.bf16.xpose.msra.mxu0 0
        %5006 = vmatprep.subr.bf16.mxu0 0
        %5007 = vmatpush1.bf16.xpose.msra.mxu0 0
        %5008 = vmatprep.subr.bf16.mxu0 0
        %5009 = vmatpush1.bf16.xpose.msra.mxu0 0
        %5010 = vmatprep.subr.bf16.mxu0 0
        %5011 = vmatpush1.bf16.xpose.msra.mxu0 0
        %5012 = vmatprep.subr.bf16.mxu0 0
        %5013 = vmatpush1.bf16.xpose.msra.mxu0 0
        %5014 = vmatprep.subr.bf16.mxu0 0
        %5015 = vmatpush1.bf16.xpose.msra.mxu0 0
        %5016 = vmatprep.subr.bf16.mxu0 0
        %5017 = vmatpush1.bf16.xpose.msra.mxu0 0
        %5018 = vmatprep.subr.bf16.mxu0 0
        %5019 = vmatpush1.bf16.xpose.msra.mxu0 0
        %5020 = vmatprep.subr.bf16.mxu0 0
        %5021 = vmatpush1.bf16.xpose.msra.mxu0 0
        %5022 = vmatprep.subr.bf16.mxu0 0
        %5023 = vmatpush1.bf16.xpose.msra.mxu0 0
        %5024 = vmatprep.subr.bf16.mxu0 0
        %5025 = vmatpush1.bf16.xpose.msra.mxu0 0
        %5026 = vmatprep.mubr.bf16.mxu0 0
        %5027 = vmatmul.mubr.bf16.gmra.mrb[0].mxu0 %v4989
        %v5028 = vpop.f32.mrb[0].mxu0
        %v5029 = vadd.f32 0.0, %v5028
        %v5030 = vpop.f32.mrb[0].mxu0
        %v5031 = vpop.f32.mrb[0].mxu0
        %v5032 = vadd.f32 0.0, %v5031
        %v5033 = vpop.f32.mrb[0].mxu0
        %5034 = vdwg.mxu0
        %5035 = vrot.lane.b32.xlu0 %v1442, 32
        %v5036 = vpop.permute.xlu0 %5035
        %5037 = vrot.lane.b32.xlu0 %v1443, 32
        %v5038 = vpop.permute.xlu0 %5037
        %v5040 = vsel %vm1467, %v5036, 0
        %v5043 = vsel %vm1467, %v5038, 0
        %5045 = vmatprep.subr.bf16.mxu0 0
        %5046 = vmatpush1.bf16.xpose.msra.mxu0 %v5043
        %5047 = vmatprep.subr.bf16.mxu0 0
        %5048 = vmatpush1.bf16.xpose.msra.mxu0 0
        %5049 = vmatprep.subr.bf16.mxu0 0
        %5050 = vmatpush1.bf16.xpose.msra.mxu0 0
        %5051 = vmatprep.subr.bf16.mxu0 0
        %5052 = vmatpush1.bf16.xpose.msra.mxu0 0
        %5053 = vmatprep.subr.bf16.mxu0 0
        %5054 = vmatpush1.bf16.xpose.msra.mxu0 0
        %5055 = vmatprep.subr.bf16.mxu0 0
        %5056 = vmatpush1.bf16.xpose.msra.mxu0 0
        %5057 = vmatprep.subr.bf16.mxu0 0
        %5058 = vmatpush1.bf16.xpose.msra.mxu0 0
        %5059 = vmatprep.subr.bf16.mxu0 0
        %5060 = vmatpush1.bf16.xpose.msra.mxu0 0
        %5061 = vmatprep.subr.bf16.mxu0 0
        %5062 = vmatpush1.bf16.xpose.msra.mxu0 0
        %5063 = vmatprep.subr.bf16.mxu0 0
        %5064 = vmatpush1.bf16.xpose.msra.mxu0 0
        %5065 = vmatprep.subr.bf16.mxu0 0
        %5066 = vmatpush1.bf16.xpose.msra.mxu0 0
        %5067 = vmatprep.subr.bf16.mxu0 0
        %5068 = vmatpush1.bf16.xpose.msra.mxu0 0
        %5069 = vmatprep.subr.bf16.mxu0 0
        %5070 = vmatpush1.bf16.xpose.msra.mxu0 0
        %5071 = vmatprep.subr.bf16.mxu0 0
        %5072 = vmatpush1.bf16.xpose.msra.mxu0 0
        %5073 = vmatprep.subr.bf16.mxu0 0
        %5074 = vmatpush1.bf16.xpose.msra.mxu0 0
        %5075 = vmatprep.subr.bf16.mxu0 0
        %5076 = vmatpush1.bf16.xpose.msra.mxu0 0
        %5077 = vmatprep.mubr.bf16.mxu0 0
        %5078 = vmatmul.mubr.bf16.gmra.mrb[0].mxu0 %v5040
        %v5079 = vpop.f32.mrb[0].mxu0
        %v5080 = vadd.f32 0.0, %v5079
        %v5081 = vpop.f32.mrb[0].mxu0
        %v5082 = vpop.f32.mrb[0].mxu0
        %v5083 = vadd.f32 0.0, %v5082
        %v5084 = vpop.f32.mrb[0].mxu0
        %5085 = vdwg.mxu0
        %5086 = vrot.lane.b32.xlu0 %v1445, 32
        %v5087 = vpop.permute.xlu0 %5086
        %5088 = vrot.lane.b32.xlu0 %v1446, 32
        %v5089 = vpop.permute.xlu0 %5088
        %v5091 = vsel %vm1467, %v5087, 0
        %v5094 = vsel %vm1467, %v5089, 0
        %5096 = vmatprep.subr.bf16.mxu0 0
        %5097 = vmatpush1.bf16.xpose.msra.mxu0 %v5094
        %5098 = vmatprep.subr.bf16.mxu0 0
        %5099 = vmatpush1.bf16.xpose.msra.mxu0 0
        %5100 = vmatprep.subr.bf16.mxu0 0
        %5101 = vmatpush1.bf16.xpose.msra.mxu0 0
        %5102 = vmatprep.subr.bf16.mxu0 0
        %5103 = vmatpush1.bf16.xpose.msra.mxu0 0
        %5104 = vmatprep.subr.bf16.mxu0 0
        %5105 = vmatpush1.bf16.xpose.msra.mxu0 0
        %5106 = vmatprep.subr.bf16.mxu0 0
        %5107 = vmatpush1.bf16.xpose.msra.mxu0 0
        %5108 = vmatprep.subr.bf16.mxu0 0
        %5109 = vmatpush1.bf16.xpose.msra.mxu0 0
        %5110 = vmatprep.subr.bf16.mxu0 0
        %5111 = vmatpush1.bf16.xpose.msra.mxu0 0
        %5112 = vmatprep.subr.bf16.mxu0 0
        %5113 = vmatpush1.bf16.xpose.msra.mxu0 0
        %5114 = vmatprep.subr.bf16.mxu0 0
        %5115 = vmatpush1.bf16.xpose.msra.mxu0 0
        %5116 = vmatprep.subr.bf16.mxu0 0
        %5117 = vmatpush1.bf16.xpose.msra.mxu0 0
        %5118 = vmatprep.subr.bf16.mxu0 0
        %5119 = vmatpush1.bf16.xpose.msra.mxu0 0
        %5120 = vmatprep.subr.bf16.mxu0 0
        %5121 = vmatpush1.bf16.xpose.msra.mxu0 0
        %5122 = vmatprep.subr.bf16.mxu0 0
        %5123 = vmatpush1.bf16.xpose.msra.mxu0 0
        %5124 = vmatprep.subr.bf16.mxu0 0
        %5125 = vmatpush1.bf16.xpose.msra.mxu0 0
        %5126 = vmatprep.subr.bf16.mxu0 0
        %5127 = vmatpush1.bf16.xpose.msra.mxu0 0
        %5128 = vmatprep.mubr.bf16.mxu0 0
        %5129 = vmatmul.mubr.bf16.gmra.mrb[0].mxu0 %v5091
        %v5130 = vpop.f32.mrb[0].mxu0
        %v5131 = vadd.f32 0.0, %v5130
        %v5132 = vpop.f32.mrb[0].mxu0
        %v5133 = vpop.f32.mrb[0].mxu0
        %v5134 = vadd.f32 0.0, %v5133
        %v5135 = vpop.f32.mrb[0].mxu0
        %5136 = vdwg.mxu0
        %5137 = vrot.lane.b32.xlu0 %v1448, 32
        %v5138 = vpop.permute.xlu0 %5137
        %5139 = vrot.lane.b32.xlu0 %v1449, 32
        %v5140 = vpop.permute.xlu0 %5139
        %v5142 = vsel %vm1467, %v5138, 0
        %v5145 = vsel %vm1467, %v5140, 0
        %5147 = vmatprep.subr.bf16.mxu0 0
        %5148 = vmatpush1.bf16.xpose.msra.mxu0 %v5145
        %5149 = vmatprep.subr.bf16.mxu0 0
        %5150 = vmatpush1.bf16.xpose.msra.mxu0 0
        %5151 = vmatprep.subr.bf16.mxu0 0
        %5152 = vmatpush1.bf16.xpose.msra.mxu0 0
        %5153 = vmatprep.subr.bf16.mxu0 0
        %5154 = vmatpush1.bf16.xpose.msra.mxu0 0
        %5155 = vmatprep.subr.bf16.mxu0 0
        %5156 = vmatpush1.bf16.xpose.msra.mxu0 0
        %5157 = vmatprep.subr.bf16.mxu0 0
        %5158 = vmatpush1.bf16.xpose.msra.mxu0 0
        %5159 = vmatprep.subr.bf16.mxu0 0
        %5160 = vmatpush1.bf16.xpose.msra.mxu0 0
        %5161 = vmatprep.subr.bf16.mxu0 0
        %5162 = vmatpush1.bf16.xpose.msra.mxu0 0
        %5163 = vmatprep.subr.bf16.mxu0 0
        %5164 = vmatpush1.bf16.xpose.msra.mxu0 0
        %5165 = vmatprep.subr.bf16.mxu0 0
        %5166 = vmatpush1.bf16.xpose.msra.mxu0 0
        %5167 = vmatprep.subr.bf16.mxu0 0
        %5168 = vmatpush1.bf16.xpose.msra.mxu0 0
        %5169 = vmatprep.subr.bf16.mxu0 0
        %5170 = vmatpush1.bf16.xpose.msra.mxu0 0
        %5171 = vmatprep.subr.bf16.mxu0 0
        %5172 = vmatpush1.bf16.xpose.msra.mxu0 0
        %5173 = vmatprep.subr.bf16.mxu0 0
        %5174 = vmatpush1.bf16.xpose.msra.mxu0 0
        %5175 = vmatprep.subr.bf16.mxu0 0
        %5176 = vmatpush1.bf16.xpose.msra.mxu0 0
        %5177 = vmatprep.subr.bf16.mxu0 0
        %5178 = vmatpush1.bf16.xpose.msra.mxu0 0
        %5179 = vmatprep.mubr.bf16.mxu0 0
        %5180 = vmatmul.mubr.bf16.gmra.mrb[0].mxu0 %v5142
        %v5181 = vpop.f32.mrb[0].mxu0
        %v5182 = vadd.f32 0.0, %v5181
        %v5183 = vpop.f32.mrb[0].mxu0
        %v5184 = vpop.f32.mrb[0].mxu0
        %v5185 = vadd.f32 0.0, %v5184
        %v5186 = vpop.f32.mrb[0].mxu0
        %5187 = vdwg.mxu0
        %v5188 = vsel %vm1844, %v4825, -inf
        %5189 = vmax.xlane.f32.xlu0 %v5188
        %v5190 = vpop.xlane.xlu0 %5189
        %v5191 = vsel %vm1844, %v4828, -inf
        %5192 = vmax.xlane.f32.xlu0 %v5191
        %v5193 = vpop.xlane.xlu0 %5192
        %v5194 = vsel %vm1844, %v4876, -inf
        %5195 = vmax.xlane.f32.xlu0 %v5194
        %v5196 = vpop.xlane.xlu0 %5195
        %v5197 = vsel %vm1844, %v4879, -inf
        %5198 = vmax.xlane.f32.xlu0 %v5197
        %v5199 = vpop.xlane.xlu0 %5198
        %v5200 = vsel %vm1844, %v4927, -inf
        %5201 = vmax.xlane.f32.xlu0 %v5200
        %v5202 = vpop.xlane.xlu0 %5201
        %v5203 = vsel %vm1844, %v4930, -inf
        %5204 = vmax.xlane.f32.xlu0 %v5203
        %v5205 = vpop.xlane.xlu0 %5204
        %v5206 = vsel %vm1844, %v4978, -inf
        %5207 = vmax.xlane.f32.xlu0 %v5206
        %v5208 = vpop.xlane.xlu0 %5207
        %v5209 = vsel %vm1844, %v4981, -inf
        %5210 = vmax.xlane.f32.xlu0 %v5209
        %v5211 = vpop.xlane.xlu0 %5210
        %v5212 = vsel %vm1844, %v5029, -inf
        %5213 = vmax.xlane.f32.xlu0 %v5212
        %v5214 = vpop.xlane.xlu0 %5213
        %v5215 = vsel %vm1844, %v5032, -inf
        %5216 = vmax.xlane.f32.xlu0 %v5215
        %v5217 = vpop.xlane.xlu0 %5216
        %v5218 = vsel %vm1844, %v5080, -inf
        %5219 = vmax.xlane.f32.xlu0 %v5218
        %v5220 = vpop.xlane.xlu0 %5219
        %v5221 = vsel %vm1844, %v5083, -inf
        %5222 = vmax.xlane.f32.xlu0 %v5221
        %v5223 = vpop.xlane.xlu0 %5222
        %v5224 = vsel %vm1844, %v5131, -inf
        %5225 = vmax.xlane.f32.xlu0 %v5224
        %v5226 = vpop.xlane.xlu0 %5225
        %v5227 = vsel %vm1844, %v5134, -inf
        %5228 = vmax.xlane.f32.xlu0 %v5227
        %v5229 = vpop.xlane.xlu0 %5228
        %v5230 = vsel %vm1844, %v5182, -inf
        %5231 = vmax.xlane.f32.xlu0 %v5230
        %v5232 = vpop.xlane.xlu0 %5231
        %v5233 = vsel %vm1844, %v5185, -inf
        %5234 = vmax.xlane.f32.xlu0 %v5233
        %v5235 = vpop.xlane.xlu0 %5234
        %v5236 = vsub.f32 %v4825, %v5190
        %v5237 = vsub.f32 %v4828, %v5193
        %v5238 = vsub.f32 %v4876, %v5196
        %v5239 = vsub.f32 %v4879, %v5199
        %v5240 = vsub.f32 %v4927, %v5202
        %v5241 = vsub.f32 %v4930, %v5205
        %v5242 = vsub.f32 %v4978, %v5208
        %v5243 = vsub.f32 %v4981, %v5211
        %v5244 = vsub.f32 %v5029, %v5214
        %v5245 = vsub.f32 %v5032, %v5217
        %v5246 = vsub.f32 %v5080, %v5220
        %v5247 = vsub.f32 %v5083, %v5223
        %v5248 = vsub.f32 %v5131, %v5226
        %v5249 = vsub.f32 %v5134, %v5229
        %v5250 = vsub.f32 %v5182, %v5232
        %v5251 = vsub.f32 %v5185, %v5235
        %v5252 = vmul.f32 %v5236, 1.442695
        %v5253 = vpow.pop %v5252
        %v5254 = vmul.f32 %v5237, 1.442695
        %v5255 = vpow.pop %v5254
        %v5256 = vmul.f32 %v5238, 1.442695
        %v5257 = vpow.pop %v5256
        %v5258 = vmul.f32 %v5239, 1.442695
        %v5259 = vpow.pop %v5258
        %v5260 = vmul.f32 %v5240, 1.442695
        %v5261 = vpow.pop %v5260
        %v5262 = vmul.f32 %v5241, 1.442695
        %v5263 = vpow.pop %v5262
        %v5264 = vmul.f32 %v5242, 1.442695
        %v5265 = vpow.pop %v5264
        %v5266 = vmul.f32 %v5243, 1.442695
        %v5267 = vpow.pop %v5266
        %v5268 = vmul.f32 %v5244, 1.442695
        %v5269 = vpow.pop %v5268
        %v5270 = vmul.f32 %v5245, 1.442695
        %v5271 = vpow.pop %v5270
        %v5272 = vmul.f32 %v5246, 1.442695
        %v5273 = vpow.pop %v5272
        %v5274 = vmul.f32 %v5247, 1.442695
        %v5275 = vpow.pop %v5274
        %v5276 = vmul.f32 %v5248, 1.442695
        %v5277 = vpow.pop %v5276
        %v5278 = vmul.f32 %v5249, 1.442695
        %v5279 = vpow.pop %v5278
        %v5280 = vmul.f32 %v5250, 1.442695
        %v5281 = vpow.pop %v5280
        %v5282 = vmul.f32 %v5251, 1.442695
        %v5283 = vpow.pop %v5282
        %v5284 = vsel %vm1844, %v5253, 0.0
        %5285 = vadd.xlane.f32.xlu0 %v5284
        %v5286 = vpop.xlane.xlu0 %5285
        %v5287 = vsel %vm1844, %v5255, 0.0
        %5288 = vadd.xlane.f32.xlu0 %v5287
        %v5289 = vpop.xlane.xlu0 %5288
        %v5290 = vsel %vm1844, %v5257, 0.0
        %5291 = vadd.xlane.f32.xlu0 %v5290
        %v5292 = vpop.xlane.xlu0 %5291
        %v5293 = vsel %vm1844, %v5259, 0.0
        %5294 = vadd.xlane.f32.xlu0 %v5293
        %v5295 = vpop.xlane.xlu0 %5294
        %v5296 = vsel %vm1844, %v5261, 0.0
        %5297 = vadd.xlane.f32.xlu0 %v5296
        %v5298 = vpop.xlane.xlu0 %5297
        %v5299 = vsel %vm1844, %v5263, 0.0
        %5300 = vadd.xlane.f32.xlu0 %v5299
        %v5301 = vpop.xlane.xlu0 %5300
        %v5302 = vsel %vm1844, %v5265, 0.0
        %5303 = vadd.xlane.f32.xlu0 %v5302
        %v5304 = vpop.xlane.xlu0 %5303
        %v5305 = vsel %vm1844, %v5267, 0.0
        %5306 = vadd.xlane.f32.xlu0 %v5305
        %v5307 = vpop.xlane.xlu0 %5306
        %v5308 = vsel %vm1844, %v5269, 0.0
        %5309 = vadd.xlane.f32.xlu0 %v5308
        %v5310 = vpop.xlane.xlu0 %5309
        %v5311 = vsel %vm1844, %v5271, 0.0
        %5312 = vadd.xlane.f32.xlu0 %v5311
        %v5313 = vpop.xlane.xlu0 %5312
        %v5314 = vsel %vm1844, %v5273, 0.0
        %5315 = vadd.xlane.f32.xlu0 %v5314
        %v5316 = vpop.xlane.xlu0 %5315
        %v5317 = vsel %vm1844, %v5275, 0.0
        %5318 = vadd.xlane.f32.xlu0 %v5317
        %v5319 = vpop.xlane.xlu0 %5318
        %v5320 = vsel %vm1844, %v5277, 0.0
        %5321 = vadd.xlane.f32.xlu0 %v5320
        %v5322 = vpop.xlane.xlu0 %5321
        %v5323 = vsel %vm1844, %v5279, 0.0
        %5324 = vadd.xlane.f32.xlu0 %v5323
        %v5325 = vpop.xlane.xlu0 %5324
        %v5326 = vsel %vm1844, %v5281, 0.0
        %5327 = vadd.xlane.f32.xlu0 %v5326
        %v5328 = vpop.xlane.xlu0 %5327
        %v5329 = vsel %vm1844, %v5283, 0.0
        %5330 = vadd.xlane.f32.xlu0 %v5329
        %v5331 = vpop.xlane.xlu0 %5330
        %v5332 = vpack.c.bf16 %v5255, %v5253
        %v5333 = vpack.c.bf16 %v5259, %v5257
        %v5334 = vpack.c.bf16 %v5263, %v5261
        %v5335 = vpack.c.bf16 %v5267, %v5265
        %v5336 = vpack.c.bf16 %v5271, %v5269
        %v5337 = vpack.c.bf16 %v5275, %v5273
        %v5338 = vpack.c.bf16 %v5279, %v5277
        %v5339 = vpack.c.bf16 %v5283, %v5281
        %5340 = vrot.lane.b32.xlu0 %v1429, 32
        %v5341 = vpop.permute.xlu0 %5340
        %v5344 = vsel %vm1844, %v5332, 0
        %5346 = vmatprep.subr.bf16.mxu0 0
        %5347 = vmatpush1.bf16.msra.mxu0 %v5341
        %5348 = vmatprep.subr.bf16.mxu0 0
        %5349 = vmatpush1.bf16.msra.mxu0 0
        %5350 = vmatprep.subr.bf16.mxu0 0
        %5351 = vmatpush1.bf16.msra.mxu0 0
        %5352 = vmatprep.subr.bf16.mxu0 0
        %5353 = vmatpush1.bf16.msra.mxu0 0
        %5354 = vmatprep.subr.bf16.mxu0 0
        %5355 = vmatpush1.bf16.msra.mxu0 0
        %5356 = vmatprep.subr.bf16.mxu0 0
        %5357 = vmatpush1.bf16.msra.mxu0 0
        %5358 = vmatprep.subr.bf16.mxu0 0
        %5359 = vmatpush1.bf16.msra.mxu0 0
        %5360 = vmatprep.subr.bf16.mxu0 0
        %5361 = vmatpush1.bf16.msra.mxu0 0
        %5362 = vmatprep.subr.bf16.mxu0 0
        %5363 = vmatpush1.bf16.msra.mxu0 0
        %5364 = vmatprep.subr.bf16.mxu0 0
        %5365 = vmatpush1.bf16.msra.mxu0 0
        %5366 = vmatprep.subr.bf16.mxu0 0
        %5367 = vmatpush1.bf16.msra.mxu0 0
        %5368 = vmatprep.subr.bf16.mxu0 0
        %5369 = vmatpush1.bf16.msra.mxu0 0
        %5370 = vmatprep.subr.bf16.mxu0 0
        %5371 = vmatpush1.bf16.msra.mxu0 0
        %5372 = vmatprep.subr.bf16.mxu0 0
        %5373 = vmatpush1.bf16.msra.mxu0 0
        %5374 = vmatprep.subr.bf16.mxu0 0
        %5375 = vmatpush1.bf16.msra.mxu0 0
        %5376 = vmatprep.subr.bf16.mxu0 0
        %5377 = vmatpush1.bf16.msra.mxu0 0
        %5378 = vmatprep.mubr.bf16.mxu0 0
        %5379 = vmatmul.mubr.bf16.gmra.mrb[0].mxu0 %v5344
        %v5380 = vpop.f32.mrb[0].mxu0
        %v5381 = vadd.f32 0.0, %v5380
        %v5382 = vpop.f32.mrb[0].mxu0
        %v5383 = vpop.f32.mrb[0].mxu0
        %v5384 = vadd.f32 0.0, %v5383
        %v5385 = vpop.f32.mrb[0].mxu0
        %5386 = vdwg.mxu0
        %5387 = vrot.lane.b32.xlu0 %v1432, 32
        %v5388 = vpop.permute.xlu0 %5387
        %v5391 = vsel %vm1844, %v5333, 0
        %5393 = vmatprep.subr.bf16.mxu0 0
        %5394 = vmatpush1.bf16.msra.mxu0 %v5388
        %5395 = vmatprep.subr.bf16.mxu0 0
        %5396 = vmatpush1.bf16.msra.mxu0 0
        %5397 = vmatprep.subr.bf16.mxu0 0
        %5398 = vmatpush1.bf16.msra.mxu0 0
        %5399 = vmatprep.subr.bf16.mxu0 0
        %5400 = vmatpush1.bf16.msra.mxu0 0
        %5401 = vmatprep.subr.bf16.mxu0 0
        %5402 = vmatpush1.bf16.msra.mxu0 0
        %5403 = vmatprep.subr.bf16.mxu0 0
        %5404 = vmatpush1.bf16.msra.mxu0 0
        %5405 = vmatprep.subr.bf16.mxu0 0
        %5406 = vmatpush1.bf16.msra.mxu0 0
        %5407 = vmatprep.subr.bf16.mxu0 0
        %5408 = vmatpush1.bf16.msra.mxu0 0
        %5409 = vmatprep.subr.bf16.mxu0 0
        %5410 = vmatpush1.bf16.msra.mxu0 0
        %5411 = vmatprep.subr.bf16.mxu0 0
        %5412 = vmatpush1.bf16.msra.mxu0 0
        %5413 = vmatprep.subr.bf16.mxu0 0
        %5414 = vmatpush1.bf16.msra.mxu0 0
        %5415 = vmatprep.subr.bf16.mxu0 0
        %5416 = vmatpush1.bf16.msra.mxu0 0
        %5417 = vmatprep.subr.bf16.mxu0 0
        %5418 = vmatpush1.bf16.msra.mxu0 0
        %5419 = vmatprep.subr.bf16.mxu0 0
        %5420 = vmatpush1.bf16.msra.mxu0 0
        %5421 = vmatprep.subr.bf16.mxu0 0
        %5422 = vmatpush1.bf16.msra.mxu0 0
        %5423 = vmatprep.subr.bf16.mxu0 0
        %5424 = vmatpush1.bf16.msra.mxu0 0
        %5425 = vmatprep.mubr.bf16.mxu0 0
        %5426 = vmatmul.mubr.bf16.gmra.mrb[0].mxu0 %v5391
        %v5427 = vpop.f32.mrb[0].mxu0
        %v5428 = vadd.f32 0.0, %v5427
        %v5429 = vpop.f32.mrb[0].mxu0
        %v5430 = vpop.f32.mrb[0].mxu0
        %v5431 = vadd.f32 0.0, %v5430
        %v5432 = vpop.f32.mrb[0].mxu0
        %5433 = vdwg.mxu0
        %5434 = vrot.lane.b32.xlu0 %v1435, 32
        %v5435 = vpop.permute.xlu0 %5434
        %v5438 = vsel %vm1844, %v5334, 0
        %5440 = vmatprep.subr.bf16.mxu0 0
        %5441 = vmatpush1.bf16.msra.mxu0 %v5435
        %5442 = vmatprep.subr.bf16.mxu0 0
        %5443 = vmatpush1.bf16.msra.mxu0 0
        %5444 = vmatprep.subr.bf16.mxu0 0
        %5445 = vmatpush1.bf16.msra.mxu0 0
        %5446 = vmatprep.subr.bf16.mxu0 0
        %5447 = vmatpush1.bf16.msra.mxu0 0
        %5448 = vmatprep.subr.bf16.mxu0 0
        %5449 = vmatpush1.bf16.msra.mxu0 0
        %5450 = vmatprep.subr.bf16.mxu0 0
        %5451 = vmatpush1.bf16.msra.mxu0 0
        %5452 = vmatprep.subr.bf16.mxu0 0
        %5453 = vmatpush1.bf16.msra.mxu0 0
        %5454 = vmatprep.subr.bf16.mxu0 0
        %5455 = vmatpush1.bf16.msra.mxu0 0
        %5456 = vmatprep.subr.bf16.mxu0 0
        %5457 = vmatpush1.bf16.msra.mxu0 0
        %5458 = vmatprep.subr.bf16.mxu0 0
        %5459 = vmatpush1.bf16.msra.mxu0 0
        %5460 = vmatprep.subr.bf16.mxu0 0
        %5461 = vmatpush1.bf16.msra.mxu0 0
        %5462 = vmatprep.subr.bf16.mxu0 0
        %5463 = vmatpush1.bf16.msra.mxu0 0
        %5464 = vmatprep.subr.bf16.mxu0 0
        %5465 = vmatpush1.bf16.msra.mxu0 0
        %5466 = vmatprep.subr.bf16.mxu0 0
        %5467 = vmatpush1.bf16.msra.mxu0 0
        %5468 = vmatprep.subr.bf16.mxu0 0
        %5469 = vmatpush1.bf16.msra.mxu0 0
        %5470 = vmatprep.subr.bf16.mxu0 0
        %5471 = vmatpush1.bf16.msra.mxu0 0
        %5472 = vmatprep.mubr.bf16.mxu0 0
        %5473 = vmatmul.mubr.bf16.gmra.mrb[0].mxu0 %v5438
        %v5474 = vpop.f32.mrb[0].mxu0
        %v5475 = vadd.f32 0.0, %v5474
        %v5476 = vpop.f32.mrb[0].mxu0
        %v5477 = vpop.f32.mrb[0].mxu0
        %v5478 = vadd.f32 0.0, %v5477
        %v5479 = vpop.f32.mrb[0].mxu0
        %5480 = vdwg.mxu0
        %5481 = vrot.lane.b32.xlu0 %v1438, 32
        %v5482 = vpop.permute.xlu0 %5481
        %v5485 = vsel %vm1844, %v5335, 0
        %5487 = vmatprep.subr.bf16.mxu0 0
        %5488 = vmatpush1.bf16.msra.mxu0 %v5482
        %5489 = vmatprep.subr.bf16.mxu0 0
        %5490 = vmatpush1.bf16.msra.mxu0 0
        %5491 = vmatprep.subr.bf16.mxu0 0
        %5492 = vmatpush1.bf16.msra.mxu0 0
        %5493 = vmatprep.subr.bf16.mxu0 0
        %5494 = vmatpush1.bf16.msra.mxu0 0
        %5495 = vmatprep.subr.bf16.mxu0 0
        %5496 = vmatpush1.bf16.msra.mxu0 0
        %5497 = vmatprep.subr.bf16.mxu0 0
        %5498 = vmatpush1.bf16.msra.mxu0 0
        %5499 = vmatprep.subr.bf16.mxu0 0
        %5500 = vmatpush1.bf16.msra.mxu0 0
        %5501 = vmatprep.subr.bf16.mxu0 0
        %5502 = vmatpush1.bf16.msra.mxu0 0
        %5503 = vmatprep.subr.bf16.mxu0 0
        %5504 = vmatpush1.bf16.msra.mxu0 0
        %5505 = vmatprep.subr.bf16.mxu0 0
        %5506 = vmatpush1.bf16.msra.mxu0 0
        %5507 = vmatprep.subr.bf16.mxu0 0
        %5508 = vmatpush1.bf16.msra.mxu0 0
        %5509 = vmatprep.subr.bf16.mxu0 0
        %5510 = vmatpush1.bf16.msra.mxu0 0
        %5511 = vmatprep.subr.bf16.mxu0 0
        %5512 = vmatpush1.bf16.msra.mxu0 0
        %5513 = vmatprep.subr.bf16.mxu0 0
        %5514 = vmatpush1.bf16.msra.mxu0 0
        %5515 = vmatprep.subr.bf16.mxu0 0
        %5516 = vmatpush1.bf16.msra.mxu0 0
        %5517 = vmatprep.subr.bf16.mxu0 0
        %5518 = vmatpush1.bf16.msra.mxu0 0
        %5519 = vmatprep.mubr.bf16.mxu0 0
        %5520 = vmatmul.mubr.bf16.gmra.mrb[0].mxu0 %v5485
        %v5521 = vpop.f32.mrb[0].mxu0
        %v5522 = vadd.f32 0.0, %v5521
        %v5523 = vpop.f32.mrb[0].mxu0
        %v5524 = vpop.f32.mrb[0].mxu0
        %v5525 = vadd.f32 0.0, %v5524
        %v5526 = vpop.f32.mrb[0].mxu0
        %5527 = vdwg.mxu0
        %5528 = vrot.lane.b32.xlu0 %v1441, 32
        %v5529 = vpop.permute.xlu0 %5528
        %v5532 = vsel %vm1844, %v5336, 0
        %5534 = vmatprep.subr.bf16.mxu0 0
        %5535 = vmatpush1.bf16.msra.mxu0 %v5529
        %5536 = vmatprep.subr.bf16.mxu0 0
        %5537 = vmatpush1.bf16.msra.mxu0 0
        %5538 = vmatprep.subr.bf16.mxu0 0
        %5539 = vmatpush1.bf16.msra.mxu0 0
        %5540 = vmatprep.subr.bf16.mxu0 0
        %5541 = vmatpush1.bf16.msra.mxu0 0
        %5542 = vmatprep.subr.bf16.mxu0 0
        %5543 = vmatpush1.bf16.msra.mxu0 0
        %5544 = vmatprep.subr.bf16.mxu0 0
        %5545 = vmatpush1.bf16.msra.mxu0 0
        %5546 = vmatprep.subr.bf16.mxu0 0
        %5547 = vmatpush1.bf16.msra.mxu0 0
        %5548 = vmatprep.subr.bf16.mxu0 0
        %5549 = vmatpush1.bf16.msra.mxu0 0
        %5550 = vmatprep.subr.bf16.mxu0 0
        %5551 = vmatpush1.bf16.msra.mxu0 0
        %5552 = vmatprep.subr.bf16.mxu0 0
        %5553 = vmatpush1.bf16.msra.mxu0 0
        %5554 = vmatprep.subr.bf16.mxu0 0
        %5555 = vmatpush1.bf16.msra.mxu0 0
        %5556 = vmatprep.subr.bf16.mxu0 0
        %5557 = vmatpush1.bf16.msra.mxu0 0
        %5558 = vmatprep.subr.bf16.mxu0 0
        %5559 = vmatpush1.bf16.msra.mxu0 0
        %5560 = vmatprep.subr.bf16.mxu0 0
        %5561 = vmatpush1.bf16.msra.mxu0 0
        %5562 = vmatprep.subr.bf16.mxu0 0
        %5563 = vmatpush1.bf16.msra.mxu0 0
        %5564 = vmatprep.subr.bf16.mxu0 0
        %5565 = vmatpush1.bf16.msra.mxu0 0
        %5566 = vmatprep.mubr.bf16.mxu0 0
        %5567 = vmatmul.mubr.bf16.gmra.mrb[0].mxu0 %v5532
        %v5568 = vpop.f32.mrb[0].mxu0
        %v5569 = vadd.f32 0.0, %v5568
        %v5570 = vpop.f32.mrb[0].mxu0
        %v5571 = vpop.f32.mrb[0].mxu0
        %v5572 = vadd.f32 0.0, %v5571
        %v5573 = vpop.f32.mrb[0].mxu0
        %5574 = vdwg.mxu0
        %5575 = vrot.lane.b32.xlu0 %v1444, 32
        %v5576 = vpop.permute.xlu0 %5575
        %v5579 = vsel %vm1844, %v5337, 0
        %5581 = vmatprep.subr.bf16.mxu0 0
        %5582 = vmatpush1.bf16.msra.mxu0 %v5576
        %5583 = vmatprep.subr.bf16.mxu0 0
        %5584 = vmatpush1.bf16.msra.mxu0 0
        %5585 = vmatprep.subr.bf16.mxu0 0
        %5586 = vmatpush1.bf16.msra.mxu0 0
        %5587 = vmatprep.subr.bf16.mxu0 0
        %5588 = vmatpush1.bf16.msra.mxu0 0
        %5589 = vmatprep.subr.bf16.mxu0 0
        %5590 = vmatpush1.bf16.msra.mxu0 0
        %5591 = vmatprep.subr.bf16.mxu0 0
        %5592 = vmatpush1.bf16.msra.mxu0 0
        %5593 = vmatprep.subr.bf16.mxu0 0
        %5594 = vmatpush1.bf16.msra.mxu0 0
        %5595 = vmatprep.subr.bf16.mxu0 0
        %5596 = vmatpush1.bf16.msra.mxu0 0
        %5597 = vmatprep.subr.bf16.mxu0 0
        %5598 = vmatpush1.bf16.msra.mxu0 0
        %5599 = vmatprep.subr.bf16.mxu0 0
        %5600 = vmatpush1.bf16.msra.mxu0 0
        %5601 = vmatprep.subr.bf16.mxu0 0
        %5602 = vmatpush1.bf16.msra.mxu0 0
        %5603 = vmatprep.subr.bf16.mxu0 0
        %5604 = vmatpush1.bf16.msra.mxu0 0
        %5605 = vmatprep.subr.bf16.mxu0 0
        %5606 = vmatpush1.bf16.msra.mxu0 0
        %5607 = vmatprep.subr.bf16.mxu0 0
        %5608 = vmatpush1.bf16.msra.mxu0 0
        %5609 = vmatprep.subr.bf16.mxu0 0
        %5610 = vmatpush1.bf16.msra.mxu0 0
        %5611 = vmatprep.subr.bf16.mxu0 0
        %5612 = vmatpush1.bf16.msra.mxu0 0
        %5613 = vmatprep.mubr.bf16.mxu0 0
        %5614 = vmatmul.mubr.bf16.gmra.mrb[0].mxu0 %v5579
        %v5615 = vpop.f32.mrb[0].mxu0
        %v5616 = vadd.f32 0.0, %v5615
        %v5617 = vpop.f32.mrb[0].mxu0
        %v5618 = vpop.f32.mrb[0].mxu0
        %v5619 = vadd.f32 0.0, %v5618
        %v5620 = vpop.f32.mrb[0].mxu0
        %5621 = vdwg.mxu0
        %5622 = vrot.lane.b32.xlu0 %v1447, 32
        %v5623 = vpop.permute.xlu0 %5622
        %v5626 = vsel %vm1844, %v5338, 0
        %5628 = vmatprep.subr.bf16.mxu0 0
        %5629 = vmatpush1.bf16.msra.mxu0 %v5623
        %5630 = vmatprep.subr.bf16.mxu0 0
        %5631 = vmatpush1.bf16.msra.mxu0 0
        %5632 = vmatprep.subr.bf16.mxu0 0
        %5633 = vmatpush1.bf16.msra.mxu0 0
        %5634 = vmatprep.subr.bf16.mxu0 0
        %5635 = vmatpush1.bf16.msra.mxu0 0
        %5636 = vmatprep.subr.bf16.mxu0 0
        %5637 = vmatpush1.bf16.msra.mxu0 0
        %5638 = vmatprep.subr.bf16.mxu0 0
        %5639 = vmatpush1.bf16.msra.mxu0 0
        %5640 = vmatprep.subr.bf16.mxu0 0
        %5641 = vmatpush1.bf16.msra.mxu0 0
        %5642 = vmatprep.subr.bf16.mxu0 0
        %5643 = vmatpush1.bf16.msra.mxu0 0
        %5644 = vmatprep.subr.bf16.mxu0 0
        %5645 = vmatpush1.bf16.msra.mxu0 0
        %5646 = vmatprep.subr.bf16.mxu0 0
        %5647 = vmatpush1.bf16.msra.mxu0 0
        %5648 = vmatprep.subr.bf16.mxu0 0
        %5649 = vmatpush1.bf16.msra.mxu0 0
        %5650 = vmatprep.subr.bf16.mxu0 0
        %5651 = vmatpush1.bf16.msra.mxu0 0
        %5652 = vmatprep.subr.bf16.mxu0 0
        %5653 = vmatpush1.bf16.msra.mxu0 0
        %5654 = vmatprep.subr.bf16.mxu0 0
        %5655 = vmatpush1.bf16.msra.mxu0 0
        %5656 = vmatprep.subr.bf16.mxu0 0
        %5657 = vmatpush1.bf16.msra.mxu0 0
        %5658 = vmatprep.subr.bf16.mxu0 0
        %5659 = vmatpush1.bf16.msra.mxu0 0
        %5660 = vmatprep.mubr.bf16.mxu0 0
        %5661 = vmatmul.mubr.bf16.gmra.mrb[0].mxu0 %v5626
        %v5662 = vpop.f32.mrb[0].mxu0
        %v5663 = vadd.f32 0.0, %v5662
        %v5664 = vpop.f32.mrb[0].mxu0
        %v5665 = vpop.f32.mrb[0].mxu0
        %v5666 = vadd.f32 0.0, %v5665
        %v5667 = vpop.f32.mrb[0].mxu0
        %5668 = vdwg.mxu0
        %5669 = vrot.lane.b32.xlu0 %v1450, 32
        %v5670 = vpop.permute.xlu0 %5669
        %v5673 = vsel %vm1844, %v5339, 0
        %5675 = vmatprep.subr.bf16.mxu0 0
        %5676 = vmatpush1.bf16.msra.mxu0 %v5670
        %5677 = vmatprep.subr.bf16.mxu0 0
        %5678 = vmatpush1.bf16.msra.mxu0 0
        %5679 = vmatprep.subr.bf16.mxu0 0
        %5680 = vmatpush1.bf16.msra.mxu0 0
        %5681 = vmatprep.subr.bf16.mxu0 0
        %5682 = vmatpush1.bf16.msra.mxu0 0
        %5683 = vmatprep.subr.bf16.mxu0 0
        %5684 = vmatpush1.bf16.msra.mxu0 0
        %5685 = vmatprep.subr.bf16.mxu0 0
        %5686 = vmatpush1.bf16.msra.mxu0 0
        %5687 = vmatprep.subr.bf16.mxu0 0
        %5688 = vmatpush1.bf16.msra.mxu0 0
        %5689 = vmatprep.subr.bf16.mxu0 0
        %5690 = vmatpush1.bf16.msra.mxu0 0
        %5691 = vmatprep.subr.bf16.mxu0 0
        %5692 = vmatpush1.bf16.msra.mxu0 0
        %5693 = vmatprep.subr.bf16.mxu0 0
        %5694 = vmatpush1.bf16.msra.mxu0 0
        %5695 = vmatprep.subr.bf16.mxu0 0
        %5696 = vmatpush1.bf16.msra.mxu0 0
        %5697 = vmatprep.subr.bf16.mxu0 0
        %5698 = vmatpush1.bf16.msra.mxu0 0
        %5699 = vmatprep.subr.bf16.mxu0 0
        %5700 = vmatpush1.bf16.msra.mxu0 0
        %5701 = vmatprep.subr.bf16.mxu0 0
        %5702 = vmatpush1.bf16.msra.mxu0 0
        %5703 = vmatprep.subr.bf16.mxu0 0
        %5704 = vmatpush1.bf16.msra.mxu0 0
        %5705 = vmatprep.subr.bf16.mxu0 0
        %5706 = vmatpush1.bf16.msra.mxu0 0
        %5707 = vmatprep.mubr.bf16.mxu0 0
        %5708 = vmatmul.mubr.bf16.gmra.mrb[0].mxu0 %v5673
        %v5709 = vpop.f32.mrb[0].mxu0
        %v5710 = vadd.f32 0.0, %v5709
        %v5711 = vpop.f32.mrb[0].mxu0
        %v5712 = vpop.f32.mrb[0].mxu0
        %v5713 = vadd.f32 0.0, %v5712
        %v5714 = vpop.f32.mrb[0].mxu0
        %5715 = vdwg.mxu0
        %v5716 = vrcp.pop %v5286
        %v5717 = vrcp.pop %v5289
        %v5718 = vrcp.pop %v5292
        %v5719 = vrcp.pop %v5295
        %v5720 = vrcp.pop %v5298
        %v5721 = vrcp.pop %v5301
        %v5722 = vrcp.pop %v5304
        %v5723 = vrcp.pop %v5307
        %v5724 = vrcp.pop %v5310
        %v5725 = vrcp.pop %v5313
        %v5726 = vrcp.pop %v5316
        %v5727 = vrcp.pop %v5319
        %v5728 = vrcp.pop %v5322
        %v5729 = vrcp.pop %v5325
        %v5730 = vrcp.pop %v5328
        %v5731 = vrcp.pop %v5331
        %v5732 = vmul.f32 %v5381, %v5716
        %v5733 = vmul.f32 %v5384, %v5717
        %v5734 = vmul.f32 %v5428, %v5718
        %v5735 = vmul.f32 %v5431, %v5719
        %v5736 = vmul.f32 %v5475, %v5720
        %v5737 = vmul.f32 %v5478, %v5721
        %v5738 = vmul.f32 %v5522, %v5722
        %v5739 = vmul.f32 %v5525, %v5723
        %v5740 = vmul.f32 %v5569, %v5724
        %v5741 = vmul.f32 %v5572, %v5725
        %v5742 = vmul.f32 %v5616, %v5726
        %v5743 = vmul.f32 %v5619, %v5727
        %v5744 = vmul.f32 %v5663, %v5728
        %v5745 = vmul.f32 %v5666, %v5729
        %v5746 = vmul.f32 %v5710, %v5730
        %v5747 = vmul.f32 %v5713, %v5731
        %v5748 = vpack.c.bf16 %v5733, %v5732
        %v5749 = vpack.c.bf16 %v5735, %v5734
        %v5750 = vpack.c.bf16 %v5737, %v5736
        %v5751 = vpack.c.bf16 %v5739, %v5738
        %v5752 = vpack.c.bf16 %v5741, %v5740
        %v5753 = vpack.c.bf16 %v5743, %v5742
        %v5754 = vpack.c.bf16 %v5745, %v5744
        %v5755 = vpack.c.bf16 %v5747, %v5746
        %v5760 = vunpack.c.l.b16 %v1463
        %v5761 = vunpack.c.l.b16 %v1464
        %v5762 = vunpack.c.l.b16 %v1465
        %v5763 = vunpack.c.l.b16 %v1466
        %v5764 = vpack.c.b16 %v5761, %v5760
        %v5765 = vpack.c.b16 %v5763, %v5762
        %v5769 = vsel %vm1467, %v5748, 0
        %v5772 = vsel %vm1467, %v5749, 0
        %v5775 = vsel %vm1467, %v5750, 0
        %v5778 = vsel %vm1467, %v5751, 0
        %v5781 = vsel %vm1467, %v5752, 0
        %v5784 = vsel %vm1467, %v5753, 0
        %v5787 = vsel %vm1467, %v5754, 0
        %v5790 = vsel %vm1467, %v5755, 0
        %5792 = vmatprep.subr.bf16.mxu0 0
        %5793 = vmatpush1.bf16.msra.mxu0 %v5764
        %5794 = vmatprep.subr.bf16.mxu0 0
        %5795 = vmatpush1.bf16.msra.mxu0 %v5765
        %5796 = vmatprep.subr.bf16.mxu0 0
        %5797 = vmatpush1.bf16.msra.mxu0 0
        %5798 = vmatprep.subr.bf16.mxu0 0
        %5799 = vmatpush1.bf16.msra.mxu0 0
        %5800 = vmatprep.subr.bf16.mxu0 0
        %5801 = vmatpush1.bf16.msra.mxu0 0
        %5802 = vmatprep.subr.bf16.mxu0 0
        %5803 = vmatpush1.bf16.msra.mxu0 0
        %5804 = vmatprep.subr.bf16.mxu0 0
        %5805 = vmatpush1.bf16.msra.mxu0 0
        %5806 = vmatprep.subr.bf16.mxu0 0
        %5807 = vmatpush1.bf16.msra.mxu0 0
        %5808 = vmatprep.subr.bf16.mxu0 0
        %5809 = vmatpush1.bf16.msra.mxu0 0
        %5810 = vmatprep.subr.bf16.mxu0 0
        %5811 = vmatpush1.bf16.msra.mxu0 0
        %5812 = vmatprep.subr.bf16.mxu0 0
        %5813 = vmatpush1.bf16.msra.mxu0 0
        %5814 = vmatprep.subr.bf16.mxu0 0
        %5815 = vmatpush1.bf16.msra.mxu0 0
        %5816 = vmatprep.subr.bf16.mxu0 0
        %5817 = vmatpush1.bf16.msra.mxu0 0
        %5818 = vmatprep.subr.bf16.mxu0 0
        %5819 = vmatpush1.bf16.msra.mxu0 0
        %5820 = vmatprep.subr.bf16.mxu0 0
        %5821 = vmatpush1.bf16.msra.mxu0 0
        %5822 = vmatprep.subr.bf16.mxu0 0
        %5823 = vmatpush1.bf16.msra.mxu0 0
        %5824 = vmatprep.mubr.bf16.mxu0 0
        %5825 = vmatmul.mubr.bf16.gmra.mrb[0].mxu0 %v5769
        %v5826 = vpop.f32.mrb[0].mxu0
        %v5827 = vadd.f32 0.0, %v5826
        %v5828 = vpop.f32.mrb[0].mxu0
        %v5829 = vpop.f32.mrb[0].mxu0
        %v5830 = vadd.f32 0.0, %v5829
        %v5831 = vpop.f32.mrb[0].mxu0
        %5832 = vmatprep.mubr.bf16.mxu0 0
        %5833 = vmatmul.mubr.bf16.gmra.mrb[0].mxu0 %v5772
        %v5834 = vpop.f32.mrb[0].mxu0
        %v5835 = vadd.f32 0.0, %v5834
        %v5836 = vpop.f32.mrb[0].mxu0
        %v5837 = vpop.f32.mrb[0].mxu0
        %v5838 = vadd.f32 0.0, %v5837
        %v5839 = vpop.f32.mrb[0].mxu0
        %5840 = vmatprep.mubr.bf16.mxu0 0
        %5841 = vmatmul.mubr.bf16.gmra.mrb[0].mxu0 %v5775
        %v5842 = vpop.f32.mrb[0].mxu0
        %v5843 = vadd.f32 0.0, %v5842
        %v5844 = vpop.f32.mrb[0].mxu0
        %v5845 = vpop.f32.mrb[0].mxu0
        %v5846 = vadd.f32 0.0, %v5845
        %v5847 = vpop.f32.mrb[0].mxu0
        %5848 = vmatprep.mubr.bf16.mxu0 0
        %5849 = vmatmul.mubr.bf16.gmra.mrb[0].mxu0 %v5778
        %v5850 = vpop.f32.mrb[0].mxu0
        %v5851 = vadd.f32 0.0, %v5850
        %v5852 = vpop.f32.mrb[0].mxu0
        %v5853 = vpop.f32.mrb[0].mxu0
        %v5854 = vadd.f32 0.0, %v5853
        %v5855 = vpop.f32.mrb[0].mxu0
        %5856 = vmatprep.mubr.bf16.mxu0 0
        %5857 = vmatmul.mubr.bf16.gmra.mrb[0].mxu0 %v5781
        %v5858 = vpop.f32.mrb[0].mxu0
        %v5859 = vadd.f32 0.0, %v5858
        %v5860 = vpop.f32.mrb[0].mxu0
        %v5861 = vpop.f32.mrb[0].mxu0
        %v5862 = vadd.f32 0.0, %v5861
        %v5863 = vpop.f32.mrb[0].mxu0
        %5864 = vmatprep.mubr.bf16.mxu0 0
        %5865 = vmatmul.mubr.bf16.gmra.mrb[0].mxu0 %v5784
        %v5866 = vpop.f32.mrb[0].mxu0
        %v5867 = vadd.f32 0.0, %v5866
        %v5868 = vpop.f32.mrb[0].mxu0
        %v5869 = vpop.f32.mrb[0].mxu0
        %v5870 = vadd.f32 0.0, %v5869
        %v5871 = vpop.f32.mrb[0].mxu0
        %5872 = vmatprep.mubr.bf16.mxu0 0
        %5873 = vmatmul.mubr.bf16.gmra.mrb[0].mxu0 %v5787
        %v5874 = vpop.f32.mrb[0].mxu0
        %v5875 = vadd.f32 0.0, %v5874
        %v5876 = vpop.f32.mrb[0].mxu0
        %v5877 = vpop.f32.mrb[0].mxu0
        %v5878 = vadd.f32 0.0, %v5877
        %v5879 = vpop.f32.mrb[0].mxu0
        %5880 = vmatprep.mubr.bf16.mxu0 0
        %5881 = vmatmul.mubr.bf16.gmra.mrb[0].mxu0 %v5790
        %v5882 = vpop.f32.mrb[0].mxu0
        %v5883 = vadd.f32 0.0, %v5882
        %v5884 = vpop.f32.mrb[0].mxu0
        %v5885 = vpop.f32.mrb[0].mxu0
        %v5886 = vadd.f32 0.0, %v5885
        %v5887 = vpop.f32.mrb[0].mxu0
        %5888 = vdwg.mxu0
        %v5889 = vadd.f32 %v4764, %v5827
        %v5890 = vadd.f32 %v4765, %v5830
        %v5891 = vadd.f32 %v4766, %v5835
        %v5892 = vadd.f32 %v4767, %v5838
        %v5893 = vadd.f32 %v4768, %v5843
        %v5894 = vadd.f32 %v4769, %v5846
        %v5895 = vadd.f32 %v4770, %v5851
        %v5896 = vadd.f32 %v4771, %v5854
        %v5897 = vadd.f32 %v4772, %v5859
        %v5898 = vadd.f32 %v4773, %v5862
        %v5899 = vadd.f32 %v4774, %v5867
        %v5900 = vadd.f32 %v4775, %v5870
        %v5901 = vadd.f32 %v4776, %v5875
        %v5902 = vadd.f32 %v4777, %v5878
        %v5903 = vadd.f32 %v4778, %v5883
        %v5904 = vadd.f32 %v4779, %v5886
        %v5905 = vadd.f32 %v778, %v5889
        %v5906 = vadd.f32 %v779, %v5890
        %v5907 = vadd.f32 %v780, %v5891
        %v5908 = vadd.f32 %v781, %v5892
        %v5909 = vadd.f32 %v782, %v5893
        %v5910 = vadd.f32 %v783, %v5894
        %v5911 = vadd.f32 %v784, %v5895
        %v5912 = vadd.f32 %v785, %v5896
        %v5913 = vadd.f32 %v786, %v5897
        %v5914 = vadd.f32 %v787, %v5898
        %v5915 = vadd.f32 %v788, %v5899
        %v5916 = vadd.f32 %v789, %v5900
        %v5917 = vadd.f32 %v790, %v5901
        %v5918 = vadd.f32 %v791, %v5902
        %v5919 = vadd.f32 %v792, %v5903
        %v5920 = vadd.f32 %v793, %v5904
        %v5921 = vld [vmem:[%s723] sm:$0x1]
        %v5923 = vlaneseq
        %v5924 = vshrl.u32 %v5923, 7
        %v5925 = vsub.s32 0, %v5924
        %v5926 = vrot.slane %v5921, %v5925
        %v5928 = vadd.f32 %v5905, %v5926
        %v5929 = vadd.f32 %v5906, %v5926
        %v5930 = vadd.f32 %v5907, %v5926
        %v5931 = vadd.f32 %v5908, %v5926
        %v5932 = vadd.f32 %v5909, %v5926
        %v5933 = vadd.f32 %v5910, %v5926
        %v5934 = vadd.f32 %v5911, %v5926
        %v5935 = vadd.f32 %v5912, %v5926
        %v5936 = vadd.f32 %v5913, %v5926
        %v5937 = vadd.f32 %v5914, %v5926
        %v5938 = vadd.f32 %v5915, %v5926
        %v5939 = vadd.f32 %v5916, %v5926
        %v5940 = vadd.f32 %v5917, %v5926
        %v5941 = vadd.f32 %v5918, %v5926
        %v5942 = vadd.f32 %v5919, %v5926
        %v5943 = vadd.f32 %v5920, %v5926
        %v5944 = vld [vmem:[%s726] sm:$0x1]
        %v5945 = vld [vmem:[%s729] sm:$0x1]
        %5946 = vadd.xlane.f32.xlu0 %v5928
        %v5947 = vpop.xlane.xlu0 %5946
        %5948 = vadd.xlane.f32.xlu0 %v5929
        %v5949 = vpop.xlane.xlu0 %5948
        %5950 = vadd.xlane.f32.xlu0 %v5930
        %v5951 = vpop.xlane.xlu0 %5950
        %5952 = vadd.xlane.f32.xlu0 %v5931
        %v5953 = vpop.xlane.xlu0 %5952
        %5954 = vadd.xlane.f32.xlu0 %v5932
        %v5955 = vpop.xlane.xlu0 %5954
        %5956 = vadd.xlane.f32.xlu0 %v5933
        %v5957 = vpop.xlane.xlu0 %5956
        %5958 = vadd.xlane.f32.xlu0 %v5934
        %v5959 = vpop.xlane.xlu0 %5958
        %5960 = vadd.xlane.f32.xlu0 %v5935
        %v5961 = vpop.xlane.xlu0 %5960
        %5962 = vadd.xlane.f32.xlu0 %v5936
        %v5963 = vpop.xlane.xlu0 %5962
        %5964 = vadd.xlane.f32.xlu0 %v5937
        %v5965 = vpop.xlane.xlu0 %5964
        %5966 = vadd.xlane.f32.xlu0 %v5938
        %v5967 = vpop.xlane.xlu0 %5966
        %5968 = vadd.xlane.f32.xlu0 %v5939
        %v5969 = vpop.xlane.xlu0 %5968
        %5970 = vadd.xlane.f32.xlu0 %v5940
        %v5971 = vpop.xlane.xlu0 %5970
        %5972 = vadd.xlane.f32.xlu0 %v5941
        %v5973 = vpop.xlane.xlu0 %5972
        %5974 = vadd.xlane.f32.xlu0 %v5942
        %v5975 = vpop.xlane.xlu0 %5974
        %5976 = vadd.xlane.f32.xlu0 %v5943
        %v5977 = vpop.xlane.xlu0 %5976
        %v5978 = vmul.f32 %v5947, %v828
        %v5979 = vmul.f32 %v5949, %v828
        %v5980 = vmul.f32 %v5951, %v828
        %v5981 = vmul.f32 %v5953, %v828
        %v5982 = vmul.f32 %v5955, %v828
        %v5983 = vmul.f32 %v5957, %v828
        %v5984 = vmul.f32 %v5959, %v828
        %v5985 = vmul.f32 %v5961, %v828
        %v5986 = vmul.f32 %v5963, %v828
        %v5987 = vmul.f32 %v5965, %v828
        %v5988 = vmul.f32 %v5967, %v828
        %v5989 = vmul.f32 %v5969, %v828
        %v5990 = vmul.f32 %v5971, %v828
        %v5991 = vmul.f32 %v5973, %v828
        %v5992 = vmul.f32 %v5975, %v828
        %v5993 = vmul.f32 %v5977, %v828
        %v5994 = vmul.f32 %v5928, %v5928
        %v5995 = vmul.f32 %v5929, %v5929
        %v5996 = vmul.f32 %v5930, %v5930
        %v5997 = vmul.f32 %v5931, %v5931
        %v5998 = vmul.f32 %v5932, %v5932
        %v5999 = vmul.f32 %v5933, %v5933
        %v6000 = vmul.f32 %v5934, %v5934
        %v6001 = vmul.f32 %v5935, %v5935
        %v6002 = vmul.f32 %v5936, %v5936
        %v6003 = vmul.f32 %v5937, %v5937
        %v6004 = vmul.f32 %v5938, %v5938
        %v6005 = vmul.f32 %v5939, %v5939
        %v6006 = vmul.f32 %v5940, %v5940
        %v6007 = vmul.f32 %v5941, %v5941
        %v6008 = vmul.f32 %v5942, %v5942
        %v6009 = vmul.f32 %v5943, %v5943
        %6010 = vadd.xlane.f32.xlu0 %v5994
        %v6011 = vpop.xlane.xlu0 %6010
        %6012 = vadd.xlane.f32.xlu0 %v5995
        %v6013 = vpop.xlane.xlu0 %6012
        %6014 = vadd.xlane.f32.xlu0 %v5996
        %v6015 = vpop.xlane.xlu0 %6014
        %6016 = vadd.xlane.f32.xlu0 %v5997
        %v6017 = vpop.xlane.xlu0 %6016
        %6018 = vadd.xlane.f32.xlu0 %v5998
        %v6019 = vpop.xlane.xlu0 %6018
        %6020 = vadd.xlane.f32.xlu0 %v5999
        %v6021 = vpop.xlane.xlu0 %6020
        %6022 = vadd.xlane.f32.xlu0 %v6000
        %v6023 = vpop.xlane.xlu0 %6022
        %6024 = vadd.xlane.f32.xlu0 %v6001
        %v6025 = vpop.xlane.xlu0 %6024
        %6026 = vadd.xlane.f32.xlu0 %v6002
        %v6027 = vpop.xlane.xlu0 %6026
        %6028 = vadd.xlane.f32.xlu0 %v6003
        %v6029 = vpop.xlane.xlu0 %6028
        %6030 = vadd.xlane.f32.xlu0 %v6004
        %v6031 = vpop.xlane.xlu0 %6030
        %6032 = vadd.xlane.f32.xlu0 %v6005
        %v6033 = vpop.xlane.xlu0 %6032
        %6034 = vadd.xlane.f32.xlu0 %v6006
        %v6035 = vpop.xlane.xlu0 %6034
        %6036 = vadd.xlane.f32.xlu0 %v6007
        %v6037 = vpop.xlane.xlu0 %6036
        %6038 = vadd.xlane.f32.xlu0 %v6008
        %v6039 = vpop.xlane.xlu0 %6038
        %6040 = vadd.xlane.f32.xlu0 %v6009
        %v6041 = vpop.xlane.xlu0 %6040
        %v6042 = vmul.f32 %v6011, %v828
        %v6043 = vmul.f32 %v6013, %v828
        %v6044 = vmul.f32 %v6015, %v828
        %v6045 = vmul.f32 %v6017, %v828
        %v6046 = vmul.f32 %v6019, %v828
        %v6047 = vmul.f32 %v6021, %v828
        %v6048 = vmul.f32 %v6023, %v828
        %v6049 = vmul.f32 %v6025, %v828
        %v6050 = vmul.f32 %v6027, %v828
        %v6051 = vmul.f32 %v6029, %v828
        %v6052 = vmul.f32 %v6031, %v828
        %v6053 = vmul.f32 %v6033, %v828
        %v6054 = vmul.f32 %v6035, %v828
        %v6055 = vmul.f32 %v6037, %v828
        %v6056 = vmul.f32 %v6039, %v828
        %v6057 = vmul.f32 %v6041, %v828
        %v6058 = vmul.f32 %v5978, %v5978
        %v6059 = vmul.f32 %v5979, %v5979
        %v6060 = vmul.f32 %v5980, %v5980
        %v6061 = vmul.f32 %v5981, %v5981
        %v6062 = vmul.f32 %v5982, %v5982
        %v6063 = vmul.f32 %v5983, %v5983
        %v6064 = vmul.f32 %v5984, %v5984
        %v6065 = vmul.f32 %v5985, %v5985
        %v6066 = vmul.f32 %v5986, %v5986
        %v6067 = vmul.f32 %v5987, %v5987
        %v6068 = vmul.f32 %v5988, %v5988
        %v6069 = vmul.f32 %v5989, %v5989
        %v6070 = vmul.f32 %v5990, %v5990
        %v6071 = vmul.f32 %v5991, %v5991
        %v6072 = vmul.f32 %v5992, %v5992
        %v6073 = vmul.f32 %v5993, %v5993
        %v6074 = vsub.f32 %v6042, %v6058
        %v6075 = vsub.f32 %v6043, %v6059
        %v6076 = vsub.f32 %v6044, %v6060
        %v6077 = vsub.f32 %v6045, %v6061
        %v6078 = vsub.f32 %v6046, %v6062
        %v6079 = vsub.f32 %v6047, %v6063
        %v6080 = vsub.f32 %v6048, %v6064
        %v6081 = vsub.f32 %v6049, %v6065
        %v6082 = vsub.f32 %v6050, %v6066
        %v6083 = vsub.f32 %v6051, %v6067
        %v6084 = vsub.f32 %v6052, %v6068
        %v6085 = vsub.f32 %v6053, %v6069
        %v6086 = vsub.f32 %v6054, %v6070
        %v6087 = vsub.f32 %v6055, %v6071
        %v6088 = vsub.f32 %v6056, %v6072
        %v6089 = vsub.f32 %v6057, %v6073
        %v6090 = vadd.f32 %v6074, 1e-05
        %v6091 = vadd.f32 %v6075, 1e-05
        %v6092 = vadd.f32 %v6076, 1e-05
        %v6093 = vadd.f32 %v6077, 1e-05
        %v6094 = vadd.f32 %v6078, 1e-05
        %v6095 = vadd.f32 %v6079, 1e-05
        %v6096 = vadd.f32 %v6080, 1e-05
        %v6097 = vadd.f32 %v6081, 1e-05
        %v6098 = vadd.f32 %v6082, 1e-05
        %v6099 = vadd.f32 %v6083, 1e-05
        %v6100 = vadd.f32 %v6084, 1e-05
        %v6101 = vadd.f32 %v6085, 1e-05
        %v6102 = vadd.f32 %v6086, 1e-05
        %v6103 = vadd.f32 %v6087, 1e-05
        %v6104 = vadd.f32 %v6088, 1e-05
        %v6105 = vadd.f32 %v6089, 1e-05
        %v6106 = vrsqrt.pop %v6090
        %v6107 = vrsqrt.pop %v6091
        %v6108 = vrsqrt.pop %v6092
        %v6109 = vrsqrt.pop %v6093
        %v6110 = vrsqrt.pop %v6094
        %v6111 = vrsqrt.pop %v6095
        %v6112 = vrsqrt.pop %v6096
        %v6113 = vrsqrt.pop %v6097
        %v6114 = vrsqrt.pop %v6098
        %v6115 = vrsqrt.pop %v6099
        %v6116 = vrsqrt.pop %v6100
        %v6117 = vrsqrt.pop %v6101
        %v6118 = vrsqrt.pop %v6102
        %v6119 = vrsqrt.pop %v6103
        %v6120 = vrsqrt.pop %v6104
        %v6121 = vrsqrt.pop %v6105
        %v6122 = vsub.f32 %v5928, %v5978
        %v6123 = vsub.f32 %v5929, %v5979
        %v6124 = vsub.f32 %v5930, %v5980
        %v6125 = vsub.f32 %v5931, %v5981
        %v6126 = vsub.f32 %v5932, %v5982
        %v6127 = vsub.f32 %v5933, %v5983
        %v6128 = vsub.f32 %v5934, %v5984
        %v6129 = vsub.f32 %v5935, %v5985
        %v6130 = vsub.f32 %v5936, %v5986
        %v6131 = vsub.f32 %v5937, %v5987
        %v6132 = vsub.f32 %v5938, %v5988
        %v6133 = vsub.f32 %v5939, %v5989
        %v6134 = vsub.f32 %v5940, %v5990
        %v6135 = vsub.f32 %v5941, %v5991
        %v6136 = vsub.f32 %v5942, %v5992
        %v6137 = vsub.f32 %v5943, %v5993
        %v6138 = vmul.f32 %v6122, %v6106
        %v6139 = vmul.f32 %v6123, %v6107
        %v6140 = vmul.f32 %v6124, %v6108
        %v6141 = vmul.f32 %v6125, %v6109
        %v6142 = vmul.f32 %v6126, %v6110
        %v6143 = vmul.f32 %v6127, %v6111
        %v6144 = vmul.f32 %v6128, %v6112
        %v6145 = vmul.f32 %v6129, %v6113
        %v6146 = vmul.f32 %v6130, %v6114
        %v6147 = vmul.f32 %v6131, %v6115
        %v6148 = vmul.f32 %v6132, %v6116
        %v6149 = vmul.f32 %v6133, %v6117
        %v6150 = vmul.f32 %v6134, %v6118
        %v6151 = vmul.f32 %v6135, %v6119
        %v6152 = vmul.f32 %v6136, %v6120
        %v6153 = vmul.f32 %v6137, %v6121
        %v6155 = vlaneseq
        %v6156 = vshrl.u32 %v6155, 7
        %v6157 = vsub.s32 0, %v6156
        %v6158 = vrot.slane %v5944, %v6157
        %v6160 = vmul.f32 %v6138, %v6158
        %v6161 = vmul.f32 %v6139, %v6158
        %v6162 = vmul.f32 %v6140, %v6158
        %v6163 = vmul.f32 %v6141, %v6158
        %v6164 = vmul.f32 %v6142, %v6158
        %v6165 = vmul.f32 %v6143, %v6158
        %v6166 = vmul.f32 %v6144, %v6158
        %v6167 = vmul.f32 %v6145, %v6158
        %v6168 = vmul.f32 %v6146, %v6158
        %v6169 = vmul.f32 %v6147, %v6158
        %v6170 = vmul.f32 %v6148, %v6158
        %v6171 = vmul.f32 %v6149, %v6158
        %v6172 = vmul.f32 %v6150, %v6158
        %v6173 = vmul.f32 %v6151, %v6158
        %v6174 = vmul.f32 %v6152, %v6158
        %v6175 = vmul.f32 %v6153, %v6158
        %v6177 = vlaneseq
        %v6178 = vshrl.u32 %v6177, 7
        %v6179 = vsub.s32 0, %v6178
        %v6180 = vrot.slane %v5945, %v6179
        %v6182 = vadd.f32 %v6160, %v6180
        %v6183 = vadd.f32 %v6161, %v6180
        %v6184 = vadd.f32 %v6162, %v6180
        %v6185 = vadd.f32 %v6163, %v6180
        %v6186 = vadd.f32 %v6164, %v6180
        %v6187 = vadd.f32 %v6165, %v6180
        %v6188 = vadd.f32 %v6166, %v6180
        %v6189 = vadd.f32 %v6167, %v6180
        %v6190 = vadd.f32 %v6168, %v6180
        %v6191 = vadd.f32 %v6169, %v6180
        %v6192 = vadd.f32 %v6170, %v6180
        %v6193 = vadd.f32 %v6171, %v6180
        %v6194 = vadd.f32 %v6172, %v6180
        %v6195 = vadd.f32 %v6173, %v6180
        %v6196 = vadd.f32 %v6174, %v6180
        %v6197 = vadd.f32 %v6175, %v6180
        %v6198 = vpack.c.bf16 %v6183, %v6182
        %v6199 = vpack.c.bf16 %v6185, %v6184
        %v6200 = vpack.c.bf16 %v6187, %v6186
        %v6201 = vpack.c.bf16 %v6189, %v6188
        %v6202 = vpack.c.bf16 %v6191, %v6190
        %v6203 = vpack.c.bf16 %v6193, %v6192
        %v6204 = vpack.c.bf16 %v6195, %v6194
        %v6205 = vpack.c.bf16 %v6197, %v6196
        %v6206 = vld [vmem:[%s734] sm:$0xff]
        %v6207 = vld [vmem:[%s734 + $0x8] sm:$0xff]
        %v6208 = vld [vmem:[%s734 + $0x10] sm:$0xff]
        %v6209 = vld [vmem:[%s734 + $0x18] sm:$0xff]
        %v6210 = vld [vmem:[%s734 + $0x20] sm:$0xff]
        %v6211 = vld [vmem:[%s734 + $0x28] sm:$0xff]
        %v6212 = vld [vmem:[%s734 + $0x30] sm:$0xff]
        %v6213 = vld [vmem:[%s734 + $0x38] sm:$0xff]
        %v6214 = vld [vmem:[%s734 + $0x40] sm:$0xff]
        %v6215 = vld [vmem:[%s734 + $0x48] sm:$0xff]
        %v6216 = vld [vmem:[%s734 + $0x50] sm:$0xff]
        %v6217 = vld [vmem:[%s734 + $0x58] sm:$0xff]
        %v6218 = vld [vmem:[%s734 + $0x60] sm:$0xff]
        %v6219 = vld [vmem:[%s734 + $0x68] sm:$0xff]
        %v6220 = vld [vmem:[%s734 + $0x70] sm:$0xff]
        %v6221 = vld [vmem:[%s734 + $0x78] sm:$0xff]
        %v6222 = vld [vmem:[%s738] sm:$0x3]
        %v6224 = vlaneseq
        %v6225 = vshrl.u32 %v6224, 7
        %v6226 = vsub.s32 0, %v6225
        %v6227 = vrot.slane %v6222, %v6226
        %v6228 = vlaneseq
        %v6229 = vshrl.u32 %v6228, 7
        %v6230 = vsub.s32 1, %v6229
        %v6231 = vrot.slane %v6222, %v6230
        %v6250 = vunpack.c.l.b16 %v6206
        %v6251 = vunpack.c.h.b16 %v6206
        %v6252 = vunpack.c.l.b16 %v6207
        %v6253 = vunpack.c.h.b16 %v6207
        %v6254 = vunpack.c.l.b16 %v6208
        %v6255 = vunpack.c.h.b16 %v6208
        %v6256 = vunpack.c.l.b16 %v6209
        %v6257 = vunpack.c.h.b16 %v6209
        %v6258 = vunpack.c.l.b16 %v6210
        %v6259 = vunpack.c.h.b16 %v6210
        %v6260 = vunpack.c.l.b16 %v6211
        %v6261 = vunpack.c.h.b16 %v6211
        %v6262 = vunpack.c.l.b16 %v6212
        %v6263 = vunpack.c.h.b16 %v6212
        %v6264 = vunpack.c.l.b16 %v6213
        %v6265 = vunpack.c.h.b16 %v6213
        %v6266 = vunpack.c.l.b16 %v6214
        %v6267 = vunpack.c.h.b16 %v6214
        %v6268 = vunpack.c.l.b16 %v6215
        %v6269 = vunpack.c.h.b16 %v6215
        %v6270 = vunpack.c.l.b16 %v6216
        %v6271 = vunpack.c.h.b16 %v6216
        %v6272 = vunpack.c.l.b16 %v6217
        %v6273 = vunpack.c.h.b16 %v6217
        %v6274 = vunpack.c.l.b16 %v6218
        %v6275 = vunpack.c.h.b16 %v6218
        %v6276 = vunpack.c.l.b16 %v6219
        %v6277 = vunpack.c.h.b16 %v6219
        %v6278 = vunpack.c.l.b16 %v6220
        %v6279 = vunpack.c.h.b16 %v6220
        %v6280 = vunpack.c.l.b16 %v6221
        %v6281 = vunpack.c.h.b16 %v6221
        %v6282 = vpack.c.b16 %v6252, %v6250
        %v6283 = vpack.c.b16 %v6253, %v6251
        %v6284 = vpack.c.b16 %v6256, %v6254
        %v6285 = vpack.c.b16 %v6257, %v6255
        %v6286 = vpack.c.b16 %v6260, %v6258
        %v6287 = vpack.c.b16 %v6261, %v6259
        %v6288 = vpack.c.b16 %v6264, %v6262
        %v6289 = vpack.c.b16 %v6265, %v6263
        %v6290 = vpack.c.b16 %v6268, %v6266
        %v6291 = vpack.c.b16 %v6269, %v6267
        %v6292 = vpack.c.b16 %v6272, %v6270
        %v6293 = vpack.c.b16 %v6273, %v6271
        %v6294 = vpack.c.b16 %v6276, %v6274
        %v6295 = vpack.c.b16 %v6277, %v6275
        %v6296 = vpack.c.b16 %v6280, %v6278
        %v6297 = vpack.c.b16 %v6281, %v6279
        %6314 = vmatprep.subr.bf16.mxu0 %v6283
        %6315 = vmatpush1.bf16.msra.mxu0 %v6282
        %6316 = vmatprep.subr.bf16.mxu0 %v6285
        %6317 = vmatpush1.bf16.msra.mxu0 %v6284
        %6318 = vmatprep.subr.bf16.mxu0 %v6287
        %6319 = vmatpush1.bf16.msra.mxu0 %v6286
        %6320 = vmatprep.subr.bf16.mxu0 %v6289
        %6321 = vmatpush1.bf16.msra.mxu0 %v6288
        %6322 = vmatprep.subr.bf16.mxu0 %v6291
        %6323 = vmatpush1.bf16.msra.mxu0 %v6290
        %6324 = vmatprep.subr.bf16.mxu0 %v6293
        %6325 = vmatpush1.bf16.msra.mxu0 %v6292
        %6326 = vmatprep.subr.bf16.mxu0 %v6295
        %6327 = vmatpush1.bf16.msra.mxu0 %v6294
        %6328 = vmatprep.subr.bf16.mxu0 %v6297
        %6329 = vmatpush1.bf16.msra.mxu0 %v6296
        %6330 = vmatprep.subr.bf16.mxu0 0
        %6331 = vmatpush1.bf16.msra.mxu0 0
        %6332 = vmatprep.subr.bf16.mxu0 0
        %6333 = vmatpush1.bf16.msra.mxu0 0
        %6334 = vmatprep.subr.bf16.mxu0 0
        %6335 = vmatpush1.bf16.msra.mxu0 0
        %6336 = vmatprep.subr.bf16.mxu0 0
        %6337 = vmatpush1.bf16.msra.mxu0 0
        %6338 = vmatprep.subr.bf16.mxu0 0
        %6339 = vmatpush1.bf16.msra.mxu0 0
        %6340 = vmatprep.subr.bf16.mxu0 0
        %6341 = vmatpush1.bf16.msra.mxu0 0
        %6342 = vmatprep.subr.bf16.mxu0 0
        %6343 = vmatpush1.bf16.msra.mxu0 0
        %6344 = vmatprep.subr.bf16.mxu0 0
        %6345 = vmatpush1.bf16.msra.mxu0 0
        %6346 = vmatprep.mubr.bf16.mxu0 0
        %6347 = vmatmul.mubr.bf16.gmra.mrb[0].mxu0 %v6198
        %v6348 = vpop.f32.mrb[0].mxu0
        %v6349 = vadd.f32 %v6227, %v6348
        %v6350 = vpop.f32.mrb[0].mxu0
        %v6351 = vadd.f32 %v6231, %v6350
        %v6352 = vpop.f32.mrb[0].mxu0
        %v6353 = vadd.f32 %v6227, %v6352
        %v6354 = vpop.f32.mrb[0].mxu0
        %v6355 = vadd.f32 %v6231, %v6354
        %6356 = vmatprep.mubr.bf16.mxu0 0
        %6357 = vmatmul.mubr.bf16.gmra.mrb[0].mxu0 %v6199
        %v6358 = vpop.f32.mrb[0].mxu0
        %v6359 = vadd.f32 %v6227, %v6358
        %v6360 = vpop.f32.mrb[0].mxu0
        %v6361 = vadd.f32 %v6231, %v6360
        %v6362 = vpop.f32.mrb[0].mxu0
        %v6363 = vadd.f32 %v6227, %v6362
        %v6364 = vpop.f32.mrb[0].mxu0
        %v6365 = vadd.f32 %v6231, %v6364
        %6366 = vmatprep.mubr.bf16.mxu0 0
        %6367 = vmatmul.mubr.bf16.gmra.mrb[0].mxu0 %v6200
        %v6368 = vpop.f32.mrb[0].mxu0
        %v6369 = vadd.f32 %v6227, %v6368
        %v6370 = vpop.f32.mrb[0].mxu0
        %v6371 = vadd.f32 %v6231, %v6370
        %v6372 = vpop.f32.mrb[0].mxu0
        %v6373 = vadd.f32 %v6227, %v6372
        %v6374 = vpop.f32.mrb[0].mxu0
        %v6375 = vadd.f32 %v6231, %v6374
        %6376 = vmatprep.mubr.bf16.mxu0 0
        %6377 = vmatmul.mubr.bf16.gmra.mrb[0].mxu0 %v6201
        %v6378 = vpop.f32.mrb[0].mxu0
        %v6379 = vadd.f32 %v6227, %v6378
        %v6380 = vpop.f32.mrb[0].mxu0
        %v6381 = vadd.f32 %v6231, %v6380
        %v6382 = vpop.f32.mrb[0].mxu0
        %v6383 = vadd.f32 %v6227, %v6382
        %v6384 = vpop.f32.mrb[0].mxu0
        %v6385 = vadd.f32 %v6231, %v6384
        %6386 = vmatprep.mubr.bf16.mxu0 0
        %6387 = vmatmul.mubr.bf16.gmra.mrb[0].mxu0 %v6202
        %v6388 = vpop.f32.mrb[0].mxu0
        %v6389 = vadd.f32 %v6227, %v6388
        %v6390 = vpop.f32.mrb[0].mxu0
        %v6391 = vadd.f32 %v6231, %v6390
        %v6392 = vpop.f32.mrb[0].mxu0
        %v6393 = vadd.f32 %v6227, %v6392
        %v6394 = vpop.f32.mrb[0].mxu0
        %v6395 = vadd.f32 %v6231, %v6394
        %6396 = vmatprep.mubr.bf16.mxu0 0
        %6397 = vmatmul.mubr.bf16.gmra.mrb[0].mxu0 %v6203
        %v6398 = vpop.f32.mrb[0].mxu0
        %v6399 = vadd.f32 %v6227, %v6398
        %v6400 = vpop.f32.mrb[0].mxu0
        %v6401 = vadd.f32 %v6231, %v6400
        %v6402 = vpop.f32.mrb[0].mxu0
        %v6403 = vadd.f32 %v6227, %v6402
        %v6404 = vpop.f32.mrb[0].mxu0
        %v6405 = vadd.f32 %v6231, %v6404
        %6406 = vmatprep.mubr.bf16.mxu0 0
        %6407 = vmatmul.mubr.bf16.gmra.mrb[0].mxu0 %v6204
        %v6408 = vpop.f32.mrb[0].mxu0
        %v6409 = vadd.f32 %v6227, %v6408
        %v6410 = vpop.f32.mrb[0].mxu0
        %v6411 = vadd.f32 %v6231, %v6410
        %v6412 = vpop.f32.mrb[0].mxu0
        %v6413 = vadd.f32 %v6227, %v6412
        %v6414 = vpop.f32.mrb[0].mxu0
        %v6415 = vadd.f32 %v6231, %v6414
        %6416 = vmatprep.mubr.bf16.mxu0 0
        %6417 = vmatmul.mubr.bf16.gmra.mrb[0].mxu0 %v6205
        %v6418 = vpop.f32.mrb[0].mxu0
        %v6419 = vadd.f32 %v6227, %v6418
        %v6420 = vpop.f32.mrb[0].mxu0
        %v6421 = vadd.f32 %v6231, %v6420
        %v6422 = vpop.f32.mrb[0].mxu0
        %v6423 = vadd.f32 %v6227, %v6422
        %v6424 = vpop.f32.mrb[0].mxu0
        %v6425 = vadd.f32 %v6231, %v6424
        %6426 = vdwg.mxu0
        %v6427 = vmul.f32 %v6349, 0.5
        %v6428 = vmul.f32 %v6351, 0.5
        %v6429 = vmul.f32 %v6353, 0.5
        %v6430 = vmul.f32 %v6355, 0.5
        %v6431 = vmul.f32 %v6359, 0.5
        %v6432 = vmul.f32 %v6361, 0.5
        %v6433 = vmul.f32 %v6363, 0.5
        %v6434 = vmul.f32 %v6365, 0.5
        %v6435 = vmul.f32 %v6369, 0.5
        %v6436 = vmul.f32 %v6371, 0.5
        %v6437 = vmul.f32 %v6373, 0.5
        %v6438 = vmul.f32 %v6375, 0.5
        %v6439 = vmul.f32 %v6379, 0.5
        %v6440 = vmul.f32 %v6381, 0.5
        %v6441 = vmul.f32 %v6383, 0.5
        %v6442 = vmul.f32 %v6385, 0.5
        %v6443 = vmul.f32 %v6389, 0.5
        %v6444 = vmul.f32 %v6391, 0.5
        %v6445 = vmul.f32 %v6393, 0.5
        %v6446 = vmul.f32 %v6395, 0.5
        %v6447 = vmul.f32 %v6399, 0.5
        %v6448 = vmul.f32 %v6401, 0.5
        %v6449 = vmul.f32 %v6403, 0.5
        %v6450 = vmul.f32 %v6405, 0.5
        %v6451 = vmul.f32 %v6409, 0.5
        %v6452 = vmul.f32 %v6411, 0.5
        %v6453 = vmul.f32 %v6413, 0.5
        %v6454 = vmul.f32 %v6415, 0.5
        %v6455 = vmul.f32 %v6419, 0.5
        %v6456 = vmul.f32 %v6421, 0.5
        %v6457 = vmul.f32 %v6423, 0.5
        %v6458 = vmul.f32 %v6425, 0.5
        %v6459 = vmul.f32 %v6349, 0.70710677
        %v6460 = vmul.f32 %v6351, 0.70710677
        %v6461 = vmul.f32 %v6353, 0.70710677
        %v6462 = vmul.f32 %v6355, 0.70710677
        %v6463 = vmul.f32 %v6359, 0.70710677
        %v6464 = vmul.f32 %v6361, 0.70710677
        %v6465 = vmul.f32 %v6363, 0.70710677
        %v6466 = vmul.f32 %v6365, 0.70710677
        %v6467 = vmul.f32 %v6369, 0.70710677
        %v6468 = vmul.f32 %v6371, 0.70710677
        %v6469 = vmul.f32 %v6373, 0.70710677
        %v6470 = vmul.f32 %v6375, 0.70710677
        %v6471 = vmul.f32 %v6379, 0.70710677
        %v6472 = vmul.f32 %v6381, 0.70710677
        %v6473 = vmul.f32 %v6383, 0.70710677
        %v6474 = vmul.f32 %v6385, 0.70710677
        %v6475 = vmul.f32 %v6389, 0.70710677
        %v6476 = vmul.f32 %v6391, 0.70710677
        %v6477 = vmul.f32 %v6393, 0.70710677
        %v6478 = vmul.f32 %v6395, 0.70710677
        %v6479 = vmul.f32 %v6399, 0.70710677
        %v6480 = vmul.f32 %v6401, 0.70710677
        %v6481 = vmul.f32 %v6403, 0.70710677
        %v6482 = vmul.f32 %v6405, 0.70710677
        %v6483 = vmul.f32 %v6409, 0.70710677
        %v6484 = vmul.f32 %v6411, 0.70710677
        %v6485 = vmul.f32 %v6413, 0.70710677
        %v6486 = vmul.f32 %v6415, 0.70710677
        %v6487 = vmul.f32 %v6419, 0.70710677
        %v6488 = vmul.f32 %v6421, 0.70710677
        %v6489 = vmul.f32 %v6423, 0.70710677
        %v6490 = vmul.f32 %v6425, 0.70710677
        %v6491 = verf.f32.pop %v6459
        %v6492 = verf.f32.pop %v6460
        %v6493 = verf.f32.pop %v6461
        %v6494 = verf.f32.pop %v6462
        %v6495 = verf.f32.pop %v6463
        %v6496 = verf.f32.pop %v6464
        %v6497 = verf.f32.pop %v6465
        %v6498 = verf.f32.pop %v6466
        %v6499 = verf.f32.pop %v6467
        %v6500 = verf.f32.pop %v6468
        %v6501 = verf.f32.pop %v6469
        %v6502 = verf.f32.pop %v6470
        %v6503 = verf.f32.pop %v6471
        %v6504 = verf.f32.pop %v6472
        %v6505 = verf.f32.pop %v6473
        %v6506 = verf.f32.pop %v6474
        %v6507 = verf.f32.pop %v6475
        %v6508 = verf.f32.pop %v6476
        %v6509 = verf.f32.pop %v6477
        %v6510 = verf.f32.pop %v6478
        %v6511 = verf.f32.pop %v6479
        %v6512 = verf.f32.pop %v6480
        %v6513 = verf.f32.pop %v6481
        %v6514 = verf.f32.pop %v6482
        %v6515 = verf.f32.pop %v6483
        %v6516 = verf.f32.pop %v6484
        %v6517 = verf.f32.pop %v6485
        %v6518 = verf.f32.pop %v6486
        %v6519 = verf.f32.pop %v6487
        %v6520 = verf.f32.pop %v6488
        %v6521 = verf.f32.pop %v6489
        %v6522 = verf.f32.pop %v6490
        %v6523 = vadd.f32 %v6491, 1.0
        %v6524 = vadd.f32 %v6492, 1.0
        %v6525 = vadd.f32 %v6493, 1.0
        %v6526 = vadd.f32 %v6494, 1.0
        %v6527 = vadd.f32 %v6495, 1.0
        %v6528 = vadd.f32 %v6496, 1.0
        %v6529 = vadd.f32 %v6497, 1.0
        %v6530 = vadd.f32 %v6498, 1.0
        %v6531 = vadd.f32 %v6499, 1.0
        %v6532 = vadd.f32 %v6500, 1.0
        %v6533 = vadd.f32 %v6501, 1.0
        %v6534 = vadd.f32 %v6502, 1.0
        %v6535 = vadd.f32 %v6503, 1.0
        %v6536 = vadd.f32 %v6504, 1.0
        %v6537 = vadd.f32 %v6505, 1.0
        %v6538 = vadd.f32 %v6506, 1.0
        %v6539 = vadd.f32 %v6507, 1.0
        %v6540 = vadd.f32 %v6508, 1.0
        %v6541 = vadd.f32 %v6509, 1.0
        %v6542 = vadd.f32 %v6510, 1.0
        %v6543 = vadd.f32 %v6511, 1.0
        %v6544 = vadd.f32 %v6512, 1.0
        %v6545 = vadd.f32 %v6513, 1.0
        %v6546 = vadd.f32 %v6514, 1.0
        %v6547 = vadd.f32 %v6515, 1.0
        %v6548 = vadd.f32 %v6516, 1.0
        %v6549 = vadd.f32 %v6517, 1.0
        %v6550 = vadd.f32 %v6518, 1.0
        %v6551 = vadd.f32 %v6519, 1.0
        %v6552 = vadd.f32 %v6520, 1.0
        %v6553 = vadd.f32 %v6521, 1.0
        %v6554 = vadd.f32 %v6522, 1.0
        %v6555 = vmul.f32 %v6427, %v6523
        %v6556 = vmul.f32 %v6428, %v6524
        %v6557 = vmul.f32 %v6429, %v6525
        %v6558 = vmul.f32 %v6430, %v6526
        %v6559 = vmul.f32 %v6431, %v6527
        %v6560 = vmul.f32 %v6432, %v6528
        %v6561 = vmul.f32 %v6433, %v6529
        %v6562 = vmul.f32 %v6434, %v6530
        %v6563 = vmul.f32 %v6435, %v6531
        %v6564 = vmul.f32 %v6436, %v6532
        %v6565 = vmul.f32 %v6437, %v6533
        %v6566 = vmul.f32 %v6438, %v6534
        %v6567 = vmul.f32 %v6439, %v6535
        %v6568 = vmul.f32 %v6440, %v6536
        %v6569 = vmul.f32 %v6441, %v6537
        %v6570 = vmul.f32 %v6442, %v6538
        %v6571 = vmul.f32 %v6443, %v6539
        %v6572 = vmul.f32 %v6444, %v6540
        %v6573 = vmul.f32 %v6445, %v6541
        %v6574 = vmul.f32 %v6446, %v6542
        %v6575 = vmul.f32 %v6447, %v6543
        %v6576 = vmul.f32 %v6448, %v6544
        %v6577 = vmul.f32 %v6449, %v6545
        %v6578 = vmul.f32 %v6450, %v6546
        %v6579 = vmul.f32 %v6451, %v6547
        %v6580 = vmul.f32 %v6452, %v6548
        %v6581 = vmul.f32 %v6453, %v6549
        %v6582 = vmul.f32 %v6454, %v6550
        %v6583 = vmul.f32 %v6455, %v6551
        %v6584 = vmul.f32 %v6456, %v6552
        %v6585 = vmul.f32 %v6457, %v6553
        %v6586 = vmul.f32 %v6458, %v6554
        %v6587 = vpack.c.bf16 %v6557, %v6555
        %v6588 = vpack.c.bf16 %v6558, %v6556
        %v6589 = vpack.c.bf16 %v6561, %v6559
        %v6590 = vpack.c.bf16 %v6562, %v6560
        %v6591 = vpack.c.bf16 %v6565, %v6563
        %v6592 = vpack.c.bf16 %v6566, %v6564
        %v6593 = vpack.c.bf16 %v6569, %v6567
        %v6594 = vpack.c.bf16 %v6570, %v6568
        %v6595 = vpack.c.bf16 %v6573, %v6571
        %v6596 = vpack.c.bf16 %v6574, %v6572
        %v6597 = vpack.c.bf16 %v6577, %v6575
        %v6598 = vpack.c.bf16 %v6578, %v6576
        %v6599 = vpack.c.bf16 %v6581, %v6579
        %v6600 = vpack.c.bf16 %v6582, %v6580
        %v6601 = vpack.c.bf16 %v6585, %v6583
        %v6602 = vpack.c.bf16 %v6586, %v6584
        %v6603 = vld [vmem:[%s615] sm:$0xf]
        %v6604 = vld [vmem:[%s615 + $0x4] sm:$0xf]
        %v6605 = vld [vmem:[%s615 + $0x8] sm:$0xf]
        %v6606 = vld [vmem:[%s615 + $0xc] sm:$0xf]
        %v6607 = vld [vmem:[%s615 + $0x10] sm:$0xf]
        %v6608 = vld [vmem:[%s615 + $0x14] sm:$0xf]
        %v6609 = vld [vmem:[%s615 + $0x18] sm:$0xf]
        %v6610 = vld [vmem:[%s615 + $0x1c] sm:$0xf]
        %v6611 = vld [vmem:[%s615 + $0x20] sm:$0xf]
        %v6612 = vld [vmem:[%s615 + $0x24] sm:$0xf]
        %v6613 = vld [vmem:[%s615 + $0x28] sm:$0xf]
        %v6614 = vld [vmem:[%s615 + $0x2c] sm:$0xf]
        %v6615 = vld [vmem:[%s615 + $0x30] sm:$0xf]
        %v6616 = vld [vmem:[%s615 + $0x34] sm:$0xf]
        %v6617 = vld [vmem:[%s615 + $0x38] sm:$0xf]
        %v6618 = vld [vmem:[%s615 + $0x3c] sm:$0xf]
        %v6619 = vld [vmem:[%s615 + $0x40] sm:$0xf]
        %v6620 = vld [vmem:[%s615 + $0x44] sm:$0xf]
        %v6621 = vld [vmem:[%s615 + $0x48] sm:$0xf]
        %v6622 = vld [vmem:[%s615 + $0x4c] sm:$0xf]
        %v6623 = vld [vmem:[%s615 + $0x50] sm:$0xf]
        %v6624 = vld [vmem:[%s615 + $0x54] sm:$0xf]
        %v6625 = vld [vmem:[%s615 + $0x58] sm:$0xf]
        %v6626 = vld [vmem:[%s615 + $0x5c] sm:$0xf]
        %v6627 = vld [vmem:[%s615 + $0x60] sm:$0xf]
        %v6628 = vld [vmem:[%s615 + $0x64] sm:$0xf]
        %v6629 = vld [vmem:[%s615 + $0x68] sm:$0xf]
        %v6630 = vld [vmem:[%s615 + $0x6c] sm:$0xf]
        %v6631 = vld [vmem:[%s615 + $0x70] sm:$0xf]
        %v6632 = vld [vmem:[%s615 + $0x74] sm:$0xf]
        %v6633 = vld [vmem:[%s615 + $0x78] sm:$0xf]
        %v6634 = vld [vmem:[%s615 + $0x7c] sm:$0xf]
        %v6635 = vld [vmem:[%s623] sm:$0x1]
        %v6637 = vlaneseq
        %v6638 = vshrl.u32 %v6637, 7
        %v6639 = vsub.s32 0, %v6638
        %v6640 = vrot.slane %v6635, %v6639
        %v6674 = vunpack.c.l.b16 %v6603
        %v6675 = vunpack.c.l.b16 %v6604
        %v6676 = vunpack.c.l.b16 %v6605
        %v6677 = vunpack.c.l.b16 %v6606
        %v6678 = vunpack.c.l.b16 %v6607
        %v6679 = vunpack.c.l.b16 %v6608
        %v6680 = vunpack.c.l.b16 %v6609
        %v6681 = vunpack.c.l.b16 %v6610
        %v6682 = vunpack.c.l.b16 %v6611
        %v6683 = vunpack.c.l.b16 %v6612
        %v6684 = vunpack.c.l.b16 %v6613
        %v6685 = vunpack.c.l.b16 %v6614
        %v6686 = vunpack.c.l.b16 %v6615
        %v6687 = vunpack.c.l.b16 %v6616
        %v6688 = vunpack.c.l.b16 %v6617
        %v6689 = vunpack.c.l.b16 %v6618
        %v6690 = vunpack.c.l.b16 %v6619
        %v6691 = vunpack.c.l.b16 %v6620
        %v6692 = vunpack.c.l.b16 %v6621
        %v6693 = vunpack.c.l.b16 %v6622
        %v6694 = vunpack.c.l.b16 %v6623
        %v6695 = vunpack.c.l.b16 %v6624
        %v6696 = vunpack.c.l.b16 %v6625
        %v6697 = vunpack.c.l.b16 %v6626
        %v6698 = vunpack.c.l.b16 %v6627
        %v6699 = vunpack.c.l.b16 %v6628
        %v6700 = vunpack.c.l.b16 %v6629
        %v6701 = vunpack.c.l.b16 %v6630
        %v6702 = vunpack.c.l.b16 %v6631
        %v6703 = vunpack.c.l.b16 %v6632
        %v6704 = vunpack.c.l.b16 %v6633
        %v6705 = vunpack.c.l.b16 %v6634
        %v6706 = vpack.c.b16 %v6675, %v6674
        %v6707 = vpack.c.b16 %v6677, %v6676
        %v6708 = vpack.c.b16 %v6679, %v6678
        %v6709 = vpack.c.b16 %v6681, %v6680
        %v6710 = vpack.c.b16 %v6683, %v6682
        %v6711 = vpack.c.b16 %v6685, %v6684
        %v6712 = vpack.c.b16 %v6687, %v6686
        %v6713 = vpack.c.b16 %v6689, %v6688
        %v6714 = vpack.c.b16 %v6691, %v6690
        %v6715 = vpack.c.b16 %v6693, %v6692
        %v6716 = vpack.c.b16 %v6695, %v6694
        %v6717 = vpack.c.b16 %v6697, %v6696
        %v6718 = vpack.c.b16 %v6699, %v6698
        %v6719 = vpack.c.b16 %v6701, %v6700
        %v6720 = vpack.c.b16 %v6703, %v6702
        %v6721 = vpack.c.b16 %v6705, %v6704
        %6738 = vmatprep.subr.bf16.mxu0 0
        %6739 = vmatpush1.bf16.msra.mxu0 %v6706
        %6740 = vmatprep.subr.bf16.mxu0 0
        %6741 = vmatpush1.bf16.msra.mxu0 %v6707
        %6742 = vmatprep.subr.bf16.mxu0 0
        %6743 = vmatpush1.bf16.msra.mxu0 %v6708
        %6744 = vmatprep.subr.bf16.mxu0 0
        %6745 = vmatpush1.bf16.msra.mxu0 %v6709
        %6746 = vmatprep.subr.bf16.mxu0 0
        %6747 = vmatpush1.bf16.msra.mxu0 %v6710
        %6748 = vmatprep.subr.bf16.mxu0 0
        %6749 = vmatpush1.bf16.msra.mxu0 %v6711
        %6750 = vmatprep.subr.bf16.mxu0 0
        %6751 = vmatpush1.bf16.msra.mxu0 %v6712
        %6752 = vmatprep.subr.bf16.mxu0 0
        %6753 = vmatpush1.bf16.msra.mxu0 %v6713
        %6754 = vmatprep.subr.bf16.mxu0 0
        %6755 = vmatpush1.bf16.msra.mxu0 %v6714
        %6756 = vmatprep.subr.bf16.mxu0 0
        %6757 = vmatpush1.bf16.msra.mxu0 %v6715
        %6758 = vmatprep.subr.bf16.mxu0 0
        %6759 = vmatpush1.bf16.msra.mxu0 %v6716
        %6760 = vmatprep.subr.bf16.mxu0 0
        %6761 = vmatpush1.bf16.msra.mxu0 %v6717
        %6762 = vmatprep.subr.bf16.mxu0 0
        %6763 = vmatpush1.bf16.msra.mxu0 %v6718
        %6764 = vmatprep.subr.bf16.mxu0 0
        %6765 = vmatpush1.bf16.msra.mxu0 %v6719
        %6766 = vmatprep.subr.bf16.mxu0 0
        %6767 = vmatpush1.bf16.msra.mxu0 %v6720
        %6768 = vmatprep.subr.bf16.mxu0 0
        %6769 = vmatpush1.bf16.msra.mxu0 %v6721
        %6770 = vmatprep.mubr.bf16.mxu0 %v6588
        %6771 = vmatmul.mubr.bf16.gmra.mrb[0].mxu0 %v6587
        %v6772 = vpop.f32.mrb[0].mxu0
        %v6773 = vadd.f32 %v6640, %v6772
        %v6774 = vpop.f32.mrb[0].mxu0
        %v6775 = vpop.f32.mrb[0].mxu0
        %v6776 = vadd.f32 %v6640, %v6775
        %v6777 = vpop.f32.mrb[0].mxu0
        %6778 = vmatprep.mubr.bf16.mxu0 %v6590
        %6779 = vmatmul.mubr.bf16.gmra.mrb[0].mxu0 %v6589
        %v6780 = vpop.f32.mrb[0].mxu0
        %v6781 = vadd.f32 %v6640, %v6780
        %v6782 = vpop.f32.mrb[0].mxu0
        %v6783 = vpop.f32.mrb[0].mxu0
        %v6784 = vadd.f32 %v6640, %v6783
        %v6785 = vpop.f32.mrb[0].mxu0
        %6786 = vmatprep.mubr.bf16.mxu0 %v6592
        %6787 = vmatmul.mubr.bf16.gmra.mrb[0].mxu0 %v6591
        %v6788 = vpop.f32.mrb[0].mxu0
        %v6789 = vadd.f32 %v6640, %v6788
        %v6790 = vpop.f32.mrb[0].mxu0
        %v6791 = vpop.f32.mrb[0].mxu0
        %v6792 = vadd.f32 %v6640, %v6791
        %v6793 = vpop.f32.mrb[0].mxu0
        %6794 = vmatprep.mubr.bf16.mxu0 %v6594
        %6795 = vmatmul.mubr.bf16.gmra.mrb[0].mxu0 %v6593
        %v6796 = vpop.f32.mrb[0].mxu0
        %v6797 = vadd.f32 %v6640, %v6796
        %v6798 = vpop.f32.mrb[0].mxu0
        %v6799 = vpop.f32.mrb[0].mxu0
        %v6800 = vadd.f32 %v6640, %v6799
        %v6801 = vpop.f32.mrb[0].mxu0
        %6802 = vmatprep.mubr.bf16.mxu0 %v6596
        %6803 = vmatmul.mubr.bf16.gmra.mrb[0].mxu0 %v6595
        %v6804 = vpop.f32.mrb[0].mxu0
        %v6805 = vadd.f32 %v6640, %v6804
        %v6806 = vpop.f32.mrb[0].mxu0
        %v6807 = vpop.f32.mrb[0].mxu0
        %v6808 = vadd.f32 %v6640, %v6807
        %v6809 = vpop.f32.mrb[0].mxu0
        %6810 = vmatprep.mubr.bf16.mxu0 %v6598
        %6811 = vmatmul.mubr.bf16.gmra.mrb[0].mxu0 %v6597
        %v6812 = vpop.f32.mrb[0].mxu0
        %v6813 = vadd.f32 %v6640, %v6812
        %v6814 = vpop.f32.mrb[0].mxu0
        %v6815 = vpop.f32.mrb[0].mxu0
        %v6816 = vadd.f32 %v6640, %v6815
        %v6817 = vpop.f32.mrb[0].mxu0
        %6818 = vmatprep.mubr.bf16.mxu0 %v6600
        %6819 = vmatmul.mubr.bf16.gmra.mrb[0].mxu0 %v6599
        %v6820 = vpop.f32.mrb[0].mxu0
        %v6821 = vadd.f32 %v6640, %v6820
        %v6822 = vpop.f32.mrb[0].mxu0
        %v6823 = vpop.f32.mrb[0].mxu0
        %v6824 = vadd.f32 %v6640, %v6823
        %v6825 = vpop.f32.mrb[0].mxu0
        %6826 = vmatprep.mubr.bf16.mxu0 %v6602
        %6827 = vmatmul.mubr.bf16.gmra.mrb[0].mxu0 %v6601
        %v6828 = vpop.f32.mrb[0].mxu0
        %v6829 = vadd.f32 %v6640, %v6828
        %v6830 = vpop.f32.mrb[0].mxu0
        %v6831 = vpop.f32.mrb[0].mxu0
        %v6832 = vadd.f32 %v6640, %v6831
        %v6833 = vpop.f32.mrb[0].mxu0
        %6834 = vdwg.mxu0
        %v6835 = vadd.f32 %v5928, %v6773
        %v6836 = vadd.f32 %v5929, %v6776
        %v6837 = vadd.f32 %v5930, %v6781
        %v6838 = vadd.f32 %v5931, %v6784
        %v6839 = vadd.f32 %v5932, %v6789
        %v6840 = vadd.f32 %v5933, %v6792
        %v6841 = vadd.f32 %v5934, %v6797
        %v6842 = vadd.f32 %v5935, %v6800
        %v6843 = vadd.f32 %v5936, %v6805
        %v6844 = vadd.f32 %v5937, %v6808
        %v6845 = vadd.f32 %v5938, %v6813
        %v6846 = vadd.f32 %v5939, %v6816
        %v6847 = vadd.f32 %v5940, %v6821
        %v6848 = vadd.f32 %v5941, %v6824
        %v6849 = vadd.f32 %v5942, %v6829
        %v6850 = vadd.f32 %v5943, %v6832
        %6851 = vst [vmem:[%s706] sm:$0xff] %v6835
        %6852 = vst [vmem:[%s706 + $0x8] sm:$0xff] %v6836
        %6853 = vst [vmem:[%s706 + $0x10] sm:$0xff] %v6837
        %6854 = vst [vmem:[%s706 + $0x18] sm:$0xff] %v6838
        %6855 = vst [vmem:[%s706 + $0x20] sm:$0xff] %v6839
        %6856 = vst [vmem:[%s706 + $0x28] sm:$0xff] %v6840
        %6857 = vst [vmem:[%s706 + $0x30] sm:$0xff] %v6841
        %6858 = vst [vmem:[%s706 + $0x38] sm:$0xff] %v6842
        %6859 = vst [vmem:[%s706 + $0x40] sm:$0xff] %v6843
        %6860 = vst [vmem:[%s706 + $0x48] sm:$0xff] %v6844
        %6861 = vst [vmem:[%s706 + $0x50] sm:$0xff] %v6845
        %6862 = vst [vmem:[%s706 + $0x58] sm:$0xff] %v6846
        %6863 = vst [vmem:[%s706 + $0x60] sm:$0xff] %v6847
        %6864 = vst [vmem:[%s706 + $0x68] sm:$0xff] %v6848
        %6865 = vst [vmem:[%s706 + $0x70] sm:$0xff] %v6849
        %6866 = vst [vmem:[%s706 + $0x78] sm:$0xff] %v6850
        %p6867 = scmp.eq.s32.totalorder %s45, 2
        // Predicated region
        $region93: #{transformer_forward.1} parent=67 // pred_check
          %p6868 = pneg %p6867
        $region94: #{transformer_forward.1} parent=67 // pred_check_branch
          %6870 = sbr.rel (%p6868) target = $region96
        $region95: #{transformer_forward.1} parent=67 // pred_region
          %6871 = vst [vmem:[%s713] sm:$0xff] %v6835
          %6872 = vst [vmem:[%s713 + $0x8] sm:$0xff] %v6836
          %6873 = vst [vmem:[%s713 + $0x10] sm:$0xff] %v6837
          %6874 = vst [vmem:[%s713 + $0x18] sm:$0xff] %v6838
          %6875 = vst [vmem:[%s713 + $0x20] sm:$0xff] %v6839
          %6876 = vst [vmem:[%s713 + $0x28] sm:$0xff] %v6840
          %6877 = vst [vmem:[%s713 + $0x30] sm:$0xff] %v6841
          %6878 = vst [vmem:[%s713 + $0x38] sm:$0xff] %v6842
          %6879 = vst [vmem:[%s713 + $0x40] sm:$0xff] %v6843
          %6880 = vst [vmem:[%s713 + $0x48] sm:$0xff] %v6844
          %6881 = vst [vmem:[%s713 + $0x50] sm:$0xff] %v6845
          %6882 = vst [vmem:[%s713 + $0x58] sm:$0xff] %v6846
          %6883 = vst [vmem:[%s713 + $0x60] sm:$0xff] %v6847
          %6884 = vst [vmem:[%s713 + $0x68] sm:$0xff] %v6848
          %6885 = vst [vmem:[%s713 + $0x70] sm:$0xff] %v6849
          %6886 = vst [vmem:[%s713 + $0x78] sm:$0xff] %v6850
        $region96: #{transformer_forward.1} parent=67 // pred_fallthru
          _
        %s6887 = sand.u32 %s372, 1
        %s6888 = scalar_lea.sflag [#allocation4], %s6887
        %s6889 = sand.u32 %s372, 1
        %s6890 = smul.addr %s6889, 128
        %s6891 = scalar_lea.vmem [#allocation11], %s6890
        %s6892 = sand.u32 %s398, 1
        %s6893 = scalar_lea.sflag [#allocation13], %s6892
        %s6894 = sand.u32 %s398, 1
        %s6895 = smul.addr %s6894, 128
        %s6896 = scalar_lea.vmem [#allocation12], %s6895
        // Predicated region
        $region97: #{transformer_forward.1} parent=67 // pred_check
          %p6897 = pneg %p382
        $region98: #{transformer_forward.1} parent=67 // pred_check_branch
          %6899 = sbr.rel (%p6897) target = $region100
        $region99: #{transformer_forward.1} parent=67 // pred_region
          %s6900 = smul.u32 8, %s44
          %s6902 = ssub.s32 2048, 2048
          %6903 = vsyncadd %s6888, %s6902
          %s6904 = smul.addr %s6900, 2
          %s6905 = smul.addr %s6904, 128
          %s6906 = scalar_lea.hbm %s12, %s6905
          %s6907 = sshll.u32 %s6891, 4
          %s6908 = int_to_ptr.vmem [resolvable:$true] %s6907
          %6913 = dma.vmem_to_hbm [thread:$0]  %s6908, 2048, %s6906, %s6888, 128, 128, 8
        $region100: #{transformer_forward.1} parent=67 // pred_fallthru
          _
        // Predicated region
        $region101: #{transformer_forward.1} parent=67 // pred_check
          %p6914 = pneg %p408
        $region102: #{transformer_forward.1} parent=67 // pred_check_branch
          %6916 = sbr.rel (%p6914) target = $region104
        $region103: #{transformer_forward.1} parent=67 // pred_region
          %s6917 = smul.u32 8, %s44
          %s6919 = ssub.s32 2048, 2048
          %6920 = vsyncadd %s6893, %s6919
          %s6921 = smul.addr %s6917, 2
          %s6922 = smul.addr %s6921, 128
          %s6923 = scalar_lea.hbm %s13, %s6922
          %s6924 = sshll.u32 %s6896, 4
          %s6925 = int_to_ptr.vmem [resolvable:$true] %s6924
          %6930 = dma.vmem_to_hbm [thread:$0]  %s6925, 2048, %s6923, %s6893, 128, 128, 8
        $region104: #{transformer_forward.1} parent=67 // pred_fallthru
          _
      $region68: #{transformer_forward.1} parent=5 // pred_fallthru
        _
      %p6931 = scmp.le.s32.totalorder 2, %s35
      // Predicated region
      $region105: #{transformer_forward.1} parent=5 // pred_check
        %p6932 = pneg %p6931
      $region106: #{transformer_forward.1} parent=5 // pred_check_branch
        %6934 = sbr.rel (%p6932) target = $region108
      $region107: #{transformer_forward.1} parent=5 // pred_region
        %s6935 = ssub.s32 %s35, 2
        // Predicated region
        $region109: #{transformer_forward.1} parent=107 // pred_check
          %p6936 = pneg %p388
        $region110: #{transformer_forward.1} parent=107 // pred_check_branch
          %6938 = sbr.rel (%p6936) target = $region112
        $region111: #{transformer_forward.1} parent=107 // pred_region
          %s6939 = sand.u32 %s373, 1
          %s6940 = scalar_lea.sflag [#allocation4], %s6939
          %s6941 = sand.u32 %s373, 1
          %s6942 = smul.addr %s6941, 128
          %s6943 = scalar_lea.vmem [#allocation11], %s6942
          %6944 = dma.done %s6940, 2048
        $region112: #{transformer_forward.1} parent=107 // pred_fallthru
          _
        // Predicated region
        $region113: #{transformer_forward.1} parent=107 // pred_check
          %p6945 = pneg %p414
        $region114: #{transformer_forward.1} parent=107 // pred_check_branch
          %6947 = sbr.rel (%p6945) target = $region116
        $region115: #{transformer_forward.1} parent=107 // pred_region
          %s6948 = sand.u32 %s399, 1
          %s6949 = scalar_lea.sflag [#allocation13], %s6948
          %s6950 = sand.u32 %s399, 1
          %s6951 = smul.addr %s6950, 128
          %s6952 = scalar_lea.vmem [#allocation12], %s6951
          %6953 = dma.done %s6949, 2048
        $region116: #{transformer_forward.1} parent=107 // pred_fallthru
          _
      $region108: #{transformer_forward.1} parent=5 // pred_fallthru
        _
    $region6: #{transformer_forward.1} parent=1 // loop_footer
      %s39 = sadd.s32 1, %s35
    $region7: #{transformer_forward.1} parent=1 // loop_footer_branch
      %34 = sbr.rel target = $region3
    $region8: #{transformer_forward.1} parent=1 // loop_exit
      _
    %6954 = vsyncpa [#allocation3], 1
    %s6955 = scalar_lea.sflag [#allocation3], 1
    %6956 = vsyncpa %s6955, 1
    %6957 = vsyncpa [#allocation6], 1
    %s6958 = scalar_lea.sflag [#allocation6], 1
    %6959 = vsyncpa %s6958, 1
    %6960 = vsyncpa [#allocation9], 1
    %s6961 = scalar_lea.sflag [#allocation9], 1
    %6962 = vsyncpa %s6961, 1
    %6963 = vsyncpa [#allocation4], 1
    %s6964 = scalar_lea.sflag [#allocation4], 1
    %6965 = vsyncpa %s6964, 1
    %6966 = vsyncpa [#allocation13], 1
    %s6967 = scalar_lea.sflag [#allocation13], 1
    %6968 = vsyncpa %s6967, 1

</llo_original>
